<compile_context>
chip_gen: v7x
topology: tpu7x:2x2x1
jax: 0.10.0
libtpu: 0.0.40
codegen_flags: <defaults>
</compile_context>

<pallas_src>
import functools

import jax
import jax.numpy as jnp
from jax import lax
from jax.experimental import pallas as pl
from jax.experimental.pallas import tpu as pltpu

K = 4        # ConvTranspose2d kernel_size
STRIDE = 2   # ConvTranspose2d stride
PAD = 1      # ConvTranspose2d padding
EPS = 1e-5   # InstanceNorm2d eps (PyTorch default)
CI_FOLD_MAX = 128   # CI below this -> folded (K=4*CI) dot; else per-tap K=CI dots

# Polyphase tap selection for ConvTranspose2d(k=4, s=2, p=1):
# output row 2r   = xpad[r]  *w[kh=3] + xpad[r+1]*w[kh=1]   (parity dy=0)
# output row 2r+1 = xpad[r+1]*w[kh=2] + xpad[r+2]*w[kh=0]   (parity dy=1)
# where xpad is the UNdilated input zero-padded by 1.  Same along width.
_TAPS = ((3, 1), (2, 0))                      # _TAPS[parity][offset] -> kernel tap
_OFFS = ((0, 0), (0, 1), (1, 0), (1, 1))      # (p, q) tap offsets, tap index = 2p+q


# ---------------------------------------------------------------------------
# activations
# ---------------------------------------------------------------------------
def _mish_in_kernel(x):
    # mish(x) = x * tanh(softplus(x)) = x * (1 - 2 / ((1+e^x)^2 + 1))
    # single exp + EUP approx reciprocal (clamp avoids inf; exact limit anyway)
    t = 1.0 + jnp.exp(jnp.minimum(x, 30.0))
    return x * (1.0 - 2.0 * pl.reciprocal(t * t + 1.0, approx=True))


def _leaky_in_kernel(x):
    return jnp.where(x >= 0.0, x, 0.01 * x)   # nn.LeakyReLU default slope


def _mish_ref(x):
    sp = jnp.log1p(jnp.exp(-jnp.abs(x))) + jnp.maximum(x, 0.0)
    return x * jnp.tanh(sp)


def _leaky_ref(x):
    return jnp.where(x >= 0.0, x, 0.01 * x)


# ---------------------------------------------------------------------------
# Kernel 1: polyphase ConvTranspose2d + bias + activation + partial IN stats
# ---------------------------------------------------------------------------
def _conv_act_stats_kernel(x_ref, w_ref, b_ref, y_ref, st_ref, *,
                           th, wdim, ci, co, activation, per_tap):
    # x_ref:  (1, H+2, W+2, CI)     bf16, zero-padded input, resident per batch
    # w_ref:  per_tap: (4, 4, CI, CO)   else folded: (4, 4*CI, CO)   bf16
    # b_ref:  (1, CO)               f32 conv bias
    # y_ref:  (1, TH, 2, W, 2*CO)   bf16 pre-norm activation, interleave-free layout
    # st_ref: (1, 1, 2, CO)         f32 per-tile [sum; sum of squares]
    act = _mish_in_kernel if activation == 'mish' else _leaky_in_kernel
    j = pl.program_id(1)
    row0 = j * th                                  # first input row of this tile
    bias = b_ref[...]                              # (1, CO)

    s1 = jnp.zeros((1, co), jnp.float32)
    s2 = jnp.zeros((1, co), jnp.float32)

    for dy in range(2):                            # output row parity
        halves = []
        for dx in range(2):                        # output col parity
            par = 2 * dy + dx
            if per_tap:
                # 4 accumulated dots of K=CI (MXU-friendly when CI >= 128)
                acc = None
                for t, (p, q) in enumerate(_OFFS):
                    xs = x_ref[0, pl.ds(row0 + dy + p, th), dx + q:dx + q + wdim, :]
                    d = jnp.dot(xs.reshape(th * wdim, ci), w_ref[par, t],
                                preferred_element_type=jnp.float32)
                    acc = d if acc is None else acc + d
            else:
                # small CI: fold 2x2 taps into the contraction dim (K = 4*CI)
                taps = [x_ref[0, pl.ds(row0 + dy + p, th), dx + q:dx + q + wdim, :]
                        for (p, q) in _OFFS]
                patch = jnp.concatenate(taps, axis=-1).reshape(th * wdim, 4 * ci)
                acc = jnp.dot(patch, w_ref[par], preferred_element_type=jnp.float32)

            yv = act(acc + bias)                    # (TH*W, CO) f32
            s1 = s1 + jnp.sum(yv, axis=0, keepdims=True)
            s2 = s2 + jnp.sum(yv * yv, axis=0, keepdims=True)
            halves.append(yv)

        # lane concat (dx interleave folded into the lane axis) + layout-preserving
        # split of the sublane axis; row parity handled by the array layout (dim 2).
        row = jnp.concatenate(halves, axis=-1).reshape(th, wdim, 2 * co)
        y_ref[0, :, dy, :, :] = row.astype(y_ref.dtype)

    st_ref[0, 0, :, :] = jnp.concatenate([s1, s2], axis=0)   # (2, CO)


# ---------------------------------------------------------------------------
# Kernel 2: apply InstanceNorm + AdaIN affine (pure elementwise)
# ---------------------------------------------------------------------------
def _adain_apply_kernel(y_ref, ss_ref, o_ref):
    # y_ref:  (1, TH, 2, W, 2*CO)  bf16 pre-norm activation
    # ss_ref: (1, 2, 2*CO)         f32 [scale; shift] (channel-tiled x2)
    # o_ref:  (1, TH, 2, W, 2*CO)  bf16 (intermediate layers) or f32 (final)
    scale = ss_ref[0, 0:1, :]
    shift = ss_ref[0, 1:2, :]
    o_ref[...] = (y_ref[...].astype(jnp.float32) * scale + shift).astype(o_ref.dtype)


# ---------------------------------------------------------------------------
# wrapper glue: weight packing, tiling choice, pallas_call plumbing
# ---------------------------------------------------------------------------
def _pack_folded_weight(w_pt):
    """PyTorch ConvT weight (CI, CO, 4, 4) -> (4, 4*CI, CO) folded parity weights."""
    parts = []
    for dy in range(2):
        for dx in range(2):
            sub = [w_pt[:, :, _TAPS[dy][p], _TAPS[dx][q]] for (p, q) in _OFFS]
            parts.append(jnp.concatenate(sub, axis=0))       # (4*CI, CO)
    return jnp.stack(parts, axis=0)                          # (4, 4*CI, CO)


def _pack_per_tap_weight(w_pt):
    """PyTorch ConvT weight (CI, CO, 4, 4) -> (4, 4, CI, CO) per-tap parity weights."""
    parts = []
    for dy in range(2):
        for dx in range(2):
            taps = [w_pt[:, :, _TAPS[dy][p], _TAPS[dx][q]] for (p, q) in _OFFS]
            parts.append(jnp.stack(taps, axis=0))             # (4, CI, CO)
    return jnp.stack(parts, axis=0)                           # (4, 4, CI, CO)


@functools.lru_cache(maxsize=None)
def _vmem_limit_bytes():
    cap = 64 * 1024 * 1024                     # conservative fallback (v7x-safe)
    try:
        cap = int(pltpu.get_tpu_info().vmem_capacity_bytes)
    except Exception:
        pass
    # ~48 MiB on v7x (64 MiB physical), ~96 MiB on v5e/v6e (128 MiB physical)
    return int(min(cap * 3 // 4, 100 * 1024 * 1024))


def _choose_tile_rows(H, W, CI, CO, budget, cap=None):
    """Largest row tile TH (divides H; halving only) whose VMEM estimate fits."""
    def need(th):
        out_tile = th * 2 * W * 2 * CO * 2            # bf16 (1,TH,2,W,2CO) block
        live_f32 = 3 * th * W * 2 * CO * 4            # kernel-1 f32 intermediates
        resident = 2 * (H + 2) * (W + 2) * CI * 2     # double-buffered padded input
        weights = 2 * 4 * 4 * CI * CO * 2
        return 4 * out_tile + live_f32 + resident + weights
    th = H
    if cap is not None:
        while th > cap and th % 2 == 0:
            th //= 2
    while need(th) > budget and th > 8 and th % 2 == 0:
        th //= 2
    return th


def deconv_act_adain_layer(x_nhwc, w_ct, b_ct, gamma_beta, activation, *,
                           out_dtype, ci_fold_max=CI_FOLD_MAX, max_tile_rows=None):
    """Fused ConvTranspose2d(4,2,1) -> activation -> InstanceNorm2d -> AdaIN."""
    B, H, W, CI = x_nhwc.shape
    CO = w_ct.shape[1]
    per_tap = CI >= ci_fold_max

    vmem = _vmem_limit_bytes()
    TH = _choose_tile_rows(H, W, CI, CO, budget=vmem // 2, cap=max_tile_rows)
    nH = H // TH

    xpad = jnp.pad(x_nhwc, ((0, 0), (1, 1), (1, 1), (0, 0))).astype(jnp.bfloat16)
    w_all = (_pack_per_tap_weight(w_ct) if per_tap
             else _pack_folded_weight(w_ct)).astype(jnp.bfloat16)
    bias = b_ct.reshape(1, CO).astype(jnp.float32)

    cparams = pltpu.CompilerParams(
        dimension_semantics=("parallel", "parallel"),
        vmem_limit_bytes=vmem)

    # ---- pass 1: conv + bias + act + per-tile partial stats --------------------
    kern1 = functools.partial(_conv_act_stats_kernel, th=TH, wdim=W, ci=CI, co=CO,
                              activation=activation, per_tap=per_tap)
    y, st = pl.pallas_call(
        kern1,
        out_shape=(jax.ShapeDtypeStruct((B, H, 2, W, 2 * CO), jnp.bfloat16),
                   jax.ShapeDtypeStruct((B, nH, 2, CO), jnp.float32)),
        grid=(B, nH),
        in_specs=[
            pl.BlockSpec((1, H + 2, W + 2, CI), lambda n, j: (n, 0, 0, 0)),
            pl.BlockSpec(w_all.shape, lambda n, j: (0,) * w_all.ndim),
            pl.BlockSpec((1, CO), lambda n, j: (0, 0)),
        ],
        out_specs=[
            pl.BlockSpec((1, TH, 2, W, 2 * CO), lambda n, j: (n, j, 0, 0, 0)),
            pl.BlockSpec((1, 1, 2, CO), lambda n, j: (n, j, 0, 0)),
        ],
        compiler_params=cparams,
    )(xpad, w_all, bias)

    # ---- tiny stats finalize + AdaIN affine (pure XLA, (B, CO) sized) ----------
    s1 = jnp.sum(st[:, :, 0, :], axis=1)                     # (B, CO)
    s2 = jnp.sum(st[:, :, 1, :], axis=1)
    n_px = 4.0 * H * W
    mean = s1 / n_px
    var = jnp.maximum(s2 / n_px - mean * mean, 0.0)
    inv_std = lax.rsqrt(var + EPS)
    gamma = gamma_beta[:, :CO]
    beta = gamma_beta[:, CO:]
    scale = (1.0 + gamma) * inv_std
    shift = beta - mean * scale
    ss = jnp.stack([jnp.concatenate([scale, scale], axis=-1),
                    jnp.concatenate([shift, shift], axis=-1)],
                   axis=1).astype(jnp.float32)               # (B, 2, 2*CO)

    # ---- pass 2: apply scale/shift, write bf16 (or f32 on the final layer) -----
    out = pl.pallas_call(
        _adain_apply_kernel,
        out_shape=jax.ShapeDtypeStruct((B, H, 2, W, 2 * CO), out_dtype),
        grid=(B, nH),
        in_specs=[
            pl.BlockSpec((1, TH, 2, W, 2 * CO), lambda n, j: (n, j, 0, 0, 0)),
            pl.BlockSpec((1, 2, 2 * CO), lambda n, j: (n, 0, 0)),
        ],
        out_specs=pl.BlockSpec((1, TH, 2, W, 2 * CO), lambda n, j: (n, j, 0, 0, 0)),
        compiler_params=cparams,
    )(y, ss)

    # (B, H, 2, W, 2*CO) -> (B, 2H, 2W, CO): pure row-major regrouping (free)
    return out.reshape(B, 2 * H, 2 * W, CO)


def init_params(key, l, filters, latent_dim):
    """Deterministic synthetic parameters matching PyTorch module shapes."""
    params = []
    for i in range(l):
        ci, co = filters[i], filters[i + 1]
        key, k1, k2, k3, k4 = jax.random.split(key, 5)
        w_ct = jax.random.normal(k1, (ci, co, K, K), jnp.float32) * 0.1   # ConvT weight
        b_ct = jax.random.normal(k2, (co,), jnp.float32) * 0.1            # ConvT bias
        w_fc = jax.random.normal(k3, (2 * co, latent_dim), jnp.float32) * 0.1
        b_fc = jax.random.normal(k4, (2 * co,), jnp.float32) * 0.1
        params.append((w_ct, b_ct, w_fc, b_fc))
    return params


def loop_deconv_forward(params, x_nchw, s, activation='mish',
                        ci_fold_max=CI_FOLD_MAX, max_tile_rows=None):
    """Equivalent of loop_deconv.forward(x, l) where `s` is the style latent `l`."""
    x = jnp.transpose(x_nchw, (0, 2, 3, 1))                  # NCHW -> NHWC
    nl = len(params)
    for i, (w_ct, b_ct, w_fc, b_fc) in enumerate(params):
        gb = (jnp.dot(s, w_fc.T) + b_fc).astype(jnp.float32)  # hoisted AdaIN FC
        out_dtype = jnp.float32 if i == nl - 1 else jnp.bfloat16
        x = deconv_act_adain_layer(x, w_ct, b_ct, gb, activation,
                                   out_dtype=out_dtype,
                                   ci_fold_max=ci_fold_max,
                                   max_tile_rows=max_tile_rows)
    return jnp.transpose(x.astype(jnp.float32), (0, 3, 1, 2))  # NHWC -> NCHW


# ---------------------------------------------------------------------------
# pure-JAX f32 reference (dilated-conv formulation) for a correctness check
# ---------------------------------------------------------------------------
def loop_deconv_reference(params, x_nchw, s, activation='mish'):
    act = _mish_ref if activation == 'mish' else _leaky_ref
    x = jnp.transpose(x_nchw, (0, 2, 3, 1))
    for (w_ct, b_ct, w_fc, b_fc) in params:
        w_conv = jnp.transpose(w_ct[:, :, ::-1, ::-1], (2, 3, 0, 1))   # (K,K,CI,CO)
        pad = K - 1 - PAD
        y = lax.conv_general_dilated(
            x, w_conv, window_strides=(1, 1),
            padding=((pad, pad), (pad, pad)), lhs_dilation=(STRIDE, STRIDE),
            dimension_numbers=('NHWC', 'HWIO', 'NHWC'))
        y = act(y + b_ct.reshape(1, 1, 1, -1))
        mean = jnp.mean(y, axis=(1, 2), keepdims=True)
        var = jnp.mean(jnp.square(y - mean), axis=(1, 2), keepdims=True)
        yn = (y - mean) * lax.rsqrt(var + EPS)
        co = w_ct.shape[1]
        gb = jnp.dot(s, w_fc.T) + b_fc
        gamma = gb[:, :co].reshape(-1, 1, 1, co)
        beta = gb[:, co:].reshape(-1, 1, 1, co)
        x = (1.0 + gamma) * yn + beta
    return jnp.transpose(x, (0, 3, 1, 2))


if __name__ == "__main__":
    key = jax.random.PRNGKey(0)
    kx, ks, kp = jax.random.split(key, 3)

    l_layers = 2
    filters = [4, 8, 8]
    latent_dim = 16
    B, H, W = 2, 16, 16

    x = jax.random.normal(kx, (B, filters[0], H, W), jnp.float32)   # NCHW like PyTorch
    s = jax.random.normal(ks, (B, latent_dim), jnp.float32)         # style latent
    params = init_params(kp, l_layers, filters, latent_dim)

    ref = loop_deconv_reference(params, x, s, activation='mish')

    # default config: folded-K path, whole-image row tile (nH == 1)
    out = jax.block_until_ready(loop_deconv_forward(params, x, s, activation='mish'))
    assert out.shape == (B, filters[-1], H * 2 ** l_layers, W * 2 ** l_layers)
    assert bool(jnp.all(jnp.isfinite(out)))
    rel = float(jnp.linalg.norm(out - ref) / (jnp.linalg.norm(ref) + 1e-12))
    assert rel < 0.05, f"relative L2 error too large (folded path): {rel}"

    # exercise row tiling (nH > 1) and the per-tap (large-CI) matmul path
    out2 = jax.block_until_ready(
        loop_deconv_forward(params, x, s, activation='mish',
                            ci_fold_max=8, max_tile_rows=8))
    rel2 = float(jnp.linalg.norm(out2 - ref) / (jnp.linalg.norm(ref) + 1e-12))
    assert rel2 < 0.05, f"relative L2 error too large (tiled/per-tap path): {rel2}"

    print("KERNEL_OK")
</pallas_src>

<mosaic_0001>
module attributes {stable_mosaic.version = 11 : i64} {
  func.func @_conv_act_stats_kernel(%arg0: i32, %arg1: i32, %arg2: memref<1x18x18x4xbf16, #tpu.memory_space<vmem>>, %arg3: memref<4x16x8xbf16, #tpu.memory_space<vmem>>, %arg4: memref<1x8xf32, #tpu.memory_space<vmem>>, %arg5: memref<1x16x2x16x16xbf16, #tpu.memory_space<vmem>>, %arg6: memref<1x1x2x8xf32, #tpu.memory_space<vmem>>) attributes {dimension_semantics = [#tpu.dimension_semantics<parallel>, #tpu.dimension_semantics<parallel>], iteration_bounds = array<i64: 2, 1>, scalar_prefetch = 0 : i64, scratch_operands = 0 : i64, tpu.core_type = #tpu.core_type<tc>, window_params = [{transform_indices = @transform_0, window_bounds = array<i64: 1, 18, 18, 4>}, {pipeline_mode = #tpu.pipeline_mode<synchronous>, transform_indices = @transform_1, window_bounds = array<i64: 4, 16, 8>}, {pipeline_mode = #tpu.pipeline_mode<synchronous>, transform_indices = @transform_2, window_bounds = array<i64: 1, 8>}, {transform_indices = @transform_3, window_bounds = array<i64: 1, 16, 2, 16, 16>}, {transform_indices = @transform_4, window_bounds = array<i64: 1, 1, 2, 8>}]} {
    %c16_i32 = arith.constant 16 : i32
    %0 = arith.muli %arg1, %c16_i32 : i32
    %c0 = arith.constant 0 : index
    %c0_0 = arith.constant 0 : index
    %1 = vector.load %arg4[%c0, %c0_0] : memref<1x8xf32, #tpu.memory_space<vmem>>, vector<1x8xf32>
    %cst = arith.constant 0.000000e+00 : f32
    %2 = vector.broadcast %cst : f32 to vector<1x8xf32>
    %cst_1 = arith.constant 0.000000e+00 : f32
    %3 = vector.broadcast %cst_1 : f32 to vector<1x8xf32>
    %c0_i32 = arith.constant 0 : i32
    %4 = arith.addi %0, %c0_i32 : i32
    %c0_i32_2 = arith.constant 0 : i32
    %5 = arith.addi %4, %c0_i32_2 : i32
    %c0_3 = arith.constant 0 : index
    %6 = arith.index_cast %5 : i32 to index
    %c0_4 = arith.constant 0 : index
    %c0_5 = arith.constant 0 : index
    %7 = vector.load %arg2[%c0_3, %6, %c0_4, %c0_5] : memref<1x18x18x4xbf16, #tpu.memory_space<vmem>>, vector<1x16x16x4xbf16>
    %8 = vector.shape_cast %7 : vector<1x16x16x4xbf16> to vector<16x16x4xbf16>
    %c0_i32_6 = arith.constant 0 : i32
    %9 = arith.addi %0, %c0_i32_6 : i32
    %c0_i32_7 = arith.constant 0 : i32
    %10 = arith.addi %9, %c0_i32_7 : i32
    %c0_8 = arith.constant 0 : index
    %11 = arith.index_cast %10 : i32 to index
    %c1 = arith.constant 1 : index
    %c0_9 = arith.constant 0 : index
    %12 = vector.load %arg2[%c0_8, %11, %c1, %c0_9] : memref<1x18x18x4xbf16, #tpu.memory_space<vmem>>, vector<1x16x16x4xbf16>
    %13 = vector.shape_cast %12 : vector<1x16x16x4xbf16> to vector<16x16x4xbf16>
    %c0_i32_10 = arith.constant 0 : i32
    %14 = arith.addi %0, %c0_i32_10 : i32
    %c1_i32 = arith.constant 1 : i32
    %15 = arith.addi %14, %c1_i32 : i32
    %c0_11 = arith.constant 0 : index
    %16 = arith.index_cast %15 : i32 to index
    %c0_12 = arith.constant 0 : index
    %c0_13 = arith.constant 0 : index
    %17 = vector.load %arg2[%c0_11, %16, %c0_12, %c0_13] : memref<1x18x18x4xbf16, #tpu.memory_space<vmem>>, vector<1x16x16x4xbf16>
    %18 = vector.shape_cast %17 : vector<1x16x16x4xbf16> to vector<16x16x4xbf16>
    %c0_i32_14 = arith.constant 0 : i32
    %19 = arith.addi %0, %c0_i32_14 : i32
    %c1_i32_15 = arith.constant 1 : i32
    %20 = arith.addi %19, %c1_i32_15 : i32
    %c0_16 = arith.constant 0 : index
    %21 = arith.index_cast %20 : i32 to index
    %c1_17 = arith.constant 1 : index
    %c0_18 = arith.constant 0 : index
    %22 = vector.load %arg2[%c0_16, %21, %c1_17, %c0_18] : memref<1x18x18x4xbf16, #tpu.memory_space<vmem>>, vector<1x16x16x4xbf16>
    %23 = vector.shape_cast %22 : vector<1x16x16x4xbf16> to vector<16x16x4xbf16>
    %24 = tpu.concatenate %8, %13, %18, %23 in 2 : vector<16x16x4xbf16>, vector<16x16x4xbf16>, vector<16x16x4xbf16>, vector<16x16x4xbf16> -> vector<16x16x16xbf16>
    %25 = vector.shape_cast %24 : vector<16x16x16xbf16> to vector<256x16xbf16>
    %c0_19 = arith.constant 0 : index
    %c0_20 = arith.constant 0 : index
    %c0_21 = arith.constant 0 : index
    %26 = vector.load %arg3[%c0_19, %c0_20, %c0_21] : memref<4x16x8xbf16, #tpu.memory_space<vmem>>, vector<1x16x8xbf16>
    %27 = vector.shape_cast %26 : vector<1x16x8xbf16> to vector<16x8xbf16>
    %cst_22 = arith.constant dense<0.000000e+00> : vector<256x8xf32>
    %28 = tpu.matmul %25, %27, %cst_22 {dimension_numbers = #tpu.dot_dimension_numbers<[1], [0], [0], [1], [0, 0, 1, 1], [], []>} : vector<256x16xbf16>, vector<16x8xbf16>, vector<256x8xf32> -> vector<256x8xf32>
    %29 = vector.broadcast %1 : vector<1x8xf32> to vector<256x8xf32>
    %30 = arith.addf %28, %29 : vector<256x8xf32>
    %cst_23 = arith.constant 3.000000e+01 : f32
    %31 = vector.broadcast %cst_23 : f32 to vector<256x8xf32>
    %32 = arith.minimumf %30, %31 : vector<256x8xf32>
    %33 = math.exp %32 : vector<256x8xf32>
    %cst_24 = arith.constant 1.000000e+00 : f32
    %34 = vector.broadcast %cst_24 : f32 to vector<256x8xf32>
    %35 = arith.addf %34, %33 : vector<256x8xf32>
    %36 = arith.mulf %35, %35 : vector<256x8xf32>
    %cst_25 = arith.constant 1.000000e+00 : f32
    %37 = vector.broadcast %cst_25 : f32 to vector<256x8xf32>
    %38 = arith.addf %36, %37 : vector<256x8xf32>
    %39 = tpu.reciprocal %38 {approx = true} : vector<256x8xf32> -> vector<256x8xf32>
    %cst_26 = arith.constant 2.000000e+00 : f32
    %40 = vector.broadcast %cst_26 : f32 to vector<256x8xf32>
    %41 = arith.mulf %40, %39 : vector<256x8xf32>
    %cst_27 = arith.constant 1.000000e+00 : f32
    %42 = vector.broadcast %cst_27 : f32 to vector<256x8xf32>
    %43 = arith.subf %42, %41 : vector<256x8xf32>
    %44 = arith.mulf %30, %43 : vector<256x8xf32>
    %cst_28 = arith.constant dense<0.000000e+00> : vector<8xf32>
    %45 = vector.multi_reduction <add>, %44, %cst_28 [0] : vector<256x8xf32> to vector<8xf32>
    %46 = vector.shape_cast %45 : vector<8xf32> to vector<1x8xf32>
    %47 = arith.addf %2, %46 : vector<1x8xf32>
    %48 = arith.mulf %44, %44 : vector<256x8xf32>
    %cst_29 = arith.constant dense<0.000000e+00> : vector<8xf32>
    %49 = vector.multi_reduction <add>, %48, %cst_29 [0] : vector<256x8xf32> to vector<8xf32>
    %50 = vector.shape_cast %49 : vector<8xf32> to vector<1x8xf32>
    %51 = arith.addf %3, %50 : vector<1x8xf32>
    %c0_i32_30 = arith.constant 0 : i32
    %52 = arith.addi %0, %c0_i32_30 : i32
    %c0_i32_31 = arith.constant 0 : i32
    %53 = arith.addi %52, %c0_i32_31 : i32
    %c0_32 = arith.constant 0 : index
    %54 = arith.index_cast %53 : i32 to index
    %c1_33 = arith.constant 1 : index
    %c0_34 = arith.constant 0 : index
    %55 = vector.load %arg2[%c0_32, %54, %c1_33, %c0_34] : memref<1x18x18x4xbf16, #tpu.memory_space<vmem>>, vector<1x16x16x4xbf16>
    %56 = vector.shape_cast %55 : vector<1x16x16x4xbf16> to vector<16x16x4xbf16>
    %c0_i32_35 = arith.constant 0 : i32
    %57 = arith.addi %0, %c0_i32_35 : i32
    %c0_i32_36 = arith.constant 0 : i32
    %58 = arith.addi %57, %c0_i32_36 : i32
    %c0_37 = arith.constant 0 : index
    %59 = arith.index_cast %58 : i32 to index
    %c2 = arith.constant 2 : index
    %c0_38 = arith.constant 0 : index
    %60 = vector.load %arg2[%c0_37, %59, %c2, %c0_38] : memref<1x18x18x4xbf16, #tpu.memory_space<vmem>>, vector<1x16x16x4xbf16>
    %61 = vector.shape_cast %60 : vector<1x16x16x4xbf16> to vector<16x16x4xbf16>
    %c0_i32_39 = arith.constant 0 : i32
    %62 = arith.addi %0, %c0_i32_39 : i32
    %c1_i32_40 = arith.constant 1 : i32
    %63 = arith.addi %62, %c1_i32_40 : i32
    %c0_41 = arith.constant 0 : index
    %64 = arith.index_cast %63 : i32 to index
    %c1_42 = arith.constant 1 : index
    %c0_43 = arith.constant 0 : index
    %65 = vector.load %arg2[%c0_41, %64, %c1_42, %c0_43] : memref<1x18x18x4xbf16, #tpu.memory_space<vmem>>, vector<1x16x16x4xbf16>
    %66 = vector.shape_cast %65 : vector<1x16x16x4xbf16> to vector<16x16x4xbf16>
    %c0_i32_44 = arith.constant 0 : i32
    %67 = arith.addi %0, %c0_i32_44 : i32
    %c1_i32_45 = arith.constant 1 : i32
    %68 = arith.addi %67, %c1_i32_45 : i32
    %c0_46 = arith.constant 0 : index
    %69 = arith.index_cast %68 : i32 to index
    %c2_47 = arith.constant 2 : index
    %c0_48 = arith.constant 0 : index
    %70 = vector.load %arg2[%c0_46, %69, %c2_47, %c0_48] : memref<1x18x18x4xbf16, #tpu.memory_space<vmem>>, vector<1x16x16x4xbf16>
    %71 = vector.shape_cast %70 : vector<1x16x16x4xbf16> to vector<16x16x4xbf16>
    %72 = tpu.concatenate %56, %61, %66, %71 in 2 : vector<16x16x4xbf16>, vector<16x16x4xbf16>, vector<16x16x4xbf16>, vector<16x16x4xbf16> -> vector<16x16x16xbf16>
    %73 = vector.shape_cast %72 : vector<16x16x16xbf16> to vector<256x16xbf16>
    %c1_49 = arith.constant 1 : index
    %c0_50 = arith.constant 0 : index
    %c0_51 = arith.constant 0 : index
    %74 = vector.load %arg3[%c1_49, %c0_50, %c0_51] : memref<4x16x8xbf16, #tpu.memory_space<vmem>>, vector<1x16x8xbf16>
    %75 = vector.shape_cast %74 : vector<1x16x8xbf16> to vector<16x8xbf16>
    %cst_52 = arith.constant dense<0.000000e+00> : vector<256x8xf32>
    %76 = tpu.matmul %73, %75, %cst_52 {dimension_numbers = #tpu.dot_dimension_numbers<[1], [0], [0], [1], [0, 0, 1, 1], [], []>} : vector<256x16xbf16>, vector<16x8xbf16>, vector<256x8xf32> -> vector<256x8xf32>
    %77 = vector.broadcast %1 : vector<1x8xf32> to vector<256x8xf32>
    %78 = arith.addf %76, %77 : vector<256x8xf32>
    %cst_53 = arith.constant 3.000000e+01 : f32
    %79 = vector.broadcast %cst_53 : f32 to vector<256x8xf32>
    %80 = arith.minimumf %78, %79 : vector<256x8xf32>
    %81 = math.exp %80 : vector<256x8xf32>
    %cst_54 = arith.constant 1.000000e+00 : f32
    %82 = vector.broadcast %cst_54 : f32 to vector<256x8xf32>
    %83 = arith.addf %82, %81 : vector<256x8xf32>
    %84 = arith.mulf %83, %83 : vector<256x8xf32>
    %cst_55 = arith.constant 1.000000e+00 : f32
    %85 = vector.broadcast %cst_55 : f32 to vector<256x8xf32>
    %86 = arith.addf %84, %85 : vector<256x8xf32>
    %87 = tpu.reciprocal %86 {approx = true} : vector<256x8xf32> -> vector<256x8xf32>
    %cst_56 = arith.constant 2.000000e+00 : f32
    %88 = vector.broadcast %cst_56 : f32 to vector<256x8xf32>
    %89 = arith.mulf %88, %87 : vector<256x8xf32>
    %cst_57 = arith.constant 1.000000e+00 : f32
    %90 = vector.broadcast %cst_57 : f32 to vector<256x8xf32>
    %91 = arith.subf %90, %89 : vector<256x8xf32>
    %92 = arith.mulf %78, %91 : vector<256x8xf32>
    %cst_58 = arith.constant dense<0.000000e+00> : vector<8xf32>
    %93 = vector.multi_reduction <add>, %92, %cst_58 [0] : vector<256x8xf32> to vector<8xf32>
    %94 = vector.shape_cast %93 : vector<8xf32> to vector<1x8xf32>
    %95 = arith.addf %47, %94 : vector<1x8xf32>
    %96 = arith.mulf %92, %92 : vector<256x8xf32>
    %cst_59 = arith.constant dense<0.000000e+00> : vector<8xf32>
    %97 = vector.multi_reduction <add>, %96, %cst_59 [0] : vector<256x8xf32> to vector<8xf32>
    %98 = vector.shape_cast %97 : vector<8xf32> to vector<1x8xf32>
    %99 = arith.addf %51, %98 : vector<1x8xf32>
    %100 = tpu.concatenate %44, %92 in 1 : vector<256x8xf32>, vector<256x8xf32> -> vector<256x16xf32>
    %101 = vector.shape_cast %100 : vector<256x16xf32> to vector<16x16x16xf32>
    %102 = arith.truncf %101 : vector<16x16x16xf32> to vector<16x16x16xbf16>
    %c0_60 = arith.constant 0 : index
    %c0_61 = arith.constant 0 : index
    %c0_62 = arith.constant 0 : index
    %c0_63 = arith.constant 0 : index
    %c0_64 = arith.constant 0 : index
    %103 = vector.load %arg5[%c0_60, %c0_61, %c0_62, %c0_63, %c0_64] : memref<1x16x2x16x16xbf16, #tpu.memory_space<vmem>>, vector<1x16x1x16x16xbf16>
    %104 = vector.shape_cast %103 : vector<1x16x1x16x16xbf16> to vector<16x16x16xbf16>
    %105 = vector.shape_cast %102 : vector<16x16x16xbf16> to vector<1x16x1x16x16xbf16>
    tpu.vector_store %arg5[%c0_60, %c0_61, %c0_62, %c0_63, %c0_64], %105 {strides = array<i32>} : memref<1x16x2x16x16xbf16, #tpu.memory_space<vmem>>, vector<1x16x1x16x16xbf16>,
    %c1_i32_65 = arith.constant 1 : i32
    %106 = arith.addi %0, %c1_i32_65 : i32
    %c0_i32_66 = arith.constant 0 : i32
    %107 = arith.addi %106, %c0_i32_66 : i32
    %c0_67 = arith.constant 0 : index
    %108 = arith.index_cast %107 : i32 to index
    %c0_68 = arith.constant 0 : index
    %c0_69 = arith.constant 0 : index
    %109 = vector.load %arg2[%c0_67, %108, %c0_68, %c0_69] : memref<1x18x18x4xbf16, #tpu.memory_space<vmem>>, vector<1x16x16x4xbf16>
    %110 = vector.shape_cast %109 : vector<1x16x16x4xbf16> to vector<16x16x4xbf16>
    %c1_i32_70 = arith.constant 1 : i32
    %111 = arith.addi %0, %c1_i32_70 : i32
    %c0_i32_71 = arith.constant 0 : i32
    %112 = arith.addi %111, %c0_i32_71 : i32
    %c0_72 = arith.constant 0 : index
    %113 = arith.index_cast %112 : i32 to index
    %c1_73 = arith.constant 1 : index
    %c0_74 = arith.constant 0 : index
    %114 = vector.load %arg2[%c0_72, %113, %c1_73, %c0_74] : memref<1x18x18x4xbf16, #tpu.memory_space<vmem>>, vector<1x16x16x4xbf16>
    %115 = vector.shape_cast %114 : vector<1x16x16x4xbf16> to vector<16x16x4xbf16>
    %c1_i32_75 = arith.constant 1 : i32
    %116 = arith.addi %0, %c1_i32_75 : i32
    %c1_i32_76 = arith.constant 1 : i32
    %117 = arith.addi %116, %c1_i32_76 : i32
    %c0_77 = arith.constant 0 : index
    %118 = arith.index_cast %117 : i32 to index
    %c0_78 = arith.constant 0 : index
    %c0_79 = arith.constant 0 : index
    %119 = vector.load %arg2[%c0_77, %118, %c0_78, %c0_79] : memref<1x18x18x4xbf16, #tpu.memory_space<vmem>>, vector<1x16x16x4xbf16>
    %120 = vector.shape_cast %119 : vector<1x16x16x4xbf16> to vector<16x16x4xbf16>
    %c1_i32_80 = arith.constant 1 : i32
    %121 = arith.addi %0, %c1_i32_80 : i32
    %c1_i32_81 = arith.constant 1 : i32
    %122 = arith.addi %121, %c1_i32_81 : i32
    %c0_82 = arith.constant 0 : index
    %123 = arith.index_cast %122 : i32 to index
    %c1_83 = arith.constant 1 : index
    %c0_84 = arith.constant 0 : index
    %124 = vector.load %arg2[%c0_82, %123, %c1_83, %c0_84] : memref<1x18x18x4xbf16, #tpu.memory_space<vmem>>, vector<1x16x16x4xbf16>
    %125 = vector.shape_cast %124 : vector<1x16x16x4xbf16> to vector<16x16x4xbf16>
    %126 = tpu.concatenate %110, %115, %120, %125 in 2 : vector<16x16x4xbf16>, vector<16x16x4xbf16>, vector<16x16x4xbf16>, vector<16x16x4xbf16> -> vector<16x16x16xbf16>
    %127 = vector.shape_cast %126 : vector<16x16x16xbf16> to vector<256x16xbf16>
    %c2_85 = arith.constant 2 : index
    %c0_86 = arith.constant 0 : index
    %c0_87 = arith.constant 0 : index
    %128 = vector.load %arg3[%c2_85, %c0_86, %c0_87] : memref<4x16x8xbf16, #tpu.memory_space<vmem>>, vector<1x16x8xbf16>
    %129 = vector.shape_cast %128 : vector<1x16x8xbf16> to vector<16x8xbf16>
    %cst_88 = arith.constant dense<0.000000e+00> : vector<256x8xf32>
    %130 = tpu.matmul %127, %129, %cst_88 {dimension_numbers = #tpu.dot_dimension_numbers<[1], [0], [0], [1], [0, 0, 1, 1], [], []>} : vector<256x16xbf16>, vector<16x8xbf16>, vector<256x8xf32> -> vector<256x8xf32>
    %131 = vector.broadcast %1 : vector<1x8xf32> to vector<256x8xf32>
    %132 = arith.addf %130, %131 : vector<256x8xf32>
    %cst_89 = arith.constant 3.000000e+01 : f32
    %133 = vector.broadcast %cst_89 : f32 to vector<256x8xf32>
    %134 = arith.minimumf %132, %133 : vector<256x8xf32>
    %135 = math.exp %134 : vector<256x8xf32>
    %cst_90 = arith.constant 1.000000e+00 : f32
    %136 = vector.broadcast %cst_90 : f32 to vector<256x8xf32>
    %137 = arith.addf %136, %135 : vector<256x8xf32>
    %138 = arith.mulf %137, %137 : vector<256x8xf32>
    %cst_91 = arith.constant 1.000000e+00 : f32
    %139 = vector.broadcast %cst_91 : f32 to vector<256x8xf32>
    %140 = arith.addf %138, %139 : vector<256x8xf32>
    %141 = tpu.reciprocal %140 {approx = true} : vector<256x8xf32> -> vector<256x8xf32>
    %cst_92 = arith.constant 2.000000e+00 : f32
    %142 = vector.broadcast %cst_92 : f32 to vector<256x8xf32>
    %143 = arith.mulf %142, %141 : vector<256x8xf32>
    %cst_93 = arith.constant 1.000000e+00 : f32
    %144 = vector.broadcast %cst_93 : f32 to vector<256x8xf32>
    %145 = arith.subf %144, %143 : vector<256x8xf32>
    %146 = arith.mulf %132, %145 : vector<256x8xf32>
    %cst_94 = arith.constant dense<0.000000e+00> : vector<8xf32>
    %147 = vector.multi_reduction <add>, %146, %cst_94 [0] : vector<256x8xf32> to vector<8xf32>
    %148 = vector.shape_cast %147 : vector<8xf32> to vector<1x8xf32>
    %149 = arith.addf %95, %148 : vector<1x8xf32>
    %150 = arith.mulf %146, %146 : vector<256x8xf32>
    %cst_95 = arith.constant dense<0.000000e+00> : vector<8xf32>
    %151 = vector.multi_reduction <add>, %150, %cst_95 [0] : vector<256x8xf32> to vector<8xf32>
    %152 = vector.shape_cast %151 : vector<8xf32> to vector<1x8xf32>
    %153 = arith.addf %99, %152 : vector<1x8xf32>
    %c1_i32_96 = arith.constant 1 : i32
    %154 = arith.addi %0, %c1_i32_96 : i32
    %c0_i32_97 = arith.constant 0 : i32
    %155 = arith.addi %154, %c0_i32_97 : i32
    %c0_98 = arith.constant 0 : index
    %156 = arith.index_cast %155 : i32 to index
    %c1_99 = arith.constant 1 : index
    %c0_100 = arith.constant 0 : index
    %157 = vector.load %arg2[%c0_98, %156, %c1_99, %c0_100] : memref<1x18x18x4xbf16, #tpu.memory_space<vmem>>, vector<1x16x16x4xbf16>
    %158 = vector.shape_cast %157 : vector<1x16x16x4xbf16> to vector<16x16x4xbf16>
    %c1_i32_101 = arith.constant 1 : i32
    %159 = arith.addi %0, %c1_i32_101 : i32
    %c0_i32_102 = arith.constant 0 : i32
    %160 = arith.addi %159, %c0_i32_102 : i32
    %c0_103 = arith.constant 0 : index
    %161 = arith.index_cast %160 : i32 to index
    %c2_104 = arith.constant 2 : index
    %c0_105 = arith.constant 0 : index
    %162 = vector.load %arg2[%c0_103, %161, %c2_104, %c0_105] : memref<1x18x18x4xbf16, #tpu.memory_space<vmem>>, vector<1x16x16x4xbf16>
    %163 = vector.shape_cast %162 : vector<1x16x16x4xbf16> to vector<16x16x4xbf16>
    %c1_i32_106 = arith.constant 1 : i32
    %164 = arith.addi %0, %c1_i32_106 : i32
    %c1_i32_107 = arith.constant 1 : i32
    %165 = arith.addi %164, %c1_i32_107 : i32
    %c0_108 = arith.constant 0 : index
    %166 = arith.index_cast %165 : i32 to index
    %c1_109 = arith.constant 1 : index
    %c0_110 = arith.constant 0 : index
    %167 = vector.load %arg2[%c0_108, %166, %c1_109, %c0_110] : memref<1x18x18x4xbf16, #tpu.memory_space<vmem>>, vector<1x16x16x4xbf16>
    %168 = vector.shape_cast %167 : vector<1x16x16x4xbf16> to vector<16x16x4xbf16>
    %c1_i32_111 = arith.constant 1 : i32
    %169 = arith.addi %0, %c1_i32_111 : i32
    %c1_i32_112 = arith.constant 1 : i32
    %170 = arith.addi %169, %c1_i32_112 : i32
    %c0_113 = arith.constant 0 : index
    %171 = arith.index_cast %170 : i32 to index
    %c2_114 = arith.constant 2 : index
    %c0_115 = arith.constant 0 : index
    %172 = vector.load %arg2[%c0_113, %171, %c2_114, %c0_115] : memref<1x18x18x4xbf16, #tpu.memory_space<vmem>>, vector<1x16x16x4xbf16>
    %173 = vector.shape_cast %172 : vector<1x16x16x4xbf16> to vector<16x16x4xbf16>
    %174 = tpu.concatenate %158, %163, %168, %173 in 2 : vector<16x16x4xbf16>, vector<16x16x4xbf16>, vector<16x16x4xbf16>, vector<16x16x4xbf16> -> vector<16x16x16xbf16>
    %175 = vector.shape_cast %174 : vector<16x16x16xbf16> to vector<256x16xbf16>
    %c3 = arith.constant 3 : index
    %c0_116 = arith.constant 0 : index
    %c0_117 = arith.constant 0 : index
    %176 = vector.load %arg3[%c3, %c0_116, %c0_117] : memref<4x16x8xbf16, #tpu.memory_space<vmem>>, vector<1x16x8xbf16>
    %177 = vector.shape_cast %176 : vector<1x16x8xbf16> to vector<16x8xbf16>
    %cst_118 = arith.constant dense<0.000000e+00> : vector<256x8xf32>
    %178 = tpu.matmul %175, %177, %cst_118 {dimension_numbers = #tpu.dot_dimension_numbers<[1], [0], [0], [1], [0, 0, 1, 1], [], []>} : vector<256x16xbf16>, vector<16x8xbf16>, vector<256x8xf32> -> vector<256x8xf32>
    %179 = vector.broadcast %1 : vector<1x8xf32> to vector<256x8xf32>
    %180 = arith.addf %178, %179 : vector<256x8xf32>
    %cst_119 = arith.constant 3.000000e+01 : f32
    %181 = vector.broadcast %cst_119 : f32 to vector<256x8xf32>
    %182 = arith.minimumf %180, %181 : vector<256x8xf32>
    %183 = math.exp %182 : vector<256x8xf32>
    %cst_120 = arith.constant 1.000000e+00 : f32
    %184 = vector.broadcast %cst_120 : f32 to vector<256x8xf32>
    %185 = arith.addf %184, %183 : vector<256x8xf32>
    %186 = arith.mulf %185, %185 : vector<256x8xf32>
    %cst_121 = arith.constant 1.000000e+00 : f32
    %187 = vector.broadcast %cst_121 : f32 to vector<256x8xf32>
    %188 = arith.addf %186, %187 : vector<256x8xf32>
    %189 = tpu.reciprocal %188 {approx = true} : vector<256x8xf32> -> vector<256x8xf32>
    %cst_122 = arith.constant 2.000000e+00 : f32
    %190 = vector.broadcast %cst_122 : f32 to vector<256x8xf32>
    %191 = arith.mulf %190, %189 : vector<256x8xf32>
    %cst_123 = arith.constant 1.000000e+00 : f32
    %192 = vector.broadcast %cst_123 : f32 to vector<256x8xf32>
    %193 = arith.subf %192, %191 : vector<256x8xf32>
    %194 = arith.mulf %180, %193 : vector<256x8xf32>
    %cst_124 = arith.constant dense<0.000000e+00> : vector<8xf32>
    %195 = vector.multi_reduction <add>, %194, %cst_124 [0] : vector<256x8xf32> to vector<8xf32>
    %196 = vector.shape_cast %195 : vector<8xf32> to vector<1x8xf32>
    %197 = arith.addf %149, %196 : vector<1x8xf32>
    %198 = arith.mulf %194, %194 : vector<256x8xf32>
    %cst_125 = arith.constant dense<0.000000e+00> : vector<8xf32>
    %199 = vector.multi_reduction <add>, %198, %cst_125 [0] : vector<256x8xf32> to vector<8xf32>
    %200 = vector.shape_cast %199 : vector<8xf32> to vector<1x8xf32>
    %201 = arith.addf %153, %200 : vector<1x8xf32>
    %202 = tpu.concatenate %146, %194 in 1 : vector<256x8xf32>, vector<256x8xf32> -> vector<256x16xf32>
    %203 = vector.shape_cast %202 : vector<256x16xf32> to vector<16x16x16xf32>
    %204 = arith.truncf %203 : vector<16x16x16xf32> to vector<16x16x16xbf16>
    %c0_126 = arith.constant 0 : index
    %c0_127 = arith.constant 0 : index
    %c1_128 = arith.constant 1 : index
    %c0_129 = arith.constant 0 : index
    %c0_130 = arith.constant 0 : index
    %205 = vector.load %arg5[%c0_126, %c0_127, %c1_128, %c0_129, %c0_130] : memref<1x16x2x16x16xbf16, #tpu.memory_space<vmem>>, vector<1x16x1x16x16xbf16>
    %206 = vector.shape_cast %205 : vector<1x16x1x16x16xbf16> to vector<16x16x16xbf16>
    %207 = vector.shape_cast %204 : vector<16x16x16xbf16> to vector<1x16x1x16x16xbf16>
    tpu.vector_store %arg5[%c0_126, %c0_127, %c1_128, %c0_129, %c0_130], %207 {strides = array<i32>} : memref<1x16x2x16x16xbf16, #tpu.memory_space<vmem>>, vector<1x16x1x16x16xbf16>,
    %208 = tpu.concatenate %197, %201 in 0 : vector<1x8xf32>, vector<1x8xf32> -> vector<2x8xf32>
    %c0_131 = arith.constant 0 : index
    %c0_132 = arith.constant 0 : index
    %c0_133 = arith.constant 0 : index
    %c0_134 = arith.constant 0 : index
    %209 = vector.load %arg6[%c0_131, %c0_132, %c0_133, %c0_134] : memref<1x1x2x8xf32, #tpu.memory_space<vmem>>, vector<1x1x2x8xf32>
    %210 = vector.shape_cast %209 : vector<1x1x2x8xf32> to vector<2x8xf32>
    %211 = vector.shape_cast %208 : vector<2x8xf32> to vector<1x1x2x8xf32>
    tpu.vector_store %arg6[%c0_131, %c0_132, %c0_133, %c0_134], %211 {strides = array<i32>} : memref<1x1x2x8xf32, #tpu.memory_space<vmem>>, vector<1x1x2x8xf32>,
    return
  }
  func.func @transform_0(%arg0: i32, %arg1: i32) -> (i32, i32, i32, i32) {
    %c0_i32 = arith.constant 0 : i32
    %c0_i32_0 = arith.constant 0 : i32
    %c0_i32_1 = arith.constant 0 : i32
    %c0_i32_2 = arith.constant 0 : i32
    return %arg0, %c0_i32, %c0_i32_0, %c0_i32_1 : i32, i32, i32, i32
  }
  func.func @transform_1(%arg0: i32, %arg1: i32) -> (i32, i32, i32) {
    %c0_i32 = arith.constant 0 : i32
    %c0_i32_0 = arith.constant 0 : i32
    %c0_i32_1 = arith.constant 0 : i32
    %c0_i32_2 = arith.constant 0 : i32
    return %c0_i32, %c0_i32_0, %c0_i32_1 : i32, i32, i32
  }
  func.func @transform_2(%arg0: i32, %arg1: i32) -> (i32, i32) {
    %c0_i32 = arith.constant 0 : i32
    %c0_i32_0 = arith.constant 0 : i32
    %c0_i32_1 = arith.constant 0 : i32
    return %c0_i32, %c0_i32_0 : i32, i32
  }
  func.func @transform_3(%arg0: i32, %arg1: i32) -> (i32, i32, i32, i32, i32) {
    %c0_i32 = arith.constant 0 : i32
    %c0_i32_0 = arith.constant 0 : i32
    %c0_i32_1 = arith.constant 0 : i32
    %c0_i32_2 = arith.constant 0 : i32
    return %arg0, %arg1, %c0_i32, %c0_i32_0, %c0_i32_1 : i32, i32, i32, i32, i32
  }
  func.func @transform_4(%arg0: i32, %arg1: i32) -> (i32, i32, i32, i32) {
    %c0_i32 = arith.constant 0 : i32
    %c0_i32_0 = arith.constant 0 : i32
    %c0_i32_1 = arith.constant 0 : i32
    return %arg0, %arg1, %c0_i32, %c0_i32_0 : i32, i32, i32, i32
  }
}

</mosaic_0001>

<llo_original>
// kernel: tpu_custom_call.1
$region0: #{tpu_custom_call.1}
  #allocation0 [shape = 'u32[]', space=smem, size = 0x4, offset = 0x4, fixed_abs, tag = 'smem constant byte address 0x4 - core index']
  #allocation1 [shape = 'u32[144,128]{1,0:T(1,128)}', space=vmem, size = 0x12000, scoped, tag = 'internal scratch']
  %s0 = inlined_call_operand.vmem [shape: bf16[2,18,18,4], index: 0, kind: input, shape index: {}]
  %s1 = inlined_call_operand.vmem [shape: bf16[4,16,8], index: 1, kind: input, shape index: {}]
  %s2 = inlined_call_operand.vmem [shape: f32[1,8], index: 2, kind: input, shape index: {}]
  %s3 = inlined_call_operand.hbm [shape: bf16[2,16,2,16,16], index: 3, kind: output, shape index: {0}]
  %s4 = inlined_call_operand.hbm [shape: f32[2,1,2,8], index: 4, kind: output, shape index: {1}]
  %5 = xla_tuple %s3, %s4
  %s6 = sld [smem:[#allocation0]]
  $region53: #{tpu_custom_call.1} parent=0
    _
  %s8 = ssub.s32 1, %s6
  %s9 = scalar_select 0, %s8, %s6
  $region1: #{tpu_custom_call.1} parent=0
    #allocation2 [shape = 'u8[262144]{0}', space=vmem, size = 0x40000, scoped, tag = 'output window, operand 0']
    #allocation3 [shape = 's32[2]{0}', space=sflag, size = 0x8, scoped, tag = 'scoped memory for tpu_custom_call.1']
    #allocation4 [shape = 'u8[2048]{0}', space=vmem, size = 0x800, scoped, tag = 'output window, operand 1']
    #allocation5 [shape = 's32[2]{0}', space=sflag, size = 0x8, scoped, tag = 'scoped memory for tpu_custom_call.1']
    %10 = vsyncpa [#allocation3], 0
    %s11 = scalar_lea.sflag [#allocation3], 1
    %12 = vsyncpa %s11, 0
    %13 = vsyncpa [#allocation5], 0
    %s14 = scalar_lea.sflag [#allocation5], 1
    %15 = vsyncpa %s14, 0
    loop: start=0, step=1, limit=4
    $region2: #{tpu_custom_call.1} parent=1 // loop_pre_header
      _
    $region3: #{tpu_custom_call.1} parent=1 // loop_header
      %s17 = sphi 0, %s21
      %p18 = scmp.ge.s32.totalorder %s17, 4
      %s24 = sphi 0, %s36
      %s25 = sphi 0, %s32
      %s26 = sphi 0, %s24
      %s27 = sphi 0, %s25
      %s28 = sphi 0, %s26
      %s29 = sphi 0, %s27
      %s39 = sphi 0, %s41
      %s42 = sphi 0, %s39
      %s43 = sphi 0, %s42
      %s59 = sphi 0, %s43
      %s63 = sphi 0, %s63
      %s65 = sphi 0, %s63
      %s66 = sphi 0, %s65
      %s80 = sphi 0, %s66
      %s84 = sphi 0, %s84
      %s86 = sphi 0, %s84
      %s87 = sphi 0, %s86
      %s101 = sphi 0, %s87
      %s109 = sphi 0, %s111
      %s112 = sphi 0, %s109
      %s113 = sphi 0, %s112
      %s129 = sphi 0, %s113
      %s137 = sphi 0, %s139
      %s140 = sphi 0, %s137
      %s141 = sphi 0, %s140
      %s157 = sphi 0, %s141
    $region4: #{tpu_custom_call.1} parent=1 // loop_header_branch
      %20 = sbr.rel (%p18) target = $region8
    $region5: #{tpu_custom_call.1} parent=1 // loop_body
      %s22 = ssub.s32 %s17, 1
      %s23 = ssub.s32 %s17, 2
      %s30 = sadd.s32 1, %s25
      %p31 = scmp.ge.s32.totalorder %s30, 1
      %s32 = scalar_select %p31, 0, %s30
      %s33 = sadd.s32 1, %s24
      %s34 = scalar_select %p31, %s33, %s24
      %p35 = scmp.ge.s32.totalorder %s34, 2
      %s36 = scalar_select %p35, 0, %s34
      %s37 = ssub.s32 %s24, %s36
      %p38 = scmp.eq.s32.totalorder %s37, 0
      %s40 = sadd.s32 %s39, 1
      %s41 = scalar_select %p38, %s39, %s40
      %p44 = pneg %p38
      %p45 = scmp.eq.s32.totalorder %s17, 1
      %p46 = por %p44, %p45
      %p47 = scmp.ne.s32.totalorder %s39, %s42
      %p48 = scmp.eq.s32.totalorder %s17, 0
      %p49 = por %p47, %p48
      %p50 = scmp.ne.s32.totalorder %s39, %s42
      %p51 = scmp.eq.s32.totalorder %s22, 1
      %p52 = por %p50, %p51
      %p53 = scmp.ne.s32.totalorder %s42, %s43
      %p54 = scmp.eq.s32.totalorder %s22, 0
      %p55 = por %p53, %p54
      %p56 = scmp.ne.s32.totalorder %s42, %s43
      %p57 = scmp.eq.s32.totalorder %s23, 1
      %p58 = por %p56, %p57
      %p60 = scmp.ne.s32.totalorder %s43, %s59
      %p61 = scmp.eq.s32.totalorder %s23, 0
      %p62 = por %p60, %p61
      %s64 = sadd.s32 %s63, 1
      %p67 = scmp.eq.s32.totalorder %s17, 1
      %p68 = scmp.ne.s32.totalorder %s63, %s65
      %p69 = scmp.eq.s32.totalorder %s17, 0
      %p70 = por %p68, %p69
      %p71 = scmp.ne.s32.totalorder %s63, %s65
      %p72 = scmp.eq.s32.totalorder %s22, 1
      %p73 = por %p71, %p72
      %p74 = scmp.ne.s32.totalorder %s65, %s66
      %p75 = scmp.eq.s32.totalorder %s22, 0
      %p76 = por %p74, %p75
      %p77 = scmp.ne.s32.totalorder %s65, %s66
      %p78 = scmp.eq.s32.totalorder %s23, 1
      %p79 = por %p77, %p78
      %p81 = scmp.ne.s32.totalorder %s66, %s80
      %p82 = scmp.eq.s32.totalorder %s23, 0
      %p83 = por %p81, %p82
      %s85 = sadd.s32 %s84, 1
      %p88 = scmp.eq.s32.totalorder %s17, 1
      %p89 = scmp.ne.s32.totalorder %s84, %s86
      %p90 = scmp.eq.s32.totalorder %s17, 0
      %p91 = por %p89, %p90
      %p92 = scmp.ne.s32.totalorder %s84, %s86
      %p93 = scmp.eq.s32.totalorder %s22, 1
      %p94 = por %p92, %p93
      %p95 = scmp.ne.s32.totalorder %s86, %s87
      %p96 = scmp.eq.s32.totalorder %s22, 0
      %p97 = por %p95, %p96
      %p98 = scmp.ne.s32.totalorder %s86, %s87
      %p99 = scmp.eq.s32.totalorder %s23, 1
      %p100 = por %p98, %p99
      %p102 = scmp.ne.s32.totalorder %s87, %s101
      %p103 = scmp.eq.s32.totalorder %s23, 0
      %p104 = por %p102, %p103
      %s105 = ssub.s32 %s24, %s36
      %s106 = ssub.s32 %s25, %s32
      %s107 = sor.u32 %s105, %s106
      %p108 = scmp.eq.s32.totalorder %s107, 0
      %s110 = sadd.s32 %s109, 1
      %s111 = scalar_select %p108, %s109, %s110
      %p114 = pneg %p108
      %p115 = scmp.eq.s32.totalorder %s17, 1
      %p116 = por %p114, %p115
      %p117 = scmp.ne.s32.totalorder %s109, %s112
      %p118 = scmp.eq.s32.totalorder %s17, 0
      %p119 = por %p117, %p118
      %p120 = scmp.ne.s32.totalorder %s109, %s112
      %p121 = scmp.eq.s32.totalorder %s22, 1
      %p122 = por %p120, %p121
      %p123 = scmp.ne.s32.totalorder %s112, %s113
      %p124 = scmp.eq.s32.totalorder %s22, 0
      %p125 = por %p123, %p124
      %p126 = scmp.ne.s32.totalorder %s112, %s113
      %p127 = scmp.eq.s32.totalorder %s23, 1
      %p128 = por %p126, %p127
      %p130 = scmp.ne.s32.totalorder %s113, %s129
      %p131 = scmp.eq.s32.totalorder %s23, 0
      %p132 = por %p130, %p131
      %s133 = ssub.s32 %s24, %s36
      %s134 = ssub.s32 %s25, %s32
      %s135 = sor.u32 %s133, %s134
      %p136 = scmp.eq.s32.totalorder %s135, 0
      %s138 = sadd.s32 %s137, 1
      %s139 = scalar_select %p136, %s137, %s138
      %p142 = pneg %p136
      %p143 = scmp.eq.s32.totalorder %s17, 1
      %p144 = por %p142, %p143
      %p145 = scmp.ne.s32.totalorder %s137, %s140
      %p146 = scmp.eq.s32.totalorder %s17, 0
      %p147 = por %p145, %p146
      %p148 = scmp.ne.s32.totalorder %s137, %s140
      %p149 = scmp.eq.s32.totalorder %s22, 1
      %p150 = por %p148, %p149
      %p151 = scmp.ne.s32.totalorder %s140, %s141
      %p152 = scmp.eq.s32.totalorder %s22, 0
      %p153 = por %p151, %p152
      %p154 = scmp.ne.s32.totalorder %s140, %s141
      %p155 = scmp.eq.s32.totalorder %s23, 1
      %p156 = por %p154, %p155
      %p158 = scmp.ne.s32.totalorder %s141, %s157
      %p159 = scmp.eq.s32.totalorder %s23, 0
      %p160 = por %p158, %p159
      %p161 = scmp.le.s32.totalorder 1, %s17
      %p162 = scmp.lt.s32.totalorder %s17, 3
      %p163 = pnand %p161, %p162
      %p164 = pneg %p163
      // Predicated region
      $region9: #{tpu_custom_call.1} parent=5 // pred_check
        _
      $region10: #{tpu_custom_call.1} parent=5 // pred_check_branch
        %166 = sbr.rel (%p163) target = $region12
      $region11: #{tpu_custom_call.1} parent=5 // pred_region
        %s167 = ssub.s32 %s17, 1
        // Predicated region
        $region13: #{tpu_custom_call.1} parent=11 // pred_check
          %p168 = pneg %p76
        $region14: #{tpu_custom_call.1} parent=11 // pred_check_branch
          %170 = sbr.rel (%p168) target = $region16
        $region15: #{tpu_custom_call.1} parent=11 // pred_region
          _
        $region16: #{tpu_custom_call.1} parent=11 // pred_fallthru
          _
        // Predicated region
        $region17: #{tpu_custom_call.1} parent=11 // pred_check
          %p171 = pneg %p97
        $region18: #{tpu_custom_call.1} parent=11 // pred_check_branch
          %173 = sbr.rel (%p171) target = $region20
        $region19: #{tpu_custom_call.1} parent=11 // pred_region
          _
        $region20: #{tpu_custom_call.1} parent=11 // pred_fallthru
          _
      $region12: #{tpu_custom_call.1} parent=5 // pred_fallthru
        _
      %p174 = scmp.lt.s32.totalorder %s17, 2
      // Predicated region
      $region21: #{tpu_custom_call.1} parent=5 // pred_check
        %p175 = pneg %p174
      $region22: #{tpu_custom_call.1} parent=5 // pred_check_branch
        %177 = sbr.rel (%p175) target = $region24
      $region23: #{tpu_custom_call.1} parent=5 // pred_region
        // Predicated region
        $region25: #{tpu_custom_call.1} parent=23 // pred_check
          %p178 = pneg %p49
        $region26: #{tpu_custom_call.1} parent=23 // pred_check_branch
          %180 = sbr.rel (%p178) target = $region28
        $region27: #{tpu_custom_call.1} parent=23 // pred_region
          %p181 = scmp.lt.s32.totalorder %s24, 1
          %s182 = scalar_select %p181, %s24, 1
          %s183 = smul.addr %s182, 54
          %s184 = smul.addr %s183, 4
          %s185 = scalar_lea.vmem %s0, %s184
        $region28: #{tpu_custom_call.1} parent=23 // pred_fallthru
          _
      $region24: #{tpu_custom_call.1} parent=5 // pred_fallthru
        _
      %p186 = scmp.le.s32.totalorder 1, %s17
      %p187 = scmp.lt.s32.totalorder %s17, 3
      %p188 = pnand %p186, %p187
      %p189 = pneg %p188
      // Predicated region
      $region29: #{tpu_custom_call.1} parent=5 // pred_check
        _
      $region30: #{tpu_custom_call.1} parent=5 // pred_check_branch
        %191 = sbr.rel (%p188) target = $region32
      $region31: #{tpu_custom_call.1} parent=5 // pred_region
        %s192 = ssub.s32 %s17, 1
        %p193 = scmp.lt.s32.totalorder %s26, 1
        %s194 = scalar_select %p193, %s26, 1
        %s195 = smul.addr %s194, 54
        %s196 = smul.addr %s195, 4
        %s197 = scalar_lea.vmem %s0, %s196
        %p198 = pneg %p55
        %p199 = pneg %p52
        %p200 = pneg %p76
        %p201 = pneg %p73
        %p202 = pneg %p97
        %p203 = pneg %p94
        %p204 = pneg %p125
        %p205 = pneg %p122
        %s206 = sand.u32 %s112, 1
        %s207 = scalar_lea.sflag [#allocation3], %s206
        %s208 = sand.u32 %s112, 1
        %s209 = smul.addr %s208, 256
        %s210 = scalar_lea.vmem [#allocation2], %s209
        %p211 = pneg %p153
        %p212 = pneg %p150
        %s213 = sand.u32 %s140, 1
        %s214 = scalar_lea.sflag [#allocation5], %s213
        %s215 = sand.u32 %s140, 1
        %s216 = smul.addr %s215, 2
        %s217 = scalar_lea.vmem [#allocation4], %s216
        %p218 = scmp.lt.s32.totalorder %s26, 1
        %s219 = scalar_select %p218, %s26, 1
        %s220 = smul.addr %s219, 54
        %s221 = smul.addr %s220, 4
        %s222 = scalar_lea.vmem %s0, %s221
        %s223 = smul.u32 16, %s27
        %s225 = smul.u32 %s27, 16
        %v226 = vld [vmem:[%s2] sm:$0x1]
        %s227 = smul.u32 %s225, 3
        %s228 = smul.addr %s227, 4
        %s229 = scalar_lea.vmem %s222, %s228
        %v230 = vld [vmem:[%s229] sm:$0xf]
        %v231 = vld [vmem:[%s229 + $0x4] sm:$0xf]
        %v232 = vld [vmem:[%s229 + $0xc] sm:$0xf]
        %v233 = vld [vmem:[%s229 + $0x10] sm:$0xf]
        %v234 = vld [vmem:[%s229 + $0x18] sm:$0xf]
        %v235 = vld [vmem:[%s229 + $0x1c] sm:$0xf]
        %v236 = vld [vmem:[%s229 + $0x24] sm:$0xf]
        %v237 = vld [vmem:[%s229 + $0x28] sm:$0xf]
        %v238 = vld [vmem:[%s229 + $0x30] sm:$0xf]
        %v239 = vld [vmem:[%s229 + $0x34] sm:$0xf]
        %v240 = vld [vmem:[%s229 + $0x3c] sm:$0xf]
        %v241 = vld [vmem:[%s229 + $0x40] sm:$0xf]
        %v242 = vld [vmem:[%s229 + $0x48] sm:$0xf]
        %v243 = vld [vmem:[%s229 + $0x4c] sm:$0xf]
        %v244 = vld [vmem:[%s229 + $0x54] sm:$0xf]
        %v245 = vld [vmem:[%s229 + $0x58] sm:$0xf]
        %v246 = vld [vmem:[%s229 + $0x60] sm:$0xf]
        %v247 = vld [vmem:[%s229 + $0x64] sm:$0xf]
        %v248 = vld [vmem:[%s229 + $0x6c] sm:$0xf]
        %v249 = vld [vmem:[%s229 + $0x70] sm:$0xf]
        %v250 = vld [vmem:[%s229 + $0x78] sm:$0xf]
        %v251 = vld [vmem:[%s229 + $0x7c] sm:$0xf]
        %v252 = vld [vmem:[%s229 + $0x84] sm:$0xf]
        %v253 = vld [vmem:[%s229 + $0x88] sm:$0xf]
        %v254 = vld [vmem:[%s229 + $0x90] sm:$0xf]
        %v255 = vld [vmem:[%s229 + $0x94] sm:$0xf]
        %v256 = vld [vmem:[%s229 + $0x9c] sm:$0xf]
        %v257 = vld [vmem:[%s229 + $0xa0] sm:$0xf]
        %v258 = vld [vmem:[%s229 + $0xa8] sm:$0xf]
        %v259 = vld [vmem:[%s229 + $0xac] sm:$0xf]
        %v260 = vld [vmem:[%s229 + $0xb4] sm:$0xf]
        %v261 = vld [vmem:[%s229 + $0xb8] sm:$0xf]
        %v262 = vld [vmem:[%s229 + $0x8] sm:$0x1]
        %v263 = vld [vmem:[%s229 + $0x14] sm:$0x1]
        %v264 = vld [vmem:[%s229 + $0x20] sm:$0x1]
        %v265 = vld [vmem:[%s229 + $0x2c] sm:$0x1]
        %v266 = vld [vmem:[%s229 + $0x38] sm:$0x1]
        %v267 = vld [vmem:[%s229 + $0x44] sm:$0x1]
        %v268 = vld [vmem:[%s229 + $0x50] sm:$0x1]
        %v269 = vld [vmem:[%s229 + $0x5c] sm:$0x1]
        %v270 = vld [vmem:[%s229 + $0x68] sm:$0x1]
        %v271 = vld [vmem:[%s229 + $0x74] sm:$0x1]
        %v272 = vld [vmem:[%s229 + $0x80] sm:$0x1]
        %v273 = vld [vmem:[%s229 + $0x8c] sm:$0x1]
        %v274 = vld [vmem:[%s229 + $0x98] sm:$0x1]
        %v275 = vld [vmem:[%s229 + $0xa4] sm:$0x1]
        %v276 = vld [vmem:[%s229 + $0xb0] sm:$0x1]
        %v277 = vld [vmem:[%s229 + $0xbc] sm:$0x1]
        %s278 = sadd.s32 %s225, 1
        %s279 = smul.u32 %s278, 3
        %s280 = smul.addr %s279, 4
        %s281 = scalar_lea.vmem %s222, %s280
        %v282 = vld [vmem:[%s281] sm:$0xf]
        %v283 = vld [vmem:[%s281 + $0x4] sm:$0xf]
        %v284 = vld [vmem:[%s281 + $0xc] sm:$0xf]
        %v285 = vld [vmem:[%s281 + $0x10] sm:$0xf]
        %v286 = vld [vmem:[%s281 + $0x18] sm:$0xf]
        %v287 = vld [vmem:[%s281 + $0x1c] sm:$0xf]
        %v288 = vld [vmem:[%s281 + $0x24] sm:$0xf]
        %v289 = vld [vmem:[%s281 + $0x28] sm:$0xf]
        %v290 = vld [vmem:[%s281 + $0x30] sm:$0xf]
        %v291 = vld [vmem:[%s281 + $0x34] sm:$0xf]
        %v292 = vld [vmem:[%s281 + $0x3c] sm:$0xf]
        %v293 = vld [vmem:[%s281 + $0x40] sm:$0xf]
        %v294 = vld [vmem:[%s281 + $0x48] sm:$0xf]
        %v295 = vld [vmem:[%s281 + $0x4c] sm:$0xf]
        %v296 = vld [vmem:[%s281 + $0x54] sm:$0xf]
        %v297 = vld [vmem:[%s281 + $0x58] sm:$0xf]
        %v298 = vld [vmem:[%s281 + $0x60] sm:$0xf]
        %v299 = vld [vmem:[%s281 + $0x64] sm:$0xf]
        %v300 = vld [vmem:[%s281 + $0x6c] sm:$0xf]
        %v301 = vld [vmem:[%s281 + $0x70] sm:$0xf]
        %v302 = vld [vmem:[%s281 + $0x78] sm:$0xf]
        %v303 = vld [vmem:[%s281 + $0x7c] sm:$0xf]
        %v304 = vld [vmem:[%s281 + $0x84] sm:$0xf]
        %v305 = vld [vmem:[%s281 + $0x88] sm:$0xf]
        %v306 = vld [vmem:[%s281 + $0x90] sm:$0xf]
        %v307 = vld [vmem:[%s281 + $0x94] sm:$0xf]
        %v308 = vld [vmem:[%s281 + $0x9c] sm:$0xf]
        %v309 = vld [vmem:[%s281 + $0xa0] sm:$0xf]
        %v310 = vld [vmem:[%s281 + $0xa8] sm:$0xf]
        %v311 = vld [vmem:[%s281 + $0xac] sm:$0xf]
        %v312 = vld [vmem:[%s281 + $0xb4] sm:$0xf]
        %v313 = vld [vmem:[%s281 + $0xb8] sm:$0xf]
        %v314 = vld [vmem:[%s281 + $0x8] sm:$0x1]
        %v315 = vld [vmem:[%s281 + $0x14] sm:$0x1]
        %v316 = vld [vmem:[%s281 + $0x20] sm:$0x1]
        %v317 = vld [vmem:[%s281 + $0x2c] sm:$0x1]
        %v318 = vld [vmem:[%s281 + $0x38] sm:$0x1]
        %v319 = vld [vmem:[%s281 + $0x44] sm:$0x1]
        %v320 = vld [vmem:[%s281 + $0x50] sm:$0x1]
        %v321 = vld [vmem:[%s281 + $0x5c] sm:$0x1]
        %v322 = vld [vmem:[%s281 + $0x68] sm:$0x1]
        %v323 = vld [vmem:[%s281 + $0x74] sm:$0x1]
        %v324 = vld [vmem:[%s281 + $0x80] sm:$0x1]
        %v325 = vld [vmem:[%s281 + $0x8c] sm:$0x1]
        %v326 = vld [vmem:[%s281 + $0x98] sm:$0x1]
        %v327 = vld [vmem:[%s281 + $0xa4] sm:$0x1]
        %v328 = vld [vmem:[%s281 + $0xb0] sm:$0x1]
        %v329 = vld [vmem:[%s281 + $0xbc] sm:$0x1]
        %v362 = vunpack.c.l.b16 %v230
        %v363 = vunpack.c.l.b16 %v231
        %v364 = vunpack.c.l.b16 %v232
        %v365 = vunpack.c.l.b16 %v233
        %v366 = vunpack.c.l.b16 %v234
        %v367 = vunpack.c.l.b16 %v235
        %v368 = vunpack.c.l.b16 %v236
        %v369 = vunpack.c.l.b16 %v237
        %v370 = vunpack.c.l.b16 %v238
        %v371 = vunpack.c.l.b16 %v239
        %v372 = vunpack.c.l.b16 %v240
        %v373 = vunpack.c.l.b16 %v241
        %v374 = vunpack.c.l.b16 %v242
        %v375 = vunpack.c.l.b16 %v243
        %v376 = vunpack.c.l.b16 %v244
        %v377 = vunpack.c.l.b16 %v245
        %v378 = vunpack.c.l.b16 %v246
        %v379 = vunpack.c.l.b16 %v247
        %v380 = vunpack.c.l.b16 %v248
        %v381 = vunpack.c.l.b16 %v249
        %v382 = vunpack.c.l.b16 %v250
        %v383 = vunpack.c.l.b16 %v251
        %v384 = vunpack.c.l.b16 %v252
        %v385 = vunpack.c.l.b16 %v253
        %v386 = vunpack.c.l.b16 %v254
        %v387 = vunpack.c.l.b16 %v255
        %v388 = vunpack.c.l.b16 %v256
        %v389 = vunpack.c.l.b16 %v257
        %v390 = vunpack.c.l.b16 %v258
        %v391 = vunpack.c.l.b16 %v259
        %v392 = vunpack.c.l.b16 %v260
        %v393 = vunpack.c.l.b16 %v261
        %v394 = vpack.c.b16 %v363, %v362
        %v395 = vpack.c.b16 %v365, %v364
        %v396 = vpack.c.b16 %v367, %v366
        %v397 = vpack.c.b16 %v369, %v368
        %v398 = vpack.c.b16 %v371, %v370
        %v399 = vpack.c.b16 %v373, %v372
        %v400 = vpack.c.b16 %v375, %v374
        %v401 = vpack.c.b16 %v377, %v376
        %v402 = vpack.c.b16 %v379, %v378
        %v403 = vpack.c.b16 %v381, %v380
        %v404 = vpack.c.b16 %v383, %v382
        %v405 = vpack.c.b16 %v385, %v384
        %v406 = vpack.c.b16 %v387, %v386
        %v407 = vpack.c.b16 %v389, %v388
        %v408 = vpack.c.b16 %v391, %v390
        %v409 = vpack.c.b16 %v393, %v392
        %v426 = vunpack.c.l.b16 %v262
        %v427 = vunpack.c.l.b16 %v263
        %v428 = vunpack.c.l.b16 %v264
        %v429 = vunpack.c.l.b16 %v265
        %v430 = vunpack.c.l.b16 %v266
        %v431 = vunpack.c.l.b16 %v267
        %v432 = vunpack.c.l.b16 %v268
        %v433 = vunpack.c.l.b16 %v269
        %v434 = vunpack.c.l.b16 %v270
        %v435 = vunpack.c.l.b16 %v271
        %v436 = vunpack.c.l.b16 %v272
        %v437 = vunpack.c.l.b16 %v273
        %v438 = vunpack.c.l.b16 %v274
        %v439 = vunpack.c.l.b16 %v275
        %v440 = vunpack.c.l.b16 %v276
        %v441 = vunpack.c.l.b16 %v277
        %v442 = vpack.c.b16 %v426, %v426
        %v443 = vpack.c.b16 %v427, %v427
        %v444 = vpack.c.b16 %v428, %v428
        %v445 = vpack.c.b16 %v429, %v429
        %v446 = vpack.c.b16 %v430, %v430
        %v447 = vpack.c.b16 %v431, %v431
        %v448 = vpack.c.b16 %v432, %v432
        %v449 = vpack.c.b16 %v433, %v433
        %v450 = vpack.c.b16 %v434, %v434
        %v451 = vpack.c.b16 %v435, %v435
        %v452 = vpack.c.b16 %v436, %v436
        %v453 = vpack.c.b16 %v437, %v437
        %v454 = vpack.c.b16 %v438, %v438
        %v455 = vpack.c.b16 %v439, %v439
        %v456 = vpack.c.b16 %v440, %v440
        %v457 = vpack.c.b16 %v441, %v441
        %vm458 = vsmask.f32 7424
        %v460 = vshrl.u32 %v394, 16
        %v462 = vshll.u32 %v394, 16
        %v464 = vrot.slane %v462, 1
        %v465 = vor.u32 %v460, %v464
        %v467 = vshll.u32 %v442, 16
        %v469 = vrot.slane %v467, 1
        %v470 = vsel %vm458, %v465, %v469
        %v472 = vshrl.u32 %v395, 16
        %v474 = vshll.u32 %v395, 16
        %v476 = vrot.slane %v474, 1
        %v477 = vor.u32 %v472, %v476
        %v479 = vshll.u32 %v443, 16
        %v481 = vrot.slane %v479, 1
        %v482 = vsel %vm458, %v477, %v481
        %v484 = vshrl.u32 %v396, 16
        %v486 = vshll.u32 %v396, 16
        %v488 = vrot.slane %v486, 1
        %v489 = vor.u32 %v484, %v488
        %v491 = vshll.u32 %v444, 16
        %v493 = vrot.slane %v491, 1
        %v494 = vsel %vm458, %v489, %v493
        %v496 = vshrl.u32 %v397, 16
        %v498 = vshll.u32 %v397, 16
        %v500 = vrot.slane %v498, 1
        %v501 = vor.u32 %v496, %v500
        %v503 = vshll.u32 %v445, 16
        %v505 = vrot.slane %v503, 1
        %v506 = vsel %vm458, %v501, %v505
        %v508 = vshrl.u32 %v398, 16
        %v510 = vshll.u32 %v398, 16
        %v512 = vrot.slane %v510, 1
        %v513 = vor.u32 %v508, %v512
        %v515 = vshll.u32 %v446, 16
        %v517 = vrot.slane %v515, 1
        %v518 = vsel %vm458, %v513, %v517
        %v520 = vshrl.u32 %v399, 16
        %v522 = vshll.u32 %v399, 16
        %v524 = vrot.slane %v522, 1
        %v525 = vor.u32 %v520, %v524
        %v527 = vshll.u32 %v447, 16
        %v529 = vrot.slane %v527, 1
        %v530 = vsel %vm458, %v525, %v529
        %v532 = vshrl.u32 %v400, 16
        %v534 = vshll.u32 %v400, 16
        %v536 = vrot.slane %v534, 1
        %v537 = vor.u32 %v532, %v536
        %v539 = vshll.u32 %v448, 16
        %v541 = vrot.slane %v539, 1
        %v542 = vsel %vm458, %v537, %v541
        %v544 = vshrl.u32 %v401, 16
        %v546 = vshll.u32 %v401, 16
        %v548 = vrot.slane %v546, 1
        %v549 = vor.u32 %v544, %v548
        %v551 = vshll.u32 %v449, 16
        %v553 = vrot.slane %v551, 1
        %v554 = vsel %vm458, %v549, %v553
        %v556 = vshrl.u32 %v402, 16
        %v558 = vshll.u32 %v402, 16
        %v560 = vrot.slane %v558, 1
        %v561 = vor.u32 %v556, %v560
        %v563 = vshll.u32 %v450, 16
        %v565 = vrot.slane %v563, 1
        %v566 = vsel %vm458, %v561, %v565
        %v568 = vshrl.u32 %v403, 16
        %v570 = vshll.u32 %v403, 16
        %v572 = vrot.slane %v570, 1
        %v573 = vor.u32 %v568, %v572
        %v575 = vshll.u32 %v451, 16
        %v577 = vrot.slane %v575, 1
        %v578 = vsel %vm458, %v573, %v577
        %v580 = vshrl.u32 %v404, 16
        %v582 = vshll.u32 %v404, 16
        %v584 = vrot.slane %v582, 1
        %v585 = vor.u32 %v580, %v584
        %v587 = vshll.u32 %v452, 16
        %v589 = vrot.slane %v587, 1
        %v590 = vsel %vm458, %v585, %v589
        %v592 = vshrl.u32 %v405, 16
        %v594 = vshll.u32 %v405, 16
        %v596 = vrot.slane %v594, 1
        %v597 = vor.u32 %v592, %v596
        %v599 = vshll.u32 %v453, 16
        %v601 = vrot.slane %v599, 1
        %v602 = vsel %vm458, %v597, %v601
        %v604 = vshrl.u32 %v406, 16
        %v606 = vshll.u32 %v406, 16
        %v608 = vrot.slane %v606, 1
        %v609 = vor.u32 %v604, %v608
        %v611 = vshll.u32 %v454, 16
        %v613 = vrot.slane %v611, 1
        %v614 = vsel %vm458, %v609, %v613
        %v616 = vshrl.u32 %v407, 16
        %v618 = vshll.u32 %v407, 16
        %v620 = vrot.slane %v618, 1
        %v621 = vor.u32 %v616, %v620
        %v623 = vshll.u32 %v455, 16
        %v625 = vrot.slane %v623, 1
        %v626 = vsel %vm458, %v621, %v625
        %v628 = vshrl.u32 %v408, 16
        %v630 = vshll.u32 %v408, 16
        %v632 = vrot.slane %v630, 1
        %v633 = vor.u32 %v628, %v632
        %v635 = vshll.u32 %v456, 16
        %v637 = vrot.slane %v635, 1
        %v638 = vsel %vm458, %v633, %v637
        %v640 = vshrl.u32 %v409, 16
        %v642 = vshll.u32 %v409, 16
        %v644 = vrot.slane %v642, 1
        %v645 = vor.u32 %v640, %v644
        %v647 = vshll.u32 %v457, 16
        %v649 = vrot.slane %v647, 1
        %v650 = vsel %vm458, %v645, %v649
        %651 = vrot.lane.b32.xlu0 %v470, 4
        %v652 = vpop.permute.xlu0 %651
        %653 = vrot.lane.b32.xlu0 %v482, 4
        %v654 = vpop.permute.xlu0 %653
        %655 = vrot.lane.b32.xlu0 %v494, 4
        %v656 = vpop.permute.xlu0 %655
        %657 = vrot.lane.b32.xlu0 %v506, 4
        %v658 = vpop.permute.xlu0 %657
        %659 = vrot.lane.b32.xlu0 %v518, 4
        %v660 = vpop.permute.xlu0 %659
        %661 = vrot.lane.b32.xlu0 %v530, 4
        %v662 = vpop.permute.xlu0 %661
        %663 = vrot.lane.b32.xlu0 %v542, 4
        %v664 = vpop.permute.xlu0 %663
        %665 = vrot.lane.b32.xlu0 %v554, 4
        %v666 = vpop.permute.xlu0 %665
        %667 = vrot.lane.b32.xlu0 %v566, 4
        %v668 = vpop.permute.xlu0 %667
        %669 = vrot.lane.b32.xlu0 %v578, 4
        %v670 = vpop.permute.xlu0 %669
        %671 = vrot.lane.b32.xlu0 %v590, 4
        %v672 = vpop.permute.xlu0 %671
        %673 = vrot.lane.b32.xlu0 %v602, 4
        %v674 = vpop.permute.xlu0 %673
        %675 = vrot.lane.b32.xlu0 %v614, 4
        %v676 = vpop.permute.xlu0 %675
        %677 = vrot.lane.b32.xlu0 %v626, 4
        %v678 = vpop.permute.xlu0 %677
        %679 = vrot.lane.b32.xlu0 %v638, 4
        %v680 = vpop.permute.xlu0 %679
        %681 = vrot.lane.b32.xlu0 %v650, 4
        %v682 = vpop.permute.xlu0 %681
        %v715 = vunpack.c.l.b16 %v282
        %v716 = vunpack.c.l.b16 %v283
        %v717 = vunpack.c.l.b16 %v284
        %v718 = vunpack.c.l.b16 %v285
        %v719 = vunpack.c.l.b16 %v286
        %v720 = vunpack.c.l.b16 %v287
        %v721 = vunpack.c.l.b16 %v288
        %v722 = vunpack.c.l.b16 %v289
        %v723 = vunpack.c.l.b16 %v290
        %v724 = vunpack.c.l.b16 %v291
        %v725 = vunpack.c.l.b16 %v292
        %v726 = vunpack.c.l.b16 %v293
        %v727 = vunpack.c.l.b16 %v294
        %v728 = vunpack.c.l.b16 %v295
        %v729 = vunpack.c.l.b16 %v296
        %v730 = vunpack.c.l.b16 %v297
        %v731 = vunpack.c.l.b16 %v298
        %v732 = vunpack.c.l.b16 %v299
        %v733 = vunpack.c.l.b16 %v300
        %v734 = vunpack.c.l.b16 %v301
        %v735 = vunpack.c.l.b16 %v302
        %v736 = vunpack.c.l.b16 %v303
        %v737 = vunpack.c.l.b16 %v304
        %v738 = vunpack.c.l.b16 %v305
        %v739 = vunpack.c.l.b16 %v306
        %v740 = vunpack.c.l.b16 %v307
        %v741 = vunpack.c.l.b16 %v308
        %v742 = vunpack.c.l.b16 %v309
        %v743 = vunpack.c.l.b16 %v310
        %v744 = vunpack.c.l.b16 %v311
        %v745 = vunpack.c.l.b16 %v312
        %v746 = vunpack.c.l.b16 %v313
        %v747 = vpack.c.b16 %v716, %v715
        %v748 = vpack.c.b16 %v718, %v717
        %v749 = vpack.c.b16 %v720, %v719
        %v750 = vpack.c.b16 %v722, %v721
        %v751 = vpack.c.b16 %v724, %v723
        %v752 = vpack.c.b16 %v726, %v725
        %v753 = vpack.c.b16 %v728, %v727
        %v754 = vpack.c.b16 %v730, %v729
        %v755 = vpack.c.b16 %v732, %v731
        %v756 = vpack.c.b16 %v734, %v733
        %v757 = vpack.c.b16 %v736, %v735
        %v758 = vpack.c.b16 %v738, %v737
        %v759 = vpack.c.b16 %v740, %v739
        %v760 = vpack.c.b16 %v742, %v741
        %v761 = vpack.c.b16 %v744, %v743
        %v762 = vpack.c.b16 %v746, %v745
        %763 = vrot.lane.b32.xlu0 %v747, 8
        %v764 = vpop.permute.xlu0 %763
        %765 = vrot.lane.b32.xlu0 %v748, 8
        %v766 = vpop.permute.xlu0 %765
        %767 = vrot.lane.b32.xlu0 %v749, 8
        %v768 = vpop.permute.xlu0 %767
        %769 = vrot.lane.b32.xlu0 %v750, 8
        %v770 = vpop.permute.xlu0 %769
        %771 = vrot.lane.b32.xlu0 %v751, 8
        %v772 = vpop.permute.xlu0 %771
        %773 = vrot.lane.b32.xlu0 %v752, 8
        %v774 = vpop.permute.xlu0 %773
        %775 = vrot.lane.b32.xlu0 %v753, 8
        %v776 = vpop.permute.xlu0 %775
        %777 = vrot.lane.b32.xlu0 %v754, 8
        %v778 = vpop.permute.xlu0 %777
        %779 = vrot.lane.b32.xlu0 %v755, 8
        %v780 = vpop.permute.xlu0 %779
        %781 = vrot.lane.b32.xlu0 %v756, 8
        %v782 = vpop.permute.xlu0 %781
        %783 = vrot.lane.b32.xlu0 %v757, 8
        %v784 = vpop.permute.xlu0 %783
        %785 = vrot.lane.b32.xlu0 %v758, 8
        %v786 = vpop.permute.xlu0 %785
        %787 = vrot.lane.b32.xlu0 %v759, 8
        %v788 = vpop.permute.xlu0 %787
        %789 = vrot.lane.b32.xlu0 %v760, 8
        %v790 = vpop.permute.xlu0 %789
        %791 = vrot.lane.b32.xlu0 %v761, 8
        %v792 = vpop.permute.xlu0 %791
        %793 = vrot.lane.b32.xlu0 %v762, 8
        %v794 = vpop.permute.xlu0 %793
        %v811 = vunpack.c.l.b16 %v314
        %v812 = vunpack.c.l.b16 %v315
        %v813 = vunpack.c.l.b16 %v316
        %v814 = vunpack.c.l.b16 %v317
        %v815 = vunpack.c.l.b16 %v318
        %v816 = vunpack.c.l.b16 %v319
        %v817 = vunpack.c.l.b16 %v320
        %v818 = vunpack.c.l.b16 %v321
        %v819 = vunpack.c.l.b16 %v322
        %v820 = vunpack.c.l.b16 %v323
        %v821 = vunpack.c.l.b16 %v324
        %v822 = vunpack.c.l.b16 %v325
        %v823 = vunpack.c.l.b16 %v326
        %v824 = vunpack.c.l.b16 %v327
        %v825 = vunpack.c.l.b16 %v328
        %v826 = vunpack.c.l.b16 %v329
        %v827 = vpack.c.b16 %v811, %v811
        %v828 = vpack.c.b16 %v812, %v812
        %v829 = vpack.c.b16 %v813, %v813
        %v830 = vpack.c.b16 %v814, %v814
        %v831 = vpack.c.b16 %v815, %v815
        %v832 = vpack.c.b16 %v816, %v816
        %v833 = vpack.c.b16 %v817, %v817
        %v834 = vpack.c.b16 %v818, %v818
        %v835 = vpack.c.b16 %v819, %v819
        %v836 = vpack.c.b16 %v820, %v820
        %v837 = vpack.c.b16 %v821, %v821
        %v838 = vpack.c.b16 %v822, %v822
        %v839 = vpack.c.b16 %v823, %v823
        %v840 = vpack.c.b16 %v824, %v824
        %v841 = vpack.c.b16 %v825, %v825
        %v842 = vpack.c.b16 %v826, %v826
        %v844 = vshrl.u32 %v747, 16
        %v846 = vshll.u32 %v747, 16
        %v848 = vrot.slane %v846, 1
        %v849 = vor.u32 %v844, %v848
        %v851 = vshll.u32 %v827, 16
        %v853 = vrot.slane %v851, 1
        %v854 = vsel %vm458, %v849, %v853
        %v856 = vshrl.u32 %v748, 16
        %v858 = vshll.u32 %v748, 16
        %v860 = vrot.slane %v858, 1
        %v861 = vor.u32 %v856, %v860
        %v863 = vshll.u32 %v828, 16
        %v865 = vrot.slane %v863, 1
        %v866 = vsel %vm458, %v861, %v865
        %v868 = vshrl.u32 %v749, 16
        %v870 = vshll.u32 %v749, 16
        %v872 = vrot.slane %v870, 1
        %v873 = vor.u32 %v868, %v872
        %v875 = vshll.u32 %v829, 16
        %v877 = vrot.slane %v875, 1
        %v878 = vsel %vm458, %v873, %v877
        %v880 = vshrl.u32 %v750, 16
        %v882 = vshll.u32 %v750, 16
        %v884 = vrot.slane %v882, 1
        %v885 = vor.u32 %v880, %v884
        %v887 = vshll.u32 %v830, 16
        %v889 = vrot.slane %v887, 1
        %v890 = vsel %vm458, %v885, %v889
        %v892 = vshrl.u32 %v751, 16
        %v894 = vshll.u32 %v751, 16
        %v896 = vrot.slane %v894, 1
        %v897 = vor.u32 %v892, %v896
        %v899 = vshll.u32 %v831, 16
        %v901 = vrot.slane %v899, 1
        %v902 = vsel %vm458, %v897, %v901
        %v904 = vshrl.u32 %v752, 16
        %v906 = vshll.u32 %v752, 16
        %v908 = vrot.slane %v906, 1
        %v909 = vor.u32 %v904, %v908
        %v911 = vshll.u32 %v832, 16
        %v913 = vrot.slane %v911, 1
        %v914 = vsel %vm458, %v909, %v913
        %v916 = vshrl.u32 %v753, 16
        %v918 = vshll.u32 %v753, 16
        %v920 = vrot.slane %v918, 1
        %v921 = vor.u32 %v916, %v920
        %v923 = vshll.u32 %v833, 16
        %v925 = vrot.slane %v923, 1
        %v926 = vsel %vm458, %v921, %v925
        %v928 = vshrl.u32 %v754, 16
        %v930 = vshll.u32 %v754, 16
        %v932 = vrot.slane %v930, 1
        %v933 = vor.u32 %v928, %v932
        %v935 = vshll.u32 %v834, 16
        %v937 = vrot.slane %v935, 1
        %v938 = vsel %vm458, %v933, %v937
        %v940 = vshrl.u32 %v755, 16
        %v942 = vshll.u32 %v755, 16
        %v944 = vrot.slane %v942, 1
        %v945 = vor.u32 %v940, %v944
        %v947 = vshll.u32 %v835, 16
        %v949 = vrot.slane %v947, 1
        %v950 = vsel %vm458, %v945, %v949
        %v952 = vshrl.u32 %v756, 16
        %v954 = vshll.u32 %v756, 16
        %v956 = vrot.slane %v954, 1
        %v957 = vor.u32 %v952, %v956
        %v959 = vshll.u32 %v836, 16
        %v961 = vrot.slane %v959, 1
        %v962 = vsel %vm458, %v957, %v961
        %v964 = vshrl.u32 %v757, 16
        %v966 = vshll.u32 %v757, 16
        %v968 = vrot.slane %v966, 1
        %v969 = vor.u32 %v964, %v968
        %v971 = vshll.u32 %v837, 16
        %v973 = vrot.slane %v971, 1
        %v974 = vsel %vm458, %v969, %v973
        %v976 = vshrl.u32 %v758, 16
        %v978 = vshll.u32 %v758, 16
        %v980 = vrot.slane %v978, 1
        %v981 = vor.u32 %v976, %v980
        %v983 = vshll.u32 %v838, 16
        %v985 = vrot.slane %v983, 1
        %v986 = vsel %vm458, %v981, %v985
        %v988 = vshrl.u32 %v759, 16
        %v990 = vshll.u32 %v759, 16
        %v992 = vrot.slane %v990, 1
        %v993 = vor.u32 %v988, %v992
        %v995 = vshll.u32 %v839, 16
        %v997 = vrot.slane %v995, 1
        %v998 = vsel %vm458, %v993, %v997
        %v1000 = vshrl.u32 %v760, 16
        %v1002 = vshll.u32 %v760, 16
        %v1004 = vrot.slane %v1002, 1
        %v1005 = vor.u32 %v1000, %v1004
        %v1007 = vshll.u32 %v840, 16
        %v1009 = vrot.slane %v1007, 1
        %v1010 = vsel %vm458, %v1005, %v1009
        %v1012 = vshrl.u32 %v761, 16
        %v1014 = vshll.u32 %v761, 16
        %v1016 = vrot.slane %v1014, 1
        %v1017 = vor.u32 %v1012, %v1016
        %v1019 = vshll.u32 %v841, 16
        %v1021 = vrot.slane %v1019, 1
        %v1022 = vsel %vm458, %v1017, %v1021
        %v1024 = vshrl.u32 %v762, 16
        %v1026 = vshll.u32 %v762, 16
        %v1028 = vrot.slane %v1026, 1
        %v1029 = vor.u32 %v1024, %v1028
        %v1031 = vshll.u32 %v842, 16
        %v1033 = vrot.slane %v1031, 1
        %v1034 = vsel %vm458, %v1029, %v1033
        %1035 = vrot.lane.b32.xlu0 %v854, 12
        %v1036 = vpop.permute.xlu0 %1035
        %1037 = vrot.lane.b32.xlu0 %v866, 12
        %v1038 = vpop.permute.xlu0 %1037
        %1039 = vrot.lane.b32.xlu0 %v878, 12
        %v1040 = vpop.permute.xlu0 %1039
        %1041 = vrot.lane.b32.xlu0 %v890, 12
        %v1042 = vpop.permute.xlu0 %1041
        %1043 = vrot.lane.b32.xlu0 %v902, 12
        %v1044 = vpop.permute.xlu0 %1043
        %1045 = vrot.lane.b32.xlu0 %v914, 12
        %v1046 = vpop.permute.xlu0 %1045
        %1047 = vrot.lane.b32.xlu0 %v926, 12
        %v1048 = vpop.permute.xlu0 %1047
        %1049 = vrot.lane.b32.xlu0 %v938, 12
        %v1050 = vpop.permute.xlu0 %1049
        %1051 = vrot.lane.b32.xlu0 %v950, 12
        %v1052 = vpop.permute.xlu0 %1051
        %1053 = vrot.lane.b32.xlu0 %v962, 12
        %v1054 = vpop.permute.xlu0 %1053
        %1055 = vrot.lane.b32.xlu0 %v974, 12
        %v1056 = vpop.permute.xlu0 %1055
        %1057 = vrot.lane.b32.xlu0 %v986, 12
        %v1058 = vpop.permute.xlu0 %1057
        %1059 = vrot.lane.b32.xlu0 %v998, 12
        %v1060 = vpop.permute.xlu0 %1059
        %1061 = vrot.lane.b32.xlu0 %v1010, 12
        %v1062 = vpop.permute.xlu0 %1061
        %1063 = vrot.lane.b32.xlu0 %v1022, 12
        %v1064 = vpop.permute.xlu0 %1063
        %1065 = vrot.lane.b32.xlu0 %v1034, 12
        %v1066 = vpop.permute.xlu0 %1065
        %vm1067 = vcmask 31744
        %v1069 = vsel %vm1067, %v394, %v652
        %v1071 = vsel %vm1067, %v395, %v654
        %v1073 = vsel %vm1067, %v396, %v656
        %v1075 = vsel %vm1067, %v397, %v658
        %v1077 = vsel %vm1067, %v398, %v660
        %v1079 = vsel %vm1067, %v399, %v662
        %v1081 = vsel %vm1067, %v400, %v664
        %v1083 = vsel %vm1067, %v401, %v666
        %v1085 = vsel %vm1067, %v402, %v668
        %v1087 = vsel %vm1067, %v403, %v670
        %v1089 = vsel %vm1067, %v404, %v672
        %v1091 = vsel %vm1067, %v405, %v674
        %v1093 = vsel %vm1067, %v406, %v676
        %v1095 = vsel %vm1067, %v407, %v678
        %v1097 = vsel %vm1067, %v408, %v680
        %v1099 = vsel %vm1067, %v409, %v682
        %vm1100 = vcmask 64512
        %v1102 = vsel %vm1100, %v1069, %v764
        %v1104 = vsel %vm1100, %v1071, %v766
        %v1106 = vsel %vm1100, %v1073, %v768
        %v1108 = vsel %vm1100, %v1075, %v770
        %v1110 = vsel %vm1100, %v1077, %v772
        %v1112 = vsel %vm1100, %v1079, %v774
        %v1114 = vsel %vm1100, %v1081, %v776
        %v1116 = vsel %vm1100, %v1083, %v778
        %v1118 = vsel %vm1100, %v1085, %v780
        %v1120 = vsel %vm1100, %v1087, %v782
        %v1122 = vsel %vm1100, %v1089, %v784
        %v1124 = vsel %vm1100, %v1091, %v786
        %v1126 = vsel %vm1100, %v1093, %v788
        %v1128 = vsel %vm1100, %v1095, %v790
        %v1130 = vsel %vm1100, %v1097, %v792
        %v1132 = vsel %vm1100, %v1099, %v794
        %vm1133 = vcmask 97280
        %v1135 = vsel %vm1133, %v1102, %v1036
        %v1137 = vsel %vm1133, %v1104, %v1038
        %v1139 = vsel %vm1133, %v1106, %v1040
        %v1141 = vsel %vm1133, %v1108, %v1042
        %v1143 = vsel %vm1133, %v1110, %v1044
        %v1145 = vsel %vm1133, %v1112, %v1046
        %v1147 = vsel %vm1133, %v1114, %v1048
        %v1149 = vsel %vm1133, %v1116, %v1050
        %v1151 = vsel %vm1133, %v1118, %v1052
        %v1153 = vsel %vm1133, %v1120, %v1054
        %v1155 = vsel %vm1133, %v1122, %v1056
        %v1157 = vsel %vm1133, %v1124, %v1058
        %v1159 = vsel %vm1133, %v1126, %v1060
        %v1161 = vsel %vm1133, %v1128, %v1062
        %v1163 = vsel %vm1133, %v1130, %v1064
        %v1165 = vsel %vm1133, %v1132, %v1066
        %v1166 = vld [vmem:[%s1] sm:$0xf]
        %v1167 = vld [vmem:[%s1 + $0x4] sm:$0xf]
        %v1169 = vlaneseq
        %v1170 = vshrl.u32 %v1169, 7
        %v1171 = vsub.s32 0, %v1170
        %v1172 = vrot.slane %v226, %v1171
        %v1176 = vunpack.c.l.b16 %v1166
        %v1177 = vunpack.c.l.b16 %v1167
        %v1178 = vpack.c.b16 %v1177, %v1176
        %vm1180 = vcmask 130048
        %v1181 = vsel %vm1180, %v1135, 0
        %v1183 = vsel %vm1180, %v1137, 0
        %v1185 = vsel %vm1180, %v1139, 0
        %v1187 = vsel %vm1180, %v1141, 0
        %v1189 = vsel %vm1180, %v1143, 0
        %v1191 = vsel %vm1180, %v1145, 0
        %v1193 = vsel %vm1180, %v1147, 0
        %v1195 = vsel %vm1180, %v1149, 0
        %v1197 = vsel %vm1180, %v1151, 0
        %v1199 = vsel %vm1180, %v1153, 0
        %v1201 = vsel %vm1180, %v1155, 0
        %v1203 = vsel %vm1180, %v1157, 0
        %v1205 = vsel %vm1180, %v1159, 0
        %v1207 = vsel %vm1180, %v1161, 0
        %v1209 = vsel %vm1180, %v1163, 0
        %v1211 = vsel %vm1180, %v1165, 0
        %1213 = vmatprep.subr.bf16.mxu0 0
        %1214 = vmatpush1.bf16.msra.mxu0 %v1178
        %1215 = vmatprep.subr.bf16.mxu0 0
        %1216 = vmatpush1.bf16.msra.mxu0 0
        %1217 = vmatprep.subr.bf16.mxu0 0
        %1218 = vmatpush1.bf16.msra.mxu0 0
        %1219 = vmatprep.subr.bf16.mxu0 0
        %1220 = vmatpush1.bf16.msra.mxu0 0
        %1221 = vmatprep.subr.bf16.mxu0 0
        %1222 = vmatpush1.bf16.msra.mxu0 0
        %1223 = vmatprep.subr.bf16.mxu0 0
        %1224 = vmatpush1.bf16.msra.mxu0 0
        %1225 = vmatprep.subr.bf16.mxu0 0
        %1226 = vmatpush1.bf16.msra.mxu0 0
        %1227 = vmatprep.subr.bf16.mxu0 0
        %1228 = vmatpush1.bf16.msra.mxu0 0
        %1229 = vmatprep.subr.bf16.mxu0 0
        %1230 = vmatpush1.bf16.msra.mxu0 0
        %1231 = vmatprep.subr.bf16.mxu0 0
        %1232 = vmatpush1.bf16.msra.mxu0 0
        %1233 = vmatprep.subr.bf16.mxu0 0
        %1234 = vmatpush1.bf16.msra.mxu0 0
        %1235 = vmatprep.subr.bf16.mxu0 0
        %1236 = vmatpush1.bf16.msra.mxu0 0
        %1237 = vmatprep.subr.bf16.mxu0 0
        %1238 = vmatpush1.bf16.msra.mxu0 0
        %1239 = vmatprep.subr.bf16.mxu0 0
        %1240 = vmatpush1.bf16.msra.mxu0 0
        %1241 = vmatprep.subr.bf16.mxu0 0
        %1242 = vmatpush1.bf16.msra.mxu0 0
        %1243 = vmatprep.subr.bf16.mxu0 0
        %1244 = vmatpush1.bf16.msra.mxu0 0
        %1245 = vmatprep.mubr.bf16.mxu0 0
        %1246 = vmatmul.mubr.bf16.gmra.mrb[0].mxu0 %v1181
        %v1247 = vpop.f32.mrb[0].mxu0
        %v1248 = vadd.f32 %v1172, %v1247
        %v1249 = vpop.f32.mrb[0].mxu0
        %v1250 = vpop.f32.mrb[0].mxu0
        %v1251 = vadd.f32 %v1172, %v1250
        %v1252 = vpop.f32.mrb[0].mxu0
        %1253 = vmatprep.mubr.bf16.mxu0 0
        %1254 = vmatmul.mubr.bf16.gmra.mrb[0].mxu0 %v1183
        %v1255 = vpop.f32.mrb[0].mxu0
        %v1256 = vadd.f32 %v1172, %v1255
        %v1257 = vpop.f32.mrb[0].mxu0
        %v1258 = vpop.f32.mrb[0].mxu0
        %v1259 = vadd.f32 %v1172, %v1258
        %v1260 = vpop.f32.mrb[0].mxu0
        %1261 = vmatprep.mubr.bf16.mxu0 0
        %1262 = vmatmul.mubr.bf16.gmra.mrb[0].mxu0 %v1185
        %v1263 = vpop.f32.mrb[0].mxu0
        %v1264 = vadd.f32 %v1172, %v1263
        %v1265 = vpop.f32.mrb[0].mxu0
        %v1266 = vpop.f32.mrb[0].mxu0
        %v1267 = vadd.f32 %v1172, %v1266
        %v1268 = vpop.f32.mrb[0].mxu0
        %1269 = vmatprep.mubr.bf16.mxu0 0
        %1270 = vmatmul.mubr.bf16.gmra.mrb[0].mxu0 %v1187
        %v1271 = vpop.f32.mrb[0].mxu0
        %v1272 = vadd.f32 %v1172, %v1271
        %v1273 = vpop.f32.mrb[0].mxu0
        %v1274 = vpop.f32.mrb[0].mxu0
        %v1275 = vadd.f32 %v1172, %v1274
        %v1276 = vpop.f32.mrb[0].mxu0
        %1277 = vmatprep.mubr.bf16.mxu0 0
        %1278 = vmatmul.mubr.bf16.gmra.mrb[0].mxu0 %v1189
        %v1279 = vpop.f32.mrb[0].mxu0
        %v1280 = vadd.f32 %v1172, %v1279
        %v1281 = vpop.f32.mrb[0].mxu0
        %v1282 = vpop.f32.mrb[0].mxu0
        %v1283 = vadd.f32 %v1172, %v1282
        %v1284 = vpop.f32.mrb[0].mxu0
        %1285 = vmatprep.mubr.bf16.mxu0 0
        %1286 = vmatmul.mubr.bf16.gmra.mrb[0].mxu0 %v1191
        %v1287 = vpop.f32.mrb[0].mxu0
        %v1288 = vadd.f32 %v1172, %v1287
        %v1289 = vpop.f32.mrb[0].mxu0
        %v1290 = vpop.f32.mrb[0].mxu0
        %v1291 = vadd.f32 %v1172, %v1290
        %v1292 = vpop.f32.mrb[0].mxu0
        %1293 = vmatprep.mubr.bf16.mxu0 0
        %1294 = vmatmul.mubr.bf16.gmra.mrb[0].mxu0 %v1193
        %v1295 = vpop.f32.mrb[0].mxu0
        %v1296 = vadd.f32 %v1172, %v1295
        %v1297 = vpop.f32.mrb[0].mxu0
        %v1298 = vpop.f32.mrb[0].mxu0
        %v1299 = vadd.f32 %v1172, %v1298
        %v1300 = vpop.f32.mrb[0].mxu0
        %1301 = vmatprep.mubr.bf16.mxu0 0
        %1302 = vmatmul.mubr.bf16.gmra.mrb[0].mxu0 %v1195
        %v1303 = vpop.f32.mrb[0].mxu0
        %v1304 = vadd.f32 %v1172, %v1303
        %v1305 = vpop.f32.mrb[0].mxu0
        %v1306 = vpop.f32.mrb[0].mxu0
        %v1307 = vadd.f32 %v1172, %v1306
        %v1308 = vpop.f32.mrb[0].mxu0
        %1309 = vmatprep.mubr.bf16.mxu0 0
        %1310 = vmatmul.mubr.bf16.gmra.mrb[0].mxu0 %v1197
        %v1311 = vpop.f32.mrb[0].mxu0
        %v1312 = vadd.f32 %v1172, %v1311
        %v1313 = vpop.f32.mrb[0].mxu0
        %v1314 = vpop.f32.mrb[0].mxu0
        %v1315 = vadd.f32 %v1172, %v1314
        %v1316 = vpop.f32.mrb[0].mxu0
        %1317 = vmatprep.mubr.bf16.mxu0 0
        %1318 = vmatmul.mubr.bf16.gmra.mrb[0].mxu0 %v1199
        %v1319 = vpop.f32.mrb[0].mxu0
        %v1320 = vadd.f32 %v1172, %v1319
        %v1321 = vpop.f32.mrb[0].mxu0
        %v1322 = vpop.f32.mrb[0].mxu0
        %v1323 = vadd.f32 %v1172, %v1322
        %v1324 = vpop.f32.mrb[0].mxu0
        %1325 = vmatprep.mubr.bf16.mxu0 0
        %1326 = vmatmul.mubr.bf16.gmra.mrb[0].mxu0 %v1201
        %v1327 = vpop.f32.mrb[0].mxu0
        %v1328 = vadd.f32 %v1172, %v1327
        %v1329 = vpop.f32.mrb[0].mxu0
        %v1330 = vpop.f32.mrb[0].mxu0
        %v1331 = vadd.f32 %v1172, %v1330
        %v1332 = vpop.f32.mrb[0].mxu0
        %1333 = vmatprep.mubr.bf16.mxu0 0
        %1334 = vmatmul.mubr.bf16.gmra.mrb[0].mxu0 %v1203
        %v1335 = vpop.f32.mrb[0].mxu0
        %v1336 = vadd.f32 %v1172, %v1335
        %v1337 = vpop.f32.mrb[0].mxu0
        %v1338 = vpop.f32.mrb[0].mxu0
        %v1339 = vadd.f32 %v1172, %v1338
        %v1340 = vpop.f32.mrb[0].mxu0
        %1341 = vmatprep.mubr.bf16.mxu0 0
        %1342 = vmatmul.mubr.bf16.gmra.mrb[0].mxu0 %v1205
        %v1343 = vpop.f32.mrb[0].mxu0
        %v1344 = vadd.f32 %v1172, %v1343
        %v1345 = vpop.f32.mrb[0].mxu0
        %v1346 = vpop.f32.mrb[0].mxu0
        %v1347 = vadd.f32 %v1172, %v1346
        %v1348 = vpop.f32.mrb[0].mxu0
        %1349 = vmatprep.mubr.bf16.mxu0 0
        %1350 = vmatmul.mubr.bf16.gmra.mrb[0].mxu0 %v1207
        %v1351 = vpop.f32.mrb[0].mxu0
        %v1352 = vadd.f32 %v1172, %v1351
        %v1353 = vpop.f32.mrb[0].mxu0
        %v1354 = vpop.f32.mrb[0].mxu0
        %v1355 = vadd.f32 %v1172, %v1354
        %v1356 = vpop.f32.mrb[0].mxu0
        %1357 = vmatprep.mubr.bf16.mxu0 0
        %1358 = vmatmul.mubr.bf16.gmra.mrb[0].mxu0 %v1209
        %v1359 = vpop.f32.mrb[0].mxu0
        %v1360 = vadd.f32 %v1172, %v1359
        %v1361 = vpop.f32.mrb[0].mxu0
        %v1362 = vpop.f32.mrb[0].mxu0
        %v1363 = vadd.f32 %v1172, %v1362
        %v1364 = vpop.f32.mrb[0].mxu0
        %1365 = vmatprep.mubr.bf16.mxu0 0
        %1366 = vmatmul.mubr.bf16.gmra.mrb[0].mxu0 %v1211
        %v1367 = vpop.f32.mrb[0].mxu0
        %v1368 = vadd.f32 %v1172, %v1367
        %v1369 = vpop.f32.mrb[0].mxu0
        %v1370 = vpop.f32.mrb[0].mxu0
        %v1371 = vadd.f32 %v1172, %v1370
        %v1372 = vpop.f32.mrb[0].mxu0
        %1373 = vdwg.mxu0
        %v1374 = vmin.f32 %v1248, 30.0
        %v1375 = vmin.f32 %v1251, 30.0
        %v1376 = vmin.f32 %v1256, 30.0
        %v1377 = vmin.f32 %v1259, 30.0
        %v1378 = vmin.f32 %v1264, 30.0
        %v1379 = vmin.f32 %v1267, 30.0
        %v1380 = vmin.f32 %v1272, 30.0
        %v1381 = vmin.f32 %v1275, 30.0
        %v1382 = vmin.f32 %v1280, 30.0
        %v1383 = vmin.f32 %v1283, 30.0
        %v1384 = vmin.f32 %v1288, 30.0
        %v1385 = vmin.f32 %v1291, 30.0
        %v1386 = vmin.f32 %v1296, 30.0
        %v1387 = vmin.f32 %v1299, 30.0
        %v1388 = vmin.f32 %v1304, 30.0
        %v1389 = vmin.f32 %v1307, 30.0
        %v1390 = vmin.f32 %v1312, 30.0
        %v1391 = vmin.f32 %v1315, 30.0
        %v1392 = vmin.f32 %v1320, 30.0
        %v1393 = vmin.f32 %v1323, 30.0
        %v1394 = vmin.f32 %v1328, 30.0
        %v1395 = vmin.f32 %v1331, 30.0
        %v1396 = vmin.f32 %v1336, 30.0
        %v1397 = vmin.f32 %v1339, 30.0
        %v1398 = vmin.f32 %v1344, 30.0
        %v1399 = vmin.f32 %v1347, 30.0
        %v1400 = vmin.f32 %v1352, 30.0
        %v1401 = vmin.f32 %v1355, 30.0
        %v1402 = vmin.f32 %v1360, 30.0
        %v1403 = vmin.f32 %v1363, 30.0
        %v1404 = vmin.f32 %v1368, 30.0
        %v1405 = vmin.f32 %v1371, 30.0
        %v1406 = vmul.f32 %v1374, 1.442695
        %v1407 = vpow.pop %v1406
        %v1408 = vmul.f32 %v1375, 1.442695
        %v1409 = vpow.pop %v1408
        %v1410 = vmul.f32 %v1376, 1.442695
        %v1411 = vpow.pop %v1410
        %v1412 = vmul.f32 %v1377, 1.442695
        %v1413 = vpow.pop %v1412
        %v1414 = vmul.f32 %v1378, 1.442695
        %v1415 = vpow.pop %v1414
        %v1416 = vmul.f32 %v1379, 1.442695
        %v1417 = vpow.pop %v1416
        %v1418 = vmul.f32 %v1380, 1.442695
        %v1419 = vpow.pop %v1418
        %v1420 = vmul.f32 %v1381, 1.442695
        %v1421 = vpow.pop %v1420
        %v1422 = vmul.f32 %v1382, 1.442695
        %v1423 = vpow.pop %v1422
        %v1424 = vmul.f32 %v1383, 1.442695
        %v1425 = vpow.pop %v1424
        %v1426 = vmul.f32 %v1384, 1.442695
        %v1427 = vpow.pop %v1426
        %v1428 = vmul.f32 %v1385, 1.442695
        %v1429 = vpow.pop %v1428
        %v1430 = vmul.f32 %v1386, 1.442695
        %v1431 = vpow.pop %v1430
        %v1432 = vmul.f32 %v1387, 1.442695
        %v1433 = vpow.pop %v1432
        %v1434 = vmul.f32 %v1388, 1.442695
        %v1435 = vpow.pop %v1434
        %v1436 = vmul.f32 %v1389, 1.442695
        %v1437 = vpow.pop %v1436
        %v1438 = vmul.f32 %v1390, 1.442695
        %v1439 = vpow.pop %v1438
        %v1440 = vmul.f32 %v1391, 1.442695
        %v1441 = vpow.pop %v1440
        %v1442 = vmul.f32 %v1392, 1.442695
        %v1443 = vpow.pop %v1442
        %v1444 = vmul.f32 %v1393, 1.442695
        %v1445 = vpow.pop %v1444
        %v1446 = vmul.f32 %v1394, 1.442695
        %v1447 = vpow.pop %v1446
        %v1448 = vmul.f32 %v1395, 1.442695
        %v1449 = vpow.pop %v1448
        %v1450 = vmul.f32 %v1396, 1.442695
        %v1451 = vpow.pop %v1450
        %v1452 = vmul.f32 %v1397, 1.442695
        %v1453 = vpow.pop %v1452
        %v1454 = vmul.f32 %v1398, 1.442695
        %v1455 = vpow.pop %v1454
        %v1456 = vmul.f32 %v1399, 1.442695
        %v1457 = vpow.pop %v1456
        %v1458 = vmul.f32 %v1400, 1.442695
        %v1459 = vpow.pop %v1458
        %v1460 = vmul.f32 %v1401, 1.442695
        %v1461 = vpow.pop %v1460
        %v1462 = vmul.f32 %v1402, 1.442695
        %v1463 = vpow.pop %v1462
        %v1464 = vmul.f32 %v1403, 1.442695
        %v1465 = vpow.pop %v1464
        %v1466 = vmul.f32 %v1404, 1.442695
        %v1467 = vpow.pop %v1466
        %v1468 = vmul.f32 %v1405, 1.442695
        %v1469 = vpow.pop %v1468
        %v1470 = vadd.f32 %v1407, 1.0
        %v1471 = vadd.f32 %v1409, 1.0
        %v1472 = vadd.f32 %v1411, 1.0
        %v1473 = vadd.f32 %v1413, 1.0
        %v1474 = vadd.f32 %v1415, 1.0
        %v1475 = vadd.f32 %v1417, 1.0
        %v1476 = vadd.f32 %v1419, 1.0
        %v1477 = vadd.f32 %v1421, 1.0
        %v1478 = vadd.f32 %v1423, 1.0
        %v1479 = vadd.f32 %v1425, 1.0
        %v1480 = vadd.f32 %v1427, 1.0
        %v1481 = vadd.f32 %v1429, 1.0
        %v1482 = vadd.f32 %v1431, 1.0
        %v1483 = vadd.f32 %v1433, 1.0
        %v1484 = vadd.f32 %v1435, 1.0
        %v1485 = vadd.f32 %v1437, 1.0
        %v1486 = vadd.f32 %v1439, 1.0
        %v1487 = vadd.f32 %v1441, 1.0
        %v1488 = vadd.f32 %v1443, 1.0
        %v1489 = vadd.f32 %v1445, 1.0
        %v1490 = vadd.f32 %v1447, 1.0
        %v1491 = vadd.f32 %v1449, 1.0
        %v1492 = vadd.f32 %v1451, 1.0
        %v1493 = vadd.f32 %v1453, 1.0
        %v1494 = vadd.f32 %v1455, 1.0
        %v1495 = vadd.f32 %v1457, 1.0
        %v1496 = vadd.f32 %v1459, 1.0
        %v1497 = vadd.f32 %v1461, 1.0
        %v1498 = vadd.f32 %v1463, 1.0
        %v1499 = vadd.f32 %v1465, 1.0
        %v1500 = vadd.f32 %v1467, 1.0
        %v1501 = vadd.f32 %v1469, 1.0
        %v1502 = vmul.f32 %v1470, %v1470
        %v1503 = vmul.f32 %v1471, %v1471
        %v1504 = vmul.f32 %v1472, %v1472
        %v1505 = vmul.f32 %v1473, %v1473
        %v1506 = vmul.f32 %v1474, %v1474
        %v1507 = vmul.f32 %v1475, %v1475
        %v1508 = vmul.f32 %v1476, %v1476
        %v1509 = vmul.f32 %v1477, %v1477
        %v1510 = vmul.f32 %v1478, %v1478
        %v1511 = vmul.f32 %v1479, %v1479
        %v1512 = vmul.f32 %v1480, %v1480
        %v1513 = vmul.f32 %v1481, %v1481
        %v1514 = vmul.f32 %v1482, %v1482
        %v1515 = vmul.f32 %v1483, %v1483
        %v1516 = vmul.f32 %v1484, %v1484
        %v1517 = vmul.f32 %v1485, %v1485
        %v1518 = vmul.f32 %v1486, %v1486
        %v1519 = vmul.f32 %v1487, %v1487
        %v1520 = vmul.f32 %v1488, %v1488
        %v1521 = vmul.f32 %v1489, %v1489
        %v1522 = vmul.f32 %v1490, %v1490
        %v1523 = vmul.f32 %v1491, %v1491
        %v1524 = vmul.f32 %v1492, %v1492
        %v1525 = vmul.f32 %v1493, %v1493
        %v1526 = vmul.f32 %v1494, %v1494
        %v1527 = vmul.f32 %v1495, %v1495
        %v1528 = vmul.f32 %v1496, %v1496
        %v1529 = vmul.f32 %v1497, %v1497
        %v1530 = vmul.f32 %v1498, %v1498
        %v1531 = vmul.f32 %v1499, %v1499
        %v1532 = vmul.f32 %v1500, %v1500
        %v1533 = vmul.f32 %v1501, %v1501
        %v1534 = vadd.f32 %v1502, 1.0
        %v1535 = vadd.f32 %v1503, 1.0
        %v1536 = vadd.f32 %v1504, 1.0
        %v1537 = vadd.f32 %v1505, 1.0
        %v1538 = vadd.f32 %v1506, 1.0
        %v1539 = vadd.f32 %v1507, 1.0
        %v1540 = vadd.f32 %v1508, 1.0
        %v1541 = vadd.f32 %v1509, 1.0
        %v1542 = vadd.f32 %v1510, 1.0
        %v1543 = vadd.f32 %v1511, 1.0
        %v1544 = vadd.f32 %v1512, 1.0
        %v1545 = vadd.f32 %v1513, 1.0
        %v1546 = vadd.f32 %v1514, 1.0
        %v1547 = vadd.f32 %v1515, 1.0
        %v1548 = vadd.f32 %v1516, 1.0
        %v1549 = vadd.f32 %v1517, 1.0
        %v1550 = vadd.f32 %v1518, 1.0
        %v1551 = vadd.f32 %v1519, 1.0
        %v1552 = vadd.f32 %v1520, 1.0
        %v1553 = vadd.f32 %v1521, 1.0
        %v1554 = vadd.f32 %v1522, 1.0
        %v1555 = vadd.f32 %v1523, 1.0
        %v1556 = vadd.f32 %v1524, 1.0
        %v1557 = vadd.f32 %v1525, 1.0
        %v1558 = vadd.f32 %v1526, 1.0
        %v1559 = vadd.f32 %v1527, 1.0
        %v1560 = vadd.f32 %v1528, 1.0
        %v1561 = vadd.f32 %v1529, 1.0
        %v1562 = vadd.f32 %v1530, 1.0
        %v1563 = vadd.f32 %v1531, 1.0
        %v1564 = vadd.f32 %v1532, 1.0
        %v1565 = vadd.f32 %v1533, 1.0
        %v1566 = vrcp.pop %v1534
        %v1567 = vrcp.pop %v1535
        %v1568 = vrcp.pop %v1536
        %v1569 = vrcp.pop %v1537
        %v1570 = vrcp.pop %v1538
        %v1571 = vrcp.pop %v1539
        %v1572 = vrcp.pop %v1540
        %v1573 = vrcp.pop %v1541
        %v1574 = vrcp.pop %v1542
        %v1575 = vrcp.pop %v1543
        %v1576 = vrcp.pop %v1544
        %v1577 = vrcp.pop %v1545
        %v1578 = vrcp.pop %v1546
        %v1579 = vrcp.pop %v1547
        %v1580 = vrcp.pop %v1548
        %v1581 = vrcp.pop %v1549
        %v1582 = vrcp.pop %v1550
        %v1583 = vrcp.pop %v1551
        %v1584 = vrcp.pop %v1552
        %v1585 = vrcp.pop %v1553
        %v1586 = vrcp.pop %v1554
        %v1587 = vrcp.pop %v1555
        %v1588 = vrcp.pop %v1556
        %v1589 = vrcp.pop %v1557
        %v1590 = vrcp.pop %v1558
        %v1591 = vrcp.pop %v1559
        %v1592 = vrcp.pop %v1560
        %v1593 = vrcp.pop %v1561
        %v1594 = vrcp.pop %v1562
        %v1595 = vrcp.pop %v1563
        %v1596 = vrcp.pop %v1564
        %v1597 = vrcp.pop %v1565
        %v1598 = vmul.f32 %v1566, 2.0
        %v1599 = vmul.f32 %v1567, 2.0
        %v1600 = vmul.f32 %v1568, 2.0
        %v1601 = vmul.f32 %v1569, 2.0
        %v1602 = vmul.f32 %v1570, 2.0
        %v1603 = vmul.f32 %v1571, 2.0
        %v1604 = vmul.f32 %v1572, 2.0
        %v1605 = vmul.f32 %v1573, 2.0
        %v1606 = vmul.f32 %v1574, 2.0
        %v1607 = vmul.f32 %v1575, 2.0
        %v1608 = vmul.f32 %v1576, 2.0
        %v1609 = vmul.f32 %v1577, 2.0
        %v1610 = vmul.f32 %v1578, 2.0
        %v1611 = vmul.f32 %v1579, 2.0
        %v1612 = vmul.f32 %v1580, 2.0
        %v1613 = vmul.f32 %v1581, 2.0
        %v1614 = vmul.f32 %v1582, 2.0
        %v1615 = vmul.f32 %v1583, 2.0
        %v1616 = vmul.f32 %v1584, 2.0
        %v1617 = vmul.f32 %v1585, 2.0
        %v1618 = vmul.f32 %v1586, 2.0
        %v1619 = vmul.f32 %v1587, 2.0
        %v1620 = vmul.f32 %v1588, 2.0
        %v1621 = vmul.f32 %v1589, 2.0
        %v1622 = vmul.f32 %v1590, 2.0
        %v1623 = vmul.f32 %v1591, 2.0
        %v1624 = vmul.f32 %v1592, 2.0
        %v1625 = vmul.f32 %v1593, 2.0
        %v1626 = vmul.f32 %v1594, 2.0
        %v1627 = vmul.f32 %v1595, 2.0
        %v1628 = vmul.f32 %v1596, 2.0
        %v1629 = vmul.f32 %v1597, 2.0
        %v1630 = vsub.f32 1.0, %v1598
        %v1631 = vsub.f32 1.0, %v1599
        %v1632 = vsub.f32 1.0, %v1600
        %v1633 = vsub.f32 1.0, %v1601
        %v1634 = vsub.f32 1.0, %v1602
        %v1635 = vsub.f32 1.0, %v1603
        %v1636 = vsub.f32 1.0, %v1604
        %v1637 = vsub.f32 1.0, %v1605
        %v1638 = vsub.f32 1.0, %v1606
        %v1639 = vsub.f32 1.0, %v1607
        %v1640 = vsub.f32 1.0, %v1608
        %v1641 = vsub.f32 1.0, %v1609
        %v1642 = vsub.f32 1.0, %v1610
        %v1643 = vsub.f32 1.0, %v1611
        %v1644 = vsub.f32 1.0, %v1612
        %v1645 = vsub.f32 1.0, %v1613
        %v1646 = vsub.f32 1.0, %v1614
        %v1647 = vsub.f32 1.0, %v1615
        %v1648 = vsub.f32 1.0, %v1616
        %v1649 = vsub.f32 1.0, %v1617
        %v1650 = vsub.f32 1.0, %v1618
        %v1651 = vsub.f32 1.0, %v1619
        %v1652 = vsub.f32 1.0, %v1620
        %v1653 = vsub.f32 1.0, %v1621
        %v1654 = vsub.f32 1.0, %v1622
        %v1655 = vsub.f32 1.0, %v1623
        %v1656 = vsub.f32 1.0, %v1624
        %v1657 = vsub.f32 1.0, %v1625
        %v1658 = vsub.f32 1.0, %v1626
        %v1659 = vsub.f32 1.0, %v1627
        %v1660 = vsub.f32 1.0, %v1628
        %v1661 = vsub.f32 1.0, %v1629
        %v1662 = vmul.f32 %v1248, %v1630
        %v1663 = vmul.f32 %v1251, %v1631
        %v1664 = vmul.f32 %v1256, %v1632
        %v1665 = vmul.f32 %v1259, %v1633
        %v1666 = vmul.f32 %v1264, %v1634
        %v1667 = vmul.f32 %v1267, %v1635
        %v1668 = vmul.f32 %v1272, %v1636
        %v1669 = vmul.f32 %v1275, %v1637
        %v1670 = vmul.f32 %v1280, %v1638
        %v1671 = vmul.f32 %v1283, %v1639
        %v1672 = vmul.f32 %v1288, %v1640
        %v1673 = vmul.f32 %v1291, %v1641
        %v1674 = vmul.f32 %v1296, %v1642
        %v1675 = vmul.f32 %v1299, %v1643
        %v1676 = vmul.f32 %v1304, %v1644
        %v1677 = vmul.f32 %v1307, %v1645
        %v1678 = vmul.f32 %v1312, %v1646
        %v1679 = vmul.f32 %v1315, %v1647
        %v1680 = vmul.f32 %v1320, %v1648
        %v1681 = vmul.f32 %v1323, %v1649
        %v1682 = vmul.f32 %v1328, %v1650
        %v1683 = vmul.f32 %v1331, %v1651
        %v1684 = vmul.f32 %v1336, %v1652
        %v1685 = vmul.f32 %v1339, %v1653
        %v1686 = vmul.f32 %v1344, %v1654
        %v1687 = vmul.f32 %v1347, %v1655
        %v1688 = vmul.f32 %v1352, %v1656
        %v1689 = vmul.f32 %v1355, %v1657
        %v1690 = vmul.f32 %v1360, %v1658
        %v1691 = vmul.f32 %v1363, %v1659
        %v1692 = vmul.f32 %v1368, %v1660
        %v1693 = vmul.f32 %v1371, %v1661
        %v1694 = vsel %vm1100, %v1662, 0.0
        %v1695 = vsel %vm1100, %v1663, 0.0
        %v1696 = vadd.f32 %v1694, %v1695
        %v1697 = vsel %vm1100, %v1664, 0.0
        %v1698 = vadd.f32 %v1696, %v1697
        %v1699 = vsel %vm1100, %v1665, 0.0
        %v1700 = vadd.f32 %v1698, %v1699
        %v1701 = vsel %vm1100, %v1666, 0.0
        %v1702 = vadd.f32 %v1700, %v1701
        %v1703 = vsel %vm1100, %v1667, 0.0
        %v1704 = vadd.f32 %v1702, %v1703
        %v1705 = vsel %vm1100, %v1668, 0.0
        %v1706 = vadd.f32 %v1704, %v1705
        %v1707 = vsel %vm1100, %v1669, 0.0
        %v1708 = vadd.f32 %v1706, %v1707
        %v1709 = vsel %vm1100, %v1670, 0.0
        %v1710 = vadd.f32 %v1708, %v1709
        %v1711 = vsel %vm1100, %v1671, 0.0
        %v1712 = vadd.f32 %v1710, %v1711
        %v1713 = vsel %vm1100, %v1672, 0.0
        %v1714 = vadd.f32 %v1712, %v1713
        %v1715 = vsel %vm1100, %v1673, 0.0
        %v1716 = vadd.f32 %v1714, %v1715
        %v1717 = vsel %vm1100, %v1674, 0.0
        %v1718 = vadd.f32 %v1716, %v1717
        %v1719 = vsel %vm1100, %v1675, 0.0
        %v1720 = vadd.f32 %v1718, %v1719
        %v1721 = vsel %vm1100, %v1676, 0.0
        %v1722 = vadd.f32 %v1720, %v1721
        %v1723 = vsel %vm1100, %v1677, 0.0
        %v1724 = vadd.f32 %v1722, %v1723
        %v1725 = vsel %vm1100, %v1678, 0.0
        %v1726 = vadd.f32 %v1724, %v1725
        %v1727 = vsel %vm1100, %v1679, 0.0
        %v1728 = vadd.f32 %v1726, %v1727
        %v1729 = vsel %vm1100, %v1680, 0.0
        %v1730 = vadd.f32 %v1728, %v1729
        %v1731 = vsel %vm1100, %v1681, 0.0
        %v1732 = vadd.f32 %v1730, %v1731
        %v1733 = vsel %vm1100, %v1682, 0.0
        %v1734 = vadd.f32 %v1732, %v1733
        %v1735 = vsel %vm1100, %v1683, 0.0
        %v1736 = vadd.f32 %v1734, %v1735
        %v1737 = vsel %vm1100, %v1684, 0.0
        %v1738 = vadd.f32 %v1736, %v1737
        %v1739 = vsel %vm1100, %v1685, 0.0
        %v1740 = vadd.f32 %v1738, %v1739
        %v1741 = vsel %vm1100, %v1686, 0.0
        %v1742 = vadd.f32 %v1740, %v1741
        %v1743 = vsel %vm1100, %v1687, 0.0
        %v1744 = vadd.f32 %v1742, %v1743
        %v1745 = vsel %vm1100, %v1688, 0.0
        %v1746 = vadd.f32 %v1744, %v1745
        %v1747 = vsel %vm1100, %v1689, 0.0
        %v1748 = vadd.f32 %v1746, %v1747
        %v1749 = vsel %vm1100, %v1690, 0.0
        %v1750 = vadd.f32 %v1748, %v1749
        %v1751 = vsel %vm1100, %v1691, 0.0
        %v1752 = vadd.f32 %v1750, %v1751
        %v1753 = vsel %vm1100, %v1692, 0.0
        %v1754 = vadd.f32 %v1752, %v1753
        %v1755 = vsel %vm1100, %v1693, 0.0
        %v1756 = vadd.f32 %v1754, %v1755
        %v1757 = vrot.slane %v1756, 4
        %v1758 = vadd.f32 %v1756, %v1757
        %v1759 = vrot.slane %v1758, 2
        %v1760 = vadd.f32 %v1758, %v1759
        %v1761 = vrot.slane %v1760, 1
        %v1762 = vadd.f32 %v1760, %v1761
        %v1763 = vadd.f32 %v1762, 0.0
        %v1764 = vmul.f32 %v1662, %v1662
        %v1765 = vmul.f32 %v1663, %v1663
        %v1766 = vmul.f32 %v1664, %v1664
        %v1767 = vmul.f32 %v1665, %v1665
        %v1768 = vmul.f32 %v1666, %v1666
        %v1769 = vmul.f32 %v1667, %v1667
        %v1770 = vmul.f32 %v1668, %v1668
        %v1771 = vmul.f32 %v1669, %v1669
        %v1772 = vmul.f32 %v1670, %v1670
        %v1773 = vmul.f32 %v1671, %v1671
        %v1774 = vmul.f32 %v1672, %v1672
        %v1775 = vmul.f32 %v1673, %v1673
        %v1776 = vmul.f32 %v1674, %v1674
        %v1777 = vmul.f32 %v1675, %v1675
        %v1778 = vmul.f32 %v1676, %v1676
        %v1779 = vmul.f32 %v1677, %v1677
        %v1780 = vmul.f32 %v1678, %v1678
        %v1781 = vmul.f32 %v1679, %v1679
        %v1782 = vmul.f32 %v1680, %v1680
        %v1783 = vmul.f32 %v1681, %v1681
        %v1784 = vmul.f32 %v1682, %v1682
        %v1785 = vmul.f32 %v1683, %v1683
        %v1786 = vmul.f32 %v1684, %v1684
        %v1787 = vmul.f32 %v1685, %v1685
        %v1788 = vmul.f32 %v1686, %v1686
        %v1789 = vmul.f32 %v1687, %v1687
        %v1790 = vmul.f32 %v1688, %v1688
        %v1791 = vmul.f32 %v1689, %v1689
        %v1792 = vmul.f32 %v1690, %v1690
        %v1793 = vmul.f32 %v1691, %v1691
        %v1794 = vmul.f32 %v1692, %v1692
        %v1795 = vmul.f32 %v1693, %v1693
        %v1796 = vsel %vm1100, %v1764, 0.0
        %v1797 = vsel %vm1100, %v1765, 0.0
        %v1798 = vadd.f32 %v1796, %v1797
        %v1799 = vsel %vm1100, %v1766, 0.0
        %v1800 = vadd.f32 %v1798, %v1799
        %v1801 = vsel %vm1100, %v1767, 0.0
        %v1802 = vadd.f32 %v1800, %v1801
        %v1803 = vsel %vm1100, %v1768, 0.0
        %v1804 = vadd.f32 %v1802, %v1803
        %v1805 = vsel %vm1100, %v1769, 0.0
        %v1806 = vadd.f32 %v1804, %v1805
        %v1807 = vsel %vm1100, %v1770, 0.0
        %v1808 = vadd.f32 %v1806, %v1807
        %v1809 = vsel %vm1100, %v1771, 0.0
        %v1810 = vadd.f32 %v1808, %v1809
        %v1811 = vsel %vm1100, %v1772, 0.0
        %v1812 = vadd.f32 %v1810, %v1811
        %v1813 = vsel %vm1100, %v1773, 0.0
        %v1814 = vadd.f32 %v1812, %v1813
        %v1815 = vsel %vm1100, %v1774, 0.0
        %v1816 = vadd.f32 %v1814, %v1815
        %v1817 = vsel %vm1100, %v1775, 0.0
        %v1818 = vadd.f32 %v1816, %v1817
        %v1819 = vsel %vm1100, %v1776, 0.0
        %v1820 = vadd.f32 %v1818, %v1819
        %v1821 = vsel %vm1100, %v1777, 0.0
        %v1822 = vadd.f32 %v1820, %v1821
        %v1823 = vsel %vm1100, %v1778, 0.0
        %v1824 = vadd.f32 %v1822, %v1823
        %v1825 = vsel %vm1100, %v1779, 0.0
        %v1826 = vadd.f32 %v1824, %v1825
        %v1827 = vsel %vm1100, %v1780, 0.0
        %v1828 = vadd.f32 %v1826, %v1827
        %v1829 = vsel %vm1100, %v1781, 0.0
        %v1830 = vadd.f32 %v1828, %v1829
        %v1831 = vsel %vm1100, %v1782, 0.0
        %v1832 = vadd.f32 %v1830, %v1831
        %v1833 = vsel %vm1100, %v1783, 0.0
        %v1834 = vadd.f32 %v1832, %v1833
        %v1835 = vsel %vm1100, %v1784, 0.0
        %v1836 = vadd.f32 %v1834, %v1835
        %v1837 = vsel %vm1100, %v1785, 0.0
        %v1838 = vadd.f32 %v1836, %v1837
        %v1839 = vsel %vm1100, %v1786, 0.0
        %v1840 = vadd.f32 %v1838, %v1839
        %v1841 = vsel %vm1100, %v1787, 0.0
        %v1842 = vadd.f32 %v1840, %v1841
        %v1843 = vsel %vm1100, %v1788, 0.0
        %v1844 = vadd.f32 %v1842, %v1843
        %v1845 = vsel %vm1100, %v1789, 0.0
        %v1846 = vadd.f32 %v1844, %v1845
        %v1847 = vsel %vm1100, %v1790, 0.0
        %v1848 = vadd.f32 %v1846, %v1847
        %v1849 = vsel %vm1100, %v1791, 0.0
        %v1850 = vadd.f32 %v1848, %v1849
        %v1851 = vsel %vm1100, %v1792, 0.0
        %v1852 = vadd.f32 %v1850, %v1851
        %v1853 = vsel %vm1100, %v1793, 0.0
        %v1854 = vadd.f32 %v1852, %v1853
        %v1855 = vsel %vm1100, %v1794, 0.0
        %v1856 = vadd.f32 %v1854, %v1855
        %v1857 = vsel %vm1100, %v1795, 0.0
        %v1858 = vadd.f32 %v1856, %v1857
        %v1859 = vrot.slane %v1858, 4
        %v1860 = vadd.f32 %v1858, %v1859
        %v1861 = vrot.slane %v1860, 2
        %v1862 = vadd.f32 %v1860, %v1861
        %v1863 = vrot.slane %v1862, 1
        %v1864 = vadd.f32 %v1862, %v1863
        %v1865 = vadd.f32 %v1864, 0.0
        %v1866 = vld [vmem:[%s229] sm:$0xe]
        %v1867 = vld [vmem:[%s229 + $0xc] sm:$0xe]
        %v1868 = vld [vmem:[%s229 + $0x18] sm:$0xe]
        %v1869 = vld [vmem:[%s229 + $0x24] sm:$0xe]
        %v1870 = vld [vmem:[%s229 + $0x30] sm:$0xe]
        %v1871 = vld [vmem:[%s229 + $0x3c] sm:$0xe]
        %v1872 = vld [vmem:[%s229 + $0x48] sm:$0xe]
        %v1873 = vld [vmem:[%s229 + $0x54] sm:$0xe]
        %v1874 = vld [vmem:[%s229 + $0x60] sm:$0xe]
        %v1875 = vld [vmem:[%s229 + $0x6c] sm:$0xe]
        %v1876 = vld [vmem:[%s229 + $0x78] sm:$0xe]
        %v1877 = vld [vmem:[%s229 + $0x84] sm:$0xe]
        %v1878 = vld [vmem:[%s229 + $0x90] sm:$0xe]
        %v1879 = vld [vmem:[%s229 + $0x9c] sm:$0xe]
        %v1880 = vld [vmem:[%s229 + $0xa8] sm:$0xe]
        %v1881 = vld [vmem:[%s229 + $0xb4] sm:$0xe]
        %v1882 = vld [vmem:[%s281] sm:$0xe]
        %v1883 = vld [vmem:[%s281 + $0xc] sm:$0xe]
        %v1884 = vld [vmem:[%s281 + $0x18] sm:$0xe]
        %v1885 = vld [vmem:[%s281 + $0x24] sm:$0xe]
        %v1886 = vld [vmem:[%s281 + $0x30] sm:$0xe]
        %v1887 = vld [vmem:[%s281 + $0x3c] sm:$0xe]
        %v1888 = vld [vmem:[%s281 + $0x48] sm:$0xe]
        %v1889 = vld [vmem:[%s281 + $0x54] sm:$0xe]
        %v1890 = vld [vmem:[%s281 + $0x60] sm:$0xe]
        %v1891 = vld [vmem:[%s281 + $0x6c] sm:$0xe]
        %v1892 = vld [vmem:[%s281 + $0x78] sm:$0xe]
        %v1893 = vld [vmem:[%s281 + $0x84] sm:$0xe]
        %v1894 = vld [vmem:[%s281 + $0x90] sm:$0xe]
        %v1895 = vld [vmem:[%s281 + $0x9c] sm:$0xe]
        %v1896 = vld [vmem:[%s281 + $0xa8] sm:$0xe]
        %v1897 = vld [vmem:[%s281 + $0xb4] sm:$0xe]
        %v1914 = vunpack.c.l.b16 %v1866
        %v1915 = vunpack.c.l.b16 %v1867
        %v1916 = vunpack.c.l.b16 %v1868
        %v1917 = vunpack.c.l.b16 %v1869
        %v1918 = vunpack.c.l.b16 %v1870
        %v1919 = vunpack.c.l.b16 %v1871
        %v1920 = vunpack.c.l.b16 %v1872
        %v1921 = vunpack.c.l.b16 %v1873
        %v1922 = vunpack.c.l.b16 %v1874
        %v1923 = vunpack.c.l.b16 %v1875
        %v1924 = vunpack.c.l.b16 %v1876
        %v1925 = vunpack.c.l.b16 %v1877
        %v1926 = vunpack.c.l.b16 %v1878
        %v1927 = vunpack.c.l.b16 %v1879
        %v1928 = vunpack.c.l.b16 %v1880
        %v1929 = vunpack.c.l.b16 %v1881
        %v1930 = vpack.c.b16 %v363, %v1914
        %v1931 = vpack.c.b16 %v365, %v1915
        %v1932 = vpack.c.b16 %v367, %v1916
        %v1933 = vpack.c.b16 %v369, %v1917
        %v1934 = vpack.c.b16 %v371, %v1918
        %v1935 = vpack.c.b16 %v373, %v1919
        %v1936 = vpack.c.b16 %v375, %v1920
        %v1937 = vpack.c.b16 %v377, %v1921
        %v1938 = vpack.c.b16 %v379, %v1922
        %v1939 = vpack.c.b16 %v381, %v1923
        %v1940 = vpack.c.b16 %v383, %v1924
        %v1941 = vpack.c.b16 %v385, %v1925
        %v1942 = vpack.c.b16 %v387, %v1926
        %v1943 = vpack.c.b16 %v389, %v1927
        %v1944 = vpack.c.b16 %v391, %v1928
        %v1945 = vpack.c.b16 %v393, %v1929
        %v1947 = vshrl.u32 %v1930, 16
        %v1949 = vshll.u32 %v1930, 16
        %v1951 = vrot.slane %v1949, 1
        %v1952 = vor.u32 %v1947, %v1951
        %v1953 = vsel %vm458, %v1952, %v469
        %v1954 = vshrl.u32 %v442, 16
        %v1957 = vshrl.u32 %v1931, 16
        %v1959 = vshll.u32 %v1931, 16
        %v1961 = vrot.slane %v1959, 1
        %v1962 = vor.u32 %v1957, %v1961
        %v1963 = vsel %vm458, %v1962, %v481
        %v1964 = vshrl.u32 %v443, 16
        %v1967 = vshrl.u32 %v1932, 16
        %v1969 = vshll.u32 %v1932, 16
        %v1971 = vrot.slane %v1969, 1
        %v1972 = vor.u32 %v1967, %v1971
        %v1973 = vsel %vm458, %v1972, %v493
        %v1974 = vshrl.u32 %v444, 16
        %v1977 = vshrl.u32 %v1933, 16
        %v1979 = vshll.u32 %v1933, 16
        %v1981 = vrot.slane %v1979, 1
        %v1982 = vor.u32 %v1977, %v1981
        %v1983 = vsel %vm458, %v1982, %v505
        %v1984 = vshrl.u32 %v445, 16
        %v1987 = vshrl.u32 %v1934, 16
        %v1989 = vshll.u32 %v1934, 16
        %v1991 = vrot.slane %v1989, 1
        %v1992 = vor.u32 %v1987, %v1991
        %v1993 = vsel %vm458, %v1992, %v517
        %v1994 = vshrl.u32 %v446, 16
        %v1997 = vshrl.u32 %v1935, 16
        %v1999 = vshll.u32 %v1935, 16
        %v2001 = vrot.slane %v1999, 1
        %v2002 = vor.u32 %v1997, %v2001
        %v2003 = vsel %vm458, %v2002, %v529
        %v2004 = vshrl.u32 %v447, 16
        %v2007 = vshrl.u32 %v1936, 16
        %v2009 = vshll.u32 %v1936, 16
        %v2011 = vrot.slane %v2009, 1
        %v2012 = vor.u32 %v2007, %v2011
        %v2013 = vsel %vm458, %v2012, %v541
        %v2014 = vshrl.u32 %v448, 16
        %v2017 = vshrl.u32 %v1937, 16
        %v2019 = vshll.u32 %v1937, 16
        %v2021 = vrot.slane %v2019, 1
        %v2022 = vor.u32 %v2017, %v2021
        %v2023 = vsel %vm458, %v2022, %v553
        %v2024 = vshrl.u32 %v449, 16
        %v2027 = vshrl.u32 %v1938, 16
        %v2029 = vshll.u32 %v1938, 16
        %v2031 = vrot.slane %v2029, 1
        %v2032 = vor.u32 %v2027, %v2031
        %v2033 = vsel %vm458, %v2032, %v565
        %v2034 = vshrl.u32 %v450, 16
        %v2037 = vshrl.u32 %v1939, 16
        %v2039 = vshll.u32 %v1939, 16
        %v2041 = vrot.slane %v2039, 1
        %v2042 = vor.u32 %v2037, %v2041
        %v2043 = vsel %vm458, %v2042, %v577
        %v2044 = vshrl.u32 %v451, 16
        %v2047 = vshrl.u32 %v1940, 16
        %v2049 = vshll.u32 %v1940, 16
        %v2051 = vrot.slane %v2049, 1
        %v2052 = vor.u32 %v2047, %v2051
        %v2053 = vsel %vm458, %v2052, %v589
        %v2054 = vshrl.u32 %v452, 16
        %v2057 = vshrl.u32 %v1941, 16
        %v2059 = vshll.u32 %v1941, 16
        %v2061 = vrot.slane %v2059, 1
        %v2062 = vor.u32 %v2057, %v2061
        %v2063 = vsel %vm458, %v2062, %v601
        %v2064 = vshrl.u32 %v453, 16
        %v2067 = vshrl.u32 %v1942, 16
        %v2069 = vshll.u32 %v1942, 16
        %v2071 = vrot.slane %v2069, 1
        %v2072 = vor.u32 %v2067, %v2071
        %v2073 = vsel %vm458, %v2072, %v613
        %v2074 = vshrl.u32 %v454, 16
        %v2077 = vshrl.u32 %v1943, 16
        %v2079 = vshll.u32 %v1943, 16
        %v2081 = vrot.slane %v2079, 1
        %v2082 = vor.u32 %v2077, %v2081
        %v2083 = vsel %vm458, %v2082, %v625
        %v2084 = vshrl.u32 %v455, 16
        %v2087 = vshrl.u32 %v1944, 16
        %v2089 = vshll.u32 %v1944, 16
        %v2091 = vrot.slane %v2089, 1
        %v2092 = vor.u32 %v2087, %v2091
        %v2093 = vsel %vm458, %v2092, %v637
        %v2094 = vshrl.u32 %v456, 16
        %v2097 = vshrl.u32 %v1945, 16
        %v2099 = vshll.u32 %v1945, 16
        %v2101 = vrot.slane %v2099, 1
        %v2102 = vor.u32 %v2097, %v2101
        %v2103 = vsel %vm458, %v2102, %v649
        %v2104 = vshrl.u32 %v457, 16
        %2106 = vrot.lane.b32.xlu0 %v1953, 4
        %v2107 = vpop.permute.xlu0 %2106
        %2108 = vrot.lane.b32.xlu0 %v1954, 4
        %v2109 = vpop.permute.xlu0 %2108
        %2110 = vrot.lane.b32.xlu0 %v1963, 4
        %v2111 = vpop.permute.xlu0 %2110
        %2112 = vrot.lane.b32.xlu0 %v1964, 4
        %v2113 = vpop.permute.xlu0 %2112
        %2114 = vrot.lane.b32.xlu0 %v1973, 4
        %v2115 = vpop.permute.xlu0 %2114
        %2116 = vrot.lane.b32.xlu0 %v1974, 4
        %v2117 = vpop.permute.xlu0 %2116
        %2118 = vrot.lane.b32.xlu0 %v1983, 4
        %v2119 = vpop.permute.xlu0 %2118
        %2120 = vrot.lane.b32.xlu0 %v1984, 4
        %v2121 = vpop.permute.xlu0 %2120
        %2122 = vrot.lane.b32.xlu0 %v1993, 4
        %v2123 = vpop.permute.xlu0 %2122
        %2124 = vrot.lane.b32.xlu0 %v1994, 4
        %v2125 = vpop.permute.xlu0 %2124
        %2126 = vrot.lane.b32.xlu0 %v2003, 4
        %v2127 = vpop.permute.xlu0 %2126
        %2128 = vrot.lane.b32.xlu0 %v2004, 4
        %v2129 = vpop.permute.xlu0 %2128
        %2130 = vrot.lane.b32.xlu0 %v2013, 4
        %v2131 = vpop.permute.xlu0 %2130
        %2132 = vrot.lane.b32.xlu0 %v2014, 4
        %v2133 = vpop.permute.xlu0 %2132
        %2134 = vrot.lane.b32.xlu0 %v2023, 4
        %v2135 = vpop.permute.xlu0 %2134
        %2136 = vrot.lane.b32.xlu0 %v2024, 4
        %v2137 = vpop.permute.xlu0 %2136
        %2138 = vrot.lane.b32.xlu0 %v2033, 4
        %v2139 = vpop.permute.xlu0 %2138
        %2140 = vrot.lane.b32.xlu0 %v2034, 4
        %v2141 = vpop.permute.xlu0 %2140
        %2142 = vrot.lane.b32.xlu0 %v2043, 4
        %v2143 = vpop.permute.xlu0 %2142
        %2144 = vrot.lane.b32.xlu0 %v2044, 4
        %v2145 = vpop.permute.xlu0 %2144
        %2146 = vrot.lane.b32.xlu0 %v2053, 4
        %v2147 = vpop.permute.xlu0 %2146
        %2148 = vrot.lane.b32.xlu0 %v2054, 4
        %v2149 = vpop.permute.xlu0 %2148
        %2150 = vrot.lane.b32.xlu0 %v2063, 4
        %v2151 = vpop.permute.xlu0 %2150
        %2152 = vrot.lane.b32.xlu0 %v2064, 4
        %v2153 = vpop.permute.xlu0 %2152
        %2154 = vrot.lane.b32.xlu0 %v2073, 4
        %v2155 = vpop.permute.xlu0 %2154
        %2156 = vrot.lane.b32.xlu0 %v2074, 4
        %v2157 = vpop.permute.xlu0 %2156
        %2158 = vrot.lane.b32.xlu0 %v2083, 4
        %v2159 = vpop.permute.xlu0 %2158
        %2160 = vrot.lane.b32.xlu0 %v2084, 4
        %v2161 = vpop.permute.xlu0 %2160
        %2162 = vrot.lane.b32.xlu0 %v2093, 4
        %v2163 = vpop.permute.xlu0 %2162
        %2164 = vrot.lane.b32.xlu0 %v2094, 4
        %v2165 = vpop.permute.xlu0 %2164
        %2166 = vrot.lane.b32.xlu0 %v2103, 4
        %v2167 = vpop.permute.xlu0 %2166
        %2168 = vrot.lane.b32.xlu0 %v2104, 4
        %v2169 = vpop.permute.xlu0 %2168
        %2170 = vrot.lane.b32.xlu0 %v827, 8
        %v2171 = vpop.permute.xlu0 %2170
        %2172 = vrot.lane.b32.xlu0 %v828, 8
        %v2173 = vpop.permute.xlu0 %2172
        %2174 = vrot.lane.b32.xlu0 %v829, 8
        %v2175 = vpop.permute.xlu0 %2174
        %2176 = vrot.lane.b32.xlu0 %v830, 8
        %v2177 = vpop.permute.xlu0 %2176
        %2178 = vrot.lane.b32.xlu0 %v831, 8
        %v2179 = vpop.permute.xlu0 %2178
        %2180 = vrot.lane.b32.xlu0 %v832, 8
        %v2181 = vpop.permute.xlu0 %2180
        %2182 = vrot.lane.b32.xlu0 %v833, 8
        %v2183 = vpop.permute.xlu0 %2182
        %2184 = vrot.lane.b32.xlu0 %v834, 8
        %v2185 = vpop.permute.xlu0 %2184
        %2186 = vrot.lane.b32.xlu0 %v835, 8
        %v2187 = vpop.permute.xlu0 %2186
        %2188 = vrot.lane.b32.xlu0 %v836, 8
        %v2189 = vpop.permute.xlu0 %2188
        %2190 = vrot.lane.b32.xlu0 %v837, 8
        %v2191 = vpop.permute.xlu0 %2190
        %2192 = vrot.lane.b32.xlu0 %v838, 8
        %v2193 = vpop.permute.xlu0 %2192
        %2194 = vrot.lane.b32.xlu0 %v839, 8
        %v2195 = vpop.permute.xlu0 %2194
        %2196 = vrot.lane.b32.xlu0 %v840, 8
        %v2197 = vpop.permute.xlu0 %2196
        %2198 = vrot.lane.b32.xlu0 %v841, 8
        %v2199 = vpop.permute.xlu0 %2198
        %2200 = vrot.lane.b32.xlu0 %v842, 8
        %v2201 = vpop.permute.xlu0 %2200
        %v2218 = vunpack.c.l.b16 %v1882
        %v2219 = vunpack.c.l.b16 %v1883
        %v2220 = vunpack.c.l.b16 %v1884
        %v2221 = vunpack.c.l.b16 %v1885
        %v2222 = vunpack.c.l.b16 %v1886
        %v2223 = vunpack.c.l.b16 %v1887
        %v2224 = vunpack.c.l.b16 %v1888
        %v2225 = vunpack.c.l.b16 %v1889
        %v2226 = vunpack.c.l.b16 %v1890
        %v2227 = vunpack.c.l.b16 %v1891
        %v2228 = vunpack.c.l.b16 %v1892
        %v2229 = vunpack.c.l.b16 %v1893
        %v2230 = vunpack.c.l.b16 %v1894
        %v2231 = vunpack.c.l.b16 %v1895
        %v2232 = vunpack.c.l.b16 %v1896
        %v2233 = vunpack.c.l.b16 %v1897
        %v2234 = vpack.c.b16 %v716, %v2218
        %v2235 = vpack.c.b16 %v718, %v2219
        %v2236 = vpack.c.b16 %v720, %v2220
        %v2237 = vpack.c.b16 %v722, %v2221
        %v2238 = vpack.c.b16 %v724, %v2222
        %v2239 = vpack.c.b16 %v726, %v2223
        %v2240 = vpack.c.b16 %v728, %v2224
        %v2241 = vpack.c.b16 %v730, %v2225
        %v2242 = vpack.c.b16 %v732, %v2226
        %v2243 = vpack.c.b16 %v734, %v2227
        %v2244 = vpack.c.b16 %v736, %v2228
        %v2245 = vpack.c.b16 %v738, %v2229
        %v2246 = vpack.c.b16 %v740, %v2230
        %v2247 = vpack.c.b16 %v742, %v2231
        %v2248 = vpack.c.b16 %v744, %v2232
        %v2249 = vpack.c.b16 %v746, %v2233
        %v2251 = vshrl.u32 %v2234, 16
        %v2253 = vshll.u32 %v2234, 16
        %v2255 = vrot.slane %v2253, 1
        %v2256 = vor.u32 %v2251, %v2255
        %v2257 = vsel %vm458, %v2256, %v853
        %v2258 = vshrl.u32 %v827, 16
        %v2261 = vshrl.u32 %v2235, 16
        %v2263 = vshll.u32 %v2235, 16
        %v2265 = vrot.slane %v2263, 1
        %v2266 = vor.u32 %v2261, %v2265
        %v2267 = vsel %vm458, %v2266, %v865
        %v2268 = vshrl.u32 %v828, 16
        %v2271 = vshrl.u32 %v2236, 16
        %v2273 = vshll.u32 %v2236, 16
        %v2275 = vrot.slane %v2273, 1
        %v2276 = vor.u32 %v2271, %v2275
        %v2277 = vsel %vm458, %v2276, %v877
        %v2278 = vshrl.u32 %v829, 16
        %v2281 = vshrl.u32 %v2237, 16
        %v2283 = vshll.u32 %v2237, 16
        %v2285 = vrot.slane %v2283, 1
        %v2286 = vor.u32 %v2281, %v2285
        %v2287 = vsel %vm458, %v2286, %v889
        %v2288 = vshrl.u32 %v830, 16
        %v2291 = vshrl.u32 %v2238, 16
        %v2293 = vshll.u32 %v2238, 16
        %v2295 = vrot.slane %v2293, 1
        %v2296 = vor.u32 %v2291, %v2295
        %v2297 = vsel %vm458, %v2296, %v901
        %v2298 = vshrl.u32 %v831, 16
        %v2301 = vshrl.u32 %v2239, 16
        %v2303 = vshll.u32 %v2239, 16
        %v2305 = vrot.slane %v2303, 1
        %v2306 = vor.u32 %v2301, %v2305
        %v2307 = vsel %vm458, %v2306, %v913
        %v2308 = vshrl.u32 %v832, 16
        %v2311 = vshrl.u32 %v2240, 16
        %v2313 = vshll.u32 %v2240, 16
        %v2315 = vrot.slane %v2313, 1
        %v2316 = vor.u32 %v2311, %v2315
        %v2317 = vsel %vm458, %v2316, %v925
        %v2318 = vshrl.u32 %v833, 16
        %v2321 = vshrl.u32 %v2241, 16
        %v2323 = vshll.u32 %v2241, 16
        %v2325 = vrot.slane %v2323, 1
        %v2326 = vor.u32 %v2321, %v2325
        %v2327 = vsel %vm458, %v2326, %v937
        %v2328 = vshrl.u32 %v834, 16
        %v2331 = vshrl.u32 %v2242, 16
        %v2333 = vshll.u32 %v2242, 16
        %v2335 = vrot.slane %v2333, 1
        %v2336 = vor.u32 %v2331, %v2335
        %v2337 = vsel %vm458, %v2336, %v949
        %v2338 = vshrl.u32 %v835, 16
        %v2341 = vshrl.u32 %v2243, 16
        %v2343 = vshll.u32 %v2243, 16
        %v2345 = vrot.slane %v2343, 1
        %v2346 = vor.u32 %v2341, %v2345
        %v2347 = vsel %vm458, %v2346, %v961
        %v2348 = vshrl.u32 %v836, 16
        %v2351 = vshrl.u32 %v2244, 16
        %v2353 = vshll.u32 %v2244, 16
        %v2355 = vrot.slane %v2353, 1
        %v2356 = vor.u32 %v2351, %v2355
        %v2357 = vsel %vm458, %v2356, %v973
        %v2358 = vshrl.u32 %v837, 16
        %v2361 = vshrl.u32 %v2245, 16
        %v2363 = vshll.u32 %v2245, 16
        %v2365 = vrot.slane %v2363, 1
        %v2366 = vor.u32 %v2361, %v2365
        %v2367 = vsel %vm458, %v2366, %v985
        %v2368 = vshrl.u32 %v838, 16
        %v2371 = vshrl.u32 %v2246, 16
        %v2373 = vshll.u32 %v2246, 16
        %v2375 = vrot.slane %v2373, 1
        %v2376 = vor.u32 %v2371, %v2375
        %v2377 = vsel %vm458, %v2376, %v997
        %v2378 = vshrl.u32 %v839, 16
        %v2381 = vshrl.u32 %v2247, 16
        %v2383 = vshll.u32 %v2247, 16
        %v2385 = vrot.slane %v2383, 1
        %v2386 = vor.u32 %v2381, %v2385
        %v2387 = vsel %vm458, %v2386, %v1009
        %v2388 = vshrl.u32 %v840, 16
        %v2391 = vshrl.u32 %v2248, 16
        %v2393 = vshll.u32 %v2248, 16
        %v2395 = vrot.slane %v2393, 1
        %v2396 = vor.u32 %v2391, %v2395
        %v2397 = vsel %vm458, %v2396, %v1021
        %v2398 = vshrl.u32 %v841, 16
        %v2401 = vshrl.u32 %v2249, 16
        %v2403 = vshll.u32 %v2249, 16
        %v2405 = vrot.slane %v2403, 1
        %v2406 = vor.u32 %v2401, %v2405
        %v2407 = vsel %vm458, %v2406, %v1033
        %v2408 = vshrl.u32 %v842, 16
        %2410 = vrot.lane.b32.xlu0 %v2257, 12
        %v2411 = vpop.permute.xlu0 %2410
        %2412 = vrot.lane.b32.xlu0 %v2258, 12
        %v2413 = vpop.permute.xlu0 %2412
        %2414 = vrot.lane.b32.xlu0 %v2267, 12
        %v2415 = vpop.permute.xlu0 %2414
        %2416 = vrot.lane.b32.xlu0 %v2268, 12
        %v2417 = vpop.permute.xlu0 %2416
        %2418 = vrot.lane.b32.xlu0 %v2277, 12
        %v2419 = vpop.permute.xlu0 %2418
        %2420 = vrot.lane.b32.xlu0 %v2278, 12
        %v2421 = vpop.permute.xlu0 %2420
        %2422 = vrot.lane.b32.xlu0 %v2287, 12
        %v2423 = vpop.permute.xlu0 %2422
        %2424 = vrot.lane.b32.xlu0 %v2288, 12
        %v2425 = vpop.permute.xlu0 %2424
        %2426 = vrot.lane.b32.xlu0 %v2297, 12
        %v2427 = vpop.permute.xlu0 %2426
        %2428 = vrot.lane.b32.xlu0 %v2298, 12
        %v2429 = vpop.permute.xlu0 %2428
        %2430 = vrot.lane.b32.xlu0 %v2307, 12
        %v2431 = vpop.permute.xlu0 %2430
        %2432 = vrot.lane.b32.xlu0 %v2308, 12
        %v2433 = vpop.permute.xlu0 %2432
        %2434 = vrot.lane.b32.xlu0 %v2317, 12
        %v2435 = vpop.permute.xlu0 %2434
        %2436 = vrot.lane.b32.xlu0 %v2318, 12
        %v2437 = vpop.permute.xlu0 %2436
        %2438 = vrot.lane.b32.xlu0 %v2327, 12
        %v2439 = vpop.permute.xlu0 %2438
        %2440 = vrot.lane.b32.xlu0 %v2328, 12
        %v2441 = vpop.permute.xlu0 %2440
        %2442 = vrot.lane.b32.xlu0 %v2337, 12
        %v2443 = vpop.permute.xlu0 %2442
        %2444 = vrot.lane.b32.xlu0 %v2338, 12
        %v2445 = vpop.permute.xlu0 %2444
        %2446 = vrot.lane.b32.xlu0 %v2347, 12
        %v2447 = vpop.permute.xlu0 %2446
        %2448 = vrot.lane.b32.xlu0 %v2348, 12
        %v2449 = vpop.permute.xlu0 %2448
        %2450 = vrot.lane.b32.xlu0 %v2357, 12
        %v2451 = vpop.permute.xlu0 %2450
        %2452 = vrot.lane.b32.xlu0 %v2358, 12
        %v2453 = vpop.permute.xlu0 %2452
        %2454 = vrot.lane.b32.xlu0 %v2367, 12
        %v2455 = vpop.permute.xlu0 %2454
        %2456 = vrot.lane.b32.xlu0 %v2368, 12
        %v2457 = vpop.permute.xlu0 %2456
        %2458 = vrot.lane.b32.xlu0 %v2377, 12
        %v2459 = vpop.permute.xlu0 %2458
        %2460 = vrot.lane.b32.xlu0 %v2378, 12
        %v2461 = vpop.permute.xlu0 %2460
        %2462 = vrot.lane.b32.xlu0 %v2387, 12
        %v2463 = vpop.permute.xlu0 %2462
        %2464 = vrot.lane.b32.xlu0 %v2388, 12
        %v2465 = vpop.permute.xlu0 %2464
        %2466 = vrot.lane.b32.xlu0 %v2397, 12
        %v2467 = vpop.permute.xlu0 %2466
        %2468 = vrot.lane.b32.xlu0 %v2398, 12
        %v2469 = vpop.permute.xlu0 %2468
        %2470 = vrot.lane.b32.xlu0 %v2407, 12
        %v2471 = vpop.permute.xlu0 %2470
        %2472 = vrot.lane.b32.xlu0 %v2408, 12
        %v2473 = vpop.permute.xlu0 %2472
        %v2475 = vsel %vm1067, %v394, %v2107
        %v2477 = vsel %vm1067, %v442, %v2109
        %v2479 = vsel %vm1067, %v395, %v2111
        %v2481 = vsel %vm1067, %v443, %v2113
        %v2483 = vsel %vm1067, %v396, %v2115
        %v2485 = vsel %vm1067, %v444, %v2117
        %v2487 = vsel %vm1067, %v397, %v2119
        %v2489 = vsel %vm1067, %v445, %v2121
        %v2491 = vsel %vm1067, %v398, %v2123
        %v2493 = vsel %vm1067, %v446, %v2125
        %v2495 = vsel %vm1067, %v399, %v2127
        %v2497 = vsel %vm1067, %v447, %v2129
        %v2499 = vsel %vm1067, %v400, %v2131
        %v2501 = vsel %vm1067, %v448, %v2133
        %v2503 = vsel %vm1067, %v401, %v2135
        %v2505 = vsel %vm1067, %v449, %v2137
        %v2507 = vsel %vm1067, %v402, %v2139
        %v2509 = vsel %vm1067, %v450, %v2141
        %v2511 = vsel %vm1067, %v403, %v2143
        %v2513 = vsel %vm1067, %v451, %v2145
        %v2515 = vsel %vm1067, %v404, %v2147
        %v2517 = vsel %vm1067, %v452, %v2149
        %v2519 = vsel %vm1067, %v405, %v2151
        %v2521 = vsel %vm1067, %v453, %v2153
        %v2523 = vsel %vm1067, %v406, %v2155
        %v2525 = vsel %vm1067, %v454, %v2157
        %v2527 = vsel %vm1067, %v407, %v2159
        %v2529 = vsel %vm1067, %v455, %v2161
        %v2531 = vsel %vm1067, %v408, %v2163
        %v2533 = vsel %vm1067, %v456, %v2165
        %v2535 = vsel %vm1067, %v409, %v2167
        %v2537 = vsel %vm1067, %v457, %v2169
        %v2538 = vsel %vm1100, %v2475, %v764
        %v2540 = vsel %vm1100, %v2477, %v2171
        %v2541 = vsel %vm1100, %v2479, %v766
        %v2543 = vsel %vm1100, %v2481, %v2173
        %v2544 = vsel %vm1100, %v2483, %v768
        %v2546 = vsel %vm1100, %v2485, %v2175
        %v2547 = vsel %vm1100, %v2487, %v770
        %v2549 = vsel %vm1100, %v2489, %v2177
        %v2550 = vsel %vm1100, %v2491, %v772
        %v2552 = vsel %vm1100, %v2493, %v2179
        %v2553 = vsel %vm1100, %v2495, %v774
        %v2555 = vsel %vm1100, %v2497, %v2181
        %v2556 = vsel %vm1100, %v2499, %v776
        %v2558 = vsel %vm1100, %v2501, %v2183
        %v2559 = vsel %vm1100, %v2503, %v778
        %v2561 = vsel %vm1100, %v2505, %v2185
        %v2562 = vsel %vm1100, %v2507, %v780
        %v2564 = vsel %vm1100, %v2509, %v2187
        %v2565 = vsel %vm1100, %v2511, %v782
        %v2567 = vsel %vm1100, %v2513, %v2189
        %v2568 = vsel %vm1100, %v2515, %v784
        %v2570 = vsel %vm1100, %v2517, %v2191
        %v2571 = vsel %vm1100, %v2519, %v786
        %v2573 = vsel %vm1100, %v2521, %v2193
        %v2574 = vsel %vm1100, %v2523, %v788
        %v2576 = vsel %vm1100, %v2525, %v2195
        %v2577 = vsel %vm1100, %v2527, %v790
        %v2579 = vsel %vm1100, %v2529, %v2197
        %v2580 = vsel %vm1100, %v2531, %v792
        %v2582 = vsel %vm1100, %v2533, %v2199
        %v2583 = vsel %vm1100, %v2535, %v794
        %v2585 = vsel %vm1100, %v2537, %v2201
        %v2587 = vsel %vm1133, %v2538, %v2411
        %v2589 = vsel %vm1133, %v2540, %v2413
        %v2591 = vsel %vm1133, %v2541, %v2415
        %v2593 = vsel %vm1133, %v2543, %v2417
        %v2595 = vsel %vm1133, %v2544, %v2419
        %v2597 = vsel %vm1133, %v2546, %v2421
        %v2599 = vsel %vm1133, %v2547, %v2423
        %v2601 = vsel %vm1133, %v2549, %v2425
        %v2603 = vsel %vm1133, %v2550, %v2427
        %v2605 = vsel %vm1133, %v2552, %v2429
        %v2607 = vsel %vm1133, %v2553, %v2431
        %v2609 = vsel %vm1133, %v2555, %v2433
        %v2611 = vsel %vm1133, %v2556, %v2435
        %v2613 = vsel %vm1133, %v2558, %v2437
        %v2615 = vsel %vm1133, %v2559, %v2439
        %v2617 = vsel %vm1133, %v2561, %v2441
        %v2619 = vsel %vm1133, %v2562, %v2443
        %v2621 = vsel %vm1133, %v2564, %v2445
        %v2623 = vsel %vm1133, %v2565, %v2447
        %v2625 = vsel %vm1133, %v2567, %v2449
        %v2627 = vsel %vm1133, %v2568, %v2451
        %v2629 = vsel %vm1133, %v2570, %v2453
        %v2631 = vsel %vm1133, %v2571, %v2455
        %v2633 = vsel %vm1133, %v2573, %v2457
        %v2635 = vsel %vm1133, %v2574, %v2459
        %v2637 = vsel %vm1133, %v2576, %v2461
        %v2639 = vsel %vm1133, %v2577, %v2463
        %v2641 = vsel %vm1133, %v2579, %v2465
        %v2643 = vsel %vm1133, %v2580, %v2467
        %v2645 = vsel %vm1133, %v2582, %v2469
        %v2647 = vsel %vm1133, %v2583, %v2471
        %v2649 = vsel %vm1133, %v2585, %v2473
        %v2650 = vshrl.u32 %v2587, 16
        %v2652 = vshll.u32 %v2587, 16
        %v2654 = vrot.slane %v2652, 1
        %v2655 = vor.u32 %v2650, %v2654
        %v2656 = vshll.u32 %v2589, 16
        %v2658 = vrot.slane %v2656, 1
        %v2659 = vsel %vm458, %v2655, %v2658
        %v2660 = vshrl.u32 %v2591, 16
        %v2662 = vshll.u32 %v2591, 16
        %v2664 = vrot.slane %v2662, 1
        %v2665 = vor.u32 %v2660, %v2664
        %v2666 = vshll.u32 %v2593, 16
        %v2668 = vrot.slane %v2666, 1
        %v2669 = vsel %vm458, %v2665, %v2668
        %v2670 = vshrl.u32 %v2595, 16
        %v2672 = vshll.u32 %v2595, 16
        %v2674 = vrot.slane %v2672, 1
        %v2675 = vor.u32 %v2670, %v2674
        %v2676 = vshll.u32 %v2597, 16
        %v2678 = vrot.slane %v2676, 1
        %v2679 = vsel %vm458, %v2675, %v2678
        %v2680 = vshrl.u32 %v2599, 16
        %v2682 = vshll.u32 %v2599, 16
        %v2684 = vrot.slane %v2682, 1
        %v2685 = vor.u32 %v2680, %v2684
        %v2686 = vshll.u32 %v2601, 16
        %v2688 = vrot.slane %v2686, 1
        %v2689 = vsel %vm458, %v2685, %v2688
        %v2690 = vshrl.u32 %v2603, 16
        %v2692 = vshll.u32 %v2603, 16
        %v2694 = vrot.slane %v2692, 1
        %v2695 = vor.u32 %v2690, %v2694
        %v2696 = vshll.u32 %v2605, 16
        %v2698 = vrot.slane %v2696, 1
        %v2699 = vsel %vm458, %v2695, %v2698
        %v2700 = vshrl.u32 %v2607, 16
        %v2702 = vshll.u32 %v2607, 16
        %v2704 = vrot.slane %v2702, 1
        %v2705 = vor.u32 %v2700, %v2704
        %v2706 = vshll.u32 %v2609, 16
        %v2708 = vrot.slane %v2706, 1
        %v2709 = vsel %vm458, %v2705, %v2708
        %v2710 = vshrl.u32 %v2611, 16
        %v2712 = vshll.u32 %v2611, 16
        %v2714 = vrot.slane %v2712, 1
        %v2715 = vor.u32 %v2710, %v2714
        %v2716 = vshll.u32 %v2613, 16
        %v2718 = vrot.slane %v2716, 1
        %v2719 = vsel %vm458, %v2715, %v2718
        %v2720 = vshrl.u32 %v2615, 16
        %v2722 = vshll.u32 %v2615, 16
        %v2724 = vrot.slane %v2722, 1
        %v2725 = vor.u32 %v2720, %v2724
        %v2726 = vshll.u32 %v2617, 16
        %v2728 = vrot.slane %v2726, 1
        %v2729 = vsel %vm458, %v2725, %v2728
        %v2730 = vshrl.u32 %v2619, 16
        %v2732 = vshll.u32 %v2619, 16
        %v2734 = vrot.slane %v2732, 1
        %v2735 = vor.u32 %v2730, %v2734
        %v2736 = vshll.u32 %v2621, 16
        %v2738 = vrot.slane %v2736, 1
        %v2739 = vsel %vm458, %v2735, %v2738
        %v2740 = vshrl.u32 %v2623, 16
        %v2742 = vshll.u32 %v2623, 16
        %v2744 = vrot.slane %v2742, 1
        %v2745 = vor.u32 %v2740, %v2744
        %v2746 = vshll.u32 %v2625, 16
        %v2748 = vrot.slane %v2746, 1
        %v2749 = vsel %vm458, %v2745, %v2748
        %v2750 = vshrl.u32 %v2627, 16
        %v2752 = vshll.u32 %v2627, 16
        %v2754 = vrot.slane %v2752, 1
        %v2755 = vor.u32 %v2750, %v2754
        %v2756 = vshll.u32 %v2629, 16
        %v2758 = vrot.slane %v2756, 1
        %v2759 = vsel %vm458, %v2755, %v2758
        %v2760 = vshrl.u32 %v2631, 16
        %v2762 = vshll.u32 %v2631, 16
        %v2764 = vrot.slane %v2762, 1
        %v2765 = vor.u32 %v2760, %v2764
        %v2766 = vshll.u32 %v2633, 16
        %v2768 = vrot.slane %v2766, 1
        %v2769 = vsel %vm458, %v2765, %v2768
        %v2770 = vshrl.u32 %v2635, 16
        %v2772 = vshll.u32 %v2635, 16
        %v2774 = vrot.slane %v2772, 1
        %v2775 = vor.u32 %v2770, %v2774
        %v2776 = vshll.u32 %v2637, 16
        %v2778 = vrot.slane %v2776, 1
        %v2779 = vsel %vm458, %v2775, %v2778
        %v2780 = vshrl.u32 %v2639, 16
        %v2782 = vshll.u32 %v2639, 16
        %v2784 = vrot.slane %v2782, 1
        %v2785 = vor.u32 %v2780, %v2784
        %v2786 = vshll.u32 %v2641, 16
        %v2788 = vrot.slane %v2786, 1
        %v2789 = vsel %vm458, %v2785, %v2788
        %v2790 = vshrl.u32 %v2643, 16
        %v2792 = vshll.u32 %v2643, 16
        %v2794 = vrot.slane %v2792, 1
        %v2795 = vor.u32 %v2790, %v2794
        %v2796 = vshll.u32 %v2645, 16
        %v2798 = vrot.slane %v2796, 1
        %v2799 = vsel %vm458, %v2795, %v2798
        %v2800 = vshrl.u32 %v2647, 16
        %v2802 = vshll.u32 %v2647, 16
        %v2804 = vrot.slane %v2802, 1
        %v2805 = vor.u32 %v2800, %v2804
        %v2806 = vshll.u32 %v2649, 16
        %v2808 = vrot.slane %v2806, 1
        %v2809 = vsel %vm458, %v2805, %v2808
        %s2810 = scalar_lea.vmem %s1, 8
        %v2811 = vld [vmem:[%s2810] sm:$0xf]
        %v2812 = vld [vmem:[%s2810 + $0x4] sm:$0xf]
        %v2815 = vunpack.c.l.b16 %v2811
        %v2816 = vunpack.c.l.b16 %v2812
        %v2817 = vpack.c.b16 %v2816, %v2815
        %v2820 = vsel %vm1180, %v2659, 0
        %v2823 = vsel %vm1180, %v2669, 0
        %v2826 = vsel %vm1180, %v2679, 0
        %v2829 = vsel %vm1180, %v2689, 0
        %v2832 = vsel %vm1180, %v2699, 0
        %v2835 = vsel %vm1180, %v2709, 0
        %v2838 = vsel %vm1180, %v2719, 0
        %v2841 = vsel %vm1180, %v2729, 0
        %v2844 = vsel %vm1180, %v2739, 0
        %v2847 = vsel %vm1180, %v2749, 0
        %v2850 = vsel %vm1180, %v2759, 0
        %v2853 = vsel %vm1180, %v2769, 0
        %v2856 = vsel %vm1180, %v2779, 0
        %v2859 = vsel %vm1180, %v2789, 0
        %v2862 = vsel %vm1180, %v2799, 0
        %v2865 = vsel %vm1180, %v2809, 0
        %2867 = vmatprep.subr.bf16.mxu0 0
        %2868 = vmatpush1.bf16.msra.mxu0 %v2817
        %2869 = vmatprep.subr.bf16.mxu0 0
        %2870 = vmatpush1.bf16.msra.mxu0 0
        %2871 = vmatprep.subr.bf16.mxu0 0
        %2872 = vmatpush1.bf16.msra.mxu0 0
        %2873 = vmatprep.subr.bf16.mxu0 0
        %2874 = vmatpush1.bf16.msra.mxu0 0
        %2875 = vmatprep.subr.bf16.mxu0 0
        %2876 = vmatpush1.bf16.msra.mxu0 0
        %2877 = vmatprep.subr.bf16.mxu0 0
        %2878 = vmatpush1.bf16.msra.mxu0 0
        %2879 = vmatprep.subr.bf16.mxu0 0
        %2880 = vmatpush1.bf16.msra.mxu0 0
        %2881 = vmatprep.subr.bf16.mxu0 0
        %2882 = vmatpush1.bf16.msra.mxu0 0
        %2883 = vmatprep.subr.bf16.mxu0 0
        %2884 = vmatpush1.bf16.msra.mxu0 0
        %2885 = vmatprep.subr.bf16.mxu0 0
        %2886 = vmatpush1.bf16.msra.mxu0 0
        %2887 = vmatprep.subr.bf16.mxu0 0
        %2888 = vmatpush1.bf16.msra.mxu0 0
        %2889 = vmatprep.subr.bf16.mxu0 0
        %2890 = vmatpush1.bf16.msra.mxu0 0
        %2891 = vmatprep.subr.bf16.mxu0 0
        %2892 = vmatpush1.bf16.msra.mxu0 0
        %2893 = vmatprep.subr.bf16.mxu0 0
        %2894 = vmatpush1.bf16.msra.mxu0 0
        %2895 = vmatprep.subr.bf16.mxu0 0
        %2896 = vmatpush1.bf16.msra.mxu0 0
        %2897 = vmatprep.subr.bf16.mxu0 0
        %2898 = vmatpush1.bf16.msra.mxu0 0
        %2899 = vmatprep.mubr.bf16.mxu0 0
        %2900 = vmatmul.mubr.bf16.gmra.mrb[0].mxu0 %v2820
        %v2901 = vpop.f32.mrb[0].mxu0
        %v2902 = vadd.f32 %v1172, %v2901
        %v2903 = vpop.f32.mrb[0].mxu0
        %v2904 = vpop.f32.mrb[0].mxu0
        %v2905 = vadd.f32 %v1172, %v2904
        %v2906 = vpop.f32.mrb[0].mxu0
        %2907 = vmatprep.mubr.bf16.mxu0 0
        %2908 = vmatmul.mubr.bf16.gmra.mrb[0].mxu0 %v2823
        %v2909 = vpop.f32.mrb[0].mxu0
        %v2910 = vadd.f32 %v1172, %v2909
        %v2911 = vpop.f32.mrb[0].mxu0
        %v2912 = vpop.f32.mrb[0].mxu0
        %v2913 = vadd.f32 %v1172, %v2912
        %v2914 = vpop.f32.mrb[0].mxu0
        %2915 = vmatprep.mubr.bf16.mxu0 0
        %2916 = vmatmul.mubr.bf16.gmra.mrb[0].mxu0 %v2826
        %v2917 = vpop.f32.mrb[0].mxu0
        %v2918 = vadd.f32 %v1172, %v2917
        %v2919 = vpop.f32.mrb[0].mxu0
        %v2920 = vpop.f32.mrb[0].mxu0
        %v2921 = vadd.f32 %v1172, %v2920
        %v2922 = vpop.f32.mrb[0].mxu0
        %2923 = vmatprep.mubr.bf16.mxu0 0
        %2924 = vmatmul.mubr.bf16.gmra.mrb[0].mxu0 %v2829
        %v2925 = vpop.f32.mrb[0].mxu0
        %v2926 = vadd.f32 %v1172, %v2925
        %v2927 = vpop.f32.mrb[0].mxu0
        %v2928 = vpop.f32.mrb[0].mxu0
        %v2929 = vadd.f32 %v1172, %v2928
        %v2930 = vpop.f32.mrb[0].mxu0
        %2931 = vmatprep.mubr.bf16.mxu0 0
        %2932 = vmatmul.mubr.bf16.gmra.mrb[0].mxu0 %v2832
        %v2933 = vpop.f32.mrb[0].mxu0
        %v2934 = vadd.f32 %v1172, %v2933
        %v2935 = vpop.f32.mrb[0].mxu0
        %v2936 = vpop.f32.mrb[0].mxu0
        %v2937 = vadd.f32 %v1172, %v2936
        %v2938 = vpop.f32.mrb[0].mxu0
        %2939 = vmatprep.mubr.bf16.mxu0 0
        %2940 = vmatmul.mubr.bf16.gmra.mrb[0].mxu0 %v2835
        %v2941 = vpop.f32.mrb[0].mxu0
        %v2942 = vadd.f32 %v1172, %v2941
        %v2943 = vpop.f32.mrb[0].mxu0
        %v2944 = vpop.f32.mrb[0].mxu0
        %v2945 = vadd.f32 %v1172, %v2944
        %v2946 = vpop.f32.mrb[0].mxu0
        %2947 = vmatprep.mubr.bf16.mxu0 0
        %2948 = vmatmul.mubr.bf16.gmra.mrb[0].mxu0 %v2838
        %v2949 = vpop.f32.mrb[0].mxu0
        %v2950 = vadd.f32 %v1172, %v2949
        %v2951 = vpop.f32.mrb[0].mxu0
        %v2952 = vpop.f32.mrb[0].mxu0
        %v2953 = vadd.f32 %v1172, %v2952
        %v2954 = vpop.f32.mrb[0].mxu0
        %2955 = vmatprep.mubr.bf16.mxu0 0
        %2956 = vmatmul.mubr.bf16.gmra.mrb[0].mxu0 %v2841
        %v2957 = vpop.f32.mrb[0].mxu0
        %v2958 = vadd.f32 %v1172, %v2957
        %v2959 = vpop.f32.mrb[0].mxu0
        %v2960 = vpop.f32.mrb[0].mxu0
        %v2961 = vadd.f32 %v1172, %v2960
        %v2962 = vpop.f32.mrb[0].mxu0
        %2963 = vmatprep.mubr.bf16.mxu0 0
        %2964 = vmatmul.mubr.bf16.gmra.mrb[0].mxu0 %v2844
        %v2965 = vpop.f32.mrb[0].mxu0
        %v2966 = vadd.f32 %v1172, %v2965
        %v2967 = vpop.f32.mrb[0].mxu0
        %v2968 = vpop.f32.mrb[0].mxu0
        %v2969 = vadd.f32 %v1172, %v2968
        %v2970 = vpop.f32.mrb[0].mxu0
        %2971 = vmatprep.mubr.bf16.mxu0 0
        %2972 = vmatmul.mubr.bf16.gmra.mrb[0].mxu0 %v2847
        %v2973 = vpop.f32.mrb[0].mxu0
        %v2974 = vadd.f32 %v1172, %v2973
        %v2975 = vpop.f32.mrb[0].mxu0
        %v2976 = vpop.f32.mrb[0].mxu0
        %v2977 = vadd.f32 %v1172, %v2976
        %v2978 = vpop.f32.mrb[0].mxu0
        %2979 = vmatprep.mubr.bf16.mxu0 0
        %2980 = vmatmul.mubr.bf16.gmra.mrb[0].mxu0 %v2850
        %v2981 = vpop.f32.mrb[0].mxu0
        %v2982 = vadd.f32 %v1172, %v2981
        %v2983 = vpop.f32.mrb[0].mxu0
        %v2984 = vpop.f32.mrb[0].mxu0
        %v2985 = vadd.f32 %v1172, %v2984
        %v2986 = vpop.f32.mrb[0].mxu0
        %2987 = vmatprep.mubr.bf16.mxu0 0
        %2988 = vmatmul.mubr.bf16.gmra.mrb[0].mxu0 %v2853
        %v2989 = vpop.f32.mrb[0].mxu0
        %v2990 = vadd.f32 %v1172, %v2989
        %v2991 = vpop.f32.mrb[0].mxu0
        %v2992 = vpop.f32.mrb[0].mxu0
        %v2993 = vadd.f32 %v1172, %v2992
        %v2994 = vpop.f32.mrb[0].mxu0
        %2995 = vmatprep.mubr.bf16.mxu0 0
        %2996 = vmatmul.mubr.bf16.gmra.mrb[0].mxu0 %v2856
        %v2997 = vpop.f32.mrb[0].mxu0
        %v2998 = vadd.f32 %v1172, %v2997
        %v2999 = vpop.f32.mrb[0].mxu0
        %v3000 = vpop.f32.mrb[0].mxu0
        %v3001 = vadd.f32 %v1172, %v3000
        %v3002 = vpop.f32.mrb[0].mxu0
        %3003 = vmatprep.mubr.bf16.mxu0 0
        %3004 = vmatmul.mubr.bf16.gmra.mrb[0].mxu0 %v2859
        %v3005 = vpop.f32.mrb[0].mxu0
        %v3006 = vadd.f32 %v1172, %v3005
        %v3007 = vpop.f32.mrb[0].mxu0
        %v3008 = vpop.f32.mrb[0].mxu0
        %v3009 = vadd.f32 %v1172, %v3008
        %v3010 = vpop.f32.mrb[0].mxu0
        %3011 = vmatprep.mubr.bf16.mxu0 0
        %3012 = vmatmul.mubr.bf16.gmra.mrb[0].mxu0 %v2862
        %v3013 = vpop.f32.mrb[0].mxu0
        %v3014 = vadd.f32 %v1172, %v3013
        %v3015 = vpop.f32.mrb[0].mxu0
        %v3016 = vpop.f32.mrb[0].mxu0
        %v3017 = vadd.f32 %v1172, %v3016
        %v3018 = vpop.f32.mrb[0].mxu0
        %3019 = vmatprep.mubr.bf16.mxu0 0
        %3020 = vmatmul.mubr.bf16.gmra.mrb[0].mxu0 %v2865
        %v3021 = vpop.f32.mrb[0].mxu0
        %v3022 = vadd.f32 %v1172, %v3021
        %v3023 = vpop.f32.mrb[0].mxu0
        %v3024 = vpop.f32.mrb[0].mxu0
        %v3025 = vadd.f32 %v1172, %v3024
        %v3026 = vpop.f32.mrb[0].mxu0
        %3027 = vdwg.mxu0
        %v3028 = vmin.f32 %v2902, 30.0
        %v3029 = vmin.f32 %v2905, 30.0
        %v3030 = vmin.f32 %v2910, 30.0
        %v3031 = vmin.f32 %v2913, 30.0
        %v3032 = vmin.f32 %v2918, 30.0
        %v3033 = vmin.f32 %v2921, 30.0
        %v3034 = vmin.f32 %v2926, 30.0
        %v3035 = vmin.f32 %v2929, 30.0
        %v3036 = vmin.f32 %v2934, 30.0
        %v3037 = vmin.f32 %v2937, 30.0
        %v3038 = vmin.f32 %v2942, 30.0
        %v3039 = vmin.f32 %v2945, 30.0
        %v3040 = vmin.f32 %v2950, 30.0
        %v3041 = vmin.f32 %v2953, 30.0
        %v3042 = vmin.f32 %v2958, 30.0
        %v3043 = vmin.f32 %v2961, 30.0
        %v3044 = vmin.f32 %v2966, 30.0
        %v3045 = vmin.f32 %v2969, 30.0
        %v3046 = vmin.f32 %v2974, 30.0
        %v3047 = vmin.f32 %v2977, 30.0
        %v3048 = vmin.f32 %v2982, 30.0
        %v3049 = vmin.f32 %v2985, 30.0
        %v3050 = vmin.f32 %v2990, 30.0
        %v3051 = vmin.f32 %v2993, 30.0
        %v3052 = vmin.f32 %v2998, 30.0
        %v3053 = vmin.f32 %v3001, 30.0
        %v3054 = vmin.f32 %v3006, 30.0
        %v3055 = vmin.f32 %v3009, 30.0
        %v3056 = vmin.f32 %v3014, 30.0
        %v3057 = vmin.f32 %v3017, 30.0
        %v3058 = vmin.f32 %v3022, 30.0
        %v3059 = vmin.f32 %v3025, 30.0
        %v3060 = vmul.f32 %v3028, 1.442695
        %v3061 = vpow.pop %v3060
        %v3062 = vmul.f32 %v3029, 1.442695
        %v3063 = vpow.pop %v3062
        %v3064 = vmul.f32 %v3030, 1.442695
        %v3065 = vpow.pop %v3064
        %v3066 = vmul.f32 %v3031, 1.442695
        %v3067 = vpow.pop %v3066
        %v3068 = vmul.f32 %v3032, 1.442695
        %v3069 = vpow.pop %v3068
        %v3070 = vmul.f32 %v3033, 1.442695
        %v3071 = vpow.pop %v3070
        %v3072 = vmul.f32 %v3034, 1.442695
        %v3073 = vpow.pop %v3072
        %v3074 = vmul.f32 %v3035, 1.442695
        %v3075 = vpow.pop %v3074
        %v3076 = vmul.f32 %v3036, 1.442695
        %v3077 = vpow.pop %v3076
        %v3078 = vmul.f32 %v3037, 1.442695
        %v3079 = vpow.pop %v3078
        %v3080 = vmul.f32 %v3038, 1.442695
        %v3081 = vpow.pop %v3080
        %v3082 = vmul.f32 %v3039, 1.442695
        %v3083 = vpow.pop %v3082
        %v3084 = vmul.f32 %v3040, 1.442695
        %v3085 = vpow.pop %v3084
        %v3086 = vmul.f32 %v3041, 1.442695
        %v3087 = vpow.pop %v3086
        %v3088 = vmul.f32 %v3042, 1.442695
        %v3089 = vpow.pop %v3088
        %v3090 = vmul.f32 %v3043, 1.442695
        %v3091 = vpow.pop %v3090
        %v3092 = vmul.f32 %v3044, 1.442695
        %v3093 = vpow.pop %v3092
        %v3094 = vmul.f32 %v3045, 1.442695
        %v3095 = vpow.pop %v3094
        %v3096 = vmul.f32 %v3046, 1.442695
        %v3097 = vpow.pop %v3096
        %v3098 = vmul.f32 %v3047, 1.442695
        %v3099 = vpow.pop %v3098
        %v3100 = vmul.f32 %v3048, 1.442695
        %v3101 = vpow.pop %v3100
        %v3102 = vmul.f32 %v3049, 1.442695
        %v3103 = vpow.pop %v3102
        %v3104 = vmul.f32 %v3050, 1.442695
        %v3105 = vpow.pop %v3104
        %v3106 = vmul.f32 %v3051, 1.442695
        %v3107 = vpow.pop %v3106
        %v3108 = vmul.f32 %v3052, 1.442695
        %v3109 = vpow.pop %v3108
        %v3110 = vmul.f32 %v3053, 1.442695
        %v3111 = vpow.pop %v3110
        %v3112 = vmul.f32 %v3054, 1.442695
        %v3113 = vpow.pop %v3112
        %v3114 = vmul.f32 %v3055, 1.442695
        %v3115 = vpow.pop %v3114
        %v3116 = vmul.f32 %v3056, 1.442695
        %v3117 = vpow.pop %v3116
        %v3118 = vmul.f32 %v3057, 1.442695
        %v3119 = vpow.pop %v3118
        %v3120 = vmul.f32 %v3058, 1.442695
        %v3121 = vpow.pop %v3120
        %v3122 = vmul.f32 %v3059, 1.442695
        %v3123 = vpow.pop %v3122
        %v3124 = vadd.f32 %v3061, 1.0
        %v3125 = vadd.f32 %v3063, 1.0
        %v3126 = vadd.f32 %v3065, 1.0
        %v3127 = vadd.f32 %v3067, 1.0
        %v3128 = vadd.f32 %v3069, 1.0
        %v3129 = vadd.f32 %v3071, 1.0
        %v3130 = vadd.f32 %v3073, 1.0
        %v3131 = vadd.f32 %v3075, 1.0
        %v3132 = vadd.f32 %v3077, 1.0
        %v3133 = vadd.f32 %v3079, 1.0
        %v3134 = vadd.f32 %v3081, 1.0
        %v3135 = vadd.f32 %v3083, 1.0
        %v3136 = vadd.f32 %v3085, 1.0
        %v3137 = vadd.f32 %v3087, 1.0
        %v3138 = vadd.f32 %v3089, 1.0
        %v3139 = vadd.f32 %v3091, 1.0
        %v3140 = vadd.f32 %v3093, 1.0
        %v3141 = vadd.f32 %v3095, 1.0
        %v3142 = vadd.f32 %v3097, 1.0
        %v3143 = vadd.f32 %v3099, 1.0
        %v3144 = vadd.f32 %v3101, 1.0
        %v3145 = vadd.f32 %v3103, 1.0
        %v3146 = vadd.f32 %v3105, 1.0
        %v3147 = vadd.f32 %v3107, 1.0
        %v3148 = vadd.f32 %v3109, 1.0
        %v3149 = vadd.f32 %v3111, 1.0
        %v3150 = vadd.f32 %v3113, 1.0
        %v3151 = vadd.f32 %v3115, 1.0
        %v3152 = vadd.f32 %v3117, 1.0
        %v3153 = vadd.f32 %v3119, 1.0
        %v3154 = vadd.f32 %v3121, 1.0
        %v3155 = vadd.f32 %v3123, 1.0
        %v3156 = vmul.f32 %v3124, %v3124
        %v3157 = vmul.f32 %v3125, %v3125
        %v3158 = vmul.f32 %v3126, %v3126
        %v3159 = vmul.f32 %v3127, %v3127
        %v3160 = vmul.f32 %v3128, %v3128
        %v3161 = vmul.f32 %v3129, %v3129
        %v3162 = vmul.f32 %v3130, %v3130
        %v3163 = vmul.f32 %v3131, %v3131
        %v3164 = vmul.f32 %v3132, %v3132
        %v3165 = vmul.f32 %v3133, %v3133
        %v3166 = vmul.f32 %v3134, %v3134
        %v3167 = vmul.f32 %v3135, %v3135
        %v3168 = vmul.f32 %v3136, %v3136
        %v3169 = vmul.f32 %v3137, %v3137
        %v3170 = vmul.f32 %v3138, %v3138
        %v3171 = vmul.f32 %v3139, %v3139
        %v3172 = vmul.f32 %v3140, %v3140
        %v3173 = vmul.f32 %v3141, %v3141
        %v3174 = vmul.f32 %v3142, %v3142
        %v3175 = vmul.f32 %v3143, %v3143
        %v3176 = vmul.f32 %v3144, %v3144
        %v3177 = vmul.f32 %v3145, %v3145
        %v3178 = vmul.f32 %v3146, %v3146
        %v3179 = vmul.f32 %v3147, %v3147
        %v3180 = vmul.f32 %v3148, %v3148
        %v3181 = vmul.f32 %v3149, %v3149
        %v3182 = vmul.f32 %v3150, %v3150
        %v3183 = vmul.f32 %v3151, %v3151
        %v3184 = vmul.f32 %v3152, %v3152
        %v3185 = vmul.f32 %v3153, %v3153
        %v3186 = vmul.f32 %v3154, %v3154
        %v3187 = vmul.f32 %v3155, %v3155
        %v3188 = vadd.f32 %v3156, 1.0
        %v3189 = vadd.f32 %v3157, 1.0
        %v3190 = vadd.f32 %v3158, 1.0
        %v3191 = vadd.f32 %v3159, 1.0
        %v3192 = vadd.f32 %v3160, 1.0
        %v3193 = vadd.f32 %v3161, 1.0
        %v3194 = vadd.f32 %v3162, 1.0
        %v3195 = vadd.f32 %v3163, 1.0
        %v3196 = vadd.f32 %v3164, 1.0
        %v3197 = vadd.f32 %v3165, 1.0
        %v3198 = vadd.f32 %v3166, 1.0
        %v3199 = vadd.f32 %v3167, 1.0
        %v3200 = vadd.f32 %v3168, 1.0
        %v3201 = vadd.f32 %v3169, 1.0
        %v3202 = vadd.f32 %v3170, 1.0
        %v3203 = vadd.f32 %v3171, 1.0
        %v3204 = vadd.f32 %v3172, 1.0
        %v3205 = vadd.f32 %v3173, 1.0
        %v3206 = vadd.f32 %v3174, 1.0
        %v3207 = vadd.f32 %v3175, 1.0
        %v3208 = vadd.f32 %v3176, 1.0
        %v3209 = vadd.f32 %v3177, 1.0
        %v3210 = vadd.f32 %v3178, 1.0
        %v3211 = vadd.f32 %v3179, 1.0
        %v3212 = vadd.f32 %v3180, 1.0
        %v3213 = vadd.f32 %v3181, 1.0
        %v3214 = vadd.f32 %v3182, 1.0
        %v3215 = vadd.f32 %v3183, 1.0
        %v3216 = vadd.f32 %v3184, 1.0
        %v3217 = vadd.f32 %v3185, 1.0
        %v3218 = vadd.f32 %v3186, 1.0
        %v3219 = vadd.f32 %v3187, 1.0
        %v3220 = vrcp.pop %v3188
        %v3221 = vrcp.pop %v3189
        %v3222 = vrcp.pop %v3190
        %v3223 = vrcp.pop %v3191
        %v3224 = vrcp.pop %v3192
        %v3225 = vrcp.pop %v3193
        %v3226 = vrcp.pop %v3194
        %v3227 = vrcp.pop %v3195
        %v3228 = vrcp.pop %v3196
        %v3229 = vrcp.pop %v3197
        %v3230 = vrcp.pop %v3198
        %v3231 = vrcp.pop %v3199
        %v3232 = vrcp.pop %v3200
        %v3233 = vrcp.pop %v3201
        %v3234 = vrcp.pop %v3202
        %v3235 = vrcp.pop %v3203
        %v3236 = vrcp.pop %v3204
        %v3237 = vrcp.pop %v3205
        %v3238 = vrcp.pop %v3206
        %v3239 = vrcp.pop %v3207
        %v3240 = vrcp.pop %v3208
        %v3241 = vrcp.pop %v3209
        %v3242 = vrcp.pop %v3210
        %v3243 = vrcp.pop %v3211
        %v3244 = vrcp.pop %v3212
        %v3245 = vrcp.pop %v3213
        %v3246 = vrcp.pop %v3214
        %v3247 = vrcp.pop %v3215
        %v3248 = vrcp.pop %v3216
        %v3249 = vrcp.pop %v3217
        %v3250 = vrcp.pop %v3218
        %v3251 = vrcp.pop %v3219
        %v3252 = vmul.f32 %v3220, 2.0
        %v3253 = vmul.f32 %v3221, 2.0
        %v3254 = vmul.f32 %v3222, 2.0
        %v3255 = vmul.f32 %v3223, 2.0
        %v3256 = vmul.f32 %v3224, 2.0
        %v3257 = vmul.f32 %v3225, 2.0
        %v3258 = vmul.f32 %v3226, 2.0
        %v3259 = vmul.f32 %v3227, 2.0
        %v3260 = vmul.f32 %v3228, 2.0
        %v3261 = vmul.f32 %v3229, 2.0
        %v3262 = vmul.f32 %v3230, 2.0
        %v3263 = vmul.f32 %v3231, 2.0
        %v3264 = vmul.f32 %v3232, 2.0
        %v3265 = vmul.f32 %v3233, 2.0
        %v3266 = vmul.f32 %v3234, 2.0
        %v3267 = vmul.f32 %v3235, 2.0
        %v3268 = vmul.f32 %v3236, 2.0
        %v3269 = vmul.f32 %v3237, 2.0
        %v3270 = vmul.f32 %v3238, 2.0
        %v3271 = vmul.f32 %v3239, 2.0
        %v3272 = vmul.f32 %v3240, 2.0
        %v3273 = vmul.f32 %v3241, 2.0
        %v3274 = vmul.f32 %v3242, 2.0
        %v3275 = vmul.f32 %v3243, 2.0
        %v3276 = vmul.f32 %v3244, 2.0
        %v3277 = vmul.f32 %v3245, 2.0
        %v3278 = vmul.f32 %v3246, 2.0
        %v3279 = vmul.f32 %v3247, 2.0
        %v3280 = vmul.f32 %v3248, 2.0
        %v3281 = vmul.f32 %v3249, 2.0
        %v3282 = vmul.f32 %v3250, 2.0
        %v3283 = vmul.f32 %v3251, 2.0
        %v3284 = vsub.f32 1.0, %v3252
        %v3285 = vsub.f32 1.0, %v3253
        %v3286 = vsub.f32 1.0, %v3254
        %v3287 = vsub.f32 1.0, %v3255
        %v3288 = vsub.f32 1.0, %v3256
        %v3289 = vsub.f32 1.0, %v3257
        %v3290 = vsub.f32 1.0, %v3258
        %v3291 = vsub.f32 1.0, %v3259
        %v3292 = vsub.f32 1.0, %v3260
        %v3293 = vsub.f32 1.0, %v3261
        %v3294 = vsub.f32 1.0, %v3262
        %v3295 = vsub.f32 1.0, %v3263
        %v3296 = vsub.f32 1.0, %v3264
        %v3297 = vsub.f32 1.0, %v3265
        %v3298 = vsub.f32 1.0, %v3266
        %v3299 = vsub.f32 1.0, %v3267
        %v3300 = vsub.f32 1.0, %v3268
        %v3301 = vsub.f32 1.0, %v3269
        %v3302 = vsub.f32 1.0, %v3270
        %v3303 = vsub.f32 1.0, %v3271
        %v3304 = vsub.f32 1.0, %v3272
        %v3305 = vsub.f32 1.0, %v3273
        %v3306 = vsub.f32 1.0, %v3274
        %v3307 = vsub.f32 1.0, %v3275
        %v3308 = vsub.f32 1.0, %v3276
        %v3309 = vsub.f32 1.0, %v3277
        %v3310 = vsub.f32 1.0, %v3278
        %v3311 = vsub.f32 1.0, %v3279
        %v3312 = vsub.f32 1.0, %v3280
        %v3313 = vsub.f32 1.0, %v3281
        %v3314 = vsub.f32 1.0, %v3282
        %v3315 = vsub.f32 1.0, %v3283
        %v3316 = vmul.f32 %v2902, %v3284
        %v3317 = vmul.f32 %v2905, %v3285
        %v3318 = vmul.f32 %v2910, %v3286
        %v3319 = vmul.f32 %v2913, %v3287
        %v3320 = vmul.f32 %v2918, %v3288
        %v3321 = vmul.f32 %v2921, %v3289
        %v3322 = vmul.f32 %v2926, %v3290
        %v3323 = vmul.f32 %v2929, %v3291
        %v3324 = vmul.f32 %v2934, %v3292
        %v3325 = vmul.f32 %v2937, %v3293
        %v3326 = vmul.f32 %v2942, %v3294
        %v3327 = vmul.f32 %v2945, %v3295
        %v3328 = vmul.f32 %v2950, %v3296
        %v3329 = vmul.f32 %v2953, %v3297
        %v3330 = vmul.f32 %v2958, %v3298
        %v3331 = vmul.f32 %v2961, %v3299
        %v3332 = vmul.f32 %v2966, %v3300
        %v3333 = vmul.f32 %v2969, %v3301
        %v3334 = vmul.f32 %v2974, %v3302
        %v3335 = vmul.f32 %v2977, %v3303
        %v3336 = vmul.f32 %v2982, %v3304
        %v3337 = vmul.f32 %v2985, %v3305
        %v3338 = vmul.f32 %v2990, %v3306
        %v3339 = vmul.f32 %v2993, %v3307
        %v3340 = vmul.f32 %v2998, %v3308
        %v3341 = vmul.f32 %v3001, %v3309
        %v3342 = vmul.f32 %v3006, %v3310
        %v3343 = vmul.f32 %v3009, %v3311
        %v3344 = vmul.f32 %v3014, %v3312
        %v3345 = vmul.f32 %v3017, %v3313
        %v3346 = vmul.f32 %v3022, %v3314
        %v3347 = vmul.f32 %v3025, %v3315
        %v3348 = vsel %vm1100, %v3316, 0.0
        %v3349 = vsel %vm1100, %v3317, 0.0
        %v3350 = vadd.f32 %v3348, %v3349
        %v3351 = vsel %vm1100, %v3318, 0.0
        %v3352 = vadd.f32 %v3350, %v3351
        %v3353 = vsel %vm1100, %v3319, 0.0
        %v3354 = vadd.f32 %v3352, %v3353
        %v3355 = vsel %vm1100, %v3320, 0.0
        %v3356 = vadd.f32 %v3354, %v3355
        %v3357 = vsel %vm1100, %v3321, 0.0
        %v3358 = vadd.f32 %v3356, %v3357
        %v3359 = vsel %vm1100, %v3322, 0.0
        %v3360 = vadd.f32 %v3358, %v3359
        %v3361 = vsel %vm1100, %v3323, 0.0
        %v3362 = vadd.f32 %v3360, %v3361
        %v3363 = vsel %vm1100, %v3324, 0.0
        %v3364 = vadd.f32 %v3362, %v3363
        %v3365 = vsel %vm1100, %v3325, 0.0
        %v3366 = vadd.f32 %v3364, %v3365
        %v3367 = vsel %vm1100, %v3326, 0.0
        %v3368 = vadd.f32 %v3366, %v3367
        %v3369 = vsel %vm1100, %v3327, 0.0
        %v3370 = vadd.f32 %v3368, %v3369
        %v3371 = vsel %vm1100, %v3328, 0.0
        %v3372 = vadd.f32 %v3370, %v3371
        %v3373 = vsel %vm1100, %v3329, 0.0
        %v3374 = vadd.f32 %v3372, %v3373
        %v3375 = vsel %vm1100, %v3330, 0.0
        %v3376 = vadd.f32 %v3374, %v3375
        %v3377 = vsel %vm1100, %v3331, 0.0
        %v3378 = vadd.f32 %v3376, %v3377
        %v3379 = vsel %vm1100, %v3332, 0.0
        %v3380 = vadd.f32 %v3378, %v3379
        %v3381 = vsel %vm1100, %v3333, 0.0
        %v3382 = vadd.f32 %v3380, %v3381
        %v3383 = vsel %vm1100, %v3334, 0.0
        %v3384 = vadd.f32 %v3382, %v3383
        %v3385 = vsel %vm1100, %v3335, 0.0
        %v3386 = vadd.f32 %v3384, %v3385
        %v3387 = vsel %vm1100, %v3336, 0.0
        %v3388 = vadd.f32 %v3386, %v3387
        %v3389 = vsel %vm1100, %v3337, 0.0
        %v3390 = vadd.f32 %v3388, %v3389
        %v3391 = vsel %vm1100, %v3338, 0.0
        %v3392 = vadd.f32 %v3390, %v3391
        %v3393 = vsel %vm1100, %v3339, 0.0
        %v3394 = vadd.f32 %v3392, %v3393
        %v3395 = vsel %vm1100, %v3340, 0.0
        %v3396 = vadd.f32 %v3394, %v3395
        %v3397 = vsel %vm1100, %v3341, 0.0
        %v3398 = vadd.f32 %v3396, %v3397
        %v3399 = vsel %vm1100, %v3342, 0.0
        %v3400 = vadd.f32 %v3398, %v3399
        %v3401 = vsel %vm1100, %v3343, 0.0
        %v3402 = vadd.f32 %v3400, %v3401
        %v3403 = vsel %vm1100, %v3344, 0.0
        %v3404 = vadd.f32 %v3402, %v3403
        %v3405 = vsel %vm1100, %v3345, 0.0
        %v3406 = vadd.f32 %v3404, %v3405
        %v3407 = vsel %vm1100, %v3346, 0.0
        %v3408 = vadd.f32 %v3406, %v3407
        %v3409 = vsel %vm1100, %v3347, 0.0
        %v3410 = vadd.f32 %v3408, %v3409
        %v3411 = vrot.slane %v3410, 4
        %v3412 = vadd.f32 %v3410, %v3411
        %v3413 = vrot.slane %v3412, 2
        %v3414 = vadd.f32 %v3412, %v3413
        %v3415 = vrot.slane %v3414, 1
        %v3416 = vadd.f32 %v3414, %v3415
        %v3417 = vadd.f32 %v1763, %v3416
        %v3418 = vmul.f32 %v3316, %v3316
        %v3419 = vmul.f32 %v3317, %v3317
        %v3420 = vmul.f32 %v3318, %v3318
        %v3421 = vmul.f32 %v3319, %v3319
        %v3422 = vmul.f32 %v3320, %v3320
        %v3423 = vmul.f32 %v3321, %v3321
        %v3424 = vmul.f32 %v3322, %v3322
        %v3425 = vmul.f32 %v3323, %v3323
        %v3426 = vmul.f32 %v3324, %v3324
        %v3427 = vmul.f32 %v3325, %v3325
        %v3428 = vmul.f32 %v3326, %v3326
        %v3429 = vmul.f32 %v3327, %v3327
        %v3430 = vmul.f32 %v3328, %v3328
        %v3431 = vmul.f32 %v3329, %v3329
        %v3432 = vmul.f32 %v3330, %v3330
        %v3433 = vmul.f32 %v3331, %v3331
        %v3434 = vmul.f32 %v3332, %v3332
        %v3435 = vmul.f32 %v3333, %v3333
        %v3436 = vmul.f32 %v3334, %v3334
        %v3437 = vmul.f32 %v3335, %v3335
        %v3438 = vmul.f32 %v3336, %v3336
        %v3439 = vmul.f32 %v3337, %v3337
        %v3440 = vmul.f32 %v3338, %v3338
        %v3441 = vmul.f32 %v3339, %v3339
        %v3442 = vmul.f32 %v3340, %v3340
        %v3443 = vmul.f32 %v3341, %v3341
        %v3444 = vmul.f32 %v3342, %v3342
        %v3445 = vmul.f32 %v3343, %v3343
        %v3446 = vmul.f32 %v3344, %v3344
        %v3447 = vmul.f32 %v3345, %v3345
        %v3448 = vmul.f32 %v3346, %v3346
        %v3449 = vmul.f32 %v3347, %v3347
        %v3450 = vsel %vm1100, %v3418, 0.0
        %v3451 = vsel %vm1100, %v3419, 0.0
        %v3452 = vadd.f32 %v3450, %v3451
        %v3453 = vsel %vm1100, %v3420, 0.0
        %v3454 = vadd.f32 %v3452, %v3453
        %v3455 = vsel %vm1100, %v3421, 0.0
        %v3456 = vadd.f32 %v3454, %v3455
        %v3457 = vsel %vm1100, %v3422, 0.0
        %v3458 = vadd.f32 %v3456, %v3457
        %v3459 = vsel %vm1100, %v3423, 0.0
        %v3460 = vadd.f32 %v3458, %v3459
        %v3461 = vsel %vm1100, %v3424, 0.0
        %v3462 = vadd.f32 %v3460, %v3461
        %v3463 = vsel %vm1100, %v3425, 0.0
        %v3464 = vadd.f32 %v3462, %v3463
        %v3465 = vsel %vm1100, %v3426, 0.0
        %v3466 = vadd.f32 %v3464, %v3465
        %v3467 = vsel %vm1100, %v3427, 0.0
        %v3468 = vadd.f32 %v3466, %v3467
        %v3469 = vsel %vm1100, %v3428, 0.0
        %v3470 = vadd.f32 %v3468, %v3469
        %v3471 = vsel %vm1100, %v3429, 0.0
        %v3472 = vadd.f32 %v3470, %v3471
        %v3473 = vsel %vm1100, %v3430, 0.0
        %v3474 = vadd.f32 %v3472, %v3473
        %v3475 = vsel %vm1100, %v3431, 0.0
        %v3476 = vadd.f32 %v3474, %v3475
        %v3477 = vsel %vm1100, %v3432, 0.0
        %v3478 = vadd.f32 %v3476, %v3477
        %v3479 = vsel %vm1100, %v3433, 0.0
        %v3480 = vadd.f32 %v3478, %v3479
        %v3481 = vsel %vm1100, %v3434, 0.0
        %v3482 = vadd.f32 %v3480, %v3481
        %v3483 = vsel %vm1100, %v3435, 0.0
        %v3484 = vadd.f32 %v3482, %v3483
        %v3485 = vsel %vm1100, %v3436, 0.0
        %v3486 = vadd.f32 %v3484, %v3485
        %v3487 = vsel %vm1100, %v3437, 0.0
        %v3488 = vadd.f32 %v3486, %v3487
        %v3489 = vsel %vm1100, %v3438, 0.0
        %v3490 = vadd.f32 %v3488, %v3489
        %v3491 = vsel %vm1100, %v3439, 0.0
        %v3492 = vadd.f32 %v3490, %v3491
        %v3493 = vsel %vm1100, %v3440, 0.0
        %v3494 = vadd.f32 %v3492, %v3493
        %v3495 = vsel %vm1100, %v3441, 0.0
        %v3496 = vadd.f32 %v3494, %v3495
        %v3497 = vsel %vm1100, %v3442, 0.0
        %v3498 = vadd.f32 %v3496, %v3497
        %v3499 = vsel %vm1100, %v3443, 0.0
        %v3500 = vadd.f32 %v3498, %v3499
        %v3501 = vsel %vm1100, %v3444, 0.0
        %v3502 = vadd.f32 %v3500, %v3501
        %v3503 = vsel %vm1100, %v3445, 0.0
        %v3504 = vadd.f32 %v3502, %v3503
        %v3505 = vsel %vm1100, %v3446, 0.0
        %v3506 = vadd.f32 %v3504, %v3505
        %v3507 = vsel %vm1100, %v3447, 0.0
        %v3508 = vadd.f32 %v3506, %v3507
        %v3509 = vsel %vm1100, %v3448, 0.0
        %v3510 = vadd.f32 %v3508, %v3509
        %v3511 = vsel %vm1100, %v3449, 0.0
        %v3512 = vadd.f32 %v3510, %v3511
        %v3513 = vrot.slane %v3512, 4
        %v3514 = vadd.f32 %v3512, %v3513
        %v3515 = vrot.slane %v3514, 2
        %v3516 = vadd.f32 %v3514, %v3515
        %v3517 = vrot.slane %v3516, 1
        %v3518 = vadd.f32 %v3516, %v3517
        %v3519 = vadd.f32 %v1865, %v3518
        %3552 = vrot.lane.b32.xlu0 %v3316, 8
        %v3553 = vpop.permute.xlu0 %3552
        %3554 = vrot.lane.b32.xlu0 %v3317, 8
        %v3555 = vpop.permute.xlu0 %3554
        %3556 = vrot.lane.b32.xlu0 %v3318, 8
        %v3557 = vpop.permute.xlu0 %3556
        %3558 = vrot.lane.b32.xlu0 %v3319, 8
        %v3559 = vpop.permute.xlu0 %3558
        %3560 = vrot.lane.b32.xlu0 %v3320, 8
        %v3561 = vpop.permute.xlu0 %3560
        %3562 = vrot.lane.b32.xlu0 %v3321, 8
        %v3563 = vpop.permute.xlu0 %3562
        %3564 = vrot.lane.b32.xlu0 %v3322, 8
        %v3565 = vpop.permute.xlu0 %3564
        %3566 = vrot.lane.b32.xlu0 %v3323, 8
        %v3567 = vpop.permute.xlu0 %3566
        %3568 = vrot.lane.b32.xlu0 %v3324, 8
        %v3569 = vpop.permute.xlu0 %3568
        %3570 = vrot.lane.b32.xlu0 %v3325, 8
        %v3571 = vpop.permute.xlu0 %3570
        %3572 = vrot.lane.b32.xlu0 %v3326, 8
        %v3573 = vpop.permute.xlu0 %3572
        %3574 = vrot.lane.b32.xlu0 %v3327, 8
        %v3575 = vpop.permute.xlu0 %3574
        %3576 = vrot.lane.b32.xlu0 %v3328, 8
        %v3577 = vpop.permute.xlu0 %3576
        %3578 = vrot.lane.b32.xlu0 %v3329, 8
        %v3579 = vpop.permute.xlu0 %3578
        %3580 = vrot.lane.b32.xlu0 %v3330, 8
        %v3581 = vpop.permute.xlu0 %3580
        %3582 = vrot.lane.b32.xlu0 %v3331, 8
        %v3583 = vpop.permute.xlu0 %3582
        %3584 = vrot.lane.b32.xlu0 %v3332, 8
        %v3585 = vpop.permute.xlu0 %3584
        %3586 = vrot.lane.b32.xlu0 %v3333, 8
        %v3587 = vpop.permute.xlu0 %3586
        %3588 = vrot.lane.b32.xlu0 %v3334, 8
        %v3589 = vpop.permute.xlu0 %3588
        %3590 = vrot.lane.b32.xlu0 %v3335, 8
        %v3591 = vpop.permute.xlu0 %3590
        %3592 = vrot.lane.b32.xlu0 %v3336, 8
        %v3593 = vpop.permute.xlu0 %3592
        %3594 = vrot.lane.b32.xlu0 %v3337, 8
        %v3595 = vpop.permute.xlu0 %3594
        %3596 = vrot.lane.b32.xlu0 %v3338, 8
        %v3597 = vpop.permute.xlu0 %3596
        %3598 = vrot.lane.b32.xlu0 %v3339, 8
        %v3599 = vpop.permute.xlu0 %3598
        %3600 = vrot.lane.b32.xlu0 %v3340, 8
        %v3601 = vpop.permute.xlu0 %3600
        %3602 = vrot.lane.b32.xlu0 %v3341, 8
        %v3603 = vpop.permute.xlu0 %3602
        %3604 = vrot.lane.b32.xlu0 %v3342, 8
        %v3605 = vpop.permute.xlu0 %3604
        %3606 = vrot.lane.b32.xlu0 %v3343, 8
        %v3607 = vpop.permute.xlu0 %3606
        %3608 = vrot.lane.b32.xlu0 %v3344, 8
        %v3609 = vpop.permute.xlu0 %3608
        %3610 = vrot.lane.b32.xlu0 %v3345, 8
        %v3611 = vpop.permute.xlu0 %3610
        %3612 = vrot.lane.b32.xlu0 %v3346, 8
        %v3613 = vpop.permute.xlu0 %3612
        %3614 = vrot.lane.b32.xlu0 %v3347, 8
        %v3615 = vpop.permute.xlu0 %3614
        %v3648 = vsel %vm1100, %v1662, %v3553
        %v3649 = vsel %vm1100, %v1663, %v3555
        %v3650 = vsel %vm1100, %v1664, %v3557
        %v3651 = vsel %vm1100, %v1665, %v3559
        %v3652 = vsel %vm1100, %v1666, %v3561
        %v3653 = vsel %vm1100, %v1667, %v3563
        %v3654 = vsel %vm1100, %v1668, %v3565
        %v3655 = vsel %vm1100, %v1669, %v3567
        %v3656 = vsel %vm1100, %v1670, %v3569
        %v3657 = vsel %vm1100, %v1671, %v3571
        %v3658 = vsel %vm1100, %v1672, %v3573
        %v3659 = vsel %vm1100, %v1673, %v3575
        %v3660 = vsel %vm1100, %v1674, %v3577
        %v3661 = vsel %vm1100, %v1675, %v3579
        %v3662 = vsel %vm1100, %v1676, %v3581
        %v3663 = vsel %vm1100, %v1677, %v3583
        %v3664 = vsel %vm1100, %v1678, %v3585
        %v3665 = vsel %vm1100, %v1679, %v3587
        %v3666 = vsel %vm1100, %v1680, %v3589
        %v3667 = vsel %vm1100, %v1681, %v3591
        %v3668 = vsel %vm1100, %v1682, %v3593
        %v3669 = vsel %vm1100, %v1683, %v3595
        %v3670 = vsel %vm1100, %v1684, %v3597
        %v3671 = vsel %vm1100, %v1685, %v3599
        %v3672 = vsel %vm1100, %v1686, %v3601
        %v3673 = vsel %vm1100, %v1687, %v3603
        %v3674 = vsel %vm1100, %v1688, %v3605
        %v3675 = vsel %vm1100, %v1689, %v3607
        %v3676 = vsel %vm1100, %v1690, %v3609
        %v3677 = vsel %vm1100, %v1691, %v3611
        %v3678 = vsel %vm1100, %v1692, %v3613
        %v3679 = vsel %vm1100, %v1693, %v3615
        %v3680 = vpack.c.bf16 %v3649, %v3648
        %v3681 = vpack.c.bf16 %v3651, %v3650
        %v3682 = vpack.c.bf16 %v3653, %v3652
        %v3683 = vpack.c.bf16 %v3655, %v3654
        %v3684 = vpack.c.bf16 %v3657, %v3656
        %v3685 = vpack.c.bf16 %v3659, %v3658
        %v3686 = vpack.c.bf16 %v3661, %v3660
        %v3687 = vpack.c.bf16 %v3663, %v3662
        %v3688 = vpack.c.bf16 %v3665, %v3664
        %v3689 = vpack.c.bf16 %v3667, %v3666
        %v3690 = vpack.c.bf16 %v3669, %v3668
        %v3691 = vpack.c.bf16 %v3671, %v3670
        %v3692 = vpack.c.bf16 %v3673, %v3672
        %v3693 = vpack.c.bf16 %v3675, %v3674
        %v3694 = vpack.c.bf16 %v3677, %v3676
        %v3695 = vpack.c.bf16 %v3679, %v3678
        %v3712 = vunpack.c.l.b16 %v3680
        %v3713 = vunpack.c.h.b16 %v3680
        %v3714 = vunpack.c.l.b16 %v3681
        %v3715 = vunpack.c.h.b16 %v3681
        %v3716 = vunpack.c.l.b16 %v3682
        %v3717 = vunpack.c.h.b16 %v3682
        %v3718 = vunpack.c.l.b16 %v3683
        %v3719 = vunpack.c.h.b16 %v3683
        %v3720 = vunpack.c.l.b16 %v3684
        %v3721 = vunpack.c.h.b16 %v3684
        %v3722 = vunpack.c.l.b16 %v3685
        %v3723 = vunpack.c.h.b16 %v3685
        %v3724 = vunpack.c.l.b16 %v3686
        %v3725 = vunpack.c.h.b16 %v3686
        %v3726 = vunpack.c.l.b16 %v3687
        %v3727 = vunpack.c.h.b16 %v3687
        %v3728 = vunpack.c.l.b16 %v3688
        %v3729 = vunpack.c.h.b16 %v3688
        %v3730 = vunpack.c.l.b16 %v3689
        %v3731 = vunpack.c.h.b16 %v3689
        %v3732 = vunpack.c.l.b16 %v3690
        %v3733 = vunpack.c.h.b16 %v3690
        %v3734 = vunpack.c.l.b16 %v3691
        %v3735 = vunpack.c.h.b16 %v3691
        %v3736 = vunpack.c.l.b16 %v3692
        %v3737 = vunpack.c.h.b16 %v3692
        %v3738 = vunpack.c.l.b16 %v3693
        %v3739 = vunpack.c.h.b16 %v3693
        %v3740 = vunpack.c.l.b16 %v3694
        %v3741 = vunpack.c.h.b16 %v3694
        %v3742 = vunpack.c.l.b16 %v3695
        %v3743 = vunpack.c.h.b16 %v3695
        %v3744 = vpack.c.b16 %v3712, %v3712
        %v3745 = vpack.c.b16 %v3713, %v3713
        %v3746 = vpack.c.b16 %v3714, %v3714
        %v3747 = vpack.c.b16 %v3715, %v3715
        %v3748 = vpack.c.b16 %v3716, %v3716
        %v3749 = vpack.c.b16 %v3717, %v3717
        %v3750 = vpack.c.b16 %v3718, %v3718
        %v3751 = vpack.c.b16 %v3719, %v3719
        %v3752 = vpack.c.b16 %v3720, %v3720
        %v3753 = vpack.c.b16 %v3721, %v3721
        %v3754 = vpack.c.b16 %v3722, %v3722
        %v3755 = vpack.c.b16 %v3723, %v3723
        %v3756 = vpack.c.b16 %v3724, %v3724
        %v3757 = vpack.c.b16 %v3725, %v3725
        %v3758 = vpack.c.b16 %v3726, %v3726
        %v3759 = vpack.c.b16 %v3727, %v3727
        %v3760 = vpack.c.b16 %v3728, %v3728
        %v3761 = vpack.c.b16 %v3729, %v3729
        %v3762 = vpack.c.b16 %v3730, %v3730
        %v3763 = vpack.c.b16 %v3731, %v3731
        %v3764 = vpack.c.b16 %v3732, %v3732
        %v3765 = vpack.c.b16 %v3733, %v3733
        %v3766 = vpack.c.b16 %v3734, %v3734
        %v3767 = vpack.c.b16 %v3735, %v3735
        %v3768 = vpack.c.b16 %v3736, %v3736
        %v3769 = vpack.c.b16 %v3737, %v3737
        %v3770 = vpack.c.b16 %v3738, %v3738
        %v3771 = vpack.c.b16 %v3739, %v3739
        %v3772 = vpack.c.b16 %v3740, %v3740
        %v3773 = vpack.c.b16 %v3741, %v3741
        %v3774 = vpack.c.b16 %v3742, %v3742
        %v3775 = vpack.c.b16 %v3743, %v3743
        %vm3808 = vcmask 125952
        %3809 = vst.msk [vmem:[%s210] sm:$0xf] %vm3808, %v3744
        %3810 = vst.msk [vmem:[%s210 + $0x4] sm:$0xf] %vm3808, %v3745
        %3811 = vst.msk [vmem:[%s210 + $0x10] sm:$0xf] %vm3808, %v3746
        %3812 = vst.msk [vmem:[%s210 + $0x14] sm:$0xf] %vm3808, %v3747
        %3813 = vst.msk [vmem:[%s210 + $0x20] sm:$0xf] %vm3808, %v3748
        %3814 = vst.msk [vmem:[%s210 + $0x24] sm:$0xf] %vm3808, %v3749
        %3815 = vst.msk [vmem:[%s210 + $0x30] sm:$0xf] %vm3808, %v3750
        %3816 = vst.msk [vmem:[%s210 + $0x34] sm:$0xf] %vm3808, %v3751
        %3817 = vst.msk [vmem:[%s210 + $0x40] sm:$0xf] %vm3808, %v3752
        %3818 = vst.msk [vmem:[%s210 + $0x44] sm:$0xf] %vm3808, %v3753
        %3819 = vst.msk [vmem:[%s210 + $0x50] sm:$0xf] %vm3808, %v3754
        %3820 = vst.msk [vmem:[%s210 + $0x54] sm:$0xf] %vm3808, %v3755
        %3821 = vst.msk [vmem:[%s210 + $0x60] sm:$0xf] %vm3808, %v3756
        %3822 = vst.msk [vmem:[%s210 + $0x64] sm:$0xf] %vm3808, %v3757
        %3823 = vst.msk [vmem:[%s210 + $0x70] sm:$0xf] %vm3808, %v3758
        %3824 = vst.msk [vmem:[%s210 + $0x74] sm:$0xf] %vm3808, %v3759
        %3825 = vst.msk [vmem:[%s210 + $0x80] sm:$0xf] %vm3808, %v3760
        %3826 = vst.msk [vmem:[%s210 + $0x84] sm:$0xf] %vm3808, %v3761
        %3827 = vst.msk [vmem:[%s210 + $0x90] sm:$0xf] %vm3808, %v3762
        %3828 = vst.msk [vmem:[%s210 + $0x94] sm:$0xf] %vm3808, %v3763
        %3829 = vst.msk [vmem:[%s210 + $0xa0] sm:$0xf] %vm3808, %v3764
        %3830 = vst.msk [vmem:[%s210 + $0xa4] sm:$0xf] %vm3808, %v3765
        %3831 = vst.msk [vmem:[%s210 + $0xb0] sm:$0xf] %vm3808, %v3766
        %3832 = vst.msk [vmem:[%s210 + $0xb4] sm:$0xf] %vm3808, %v3767
        %3833 = vst.msk [vmem:[%s210 + $0xc0] sm:$0xf] %vm3808, %v3768
        %3834 = vst.msk [vmem:[%s210 + $0xc4] sm:$0xf] %vm3808, %v3769
        %3835 = vst.msk [vmem:[%s210 + $0xd0] sm:$0xf] %vm3808, %v3770
        %3836 = vst.msk [vmem:[%s210 + $0xd4] sm:$0xf] %vm3808, %v3771
        %3837 = vst.msk [vmem:[%s210 + $0xe0] sm:$0xf] %vm3808, %v3772
        %3838 = vst.msk [vmem:[%s210 + $0xe4] sm:$0xf] %vm3808, %v3773
        %3839 = vst.msk [vmem:[%s210 + $0xf0] sm:$0xf] %vm3808, %v3774
        %3840 = vst.msk [vmem:[%s210 + $0xf4] sm:$0xf] %vm3808, %v3775
        %v3841 = vld [vmem:[%s281] sm:$0xf]
        %v3842 = vld [vmem:[%s281 + $0x4] sm:$0xf]
        %v3843 = vld [vmem:[%s281 + $0xc] sm:$0xf]
        %v3844 = vld [vmem:[%s281 + $0x10] sm:$0xf]
        %v3845 = vld [vmem:[%s281 + $0x18] sm:$0xf]
        %v3846 = vld [vmem:[%s281 + $0x1c] sm:$0xf]
        %v3847 = vld [vmem:[%s281 + $0x24] sm:$0xf]
        %v3848 = vld [vmem:[%s281 + $0x28] sm:$0xf]
        %v3849 = vld [vmem:[%s281 + $0x30] sm:$0xf]
        %v3850 = vld [vmem:[%s281 + $0x34] sm:$0xf]
        %v3851 = vld [vmem:[%s281 + $0x3c] sm:$0xf]
        %v3852 = vld [vmem:[%s281 + $0x40] sm:$0xf]
        %v3853 = vld [vmem:[%s281 + $0x48] sm:$0xf]
        %v3854 = vld [vmem:[%s281 + $0x4c] sm:$0xf]
        %v3855 = vld [vmem:[%s281 + $0x54] sm:$0xf]
        %v3856 = vld [vmem:[%s281 + $0x58] sm:$0xf]
        %v3857 = vld [vmem:[%s281 + $0x60] sm:$0xf]
        %v3858 = vld [vmem:[%s281 + $0x64] sm:$0xf]
        %v3859 = vld [vmem:[%s281 + $0x6c] sm:$0xf]
        %v3860 = vld [vmem:[%s281 + $0x70] sm:$0xf]
        %v3861 = vld [vmem:[%s281 + $0x78] sm:$0xf]
        %v3862 = vld [vmem:[%s281 + $0x7c] sm:$0xf]
        %v3863 = vld [vmem:[%s281 + $0x84] sm:$0xf]
        %v3864 = vld [vmem:[%s281 + $0x88] sm:$0xf]
        %v3865 = vld [vmem:[%s281 + $0x90] sm:$0xf]
        %v3866 = vld [vmem:[%s281 + $0x94] sm:$0xf]
        %v3867 = vld [vmem:[%s281 + $0x9c] sm:$0xf]
        %v3868 = vld [vmem:[%s281 + $0xa0] sm:$0xf]
        %v3869 = vld [vmem:[%s281 + $0xa8] sm:$0xf]
        %v3870 = vld [vmem:[%s281 + $0xac] sm:$0xf]
        %v3871 = vld [vmem:[%s281 + $0xb4] sm:$0xf]
        %v3872 = vld [vmem:[%s281 + $0xb8] sm:$0xf]
        %v3873 = vld [vmem:[%s281 + $0x8] sm:$0x1]
        %v3874 = vld [vmem:[%s281 + $0x14] sm:$0x1]
        %v3875 = vld [vmem:[%s281 + $0x20] sm:$0x1]
        %v3876 = vld [vmem:[%s281 + $0x2c] sm:$0x1]
        %v3877 = vld [vmem:[%s281 + $0x38] sm:$0x1]
        %v3878 = vld [vmem:[%s281 + $0x44] sm:$0x1]
        %v3879 = vld [vmem:[%s281 + $0x50] sm:$0x1]
        %v3880 = vld [vmem:[%s281 + $0x5c] sm:$0x1]
        %v3881 = vld [vmem:[%s281 + $0x68] sm:$0x1]
        %v3882 = vld [vmem:[%s281 + $0x74] sm:$0x1]
        %v3883 = vld [vmem:[%s281 + $0x80] sm:$0x1]
        %v3884 = vld [vmem:[%s281 + $0x8c] sm:$0x1]
        %v3885 = vld [vmem:[%s281 + $0x98] sm:$0x1]
        %v3886 = vld [vmem:[%s281 + $0xa4] sm:$0x1]
        %v3887 = vld [vmem:[%s281 + $0xb0] sm:$0x1]
        %v3888 = vld [vmem:[%s281 + $0xbc] sm:$0x1]
        %s3889 = sadd.s32 %s225, 2
        %s3890 = smul.u32 %s3889, 3
        %s3891 = smul.addr %s3890, 4
        %s3892 = scalar_lea.vmem %s222, %s3891
        %v3893 = vld [vmem:[%s3892] sm:$0xf]
        %v3894 = vld [vmem:[%s3892 + $0x4] sm:$0xf]
        %v3895 = vld [vmem:[%s3892 + $0xc] sm:$0xf]
        %v3896 = vld [vmem:[%s3892 + $0x10] sm:$0xf]
        %v3897 = vld [vmem:[%s3892 + $0x18] sm:$0xf]
        %v3898 = vld [vmem:[%s3892 + $0x1c] sm:$0xf]
        %v3899 = vld [vmem:[%s3892 + $0x24] sm:$0xf]
        %v3900 = vld [vmem:[%s3892 + $0x28] sm:$0xf]
        %v3901 = vld [vmem:[%s3892 + $0x30] sm:$0xf]
        %v3902 = vld [vmem:[%s3892 + $0x34] sm:$0xf]
        %v3903 = vld [vmem:[%s3892 + $0x3c] sm:$0xf]
        %v3904 = vld [vmem:[%s3892 + $0x40] sm:$0xf]
        %v3905 = vld [vmem:[%s3892 + $0x48] sm:$0xf]
        %v3906 = vld [vmem:[%s3892 + $0x4c] sm:$0xf]
        %v3907 = vld [vmem:[%s3892 + $0x54] sm:$0xf]
        %v3908 = vld [vmem:[%s3892 + $0x58] sm:$0xf]
        %v3909 = vld [vmem:[%s3892 + $0x60] sm:$0xf]
        %v3910 = vld [vmem:[%s3892 + $0x64] sm:$0xf]
        %v3911 = vld [vmem:[%s3892 + $0x6c] sm:$0xf]
        %v3912 = vld [vmem:[%s3892 + $0x70] sm:$0xf]
        %v3913 = vld [vmem:[%s3892 + $0x78] sm:$0xf]
        %v3914 = vld [vmem:[%s3892 + $0x7c] sm:$0xf]
        %v3915 = vld [vmem:[%s3892 + $0x84] sm:$0xf]
        %v3916 = vld [vmem:[%s3892 + $0x88] sm:$0xf]
        %v3917 = vld [vmem:[%s3892 + $0x90] sm:$0xf]
        %v3918 = vld [vmem:[%s3892 + $0x94] sm:$0xf]
        %v3919 = vld [vmem:[%s3892 + $0x9c] sm:$0xf]
        %v3920 = vld [vmem:[%s3892 + $0xa0] sm:$0xf]
        %v3921 = vld [vmem:[%s3892 + $0xa8] sm:$0xf]
        %v3922 = vld [vmem:[%s3892 + $0xac] sm:$0xf]
        %v3923 = vld [vmem:[%s3892 + $0xb4] sm:$0xf]
        %v3924 = vld [vmem:[%s3892 + $0xb8] sm:$0xf]
        %v3925 = vld [vmem:[%s3892 + $0x8] sm:$0x1]
        %v3926 = vld [vmem:[%s3892 + $0x14] sm:$0x1]
        %v3927 = vld [vmem:[%s3892 + $0x20] sm:$0x1]
        %v3928 = vld [vmem:[%s3892 + $0x2c] sm:$0x1]
        %v3929 = vld [vmem:[%s3892 + $0x38] sm:$0x1]
        %v3930 = vld [vmem:[%s3892 + $0x44] sm:$0x1]
        %v3931 = vld [vmem:[%s3892 + $0x50] sm:$0x1]
        %v3932 = vld [vmem:[%s3892 + $0x5c] sm:$0x1]
        %v3933 = vld [vmem:[%s3892 + $0x68] sm:$0x1]
        %v3934 = vld [vmem:[%s3892 + $0x74] sm:$0x1]
        %v3935 = vld [vmem:[%s3892 + $0x80] sm:$0x1]
        %v3936 = vld [vmem:[%s3892 + $0x8c] sm:$0x1]
        %v3937 = vld [vmem:[%s3892 + $0x98] sm:$0x1]
        %v3938 = vld [vmem:[%s3892 + $0xa4] sm:$0x1]
        %v3939 = vld [vmem:[%s3892 + $0xb0] sm:$0x1]
        %v3940 = vld [vmem:[%s3892 + $0xbc] sm:$0x1]
        %v3973 = vunpack.c.l.b16 %v3841
        %v3974 = vunpack.c.l.b16 %v3842
        %v3975 = vunpack.c.l.b16 %v3843
        %v3976 = vunpack.c.l.b16 %v3844
        %v3977 = vunpack.c.l.b16 %v3845
        %v3978 = vunpack.c.l.b16 %v3846
        %v3979 = vunpack.c.l.b16 %v3847
        %v3980 = vunpack.c.l.b16 %v3848
        %v3981 = vunpack.c.l.b16 %v3849
        %v3982 = vunpack.c.l.b16 %v3850
        %v3983 = vunpack.c.l.b16 %v3851
        %v3984 = vunpack.c.l.b16 %v3852
        %v3985 = vunpack.c.l.b16 %v3853
        %v3986 = vunpack.c.l.b16 %v3854
        %v3987 = vunpack.c.l.b16 %v3855
        %v3988 = vunpack.c.l.b16 %v3856
        %v3989 = vunpack.c.l.b16 %v3857
        %v3990 = vunpack.c.l.b16 %v3858
        %v3991 = vunpack.c.l.b16 %v3859
        %v3992 = vunpack.c.l.b16 %v3860
        %v3993 = vunpack.c.l.b16 %v3861
        %v3994 = vunpack.c.l.b16 %v3862
        %v3995 = vunpack.c.l.b16 %v3863
        %v3996 = vunpack.c.l.b16 %v3864
        %v3997 = vunpack.c.l.b16 %v3865
        %v3998 = vunpack.c.l.b16 %v3866
        %v3999 = vunpack.c.l.b16 %v3867
        %v4000 = vunpack.c.l.b16 %v3868
        %v4001 = vunpack.c.l.b16 %v3869
        %v4002 = vunpack.c.l.b16 %v3870
        %v4003 = vunpack.c.l.b16 %v3871
        %v4004 = vunpack.c.l.b16 %v3872
        %v4005 = vpack.c.b16 %v3974, %v3973
        %v4006 = vpack.c.b16 %v3976, %v3975
        %v4007 = vpack.c.b16 %v3978, %v3977
        %v4008 = vpack.c.b16 %v3980, %v3979
        %v4009 = vpack.c.b16 %v3982, %v3981
        %v4010 = vpack.c.b16 %v3984, %v3983
        %v4011 = vpack.c.b16 %v3986, %v3985
        %v4012 = vpack.c.b16 %v3988, %v3987
        %v4013 = vpack.c.b16 %v3990, %v3989
        %v4014 = vpack.c.b16 %v3992, %v3991
        %v4015 = vpack.c.b16 %v3994, %v3993
        %v4016 = vpack.c.b16 %v3996, %v3995
        %v4017 = vpack.c.b16 %v3998, %v3997
        %v4018 = vpack.c.b16 %v4000, %v3999
        %v4019 = vpack.c.b16 %v4002, %v4001
        %v4020 = vpack.c.b16 %v4004, %v4003
        %v4037 = vunpack.c.l.b16 %v3873
        %v4038 = vunpack.c.l.b16 %v3874
        %v4039 = vunpack.c.l.b16 %v3875
        %v4040 = vunpack.c.l.b16 %v3876
        %v4041 = vunpack.c.l.b16 %v3877
        %v4042 = vunpack.c.l.b16 %v3878
        %v4043 = vunpack.c.l.b16 %v3879
        %v4044 = vunpack.c.l.b16 %v3880
        %v4045 = vunpack.c.l.b16 %v3881
        %v4046 = vunpack.c.l.b16 %v3882
        %v4047 = vunpack.c.l.b16 %v3883
        %v4048 = vunpack.c.l.b16 %v3884
        %v4049 = vunpack.c.l.b16 %v3885
        %v4050 = vunpack.c.l.b16 %v3886
        %v4051 = vunpack.c.l.b16 %v3887
        %v4052 = vunpack.c.l.b16 %v3888
        %v4053 = vpack.c.b16 %v4037, %v4037
        %v4054 = vpack.c.b16 %v4038, %v4038
        %v4055 = vpack.c.b16 %v4039, %v4039
        %v4056 = vpack.c.b16 %v4040, %v4040
        %v4057 = vpack.c.b16 %v4041, %v4041
        %v4058 = vpack.c.b16 %v4042, %v4042
        %v4059 = vpack.c.b16 %v4043, %v4043
        %v4060 = vpack.c.b16 %v4044, %v4044
        %v4061 = vpack.c.b16 %v4045, %v4045
        %v4062 = vpack.c.b16 %v4046, %v4046
        %v4063 = vpack.c.b16 %v4047, %v4047
        %v4064 = vpack.c.b16 %v4048, %v4048
        %v4065 = vpack.c.b16 %v4049, %v4049
        %v4066 = vpack.c.b16 %v4050, %v4050
        %v4067 = vpack.c.b16 %v4051, %v4051
        %v4068 = vpack.c.b16 %v4052, %v4052
        %v4070 = vshrl.u32 %v4005, 16
        %v4072 = vshll.u32 %v4005, 16
        %v4074 = vrot.slane %v4072, 1
        %v4075 = vor.u32 %v4070, %v4074
        %v4077 = vshll.u32 %v4053, 16
        %v4079 = vrot.slane %v4077, 1
        %v4080 = vsel %vm458, %v4075, %v4079
        %v4082 = vshrl.u32 %v4006, 16
        %v4084 = vshll.u32 %v4006, 16
        %v4086 = vrot.slane %v4084, 1
        %v4087 = vor.u32 %v4082, %v4086
        %v4089 = vshll.u32 %v4054, 16
        %v4091 = vrot.slane %v4089, 1
        %v4092 = vsel %vm458, %v4087, %v4091
        %v4094 = vshrl.u32 %v4007, 16
        %v4096 = vshll.u32 %v4007, 16
        %v4098 = vrot.slane %v4096, 1
        %v4099 = vor.u32 %v4094, %v4098
        %v4101 = vshll.u32 %v4055, 16
        %v4103 = vrot.slane %v4101, 1
        %v4104 = vsel %vm458, %v4099, %v4103
        %v4106 = vshrl.u32 %v4008, 16
        %v4108 = vshll.u32 %v4008, 16
        %v4110 = vrot.slane %v4108, 1
        %v4111 = vor.u32 %v4106, %v4110
        %v4113 = vshll.u32 %v4056, 16
        %v4115 = vrot.slane %v4113, 1
        %v4116 = vsel %vm458, %v4111, %v4115
        %v4118 = vshrl.u32 %v4009, 16
        %v4120 = vshll.u32 %v4009, 16
        %v4122 = vrot.slane %v4120, 1
        %v4123 = vor.u32 %v4118, %v4122
        %v4125 = vshll.u32 %v4057, 16
        %v4127 = vrot.slane %v4125, 1
        %v4128 = vsel %vm458, %v4123, %v4127
        %v4130 = vshrl.u32 %v4010, 16
        %v4132 = vshll.u32 %v4010, 16
        %v4134 = vrot.slane %v4132, 1
        %v4135 = vor.u32 %v4130, %v4134
        %v4137 = vshll.u32 %v4058, 16
        %v4139 = vrot.slane %v4137, 1
        %v4140 = vsel %vm458, %v4135, %v4139
        %v4142 = vshrl.u32 %v4011, 16
        %v4144 = vshll.u32 %v4011, 16
        %v4146 = vrot.slane %v4144, 1
        %v4147 = vor.u32 %v4142, %v4146
        %v4149 = vshll.u32 %v4059, 16
        %v4151 = vrot.slane %v4149, 1
        %v4152 = vsel %vm458, %v4147, %v4151
        %v4154 = vshrl.u32 %v4012, 16
        %v4156 = vshll.u32 %v4012, 16
        %v4158 = vrot.slane %v4156, 1
        %v4159 = vor.u32 %v4154, %v4158
        %v4161 = vshll.u32 %v4060, 16
        %v4163 = vrot.slane %v4161, 1
        %v4164 = vsel %vm458, %v4159, %v4163
        %v4166 = vshrl.u32 %v4013, 16
        %v4168 = vshll.u32 %v4013, 16
        %v4170 = vrot.slane %v4168, 1
        %v4171 = vor.u32 %v4166, %v4170
        %v4173 = vshll.u32 %v4061, 16
        %v4175 = vrot.slane %v4173, 1
        %v4176 = vsel %vm458, %v4171, %v4175
        %v4178 = vshrl.u32 %v4014, 16
        %v4180 = vshll.u32 %v4014, 16
        %v4182 = vrot.slane %v4180, 1
        %v4183 = vor.u32 %v4178, %v4182
        %v4185 = vshll.u32 %v4062, 16
        %v4187 = vrot.slane %v4185, 1
        %v4188 = vsel %vm458, %v4183, %v4187
        %v4190 = vshrl.u32 %v4015, 16
        %v4192 = vshll.u32 %v4015, 16
        %v4194 = vrot.slane %v4192, 1
        %v4195 = vor.u32 %v4190, %v4194
        %v4197 = vshll.u32 %v4063, 16
        %v4199 = vrot.slane %v4197, 1
        %v4200 = vsel %vm458, %v4195, %v4199
        %v4202 = vshrl.u32 %v4016, 16
        %v4204 = vshll.u32 %v4016, 16
        %v4206 = vrot.slane %v4204, 1
        %v4207 = vor.u32 %v4202, %v4206
        %v4209 = vshll.u32 %v4064, 16
        %v4211 = vrot.slane %v4209, 1
        %v4212 = vsel %vm458, %v4207, %v4211
        %v4214 = vshrl.u32 %v4017, 16
        %v4216 = vshll.u32 %v4017, 16
        %v4218 = vrot.slane %v4216, 1
        %v4219 = vor.u32 %v4214, %v4218
        %v4221 = vshll.u32 %v4065, 16
        %v4223 = vrot.slane %v4221, 1
        %v4224 = vsel %vm458, %v4219, %v4223
        %v4226 = vshrl.u32 %v4018, 16
        %v4228 = vshll.u32 %v4018, 16
        %v4230 = vrot.slane %v4228, 1
        %v4231 = vor.u32 %v4226, %v4230
        %v4233 = vshll.u32 %v4066, 16
        %v4235 = vrot.slane %v4233, 1
        %v4236 = vsel %vm458, %v4231, %v4235
        %v4238 = vshrl.u32 %v4019, 16
        %v4240 = vshll.u32 %v4019, 16
        %v4242 = vrot.slane %v4240, 1
        %v4243 = vor.u32 %v4238, %v4242
        %v4245 = vshll.u32 %v4067, 16
        %v4247 = vrot.slane %v4245, 1
        %v4248 = vsel %vm458, %v4243, %v4247
        %v4250 = vshrl.u32 %v4020, 16
        %v4252 = vshll.u32 %v4020, 16
        %v4254 = vrot.slane %v4252, 1
        %v4255 = vor.u32 %v4250, %v4254
        %v4257 = vshll.u32 %v4068, 16
        %v4259 = vrot.slane %v4257, 1
        %v4260 = vsel %vm458, %v4255, %v4259
        %4261 = vrot.lane.b32.xlu0 %v4080, 4
        %v4262 = vpop.permute.xlu0 %4261
        %4263 = vrot.lane.b32.xlu0 %v4092, 4
        %v4264 = vpop.permute.xlu0 %4263
        %4265 = vrot.lane.b32.xlu0 %v4104, 4
        %v4266 = vpop.permute.xlu0 %4265
        %4267 = vrot.lane.b32.xlu0 %v4116, 4
        %v4268 = vpop.permute.xlu0 %4267
        %4269 = vrot.lane.b32.xlu0 %v4128, 4
        %v4270 = vpop.permute.xlu0 %4269
        %4271 = vrot.lane.b32.xlu0 %v4140, 4
        %v4272 = vpop.permute.xlu0 %4271
        %4273 = vrot.lane.b32.xlu0 %v4152, 4
        %v4274 = vpop.permute.xlu0 %4273
        %4275 = vrot.lane.b32.xlu0 %v4164, 4
        %v4276 = vpop.permute.xlu0 %4275
        %4277 = vrot.lane.b32.xlu0 %v4176, 4
        %v4278 = vpop.permute.xlu0 %4277
        %4279 = vrot.lane.b32.xlu0 %v4188, 4
        %v4280 = vpop.permute.xlu0 %4279
        %4281 = vrot.lane.b32.xlu0 %v4200, 4
        %v4282 = vpop.permute.xlu0 %4281
        %4283 = vrot.lane.b32.xlu0 %v4212, 4
        %v4284 = vpop.permute.xlu0 %4283
        %4285 = vrot.lane.b32.xlu0 %v4224, 4
        %v4286 = vpop.permute.xlu0 %4285
        %4287 = vrot.lane.b32.xlu0 %v4236, 4
        %v4288 = vpop.permute.xlu0 %4287
        %4289 = vrot.lane.b32.xlu0 %v4248, 4
        %v4290 = vpop.permute.xlu0 %4289
        %4291 = vrot.lane.b32.xlu0 %v4260, 4
        %v4292 = vpop.permute.xlu0 %4291
        %v4325 = vunpack.c.l.b16 %v3893
        %v4326 = vunpack.c.l.b16 %v3894
        %v4327 = vunpack.c.l.b16 %v3895
        %v4328 = vunpack.c.l.b16 %v3896
        %v4329 = vunpack.c.l.b16 %v3897
        %v4330 = vunpack.c.l.b16 %v3898
        %v4331 = vunpack.c.l.b16 %v3899
        %v4332 = vunpack.c.l.b16 %v3900
        %v4333 = vunpack.c.l.b16 %v3901
        %v4334 = vunpack.c.l.b16 %v3902
        %v4335 = vunpack.c.l.b16 %v3903
        %v4336 = vunpack.c.l.b16 %v3904
        %v4337 = vunpack.c.l.b16 %v3905
        %v4338 = vunpack.c.l.b16 %v3906
        %v4339 = vunpack.c.l.b16 %v3907
        %v4340 = vunpack.c.l.b16 %v3908
        %v4341 = vunpack.c.l.b16 %v3909
        %v4342 = vunpack.c.l.b16 %v3910
        %v4343 = vunpack.c.l.b16 %v3911
        %v4344 = vunpack.c.l.b16 %v3912
        %v4345 = vunpack.c.l.b16 %v3913
        %v4346 = vunpack.c.l.b16 %v3914
        %v4347 = vunpack.c.l.b16 %v3915
        %v4348 = vunpack.c.l.b16 %v3916
        %v4349 = vunpack.c.l.b16 %v3917
        %v4350 = vunpack.c.l.b16 %v3918
        %v4351 = vunpack.c.l.b16 %v3919
        %v4352 = vunpack.c.l.b16 %v3920
        %v4353 = vunpack.c.l.b16 %v3921
        %v4354 = vunpack.c.l.b16 %v3922
        %v4355 = vunpack.c.l.b16 %v3923
        %v4356 = vunpack.c.l.b16 %v3924
        %v4357 = vpack.c.b16 %v4326, %v4325
        %v4358 = vpack.c.b16 %v4328, %v4327
        %v4359 = vpack.c.b16 %v4330, %v4329
        %v4360 = vpack.c.b16 %v4332, %v4331
        %v4361 = vpack.c.b16 %v4334, %v4333
        %v4362 = vpack.c.b16 %v4336, %v4335
        %v4363 = vpack.c.b16 %v4338, %v4337
        %v4364 = vpack.c.b16 %v4340, %v4339
        %v4365 = vpack.c.b16 %v4342, %v4341
        %v4366 = vpack.c.b16 %v4344, %v4343
        %v4367 = vpack.c.b16 %v4346, %v4345
        %v4368 = vpack.c.b16 %v4348, %v4347
        %v4369 = vpack.c.b16 %v4350, %v4349
        %v4370 = vpack.c.b16 %v4352, %v4351
        %v4371 = vpack.c.b16 %v4354, %v4353
        %v4372 = vpack.c.b16 %v4356, %v4355
        %4373 = vrot.lane.b32.xlu0 %v4357, 8
        %v4374 = vpop.permute.xlu0 %4373
        %4375 = vrot.lane.b32.xlu0 %v4358, 8
        %v4376 = vpop.permute.xlu0 %4375
        %4377 = vrot.lane.b32.xlu0 %v4359, 8
        %v4378 = vpop.permute.xlu0 %4377
        %4379 = vrot.lane.b32.xlu0 %v4360, 8
        %v4380 = vpop.permute.xlu0 %4379
        %4381 = vrot.lane.b32.xlu0 %v4361, 8
        %v4382 = vpop.permute.xlu0 %4381
        %4383 = vrot.lane.b32.xlu0 %v4362, 8
        %v4384 = vpop.permute.xlu0 %4383
        %4385 = vrot.lane.b32.xlu0 %v4363, 8
        %v4386 = vpop.permute.xlu0 %4385
        %4387 = vrot.lane.b32.xlu0 %v4364, 8
        %v4388 = vpop.permute.xlu0 %4387
        %4389 = vrot.lane.b32.xlu0 %v4365, 8
        %v4390 = vpop.permute.xlu0 %4389
        %4391 = vrot.lane.b32.xlu0 %v4366, 8
        %v4392 = vpop.permute.xlu0 %4391
        %4393 = vrot.lane.b32.xlu0 %v4367, 8
        %v4394 = vpop.permute.xlu0 %4393
        %4395 = vrot.lane.b32.xlu0 %v4368, 8
        %v4396 = vpop.permute.xlu0 %4395
        %4397 = vrot.lane.b32.xlu0 %v4369, 8
        %v4398 = vpop.permute.xlu0 %4397
        %4399 = vrot.lane.b32.xlu0 %v4370, 8
        %v4400 = vpop.permute.xlu0 %4399
        %4401 = vrot.lane.b32.xlu0 %v4371, 8
        %v4402 = vpop.permute.xlu0 %4401
        %4403 = vrot.lane.b32.xlu0 %v4372, 8
        %v4404 = vpop.permute.xlu0 %4403
        %v4421 = vunpack.c.l.b16 %v3925
        %v4422 = vunpack.c.l.b16 %v3926
        %v4423 = vunpack.c.l.b16 %v3927
        %v4424 = vunpack.c.l.b16 %v3928
        %v4425 = vunpack.c.l.b16 %v3929
        %v4426 = vunpack.c.l.b16 %v3930
        %v4427 = vunpack.c.l.b16 %v3931
        %v4428 = vunpack.c.l.b16 %v3932
        %v4429 = vunpack.c.l.b16 %v3933
        %v4430 = vunpack.c.l.b16 %v3934
        %v4431 = vunpack.c.l.b16 %v3935
        %v4432 = vunpack.c.l.b16 %v3936
        %v4433 = vunpack.c.l.b16 %v3937
        %v4434 = vunpack.c.l.b16 %v3938
        %v4435 = vunpack.c.l.b16 %v3939
        %v4436 = vunpack.c.l.b16 %v3940
        %v4437 = vpack.c.b16 %v4421, %v4421
        %v4438 = vpack.c.b16 %v4422, %v4422
        %v4439 = vpack.c.b16 %v4423, %v4423
        %v4440 = vpack.c.b16 %v4424, %v4424
        %v4441 = vpack.c.b16 %v4425, %v4425
        %v4442 = vpack.c.b16 %v4426, %v4426
        %v4443 = vpack.c.b16 %v4427, %v4427
        %v4444 = vpack.c.b16 %v4428, %v4428
        %v4445 = vpack.c.b16 %v4429, %v4429
        %v4446 = vpack.c.b16 %v4430, %v4430
        %v4447 = vpack.c.b16 %v4431, %v4431
        %v4448 = vpack.c.b16 %v4432, %v4432
        %v4449 = vpack.c.b16 %v4433, %v4433
        %v4450 = vpack.c.b16 %v4434, %v4434
        %v4451 = vpack.c.b16 %v4435, %v4435
        %v4452 = vpack.c.b16 %v4436, %v4436
        %v4454 = vshrl.u32 %v4357, 16
        %v4456 = vshll.u32 %v4357, 16
        %v4458 = vrot.slane %v4456, 1
        %v4459 = vor.u32 %v4454, %v4458
        %v4461 = vshll.u32 %v4437, 16
        %v4463 = vrot.slane %v4461, 1
        %v4464 = vsel %vm458, %v4459, %v4463
        %v4466 = vshrl.u32 %v4358, 16
        %v4468 = vshll.u32 %v4358, 16
        %v4470 = vrot.slane %v4468, 1
        %v4471 = vor.u32 %v4466, %v4470
        %v4473 = vshll.u32 %v4438, 16
        %v4475 = vrot.slane %v4473, 1
        %v4476 = vsel %vm458, %v4471, %v4475
        %v4478 = vshrl.u32 %v4359, 16
        %v4480 = vshll.u32 %v4359, 16
        %v4482 = vrot.slane %v4480, 1
        %v4483 = vor.u32 %v4478, %v4482
        %v4485 = vshll.u32 %v4439, 16
        %v4487 = vrot.slane %v4485, 1
        %v4488 = vsel %vm458, %v4483, %v4487
        %v4490 = vshrl.u32 %v4360, 16
        %v4492 = vshll.u32 %v4360, 16
        %v4494 = vrot.slane %v4492, 1
        %v4495 = vor.u32 %v4490, %v4494
        %v4497 = vshll.u32 %v4440, 16
        %v4499 = vrot.slane %v4497, 1
        %v4500 = vsel %vm458, %v4495, %v4499
        %v4502 = vshrl.u32 %v4361, 16
        %v4504 = vshll.u32 %v4361, 16
        %v4506 = vrot.slane %v4504, 1
        %v4507 = vor.u32 %v4502, %v4506
        %v4509 = vshll.u32 %v4441, 16
        %v4511 = vrot.slane %v4509, 1
        %v4512 = vsel %vm458, %v4507, %v4511
        %v4514 = vshrl.u32 %v4362, 16
        %v4516 = vshll.u32 %v4362, 16
        %v4518 = vrot.slane %v4516, 1
        %v4519 = vor.u32 %v4514, %v4518
        %v4521 = vshll.u32 %v4442, 16
        %v4523 = vrot.slane %v4521, 1
        %v4524 = vsel %vm458, %v4519, %v4523
        %v4526 = vshrl.u32 %v4363, 16
        %v4528 = vshll.u32 %v4363, 16
        %v4530 = vrot.slane %v4528, 1
        %v4531 = vor.u32 %v4526, %v4530
        %v4533 = vshll.u32 %v4443, 16
        %v4535 = vrot.slane %v4533, 1
        %v4536 = vsel %vm458, %v4531, %v4535
        %v4538 = vshrl.u32 %v4364, 16
        %v4540 = vshll.u32 %v4364, 16
        %v4542 = vrot.slane %v4540, 1
        %v4543 = vor.u32 %v4538, %v4542
        %v4545 = vshll.u32 %v4444, 16
        %v4547 = vrot.slane %v4545, 1
        %v4548 = vsel %vm458, %v4543, %v4547
        %v4550 = vshrl.u32 %v4365, 16
        %v4552 = vshll.u32 %v4365, 16
        %v4554 = vrot.slane %v4552, 1
        %v4555 = vor.u32 %v4550, %v4554
        %v4557 = vshll.u32 %v4445, 16
        %v4559 = vrot.slane %v4557, 1
        %v4560 = vsel %vm458, %v4555, %v4559
        %v4562 = vshrl.u32 %v4366, 16
        %v4564 = vshll.u32 %v4366, 16
        %v4566 = vrot.slane %v4564, 1
        %v4567 = vor.u32 %v4562, %v4566
        %v4569 = vshll.u32 %v4446, 16
        %v4571 = vrot.slane %v4569, 1
        %v4572 = vsel %vm458, %v4567, %v4571
        %v4574 = vshrl.u32 %v4367, 16
        %v4576 = vshll.u32 %v4367, 16
        %v4578 = vrot.slane %v4576, 1
        %v4579 = vor.u32 %v4574, %v4578
        %v4581 = vshll.u32 %v4447, 16
        %v4583 = vrot.slane %v4581, 1
        %v4584 = vsel %vm458, %v4579, %v4583
        %v4586 = vshrl.u32 %v4368, 16
        %v4588 = vshll.u32 %v4368, 16
        %v4590 = vrot.slane %v4588, 1
        %v4591 = vor.u32 %v4586, %v4590
        %v4593 = vshll.u32 %v4448, 16
        %v4595 = vrot.slane %v4593, 1
        %v4596 = vsel %vm458, %v4591, %v4595
        %v4598 = vshrl.u32 %v4369, 16
        %v4600 = vshll.u32 %v4369, 16
        %v4602 = vrot.slane %v4600, 1
        %v4603 = vor.u32 %v4598, %v4602
        %v4605 = vshll.u32 %v4449, 16
        %v4607 = vrot.slane %v4605, 1
        %v4608 = vsel %vm458, %v4603, %v4607
        %v4610 = vshrl.u32 %v4370, 16
        %v4612 = vshll.u32 %v4370, 16
        %v4614 = vrot.slane %v4612, 1
        %v4615 = vor.u32 %v4610, %v4614
        %v4617 = vshll.u32 %v4450, 16
        %v4619 = vrot.slane %v4617, 1
        %v4620 = vsel %vm458, %v4615, %v4619
        %v4622 = vshrl.u32 %v4371, 16
        %v4624 = vshll.u32 %v4371, 16
        %v4626 = vrot.slane %v4624, 1
        %v4627 = vor.u32 %v4622, %v4626
        %v4629 = vshll.u32 %v4451, 16
        %v4631 = vrot.slane %v4629, 1
        %v4632 = vsel %vm458, %v4627, %v4631
        %v4634 = vshrl.u32 %v4372, 16
        %v4636 = vshll.u32 %v4372, 16
        %v4638 = vrot.slane %v4636, 1
        %v4639 = vor.u32 %v4634, %v4638
        %v4641 = vshll.u32 %v4452, 16
        %v4643 = vrot.slane %v4641, 1
        %v4644 = vsel %vm458, %v4639, %v4643
        %4645 = vrot.lane.b32.xlu0 %v4464, 12
        %v4646 = vpop.permute.xlu0 %4645
        %4647 = vrot.lane.b32.xlu0 %v4476, 12
        %v4648 = vpop.permute.xlu0 %4647
        %4649 = vrot.lane.b32.xlu0 %v4488, 12
        %v4650 = vpop.permute.xlu0 %4649
        %4651 = vrot.lane.b32.xlu0 %v4500, 12
        %v4652 = vpop.permute.xlu0 %4651
        %4653 = vrot.lane.b32.xlu0 %v4512, 12
        %v4654 = vpop.permute.xlu0 %4653
        %4655 = vrot.lane.b32.xlu0 %v4524, 12
        %v4656 = vpop.permute.xlu0 %4655
        %4657 = vrot.lane.b32.xlu0 %v4536, 12
        %v4658 = vpop.permute.xlu0 %4657
        %4659 = vrot.lane.b32.xlu0 %v4548, 12
        %v4660 = vpop.permute.xlu0 %4659
        %4661 = vrot.lane.b32.xlu0 %v4560, 12
        %v4662 = vpop.permute.xlu0 %4661
        %4663 = vrot.lane.b32.xlu0 %v4572, 12
        %v4664 = vpop.permute.xlu0 %4663
        %4665 = vrot.lane.b32.xlu0 %v4584, 12
        %v4666 = vpop.permute.xlu0 %4665
        %4667 = vrot.lane.b32.xlu0 %v4596, 12
        %v4668 = vpop.permute.xlu0 %4667
        %4669 = vrot.lane.b32.xlu0 %v4608, 12
        %v4670 = vpop.permute.xlu0 %4669
        %4671 = vrot.lane.b32.xlu0 %v4620, 12
        %v4672 = vpop.permute.xlu0 %4671
        %4673 = vrot.lane.b32.xlu0 %v4632, 12
        %v4674 = vpop.permute.xlu0 %4673
        %4675 = vrot.lane.b32.xlu0 %v4644, 12
        %v4676 = vpop.permute.xlu0 %4675
        %v4678 = vsel %vm1067, %v4005, %v4262
        %v4680 = vsel %vm1067, %v4006, %v4264
        %v4682 = vsel %vm1067, %v4007, %v4266
        %v4684 = vsel %vm1067, %v4008, %v4268
        %v4686 = vsel %vm1067, %v4009, %v4270
        %v4688 = vsel %vm1067, %v4010, %v4272
        %v4690 = vsel %vm1067, %v4011, %v4274
        %v4692 = vsel %vm1067, %v4012, %v4276
        %v4694 = vsel %vm1067, %v4013, %v4278
        %v4696 = vsel %vm1067, %v4014, %v4280
        %v4698 = vsel %vm1067, %v4015, %v4282
        %v4700 = vsel %vm1067, %v4016, %v4284
        %v4702 = vsel %vm1067, %v4017, %v4286
        %v4704 = vsel %vm1067, %v4018, %v4288
        %v4706 = vsel %vm1067, %v4019, %v4290
        %v4708 = vsel %vm1067, %v4020, %v4292
        %v4710 = vsel %vm1100, %v4678, %v4374
        %v4712 = vsel %vm1100, %v4680, %v4376
        %v4714 = vsel %vm1100, %v4682, %v4378
        %v4716 = vsel %vm1100, %v4684, %v4380
        %v4718 = vsel %vm1100, %v4686, %v4382
        %v4720 = vsel %vm1100, %v4688, %v4384
        %v4722 = vsel %vm1100, %v4690, %v4386
        %v4724 = vsel %vm1100, %v4692, %v4388
        %v4726 = vsel %vm1100, %v4694, %v4390
        %v4728 = vsel %vm1100, %v4696, %v4392
        %v4730 = vsel %vm1100, %v4698, %v4394
        %v4732 = vsel %vm1100, %v4700, %v4396
        %v4734 = vsel %vm1100, %v4702, %v4398
        %v4736 = vsel %vm1100, %v4704, %v4400
        %v4738 = vsel %vm1100, %v4706, %v4402
        %v4740 = vsel %vm1100, %v4708, %v4404
        %v4742 = vsel %vm1133, %v4710, %v4646
        %v4744 = vsel %vm1133, %v4712, %v4648
        %v4746 = vsel %vm1133, %v4714, %v4650
        %v4748 = vsel %vm1133, %v4716, %v4652
        %v4750 = vsel %vm1133, %v4718, %v4654
        %v4752 = vsel %vm1133, %v4720, %v4656
        %v4754 = vsel %vm1133, %v4722, %v4658
        %v4756 = vsel %vm1133, %v4724, %v4660
        %v4758 = vsel %vm1133, %v4726, %v4662
        %v4760 = vsel %vm1133, %v4728, %v4664
        %v4762 = vsel %vm1133, %v4730, %v4666
        %v4764 = vsel %vm1133, %v4732, %v4668
        %v4766 = vsel %vm1133, %v4734, %v4670
        %v4768 = vsel %vm1133, %v4736, %v4672
        %v4770 = vsel %vm1133, %v4738, %v4674
        %v4772 = vsel %vm1133, %v4740, %v4676
        %s4773 = scalar_lea.vmem %s1, 16
        %v4774 = vld [vmem:[%s4773] sm:$0xf]
        %v4775 = vld [vmem:[%s4773 + $0x4] sm:$0xf]
        %v4778 = vunpack.c.l.b16 %v4774
        %v4779 = vunpack.c.l.b16 %v4775
        %v4780 = vpack.c.b16 %v4779, %v4778
        %v4782 = vsel %vm1180, %v4742, 0
        %v4784 = vsel %vm1180, %v4744, 0
        %v4786 = vsel %vm1180, %v4746, 0
        %v4788 = vsel %vm1180, %v4748, 0
        %v4790 = vsel %vm1180, %v4750, 0
        %v4792 = vsel %vm1180, %v4752, 0
        %v4794 = vsel %vm1180, %v4754, 0
        %v4796 = vsel %vm1180, %v4756, 0
        %v4798 = vsel %vm1180, %v4758, 0
        %v4800 = vsel %vm1180, %v4760, 0
        %v4802 = vsel %vm1180, %v4762, 0
        %v4804 = vsel %vm1180, %v4764, 0
        %v4806 = vsel %vm1180, %v4766, 0
        %v4808 = vsel %vm1180, %v4768, 0
        %v4810 = vsel %vm1180, %v4770, 0
        %v4812 = vsel %vm1180, %v4772, 0
        %4814 = vmatprep.subr.bf16.mxu0 0
        %4815 = vmatpush1.bf16.msra.mxu0 %v4780
        %4816 = vmatprep.subr.bf16.mxu0 0
        %4817 = vmatpush1.bf16.msra.mxu0 0
        %4818 = vmatprep.subr.bf16.mxu0 0
        %4819 = vmatpush1.bf16.msra.mxu0 0
        %4820 = vmatprep.subr.bf16.mxu0 0
        %4821 = vmatpush1.bf16.msra.mxu0 0
        %4822 = vmatprep.subr.bf16.mxu0 0
        %4823 = vmatpush1.bf16.msra.mxu0 0
        %4824 = vmatprep.subr.bf16.mxu0 0
        %4825 = vmatpush1.bf16.msra.mxu0 0
        %4826 = vmatprep.subr.bf16.mxu0 0
        %4827 = vmatpush1.bf16.msra.mxu0 0
        %4828 = vmatprep.subr.bf16.mxu0 0
        %4829 = vmatpush1.bf16.msra.mxu0 0
        %4830 = vmatprep.subr.bf16.mxu0 0
        %4831 = vmatpush1.bf16.msra.mxu0 0
        %4832 = vmatprep.subr.bf16.mxu0 0
        %4833 = vmatpush1.bf16.msra.mxu0 0
        %4834 = vmatprep.subr.bf16.mxu0 0
        %4835 = vmatpush1.bf16.msra.mxu0 0
        %4836 = vmatprep.subr.bf16.mxu0 0
        %4837 = vmatpush1.bf16.msra.mxu0 0
        %4838 = vmatprep.subr.bf16.mxu0 0
        %4839 = vmatpush1.bf16.msra.mxu0 0
        %4840 = vmatprep.subr.bf16.mxu0 0
        %4841 = vmatpush1.bf16.msra.mxu0 0
        %4842 = vmatprep.subr.bf16.mxu0 0
        %4843 = vmatpush1.bf16.msra.mxu0 0
        %4844 = vmatprep.subr.bf16.mxu0 0
        %4845 = vmatpush1.bf16.msra.mxu0 0
        %4846 = vmatprep.mubr.bf16.mxu0 0
        %4847 = vmatmul.mubr.bf16.gmra.mrb[0].mxu0 %v4782
        %v4848 = vpop.f32.mrb[0].mxu0
        %v4849 = vadd.f32 %v1172, %v4848
        %v4850 = vpop.f32.mrb[0].mxu0
        %v4851 = vpop.f32.mrb[0].mxu0
        %v4852 = vadd.f32 %v1172, %v4851
        %v4853 = vpop.f32.mrb[0].mxu0
        %4854 = vmatprep.mubr.bf16.mxu0 0
        %4855 = vmatmul.mubr.bf16.gmra.mrb[0].mxu0 %v4784
        %v4856 = vpop.f32.mrb[0].mxu0
        %v4857 = vadd.f32 %v1172, %v4856
        %v4858 = vpop.f32.mrb[0].mxu0
        %v4859 = vpop.f32.mrb[0].mxu0
        %v4860 = vadd.f32 %v1172, %v4859
        %v4861 = vpop.f32.mrb[0].mxu0
        %4862 = vmatprep.mubr.bf16.mxu0 0
        %4863 = vmatmul.mubr.bf16.gmra.mrb[0].mxu0 %v4786
        %v4864 = vpop.f32.mrb[0].mxu0
        %v4865 = vadd.f32 %v1172, %v4864
        %v4866 = vpop.f32.mrb[0].mxu0
        %v4867 = vpop.f32.mrb[0].mxu0
        %v4868 = vadd.f32 %v1172, %v4867
        %v4869 = vpop.f32.mrb[0].mxu0
        %4870 = vmatprep.mubr.bf16.mxu0 0
        %4871 = vmatmul.mubr.bf16.gmra.mrb[0].mxu0 %v4788
        %v4872 = vpop.f32.mrb[0].mxu0
        %v4873 = vadd.f32 %v1172, %v4872
        %v4874 = vpop.f32.mrb[0].mxu0
        %v4875 = vpop.f32.mrb[0].mxu0
        %v4876 = vadd.f32 %v1172, %v4875
        %v4877 = vpop.f32.mrb[0].mxu0
        %4878 = vmatprep.mubr.bf16.mxu0 0
        %4879 = vmatmul.mubr.bf16.gmra.mrb[0].mxu0 %v4790
        %v4880 = vpop.f32.mrb[0].mxu0
        %v4881 = vadd.f32 %v1172, %v4880
        %v4882 = vpop.f32.mrb[0].mxu0
        %v4883 = vpop.f32.mrb[0].mxu0
        %v4884 = vadd.f32 %v1172, %v4883
        %v4885 = vpop.f32.mrb[0].mxu0
        %4886 = vmatprep.mubr.bf16.mxu0 0
        %4887 = vmatmul.mubr.bf16.gmra.mrb[0].mxu0 %v4792
        %v4888 = vpop.f32.mrb[0].mxu0
        %v4889 = vadd.f32 %v1172, %v4888
        %v4890 = vpop.f32.mrb[0].mxu0
        %v4891 = vpop.f32.mrb[0].mxu0
        %v4892 = vadd.f32 %v1172, %v4891
        %v4893 = vpop.f32.mrb[0].mxu0
        %4894 = vmatprep.mubr.bf16.mxu0 0
        %4895 = vmatmul.mubr.bf16.gmra.mrb[0].mxu0 %v4794
        %v4896 = vpop.f32.mrb[0].mxu0
        %v4897 = vadd.f32 %v1172, %v4896
        %v4898 = vpop.f32.mrb[0].mxu0
        %v4899 = vpop.f32.mrb[0].mxu0
        %v4900 = vadd.f32 %v1172, %v4899
        %v4901 = vpop.f32.mrb[0].mxu0
        %4902 = vmatprep.mubr.bf16.mxu0 0
        %4903 = vmatmul.mubr.bf16.gmra.mrb[0].mxu0 %v4796
        %v4904 = vpop.f32.mrb[0].mxu0
        %v4905 = vadd.f32 %v1172, %v4904
        %v4906 = vpop.f32.mrb[0].mxu0
        %v4907 = vpop.f32.mrb[0].mxu0
        %v4908 = vadd.f32 %v1172, %v4907
        %v4909 = vpop.f32.mrb[0].mxu0
        %4910 = vmatprep.mubr.bf16.mxu0 0
        %4911 = vmatmul.mubr.bf16.gmra.mrb[0].mxu0 %v4798
        %v4912 = vpop.f32.mrb[0].mxu0
        %v4913 = vadd.f32 %v1172, %v4912
        %v4914 = vpop.f32.mrb[0].mxu0
        %v4915 = vpop.f32.mrb[0].mxu0
        %v4916 = vadd.f32 %v1172, %v4915
        %v4917 = vpop.f32.mrb[0].mxu0
        %4918 = vmatprep.mubr.bf16.mxu0 0
        %4919 = vmatmul.mubr.bf16.gmra.mrb[0].mxu0 %v4800
        %v4920 = vpop.f32.mrb[0].mxu0
        %v4921 = vadd.f32 %v1172, %v4920
        %v4922 = vpop.f32.mrb[0].mxu0
        %v4923 = vpop.f32.mrb[0].mxu0
        %v4924 = vadd.f32 %v1172, %v4923
        %v4925 = vpop.f32.mrb[0].mxu0
        %4926 = vmatprep.mubr.bf16.mxu0 0
        %4927 = vmatmul.mubr.bf16.gmra.mrb[0].mxu0 %v4802
        %v4928 = vpop.f32.mrb[0].mxu0
        %v4929 = vadd.f32 %v1172, %v4928
        %v4930 = vpop.f32.mrb[0].mxu0
        %v4931 = vpop.f32.mrb[0].mxu0
        %v4932 = vadd.f32 %v1172, %v4931
        %v4933 = vpop.f32.mrb[0].mxu0
        %4934 = vmatprep.mubr.bf16.mxu0 0
        %4935 = vmatmul.mubr.bf16.gmra.mrb[0].mxu0 %v4804
        %v4936 = vpop.f32.mrb[0].mxu0
        %v4937 = vadd.f32 %v1172, %v4936
        %v4938 = vpop.f32.mrb[0].mxu0
        %v4939 = vpop.f32.mrb[0].mxu0
        %v4940 = vadd.f32 %v1172, %v4939
        %v4941 = vpop.f32.mrb[0].mxu0
        %4942 = vmatprep.mubr.bf16.mxu0 0
        %4943 = vmatmul.mubr.bf16.gmra.mrb[0].mxu0 %v4806
        %v4944 = vpop.f32.mrb[0].mxu0
        %v4945 = vadd.f32 %v1172, %v4944
        %v4946 = vpop.f32.mrb[0].mxu0
        %v4947 = vpop.f32.mrb[0].mxu0
        %v4948 = vadd.f32 %v1172, %v4947
        %v4949 = vpop.f32.mrb[0].mxu0
        %4950 = vmatprep.mubr.bf16.mxu0 0
        %4951 = vmatmul.mubr.bf16.gmra.mrb[0].mxu0 %v4808
        %v4952 = vpop.f32.mrb[0].mxu0
        %v4953 = vadd.f32 %v1172, %v4952
        %v4954 = vpop.f32.mrb[0].mxu0
        %v4955 = vpop.f32.mrb[0].mxu0
        %v4956 = vadd.f32 %v1172, %v4955
        %v4957 = vpop.f32.mrb[0].mxu0
        %4958 = vmatprep.mubr.bf16.mxu0 0
        %4959 = vmatmul.mubr.bf16.gmra.mrb[0].mxu0 %v4810
        %v4960 = vpop.f32.mrb[0].mxu0
        %v4961 = vadd.f32 %v1172, %v4960
        %v4962 = vpop.f32.mrb[0].mxu0
        %v4963 = vpop.f32.mrb[0].mxu0
        %v4964 = vadd.f32 %v1172, %v4963
        %v4965 = vpop.f32.mrb[0].mxu0
        %4966 = vmatprep.mubr.bf16.mxu0 0
        %4967 = vmatmul.mubr.bf16.gmra.mrb[0].mxu0 %v4812
        %v4968 = vpop.f32.mrb[0].mxu0
        %v4969 = vadd.f32 %v1172, %v4968
        %v4970 = vpop.f32.mrb[0].mxu0
        %v4971 = vpop.f32.mrb[0].mxu0
        %v4972 = vadd.f32 %v1172, %v4971
        %v4973 = vpop.f32.mrb[0].mxu0
        %4974 = vdwg.mxu0
        %v4975 = vmin.f32 %v4849, 30.0
        %v4976 = vmin.f32 %v4852, 30.0
        %v4977 = vmin.f32 %v4857, 30.0
        %v4978 = vmin.f32 %v4860, 30.0
        %v4979 = vmin.f32 %v4865, 30.0
        %v4980 = vmin.f32 %v4868, 30.0
        %v4981 = vmin.f32 %v4873, 30.0
        %v4982 = vmin.f32 %v4876, 30.0
        %v4983 = vmin.f32 %v4881, 30.0
        %v4984 = vmin.f32 %v4884, 30.0
        %v4985 = vmin.f32 %v4889, 30.0
        %v4986 = vmin.f32 %v4892, 30.0
        %v4987 = vmin.f32 %v4897, 30.0
        %v4988 = vmin.f32 %v4900, 30.0
        %v4989 = vmin.f32 %v4905, 30.0
        %v4990 = vmin.f32 %v4908, 30.0
        %v4991 = vmin.f32 %v4913, 30.0
        %v4992 = vmin.f32 %v4916, 30.0
        %v4993 = vmin.f32 %v4921, 30.0
        %v4994 = vmin.f32 %v4924, 30.0
        %v4995 = vmin.f32 %v4929, 30.0
        %v4996 = vmin.f32 %v4932, 30.0
        %v4997 = vmin.f32 %v4937, 30.0
        %v4998 = vmin.f32 %v4940, 30.0
        %v4999 = vmin.f32 %v4945, 30.0
        %v5000 = vmin.f32 %v4948, 30.0
        %v5001 = vmin.f32 %v4953, 30.0
        %v5002 = vmin.f32 %v4956, 30.0
        %v5003 = vmin.f32 %v4961, 30.0
        %v5004 = vmin.f32 %v4964, 30.0
        %v5005 = vmin.f32 %v4969, 30.0
        %v5006 = vmin.f32 %v4972, 30.0
        %v5007 = vmul.f32 %v4975, 1.442695
        %v5008 = vpow.pop %v5007
        %v5009 = vmul.f32 %v4976, 1.442695
        %v5010 = vpow.pop %v5009
        %v5011 = vmul.f32 %v4977, 1.442695
        %v5012 = vpow.pop %v5011
        %v5013 = vmul.f32 %v4978, 1.442695
        %v5014 = vpow.pop %v5013
        %v5015 = vmul.f32 %v4979, 1.442695
        %v5016 = vpow.pop %v5015
        %v5017 = vmul.f32 %v4980, 1.442695
        %v5018 = vpow.pop %v5017
        %v5019 = vmul.f32 %v4981, 1.442695
        %v5020 = vpow.pop %v5019
        %v5021 = vmul.f32 %v4982, 1.442695
        %v5022 = vpow.pop %v5021
        %v5023 = vmul.f32 %v4983, 1.442695
        %v5024 = vpow.pop %v5023
        %v5025 = vmul.f32 %v4984, 1.442695
        %v5026 = vpow.pop %v5025
        %v5027 = vmul.f32 %v4985, 1.442695
        %v5028 = vpow.pop %v5027
        %v5029 = vmul.f32 %v4986, 1.442695
        %v5030 = vpow.pop %v5029
        %v5031 = vmul.f32 %v4987, 1.442695
        %v5032 = vpow.pop %v5031
        %v5033 = vmul.f32 %v4988, 1.442695
        %v5034 = vpow.pop %v5033
        %v5035 = vmul.f32 %v4989, 1.442695
        %v5036 = vpow.pop %v5035
        %v5037 = vmul.f32 %v4990, 1.442695
        %v5038 = vpow.pop %v5037
        %v5039 = vmul.f32 %v4991, 1.442695
        %v5040 = vpow.pop %v5039
        %v5041 = vmul.f32 %v4992, 1.442695
        %v5042 = vpow.pop %v5041
        %v5043 = vmul.f32 %v4993, 1.442695
        %v5044 = vpow.pop %v5043
        %v5045 = vmul.f32 %v4994, 1.442695
        %v5046 = vpow.pop %v5045
        %v5047 = vmul.f32 %v4995, 1.442695
        %v5048 = vpow.pop %v5047
        %v5049 = vmul.f32 %v4996, 1.442695
        %v5050 = vpow.pop %v5049
        %v5051 = vmul.f32 %v4997, 1.442695
        %v5052 = vpow.pop %v5051
        %v5053 = vmul.f32 %v4998, 1.442695
        %v5054 = vpow.pop %v5053
        %v5055 = vmul.f32 %v4999, 1.442695
        %v5056 = vpow.pop %v5055
        %v5057 = vmul.f32 %v5000, 1.442695
        %v5058 = vpow.pop %v5057
        %v5059 = vmul.f32 %v5001, 1.442695
        %v5060 = vpow.pop %v5059
        %v5061 = vmul.f32 %v5002, 1.442695
        %v5062 = vpow.pop %v5061
        %v5063 = vmul.f32 %v5003, 1.442695
        %v5064 = vpow.pop %v5063
        %v5065 = vmul.f32 %v5004, 1.442695
        %v5066 = vpow.pop %v5065
        %v5067 = vmul.f32 %v5005, 1.442695
        %v5068 = vpow.pop %v5067
        %v5069 = vmul.f32 %v5006, 1.442695
        %v5070 = vpow.pop %v5069
        %v5071 = vadd.f32 %v5008, 1.0
        %v5072 = vadd.f32 %v5010, 1.0
        %v5073 = vadd.f32 %v5012, 1.0
        %v5074 = vadd.f32 %v5014, 1.0
        %v5075 = vadd.f32 %v5016, 1.0
        %v5076 = vadd.f32 %v5018, 1.0
        %v5077 = vadd.f32 %v5020, 1.0
        %v5078 = vadd.f32 %v5022, 1.0
        %v5079 = vadd.f32 %v5024, 1.0
        %v5080 = vadd.f32 %v5026, 1.0
        %v5081 = vadd.f32 %v5028, 1.0
        %v5082 = vadd.f32 %v5030, 1.0
        %v5083 = vadd.f32 %v5032, 1.0
        %v5084 = vadd.f32 %v5034, 1.0
        %v5085 = vadd.f32 %v5036, 1.0
        %v5086 = vadd.f32 %v5038, 1.0
        %v5087 = vadd.f32 %v5040, 1.0
        %v5088 = vadd.f32 %v5042, 1.0
        %v5089 = vadd.f32 %v5044, 1.0
        %v5090 = vadd.f32 %v5046, 1.0
        %v5091 = vadd.f32 %v5048, 1.0
        %v5092 = vadd.f32 %v5050, 1.0
        %v5093 = vadd.f32 %v5052, 1.0
        %v5094 = vadd.f32 %v5054, 1.0
        %v5095 = vadd.f32 %v5056, 1.0
        %v5096 = vadd.f32 %v5058, 1.0
        %v5097 = vadd.f32 %v5060, 1.0
        %v5098 = vadd.f32 %v5062, 1.0
        %v5099 = vadd.f32 %v5064, 1.0
        %v5100 = vadd.f32 %v5066, 1.0
        %v5101 = vadd.f32 %v5068, 1.0
        %v5102 = vadd.f32 %v5070, 1.0
        %v5103 = vmul.f32 %v5071, %v5071
        %v5104 = vmul.f32 %v5072, %v5072
        %v5105 = vmul.f32 %v5073, %v5073
        %v5106 = vmul.f32 %v5074, %v5074
        %v5107 = vmul.f32 %v5075, %v5075
        %v5108 = vmul.f32 %v5076, %v5076
        %v5109 = vmul.f32 %v5077, %v5077
        %v5110 = vmul.f32 %v5078, %v5078
        %v5111 = vmul.f32 %v5079, %v5079
        %v5112 = vmul.f32 %v5080, %v5080
        %v5113 = vmul.f32 %v5081, %v5081
        %v5114 = vmul.f32 %v5082, %v5082
        %v5115 = vmul.f32 %v5083, %v5083
        %v5116 = vmul.f32 %v5084, %v5084
        %v5117 = vmul.f32 %v5085, %v5085
        %v5118 = vmul.f32 %v5086, %v5086
        %v5119 = vmul.f32 %v5087, %v5087
        %v5120 = vmul.f32 %v5088, %v5088
        %v5121 = vmul.f32 %v5089, %v5089
        %v5122 = vmul.f32 %v5090, %v5090
        %v5123 = vmul.f32 %v5091, %v5091
        %v5124 = vmul.f32 %v5092, %v5092
        %v5125 = vmul.f32 %v5093, %v5093
        %v5126 = vmul.f32 %v5094, %v5094
        %v5127 = vmul.f32 %v5095, %v5095
        %v5128 = vmul.f32 %v5096, %v5096
        %v5129 = vmul.f32 %v5097, %v5097
        %v5130 = vmul.f32 %v5098, %v5098
        %v5131 = vmul.f32 %v5099, %v5099
        %v5132 = vmul.f32 %v5100, %v5100
        %v5133 = vmul.f32 %v5101, %v5101
        %v5134 = vmul.f32 %v5102, %v5102
        %v5135 = vadd.f32 %v5103, 1.0
        %v5136 = vadd.f32 %v5104, 1.0
        %v5137 = vadd.f32 %v5105, 1.0
        %v5138 = vadd.f32 %v5106, 1.0
        %v5139 = vadd.f32 %v5107, 1.0
        %v5140 = vadd.f32 %v5108, 1.0
        %v5141 = vadd.f32 %v5109, 1.0
        %v5142 = vadd.f32 %v5110, 1.0
        %v5143 = vadd.f32 %v5111, 1.0
        %v5144 = vadd.f32 %v5112, 1.0
        %v5145 = vadd.f32 %v5113, 1.0
        %v5146 = vadd.f32 %v5114, 1.0
        %v5147 = vadd.f32 %v5115, 1.0
        %v5148 = vadd.f32 %v5116, 1.0
        %v5149 = vadd.f32 %v5117, 1.0
        %v5150 = vadd.f32 %v5118, 1.0
        %v5151 = vadd.f32 %v5119, 1.0
        %v5152 = vadd.f32 %v5120, 1.0
        %v5153 = vadd.f32 %v5121, 1.0
        %v5154 = vadd.f32 %v5122, 1.0
        %v5155 = vadd.f32 %v5123, 1.0
        %v5156 = vadd.f32 %v5124, 1.0
        %v5157 = vadd.f32 %v5125, 1.0
        %v5158 = vadd.f32 %v5126, 1.0
        %v5159 = vadd.f32 %v5127, 1.0
        %v5160 = vadd.f32 %v5128, 1.0
        %v5161 = vadd.f32 %v5129, 1.0
        %v5162 = vadd.f32 %v5130, 1.0
        %v5163 = vadd.f32 %v5131, 1.0
        %v5164 = vadd.f32 %v5132, 1.0
        %v5165 = vadd.f32 %v5133, 1.0
        %v5166 = vadd.f32 %v5134, 1.0
        %v5167 = vrcp.pop %v5135
        %v5168 = vrcp.pop %v5136
        %v5169 = vrcp.pop %v5137
        %v5170 = vrcp.pop %v5138
        %v5171 = vrcp.pop %v5139
        %v5172 = vrcp.pop %v5140
        %v5173 = vrcp.pop %v5141
        %v5174 = vrcp.pop %v5142
        %v5175 = vrcp.pop %v5143
        %v5176 = vrcp.pop %v5144
        %v5177 = vrcp.pop %v5145
        %v5178 = vrcp.pop %v5146
        %v5179 = vrcp.pop %v5147
        %v5180 = vrcp.pop %v5148
        %v5181 = vrcp.pop %v5149
        %v5182 = vrcp.pop %v5150
        %v5183 = vrcp.pop %v5151
        %v5184 = vrcp.pop %v5152
        %v5185 = vrcp.pop %v5153
        %v5186 = vrcp.pop %v5154
        %v5187 = vrcp.pop %v5155
        %v5188 = vrcp.pop %v5156
        %v5189 = vrcp.pop %v5157
        %v5190 = vrcp.pop %v5158
        %v5191 = vrcp.pop %v5159
        %v5192 = vrcp.pop %v5160
        %v5193 = vrcp.pop %v5161
        %v5194 = vrcp.pop %v5162
        %v5195 = vrcp.pop %v5163
        %v5196 = vrcp.pop %v5164
        %v5197 = vrcp.pop %v5165
        %v5198 = vrcp.pop %v5166
        %v5199 = vmul.f32 %v5167, 2.0
        %v5200 = vmul.f32 %v5168, 2.0
        %v5201 = vmul.f32 %v5169, 2.0
        %v5202 = vmul.f32 %v5170, 2.0
        %v5203 = vmul.f32 %v5171, 2.0
        %v5204 = vmul.f32 %v5172, 2.0
        %v5205 = vmul.f32 %v5173, 2.0
        %v5206 = vmul.f32 %v5174, 2.0
        %v5207 = vmul.f32 %v5175, 2.0
        %v5208 = vmul.f32 %v5176, 2.0
        %v5209 = vmul.f32 %v5177, 2.0
        %v5210 = vmul.f32 %v5178, 2.0
        %v5211 = vmul.f32 %v5179, 2.0
        %v5212 = vmul.f32 %v5180, 2.0
        %v5213 = vmul.f32 %v5181, 2.0
        %v5214 = vmul.f32 %v5182, 2.0
        %v5215 = vmul.f32 %v5183, 2.0
        %v5216 = vmul.f32 %v5184, 2.0
        %v5217 = vmul.f32 %v5185, 2.0
        %v5218 = vmul.f32 %v5186, 2.0
        %v5219 = vmul.f32 %v5187, 2.0
        %v5220 = vmul.f32 %v5188, 2.0
        %v5221 = vmul.f32 %v5189, 2.0
        %v5222 = vmul.f32 %v5190, 2.0
        %v5223 = vmul.f32 %v5191, 2.0
        %v5224 = vmul.f32 %v5192, 2.0
        %v5225 = vmul.f32 %v5193, 2.0
        %v5226 = vmul.f32 %v5194, 2.0
        %v5227 = vmul.f32 %v5195, 2.0
        %v5228 = vmul.f32 %v5196, 2.0
        %v5229 = vmul.f32 %v5197, 2.0
        %v5230 = vmul.f32 %v5198, 2.0
        %v5231 = vsub.f32 1.0, %v5199
        %v5232 = vsub.f32 1.0, %v5200
        %v5233 = vsub.f32 1.0, %v5201
        %v5234 = vsub.f32 1.0, %v5202
        %v5235 = vsub.f32 1.0, %v5203
        %v5236 = vsub.f32 1.0, %v5204
        %v5237 = vsub.f32 1.0, %v5205
        %v5238 = vsub.f32 1.0, %v5206
        %v5239 = vsub.f32 1.0, %v5207
        %v5240 = vsub.f32 1.0, %v5208
        %v5241 = vsub.f32 1.0, %v5209
        %v5242 = vsub.f32 1.0, %v5210
        %v5243 = vsub.f32 1.0, %v5211
        %v5244 = vsub.f32 1.0, %v5212
        %v5245 = vsub.f32 1.0, %v5213
        %v5246 = vsub.f32 1.0, %v5214
        %v5247 = vsub.f32 1.0, %v5215
        %v5248 = vsub.f32 1.0, %v5216
        %v5249 = vsub.f32 1.0, %v5217
        %v5250 = vsub.f32 1.0, %v5218
        %v5251 = vsub.f32 1.0, %v5219
        %v5252 = vsub.f32 1.0, %v5220
        %v5253 = vsub.f32 1.0, %v5221
        %v5254 = vsub.f32 1.0, %v5222
        %v5255 = vsub.f32 1.0, %v5223
        %v5256 = vsub.f32 1.0, %v5224
        %v5257 = vsub.f32 1.0, %v5225
        %v5258 = vsub.f32 1.0, %v5226
        %v5259 = vsub.f32 1.0, %v5227
        %v5260 = vsub.f32 1.0, %v5228
        %v5261 = vsub.f32 1.0, %v5229
        %v5262 = vsub.f32 1.0, %v5230
        %v5263 = vmul.f32 %v4849, %v5231
        %v5264 = vmul.f32 %v4852, %v5232
        %v5265 = vmul.f32 %v4857, %v5233
        %v5266 = vmul.f32 %v4860, %v5234
        %v5267 = vmul.f32 %v4865, %v5235
        %v5268 = vmul.f32 %v4868, %v5236
        %v5269 = vmul.f32 %v4873, %v5237
        %v5270 = vmul.f32 %v4876, %v5238
        %v5271 = vmul.f32 %v4881, %v5239
        %v5272 = vmul.f32 %v4884, %v5240
        %v5273 = vmul.f32 %v4889, %v5241
        %v5274 = vmul.f32 %v4892, %v5242
        %v5275 = vmul.f32 %v4897, %v5243
        %v5276 = vmul.f32 %v4900, %v5244
        %v5277 = vmul.f32 %v4905, %v5245
        %v5278 = vmul.f32 %v4908, %v5246
        %v5279 = vmul.f32 %v4913, %v5247
        %v5280 = vmul.f32 %v4916, %v5248
        %v5281 = vmul.f32 %v4921, %v5249
        %v5282 = vmul.f32 %v4924, %v5250
        %v5283 = vmul.f32 %v4929, %v5251
        %v5284 = vmul.f32 %v4932, %v5252
        %v5285 = vmul.f32 %v4937, %v5253
        %v5286 = vmul.f32 %v4940, %v5254
        %v5287 = vmul.f32 %v4945, %v5255
        %v5288 = vmul.f32 %v4948, %v5256
        %v5289 = vmul.f32 %v4953, %v5257
        %v5290 = vmul.f32 %v4956, %v5258
        %v5291 = vmul.f32 %v4961, %v5259
        %v5292 = vmul.f32 %v4964, %v5260
        %v5293 = vmul.f32 %v4969, %v5261
        %v5294 = vmul.f32 %v4972, %v5262
        %v5295 = vsel %vm1100, %v5263, 0.0
        %v5296 = vsel %vm1100, %v5264, 0.0
        %v5297 = vadd.f32 %v5295, %v5296
        %v5298 = vsel %vm1100, %v5265, 0.0
        %v5299 = vadd.f32 %v5297, %v5298
        %v5300 = vsel %vm1100, %v5266, 0.0
        %v5301 = vadd.f32 %v5299, %v5300
        %v5302 = vsel %vm1100, %v5267, 0.0
        %v5303 = vadd.f32 %v5301, %v5302
        %v5304 = vsel %vm1100, %v5268, 0.0
        %v5305 = vadd.f32 %v5303, %v5304
        %v5306 = vsel %vm1100, %v5269, 0.0
        %v5307 = vadd.f32 %v5305, %v5306
        %v5308 = vsel %vm1100, %v5270, 0.0
        %v5309 = vadd.f32 %v5307, %v5308
        %v5310 = vsel %vm1100, %v5271, 0.0
        %v5311 = vadd.f32 %v5309, %v5310
        %v5312 = vsel %vm1100, %v5272, 0.0
        %v5313 = vadd.f32 %v5311, %v5312
        %v5314 = vsel %vm1100, %v5273, 0.0
        %v5315 = vadd.f32 %v5313, %v5314
        %v5316 = vsel %vm1100, %v5274, 0.0
        %v5317 = vadd.f32 %v5315, %v5316
        %v5318 = vsel %vm1100, %v5275, 0.0
        %v5319 = vadd.f32 %v5317, %v5318
        %v5320 = vsel %vm1100, %v5276, 0.0
        %v5321 = vadd.f32 %v5319, %v5320
        %v5322 = vsel %vm1100, %v5277, 0.0
        %v5323 = vadd.f32 %v5321, %v5322
        %v5324 = vsel %vm1100, %v5278, 0.0
        %v5325 = vadd.f32 %v5323, %v5324
        %v5326 = vsel %vm1100, %v5279, 0.0
        %v5327 = vadd.f32 %v5325, %v5326
        %v5328 = vsel %vm1100, %v5280, 0.0
        %v5329 = vadd.f32 %v5327, %v5328
        %v5330 = vsel %vm1100, %v5281, 0.0
        %v5331 = vadd.f32 %v5329, %v5330
        %v5332 = vsel %vm1100, %v5282, 0.0
        %v5333 = vadd.f32 %v5331, %v5332
        %v5334 = vsel %vm1100, %v5283, 0.0
        %v5335 = vadd.f32 %v5333, %v5334
        %v5336 = vsel %vm1100, %v5284, 0.0
        %v5337 = vadd.f32 %v5335, %v5336
        %v5338 = vsel %vm1100, %v5285, 0.0
        %v5339 = vadd.f32 %v5337, %v5338
        %v5340 = vsel %vm1100, %v5286, 0.0
        %v5341 = vadd.f32 %v5339, %v5340
        %v5342 = vsel %vm1100, %v5287, 0.0
        %v5343 = vadd.f32 %v5341, %v5342
        %v5344 = vsel %vm1100, %v5288, 0.0
        %v5345 = vadd.f32 %v5343, %v5344
        %v5346 = vsel %vm1100, %v5289, 0.0
        %v5347 = vadd.f32 %v5345, %v5346
        %v5348 = vsel %vm1100, %v5290, 0.0
        %v5349 = vadd.f32 %v5347, %v5348
        %v5350 = vsel %vm1100, %v5291, 0.0
        %v5351 = vadd.f32 %v5349, %v5350
        %v5352 = vsel %vm1100, %v5292, 0.0
        %v5353 = vadd.f32 %v5351, %v5352
        %v5354 = vsel %vm1100, %v5293, 0.0
        %v5355 = vadd.f32 %v5353, %v5354
        %v5356 = vsel %vm1100, %v5294, 0.0
        %v5357 = vadd.f32 %v5355, %v5356
        %v5358 = vrot.slane %v5357, 4
        %v5359 = vadd.f32 %v5357, %v5358
        %v5360 = vrot.slane %v5359, 2
        %v5361 = vadd.f32 %v5359, %v5360
        %v5362 = vrot.slane %v5361, 1
        %v5363 = vadd.f32 %v5361, %v5362
        %v5364 = vadd.f32 %v3417, %v5363
        %v5365 = vmul.f32 %v5263, %v5263
        %v5366 = vmul.f32 %v5264, %v5264
        %v5367 = vmul.f32 %v5265, %v5265
        %v5368 = vmul.f32 %v5266, %v5266
        %v5369 = vmul.f32 %v5267, %v5267
        %v5370 = vmul.f32 %v5268, %v5268
        %v5371 = vmul.f32 %v5269, %v5269
        %v5372 = vmul.f32 %v5270, %v5270
        %v5373 = vmul.f32 %v5271, %v5271
        %v5374 = vmul.f32 %v5272, %v5272
        %v5375 = vmul.f32 %v5273, %v5273
        %v5376 = vmul.f32 %v5274, %v5274
        %v5377 = vmul.f32 %v5275, %v5275
        %v5378 = vmul.f32 %v5276, %v5276
        %v5379 = vmul.f32 %v5277, %v5277
        %v5380 = vmul.f32 %v5278, %v5278
        %v5381 = vmul.f32 %v5279, %v5279
        %v5382 = vmul.f32 %v5280, %v5280
        %v5383 = vmul.f32 %v5281, %v5281
        %v5384 = vmul.f32 %v5282, %v5282
        %v5385 = vmul.f32 %v5283, %v5283
        %v5386 = vmul.f32 %v5284, %v5284
        %v5387 = vmul.f32 %v5285, %v5285
        %v5388 = vmul.f32 %v5286, %v5286
        %v5389 = vmul.f32 %v5287, %v5287
        %v5390 = vmul.f32 %v5288, %v5288
        %v5391 = vmul.f32 %v5289, %v5289
        %v5392 = vmul.f32 %v5290, %v5290
        %v5393 = vmul.f32 %v5291, %v5291
        %v5394 = vmul.f32 %v5292, %v5292
        %v5395 = vmul.f32 %v5293, %v5293
        %v5396 = vmul.f32 %v5294, %v5294
        %v5397 = vsel %vm1100, %v5365, 0.0
        %v5398 = vsel %vm1100, %v5366, 0.0
        %v5399 = vadd.f32 %v5397, %v5398
        %v5400 = vsel %vm1100, %v5367, 0.0
        %v5401 = vadd.f32 %v5399, %v5400
        %v5402 = vsel %vm1100, %v5368, 0.0
        %v5403 = vadd.f32 %v5401, %v5402
        %v5404 = vsel %vm1100, %v5369, 0.0
        %v5405 = vadd.f32 %v5403, %v5404
        %v5406 = vsel %vm1100, %v5370, 0.0
        %v5407 = vadd.f32 %v5405, %v5406
        %v5408 = vsel %vm1100, %v5371, 0.0
        %v5409 = vadd.f32 %v5407, %v5408
        %v5410 = vsel %vm1100, %v5372, 0.0
        %v5411 = vadd.f32 %v5409, %v5410
        %v5412 = vsel %vm1100, %v5373, 0.0
        %v5413 = vadd.f32 %v5411, %v5412
        %v5414 = vsel %vm1100, %v5374, 0.0
        %v5415 = vadd.f32 %v5413, %v5414
        %v5416 = vsel %vm1100, %v5375, 0.0
        %v5417 = vadd.f32 %v5415, %v5416
        %v5418 = vsel %vm1100, %v5376, 0.0
        %v5419 = vadd.f32 %v5417, %v5418
        %v5420 = vsel %vm1100, %v5377, 0.0
        %v5421 = vadd.f32 %v5419, %v5420
        %v5422 = vsel %vm1100, %v5378, 0.0
        %v5423 = vadd.f32 %v5421, %v5422
        %v5424 = vsel %vm1100, %v5379, 0.0
        %v5425 = vadd.f32 %v5423, %v5424
        %v5426 = vsel %vm1100, %v5380, 0.0
        %v5427 = vadd.f32 %v5425, %v5426
        %v5428 = vsel %vm1100, %v5381, 0.0
        %v5429 = vadd.f32 %v5427, %v5428
        %v5430 = vsel %vm1100, %v5382, 0.0
        %v5431 = vadd.f32 %v5429, %v5430
        %v5432 = vsel %vm1100, %v5383, 0.0
        %v5433 = vadd.f32 %v5431, %v5432
        %v5434 = vsel %vm1100, %v5384, 0.0
        %v5435 = vadd.f32 %v5433, %v5434
        %v5436 = vsel %vm1100, %v5385, 0.0
        %v5437 = vadd.f32 %v5435, %v5436
        %v5438 = vsel %vm1100, %v5386, 0.0
        %v5439 = vadd.f32 %v5437, %v5438
        %v5440 = vsel %vm1100, %v5387, 0.0
        %v5441 = vadd.f32 %v5439, %v5440
        %v5442 = vsel %vm1100, %v5388, 0.0
        %v5443 = vadd.f32 %v5441, %v5442
        %v5444 = vsel %vm1100, %v5389, 0.0
        %v5445 = vadd.f32 %v5443, %v5444
        %v5446 = vsel %vm1100, %v5390, 0.0
        %v5447 = vadd.f32 %v5445, %v5446
        %v5448 = vsel %vm1100, %v5391, 0.0
        %v5449 = vadd.f32 %v5447, %v5448
        %v5450 = vsel %vm1100, %v5392, 0.0
        %v5451 = vadd.f32 %v5449, %v5450
        %v5452 = vsel %vm1100, %v5393, 0.0
        %v5453 = vadd.f32 %v5451, %v5452
        %v5454 = vsel %vm1100, %v5394, 0.0
        %v5455 = vadd.f32 %v5453, %v5454
        %v5456 = vsel %vm1100, %v5395, 0.0
        %v5457 = vadd.f32 %v5455, %v5456
        %v5458 = vsel %vm1100, %v5396, 0.0
        %v5459 = vadd.f32 %v5457, %v5458
        %v5460 = vrot.slane %v5459, 4
        %v5461 = vadd.f32 %v5459, %v5460
        %v5462 = vrot.slane %v5461, 2
        %v5463 = vadd.f32 %v5461, %v5462
        %v5464 = vrot.slane %v5463, 1
        %v5465 = vadd.f32 %v5463, %v5464
        %v5466 = vadd.f32 %v3519, %v5465
        %v5467 = vld [vmem:[%s281] sm:$0xe]
        %v5468 = vld [vmem:[%s281 + $0xc] sm:$0xe]
        %v5469 = vld [vmem:[%s281 + $0x18] sm:$0xe]
        %v5470 = vld [vmem:[%s281 + $0x24] sm:$0xe]
        %v5471 = vld [vmem:[%s281 + $0x30] sm:$0xe]
        %v5472 = vld [vmem:[%s281 + $0x3c] sm:$0xe]
        %v5473 = vld [vmem:[%s281 + $0x48] sm:$0xe]
        %v5474 = vld [vmem:[%s281 + $0x54] sm:$0xe]
        %v5475 = vld [vmem:[%s281 + $0x60] sm:$0xe]
        %v5476 = vld [vmem:[%s281 + $0x6c] sm:$0xe]
        %v5477 = vld [vmem:[%s281 + $0x78] sm:$0xe]
        %v5478 = vld [vmem:[%s281 + $0x84] sm:$0xe]
        %v5479 = vld [vmem:[%s281 + $0x90] sm:$0xe]
        %v5480 = vld [vmem:[%s281 + $0x9c] sm:$0xe]
        %v5481 = vld [vmem:[%s281 + $0xa8] sm:$0xe]
        %v5482 = vld [vmem:[%s281 + $0xb4] sm:$0xe]
        %v5483 = vld [vmem:[%s3892] sm:$0xe]
        %v5484 = vld [vmem:[%s3892 + $0xc] sm:$0xe]
        %v5485 = vld [vmem:[%s3892 + $0x18] sm:$0xe]
        %v5486 = vld [vmem:[%s3892 + $0x24] sm:$0xe]
        %v5487 = vld [vmem:[%s3892 + $0x30] sm:$0xe]
        %v5488 = vld [vmem:[%s3892 + $0x3c] sm:$0xe]
        %v5489 = vld [vmem:[%s3892 + $0x48] sm:$0xe]
        %v5490 = vld [vmem:[%s3892 + $0x54] sm:$0xe]
        %v5491 = vld [vmem:[%s3892 + $0x60] sm:$0xe]
        %v5492 = vld [vmem:[%s3892 + $0x6c] sm:$0xe]
        %v5493 = vld [vmem:[%s3892 + $0x78] sm:$0xe]
        %v5494 = vld [vmem:[%s3892 + $0x84] sm:$0xe]
        %v5495 = vld [vmem:[%s3892 + $0x90] sm:$0xe]
        %v5496 = vld [vmem:[%s3892 + $0x9c] sm:$0xe]
        %v5497 = vld [vmem:[%s3892 + $0xa8] sm:$0xe]
        %v5498 = vld [vmem:[%s3892 + $0xb4] sm:$0xe]
        %v5515 = vunpack.c.l.b16 %v5467
        %v5516 = vunpack.c.l.b16 %v5468
        %v5517 = vunpack.c.l.b16 %v5469
        %v5518 = vunpack.c.l.b16 %v5470
        %v5519 = vunpack.c.l.b16 %v5471
        %v5520 = vunpack.c.l.b16 %v5472
        %v5521 = vunpack.c.l.b16 %v5473
        %v5522 = vunpack.c.l.b16 %v5474
        %v5523 = vunpack.c.l.b16 %v5475
        %v5524 = vunpack.c.l.b16 %v5476
        %v5525 = vunpack.c.l.b16 %v5477
        %v5526 = vunpack.c.l.b16 %v5478
        %v5527 = vunpack.c.l.b16 %v5479
        %v5528 = vunpack.c.l.b16 %v5480
        %v5529 = vunpack.c.l.b16 %v5481
        %v5530 = vunpack.c.l.b16 %v5482
        %v5531 = vpack.c.b16 %v3974, %v5515
        %v5532 = vpack.c.b16 %v3976, %v5516
        %v5533 = vpack.c.b16 %v3978, %v5517
        %v5534 = vpack.c.b16 %v3980, %v5518
        %v5535 = vpack.c.b16 %v3982, %v5519
        %v5536 = vpack.c.b16 %v3984, %v5520
        %v5537 = vpack.c.b16 %v3986, %v5521
        %v5538 = vpack.c.b16 %v3988, %v5522
        %v5539 = vpack.c.b16 %v3990, %v5523
        %v5540 = vpack.c.b16 %v3992, %v5524
        %v5541 = vpack.c.b16 %v3994, %v5525
        %v5542 = vpack.c.b16 %v3996, %v5526
        %v5543 = vpack.c.b16 %v3998, %v5527
        %v5544 = vpack.c.b16 %v4000, %v5528
        %v5545 = vpack.c.b16 %v4002, %v5529
        %v5546 = vpack.c.b16 %v4004, %v5530
        %v5548 = vshrl.u32 %v5531, 16
        %v5550 = vshll.u32 %v5531, 16
        %v5552 = vrot.slane %v5550, 1
        %v5553 = vor.u32 %v5548, %v5552
        %v5554 = vsel %vm458, %v5553, %v4079
        %v5555 = vshrl.u32 %v4053, 16
        %v5558 = vshrl.u32 %v5532, 16
        %v5560 = vshll.u32 %v5532, 16
        %v5562 = vrot.slane %v5560, 1
        %v5563 = vor.u32 %v5558, %v5562
        %v5564 = vsel %vm458, %v5563, %v4091
        %v5565 = vshrl.u32 %v4054, 16
        %v5568 = vshrl.u32 %v5533, 16
        %v5570 = vshll.u32 %v5533, 16
        %v5572 = vrot.slane %v5570, 1
        %v5573 = vor.u32 %v5568, %v5572
        %v5574 = vsel %vm458, %v5573, %v4103
        %v5575 = vshrl.u32 %v4055, 16
        %v5578 = vshrl.u32 %v5534, 16
        %v5580 = vshll.u32 %v5534, 16
        %v5582 = vrot.slane %v5580, 1
        %v5583 = vor.u32 %v5578, %v5582
        %v5584 = vsel %vm458, %v5583, %v4115
        %v5585 = vshrl.u32 %v4056, 16
        %v5588 = vshrl.u32 %v5535, 16
        %v5590 = vshll.u32 %v5535, 16
        %v5592 = vrot.slane %v5590, 1
        %v5593 = vor.u32 %v5588, %v5592
        %v5594 = vsel %vm458, %v5593, %v4127
        %v5595 = vshrl.u32 %v4057, 16
        %v5598 = vshrl.u32 %v5536, 16
        %v5600 = vshll.u32 %v5536, 16
        %v5602 = vrot.slane %v5600, 1
        %v5603 = vor.u32 %v5598, %v5602
        %v5604 = vsel %vm458, %v5603, %v4139
        %v5605 = vshrl.u32 %v4058, 16
        %v5608 = vshrl.u32 %v5537, 16
        %v5610 = vshll.u32 %v5537, 16
        %v5612 = vrot.slane %v5610, 1
        %v5613 = vor.u32 %v5608, %v5612
        %v5614 = vsel %vm458, %v5613, %v4151
        %v5615 = vshrl.u32 %v4059, 16
        %v5618 = vshrl.u32 %v5538, 16
        %v5620 = vshll.u32 %v5538, 16
        %v5622 = vrot.slane %v5620, 1
        %v5623 = vor.u32 %v5618, %v5622
        %v5624 = vsel %vm458, %v5623, %v4163
        %v5625 = vshrl.u32 %v4060, 16
        %v5628 = vshrl.u32 %v5539, 16
        %v5630 = vshll.u32 %v5539, 16
        %v5632 = vrot.slane %v5630, 1
        %v5633 = vor.u32 %v5628, %v5632
        %v5634 = vsel %vm458, %v5633, %v4175
        %v5635 = vshrl.u32 %v4061, 16
        %v5638 = vshrl.u32 %v5540, 16
        %v5640 = vshll.u32 %v5540, 16
        %v5642 = vrot.slane %v5640, 1
        %v5643 = vor.u32 %v5638, %v5642
        %v5644 = vsel %vm458, %v5643, %v4187
        %v5645 = vshrl.u32 %v4062, 16
        %v5648 = vshrl.u32 %v5541, 16
        %v5650 = vshll.u32 %v5541, 16
        %v5652 = vrot.slane %v5650, 1
        %v5653 = vor.u32 %v5648, %v5652
        %v5654 = vsel %vm458, %v5653, %v4199
        %v5655 = vshrl.u32 %v4063, 16
        %v5658 = vshrl.u32 %v5542, 16
        %v5660 = vshll.u32 %v5542, 16
        %v5662 = vrot.slane %v5660, 1
        %v5663 = vor.u32 %v5658, %v5662
        %v5664 = vsel %vm458, %v5663, %v4211
        %v5665 = vshrl.u32 %v4064, 16
        %v5668 = vshrl.u32 %v5543, 16
        %v5670 = vshll.u32 %v5543, 16
        %v5672 = vrot.slane %v5670, 1
        %v5673 = vor.u32 %v5668, %v5672
        %v5674 = vsel %vm458, %v5673, %v4223
        %v5675 = vshrl.u32 %v4065, 16
        %v5678 = vshrl.u32 %v5544, 16
        %v5680 = vshll.u32 %v5544, 16
        %v5682 = vrot.slane %v5680, 1
        %v5683 = vor.u32 %v5678, %v5682
        %v5684 = vsel %vm458, %v5683, %v4235
        %v5685 = vshrl.u32 %v4066, 16
        %v5688 = vshrl.u32 %v5545, 16
        %v5690 = vshll.u32 %v5545, 16
        %v5692 = vrot.slane %v5690, 1
        %v5693 = vor.u32 %v5688, %v5692
        %v5694 = vsel %vm458, %v5693, %v4247
        %v5695 = vshrl.u32 %v4067, 16
        %v5698 = vshrl.u32 %v5546, 16
        %v5700 = vshll.u32 %v5546, 16
        %v5702 = vrot.slane %v5700, 1
        %v5703 = vor.u32 %v5698, %v5702
        %v5704 = vsel %vm458, %v5703, %v4259
        %v5705 = vshrl.u32 %v4068, 16
        %5707 = vrot.lane.b32.xlu0 %v5554, 4
        %v5708 = vpop.permute.xlu0 %5707
        %5709 = vrot.lane.b32.xlu0 %v5555, 4
        %v5710 = vpop.permute.xlu0 %5709
        %5711 = vrot.lane.b32.xlu0 %v5564, 4
        %v5712 = vpop.permute.xlu0 %5711
        %5713 = vrot.lane.b32.xlu0 %v5565, 4
        %v5714 = vpop.permute.xlu0 %5713
        %5715 = vrot.lane.b32.xlu0 %v5574, 4
        %v5716 = vpop.permute.xlu0 %5715
        %5717 = vrot.lane.b32.xlu0 %v5575, 4
        %v5718 = vpop.permute.xlu0 %5717
        %5719 = vrot.lane.b32.xlu0 %v5584, 4
        %v5720 = vpop.permute.xlu0 %5719
        %5721 = vrot.lane.b32.xlu0 %v5585, 4
        %v5722 = vpop.permute.xlu0 %5721
        %5723 = vrot.lane.b32.xlu0 %v5594, 4
        %v5724 = vpop.permute.xlu0 %5723
        %5725 = vrot.lane.b32.xlu0 %v5595, 4
        %v5726 = vpop.permute.xlu0 %5725
        %5727 = vrot.lane.b32.xlu0 %v5604, 4
        %v5728 = vpop.permute.xlu0 %5727
        %5729 = vrot.lane.b32.xlu0 %v5605, 4
        %v5730 = vpop.permute.xlu0 %5729
        %5731 = vrot.lane.b32.xlu0 %v5614, 4
        %v5732 = vpop.permute.xlu0 %5731
        %5733 = vrot.lane.b32.xlu0 %v5615, 4
        %v5734 = vpop.permute.xlu0 %5733
        %5735 = vrot.lane.b32.xlu0 %v5624, 4
        %v5736 = vpop.permute.xlu0 %5735
        %5737 = vrot.lane.b32.xlu0 %v5625, 4
        %v5738 = vpop.permute.xlu0 %5737
        %5739 = vrot.lane.b32.xlu0 %v5634, 4
        %v5740 = vpop.permute.xlu0 %5739
        %5741 = vrot.lane.b32.xlu0 %v5635, 4
        %v5742 = vpop.permute.xlu0 %5741
        %5743 = vrot.lane.b32.xlu0 %v5644, 4
        %v5744 = vpop.permute.xlu0 %5743
        %5745 = vrot.lane.b32.xlu0 %v5645, 4
        %v5746 = vpop.permute.xlu0 %5745
        %5747 = vrot.lane.b32.xlu0 %v5654, 4
        %v5748 = vpop.permute.xlu0 %5747
        %5749 = vrot.lane.b32.xlu0 %v5655, 4
        %v5750 = vpop.permute.xlu0 %5749
        %5751 = vrot.lane.b32.xlu0 %v5664, 4
        %v5752 = vpop.permute.xlu0 %5751
        %5753 = vrot.lane.b32.xlu0 %v5665, 4
        %v5754 = vpop.permute.xlu0 %5753
        %5755 = vrot.lane.b32.xlu0 %v5674, 4
        %v5756 = vpop.permute.xlu0 %5755
        %5757 = vrot.lane.b32.xlu0 %v5675, 4
        %v5758 = vpop.permute.xlu0 %5757
        %5759 = vrot.lane.b32.xlu0 %v5684, 4
        %v5760 = vpop.permute.xlu0 %5759
        %5761 = vrot.lane.b32.xlu0 %v5685, 4
        %v5762 = vpop.permute.xlu0 %5761
        %5763 = vrot.lane.b32.xlu0 %v5694, 4
        %v5764 = vpop.permute.xlu0 %5763
        %5765 = vrot.lane.b32.xlu0 %v5695, 4
        %v5766 = vpop.permute.xlu0 %5765
        %5767 = vrot.lane.b32.xlu0 %v5704, 4
        %v5768 = vpop.permute.xlu0 %5767
        %5769 = vrot.lane.b32.xlu0 %v5705, 4
        %v5770 = vpop.permute.xlu0 %5769
        %5771 = vrot.lane.b32.xlu0 %v4437, 8
        %v5772 = vpop.permute.xlu0 %5771
        %5773 = vrot.lane.b32.xlu0 %v4438, 8
        %v5774 = vpop.permute.xlu0 %5773
        %5775 = vrot.lane.b32.xlu0 %v4439, 8
        %v5776 = vpop.permute.xlu0 %5775
        %5777 = vrot.lane.b32.xlu0 %v4440, 8
        %v5778 = vpop.permute.xlu0 %5777
        %5779 = vrot.lane.b32.xlu0 %v4441, 8
        %v5780 = vpop.permute.xlu0 %5779
        %5781 = vrot.lane.b32.xlu0 %v4442, 8
        %v5782 = vpop.permute.xlu0 %5781
        %5783 = vrot.lane.b32.xlu0 %v4443, 8
        %v5784 = vpop.permute.xlu0 %5783
        %5785 = vrot.lane.b32.xlu0 %v4444, 8
        %v5786 = vpop.permute.xlu0 %5785
        %5787 = vrot.lane.b32.xlu0 %v4445, 8
        %v5788 = vpop.permute.xlu0 %5787
        %5789 = vrot.lane.b32.xlu0 %v4446, 8
        %v5790 = vpop.permute.xlu0 %5789
        %5791 = vrot.lane.b32.xlu0 %v4447, 8
        %v5792 = vpop.permute.xlu0 %5791
        %5793 = vrot.lane.b32.xlu0 %v4448, 8
        %v5794 = vpop.permute.xlu0 %5793
        %5795 = vrot.lane.b32.xlu0 %v4449, 8
        %v5796 = vpop.permute.xlu0 %5795
        %5797 = vrot.lane.b32.xlu0 %v4450, 8
        %v5798 = vpop.permute.xlu0 %5797
        %5799 = vrot.lane.b32.xlu0 %v4451, 8
        %v5800 = vpop.permute.xlu0 %5799
        %5801 = vrot.lane.b32.xlu0 %v4452, 8
        %v5802 = vpop.permute.xlu0 %5801
        %v5819 = vunpack.c.l.b16 %v5483
        %v5820 = vunpack.c.l.b16 %v5484
        %v5821 = vunpack.c.l.b16 %v5485
        %v5822 = vunpack.c.l.b16 %v5486
        %v5823 = vunpack.c.l.b16 %v5487
        %v5824 = vunpack.c.l.b16 %v5488
        %v5825 = vunpack.c.l.b16 %v5489
        %v5826 = vunpack.c.l.b16 %v5490
        %v5827 = vunpack.c.l.b16 %v5491
        %v5828 = vunpack.c.l.b16 %v5492
        %v5829 = vunpack.c.l.b16 %v5493
        %v5830 = vunpack.c.l.b16 %v5494
        %v5831 = vunpack.c.l.b16 %v5495
        %v5832 = vunpack.c.l.b16 %v5496
        %v5833 = vunpack.c.l.b16 %v5497
        %v5834 = vunpack.c.l.b16 %v5498
        %v5835 = vpack.c.b16 %v4326, %v5819
        %v5836 = vpack.c.b16 %v4328, %v5820
        %v5837 = vpack.c.b16 %v4330, %v5821
        %v5838 = vpack.c.b16 %v4332, %v5822
        %v5839 = vpack.c.b16 %v4334, %v5823
        %v5840 = vpack.c.b16 %v4336, %v5824
        %v5841 = vpack.c.b16 %v4338, %v5825
        %v5842 = vpack.c.b16 %v4340, %v5826
        %v5843 = vpack.c.b16 %v4342, %v5827
        %v5844 = vpack.c.b16 %v4344, %v5828
        %v5845 = vpack.c.b16 %v4346, %v5829
        %v5846 = vpack.c.b16 %v4348, %v5830
        %v5847 = vpack.c.b16 %v4350, %v5831
        %v5848 = vpack.c.b16 %v4352, %v5832
        %v5849 = vpack.c.b16 %v4354, %v5833
        %v5850 = vpack.c.b16 %v4356, %v5834
        %v5852 = vshrl.u32 %v5835, 16
        %v5854 = vshll.u32 %v5835, 16
        %v5856 = vrot.slane %v5854, 1
        %v5857 = vor.u32 %v5852, %v5856
        %v5858 = vsel %vm458, %v5857, %v4463
        %v5859 = vshrl.u32 %v4437, 16
        %v5862 = vshrl.u32 %v5836, 16
        %v5864 = vshll.u32 %v5836, 16
        %v5866 = vrot.slane %v5864, 1
        %v5867 = vor.u32 %v5862, %v5866
        %v5868 = vsel %vm458, %v5867, %v4475
        %v5869 = vshrl.u32 %v4438, 16
        %v5872 = vshrl.u32 %v5837, 16
        %v5874 = vshll.u32 %v5837, 16
        %v5876 = vrot.slane %v5874, 1
        %v5877 = vor.u32 %v5872, %v5876
        %v5878 = vsel %vm458, %v5877, %v4487
        %v5879 = vshrl.u32 %v4439, 16
        %v5882 = vshrl.u32 %v5838, 16
        %v5884 = vshll.u32 %v5838, 16
        %v5886 = vrot.slane %v5884, 1
        %v5887 = vor.u32 %v5882, %v5886
        %v5888 = vsel %vm458, %v5887, %v4499
        %v5889 = vshrl.u32 %v4440, 16
        %v5892 = vshrl.u32 %v5839, 16
        %v5894 = vshll.u32 %v5839, 16
        %v5896 = vrot.slane %v5894, 1
        %v5897 = vor.u32 %v5892, %v5896
        %v5898 = vsel %vm458, %v5897, %v4511
        %v5899 = vshrl.u32 %v4441, 16
        %v5902 = vshrl.u32 %v5840, 16
        %v5904 = vshll.u32 %v5840, 16
        %v5906 = vrot.slane %v5904, 1
        %v5907 = vor.u32 %v5902, %v5906
        %v5908 = vsel %vm458, %v5907, %v4523
        %v5909 = vshrl.u32 %v4442, 16
        %v5912 = vshrl.u32 %v5841, 16
        %v5914 = vshll.u32 %v5841, 16
        %v5916 = vrot.slane %v5914, 1
        %v5917 = vor.u32 %v5912, %v5916
        %v5918 = vsel %vm458, %v5917, %v4535
        %v5919 = vshrl.u32 %v4443, 16
        %v5922 = vshrl.u32 %v5842, 16
        %v5924 = vshll.u32 %v5842, 16
        %v5926 = vrot.slane %v5924, 1
        %v5927 = vor.u32 %v5922, %v5926
        %v5928 = vsel %vm458, %v5927, %v4547
        %v5929 = vshrl.u32 %v4444, 16
        %v5932 = vshrl.u32 %v5843, 16
        %v5934 = vshll.u32 %v5843, 16
        %v5936 = vrot.slane %v5934, 1
        %v5937 = vor.u32 %v5932, %v5936
        %v5938 = vsel %vm458, %v5937, %v4559
        %v5939 = vshrl.u32 %v4445, 16
        %v5942 = vshrl.u32 %v5844, 16
        %v5944 = vshll.u32 %v5844, 16
        %v5946 = vrot.slane %v5944, 1
        %v5947 = vor.u32 %v5942, %v5946
        %v5948 = vsel %vm458, %v5947, %v4571
        %v5949 = vshrl.u32 %v4446, 16
        %v5952 = vshrl.u32 %v5845, 16
        %v5954 = vshll.u32 %v5845, 16
        %v5956 = vrot.slane %v5954, 1
        %v5957 = vor.u32 %v5952, %v5956
        %v5958 = vsel %vm458, %v5957, %v4583
        %v5959 = vshrl.u32 %v4447, 16
        %v5962 = vshrl.u32 %v5846, 16
        %v5964 = vshll.u32 %v5846, 16
        %v5966 = vrot.slane %v5964, 1
        %v5967 = vor.u32 %v5962, %v5966
        %v5968 = vsel %vm458, %v5967, %v4595
        %v5969 = vshrl.u32 %v4448, 16
        %v5972 = vshrl.u32 %v5847, 16
        %v5974 = vshll.u32 %v5847, 16
        %v5976 = vrot.slane %v5974, 1
        %v5977 = vor.u32 %v5972, %v5976
        %v5978 = vsel %vm458, %v5977, %v4607
        %v5979 = vshrl.u32 %v4449, 16
        %v5982 = vshrl.u32 %v5848, 16
        %v5984 = vshll.u32 %v5848, 16
        %v5986 = vrot.slane %v5984, 1
        %v5987 = vor.u32 %v5982, %v5986
        %v5988 = vsel %vm458, %v5987, %v4619
        %v5989 = vshrl.u32 %v4450, 16
        %v5992 = vshrl.u32 %v5849, 16
        %v5994 = vshll.u32 %v5849, 16
        %v5996 = vrot.slane %v5994, 1
        %v5997 = vor.u32 %v5992, %v5996
        %v5998 = vsel %vm458, %v5997, %v4631
        %v5999 = vshrl.u32 %v4451, 16
        %v6002 = vshrl.u32 %v5850, 16
        %v6004 = vshll.u32 %v5850, 16
        %v6006 = vrot.slane %v6004, 1
        %v6007 = vor.u32 %v6002, %v6006
        %v6008 = vsel %vm458, %v6007, %v4643
        %v6009 = vshrl.u32 %v4452, 16
        %6011 = vrot.lane.b32.xlu0 %v5858, 12
        %v6012 = vpop.permute.xlu0 %6011
        %6013 = vrot.lane.b32.xlu0 %v5859, 12
        %v6014 = vpop.permute.xlu0 %6013
        %6015 = vrot.lane.b32.xlu0 %v5868, 12
        %v6016 = vpop.permute.xlu0 %6015
        %6017 = vrot.lane.b32.xlu0 %v5869, 12
        %v6018 = vpop.permute.xlu0 %6017
        %6019 = vrot.lane.b32.xlu0 %v5878, 12
        %v6020 = vpop.permute.xlu0 %6019
        %6021 = vrot.lane.b32.xlu0 %v5879, 12
        %v6022 = vpop.permute.xlu0 %6021
        %6023 = vrot.lane.b32.xlu0 %v5888, 12
        %v6024 = vpop.permute.xlu0 %6023
        %6025 = vrot.lane.b32.xlu0 %v5889, 12
        %v6026 = vpop.permute.xlu0 %6025
        %6027 = vrot.lane.b32.xlu0 %v5898, 12
        %v6028 = vpop.permute.xlu0 %6027
        %6029 = vrot.lane.b32.xlu0 %v5899, 12
        %v6030 = vpop.permute.xlu0 %6029
        %6031 = vrot.lane.b32.xlu0 %v5908, 12
        %v6032 = vpop.permute.xlu0 %6031
        %6033 = vrot.lane.b32.xlu0 %v5909, 12
        %v6034 = vpop.permute.xlu0 %6033
        %6035 = vrot.lane.b32.xlu0 %v5918, 12
        %v6036 = vpop.permute.xlu0 %6035
        %6037 = vrot.lane.b32.xlu0 %v5919, 12
        %v6038 = vpop.permute.xlu0 %6037
        %6039 = vrot.lane.b32.xlu0 %v5928, 12
        %v6040 = vpop.permute.xlu0 %6039
        %6041 = vrot.lane.b32.xlu0 %v5929, 12
        %v6042 = vpop.permute.xlu0 %6041
        %6043 = vrot.lane.b32.xlu0 %v5938, 12
        %v6044 = vpop.permute.xlu0 %6043
        %6045 = vrot.lane.b32.xlu0 %v5939, 12
        %v6046 = vpop.permute.xlu0 %6045
        %6047 = vrot.lane.b32.xlu0 %v5948, 12
        %v6048 = vpop.permute.xlu0 %6047
        %6049 = vrot.lane.b32.xlu0 %v5949, 12
        %v6050 = vpop.permute.xlu0 %6049
        %6051 = vrot.lane.b32.xlu0 %v5958, 12
        %v6052 = vpop.permute.xlu0 %6051
        %6053 = vrot.lane.b32.xlu0 %v5959, 12
        %v6054 = vpop.permute.xlu0 %6053
        %6055 = vrot.lane.b32.xlu0 %v5968, 12
        %v6056 = vpop.permute.xlu0 %6055
        %6057 = vrot.lane.b32.xlu0 %v5969, 12
        %v6058 = vpop.permute.xlu0 %6057
        %6059 = vrot.lane.b32.xlu0 %v5978, 12
        %v6060 = vpop.permute.xlu0 %6059
        %6061 = vrot.lane.b32.xlu0 %v5979, 12
        %v6062 = vpop.permute.xlu0 %6061
        %6063 = vrot.lane.b32.xlu0 %v5988, 12
        %v6064 = vpop.permute.xlu0 %6063
        %6065 = vrot.lane.b32.xlu0 %v5989, 12
        %v6066 = vpop.permute.xlu0 %6065
        %6067 = vrot.lane.b32.xlu0 %v5998, 12
        %v6068 = vpop.permute.xlu0 %6067
        %6069 = vrot.lane.b32.xlu0 %v5999, 12
        %v6070 = vpop.permute.xlu0 %6069
        %6071 = vrot.lane.b32.xlu0 %v6008, 12
        %v6072 = vpop.permute.xlu0 %6071
        %6073 = vrot.lane.b32.xlu0 %v6009, 12
        %v6074 = vpop.permute.xlu0 %6073
        %v6076 = vsel %vm1067, %v4005, %v5708
        %v6078 = vsel %vm1067, %v4053, %v5710
        %v6080 = vsel %vm1067, %v4006, %v5712
        %v6082 = vsel %vm1067, %v4054, %v5714
        %v6084 = vsel %vm1067, %v4007, %v5716
        %v6086 = vsel %vm1067, %v4055, %v5718
        %v6088 = vsel %vm1067, %v4008, %v5720
        %v6090 = vsel %vm1067, %v4056, %v5722
        %v6092 = vsel %vm1067, %v4009, %v5724
        %v6094 = vsel %vm1067, %v4057, %v5726
        %v6096 = vsel %vm1067, %v4010, %v5728
        %v6098 = vsel %vm1067, %v4058, %v5730
        %v6100 = vsel %vm1067, %v4011, %v5732
        %v6102 = vsel %vm1067, %v4059, %v5734
        %v6104 = vsel %vm1067, %v4012, %v5736
        %v6106 = vsel %vm1067, %v4060, %v5738
        %v6108 = vsel %vm1067, %v4013, %v5740
        %v6110 = vsel %vm1067, %v4061, %v5742
        %v6112 = vsel %vm1067, %v4014, %v5744
        %v6114 = vsel %vm1067, %v4062, %v5746
        %v6116 = vsel %vm1067, %v4015, %v5748
        %v6118 = vsel %vm1067, %v4063, %v5750
        %v6120 = vsel %vm1067, %v4016, %v5752
        %v6122 = vsel %vm1067, %v4064, %v5754
        %v6124 = vsel %vm1067, %v4017, %v5756
        %v6126 = vsel %vm1067, %v4065, %v5758
        %v6128 = vsel %vm1067, %v4018, %v5760
        %v6130 = vsel %vm1067, %v4066, %v5762
        %v6132 = vsel %vm1067, %v4019, %v5764
        %v6134 = vsel %vm1067, %v4067, %v5766
        %v6136 = vsel %vm1067, %v4020, %v5768
        %v6138 = vsel %vm1067, %v4068, %v5770
        %v6139 = vsel %vm1100, %v6076, %v4374
        %v6141 = vsel %vm1100, %v6078, %v5772
        %v6142 = vsel %vm1100, %v6080, %v4376
        %v6144 = vsel %vm1100, %v6082, %v5774
        %v6145 = vsel %vm1100, %v6084, %v4378
        %v6147 = vsel %vm1100, %v6086, %v5776
        %v6148 = vsel %vm1100, %v6088, %v4380
        %v6150 = vsel %vm1100, %v6090, %v5778
        %v6151 = vsel %vm1100, %v6092, %v4382
        %v6153 = vsel %vm1100, %v6094, %v5780
        %v6154 = vsel %vm1100, %v6096, %v4384
        %v6156 = vsel %vm1100, %v6098, %v5782
        %v6157 = vsel %vm1100, %v6100, %v4386
        %v6159 = vsel %vm1100, %v6102, %v5784
        %v6160 = vsel %vm1100, %v6104, %v4388
        %v6162 = vsel %vm1100, %v6106, %v5786
        %v6163 = vsel %vm1100, %v6108, %v4390
        %v6165 = vsel %vm1100, %v6110, %v5788
        %v6166 = vsel %vm1100, %v6112, %v4392
        %v6168 = vsel %vm1100, %v6114, %v5790
        %v6169 = vsel %vm1100, %v6116, %v4394
        %v6171 = vsel %vm1100, %v6118, %v5792
        %v6172 = vsel %vm1100, %v6120, %v4396
        %v6174 = vsel %vm1100, %v6122, %v5794
        %v6175 = vsel %vm1100, %v6124, %v4398
        %v6177 = vsel %vm1100, %v6126, %v5796
        %v6178 = vsel %vm1100, %v6128, %v4400
        %v6180 = vsel %vm1100, %v6130, %v5798
        %v6181 = vsel %vm1100, %v6132, %v4402
        %v6183 = vsel %vm1100, %v6134, %v5800
        %v6184 = vsel %vm1100, %v6136, %v4404
        %v6186 = vsel %vm1100, %v6138, %v5802
        %v6188 = vsel %vm1133, %v6139, %v6012
        %v6190 = vsel %vm1133, %v6141, %v6014
        %v6192 = vsel %vm1133, %v6142, %v6016
        %v6194 = vsel %vm1133, %v6144, %v6018
        %v6196 = vsel %vm1133, %v6145, %v6020
        %v6198 = vsel %vm1133, %v6147, %v6022
        %v6200 = vsel %vm1133, %v6148, %v6024
        %v6202 = vsel %vm1133, %v6150, %v6026
        %v6204 = vsel %vm1133, %v6151, %v6028
        %v6206 = vsel %vm1133, %v6153, %v6030
        %v6208 = vsel %vm1133, %v6154, %v6032
        %v6210 = vsel %vm1133, %v6156, %v6034
        %v6212 = vsel %vm1133, %v6157, %v6036
        %v6214 = vsel %vm1133, %v6159, %v6038
        %v6216 = vsel %vm1133, %v6160, %v6040
        %v6218 = vsel %vm1133, %v6162, %v6042
        %v6220 = vsel %vm1133, %v6163, %v6044
        %v6222 = vsel %vm1133, %v6165, %v6046
        %v6224 = vsel %vm1133, %v6166, %v6048
        %v6226 = vsel %vm1133, %v6168, %v6050
        %v6228 = vsel %vm1133, %v6169, %v6052
        %v6230 = vsel %vm1133, %v6171, %v6054
        %v6232 = vsel %vm1133, %v6172, %v6056
        %v6234 = vsel %vm1133, %v6174, %v6058
        %v6236 = vsel %vm1133, %v6175, %v6060
        %v6238 = vsel %vm1133, %v6177, %v6062
        %v6240 = vsel %vm1133, %v6178, %v6064
        %v6242 = vsel %vm1133, %v6180, %v6066
        %v6244 = vsel %vm1133, %v6181, %v6068
        %v6246 = vsel %vm1133, %v6183, %v6070
        %v6248 = vsel %vm1133, %v6184, %v6072
        %v6250 = vsel %vm1133, %v6186, %v6074
        %v6251 = vshrl.u32 %v6188, 16
        %v6253 = vshll.u32 %v6188, 16
        %v6255 = vrot.slane %v6253, 1
        %v6256 = vor.u32 %v6251, %v6255
        %v6257 = vshll.u32 %v6190, 16
        %v6259 = vrot.slane %v6257, 1
        %v6260 = vsel %vm458, %v6256, %v6259
        %v6261 = vshrl.u32 %v6192, 16
        %v6263 = vshll.u32 %v6192, 16
        %v6265 = vrot.slane %v6263, 1
        %v6266 = vor.u32 %v6261, %v6265
        %v6267 = vshll.u32 %v6194, 16
        %v6269 = vrot.slane %v6267, 1
        %v6270 = vsel %vm458, %v6266, %v6269
        %v6271 = vshrl.u32 %v6196, 16
        %v6273 = vshll.u32 %v6196, 16
        %v6275 = vrot.slane %v6273, 1
        %v6276 = vor.u32 %v6271, %v6275
        %v6277 = vshll.u32 %v6198, 16
        %v6279 = vrot.slane %v6277, 1
        %v6280 = vsel %vm458, %v6276, %v6279
        %v6281 = vshrl.u32 %v6200, 16
        %v6283 = vshll.u32 %v6200, 16
        %v6285 = vrot.slane %v6283, 1
        %v6286 = vor.u32 %v6281, %v6285
        %v6287 = vshll.u32 %v6202, 16
        %v6289 = vrot.slane %v6287, 1
        %v6290 = vsel %vm458, %v6286, %v6289
        %v6291 = vshrl.u32 %v6204, 16
        %v6293 = vshll.u32 %v6204, 16
        %v6295 = vrot.slane %v6293, 1
        %v6296 = vor.u32 %v6291, %v6295
        %v6297 = vshll.u32 %v6206, 16
        %v6299 = vrot.slane %v6297, 1
        %v6300 = vsel %vm458, %v6296, %v6299
        %v6301 = vshrl.u32 %v6208, 16
        %v6303 = vshll.u32 %v6208, 16
        %v6305 = vrot.slane %v6303, 1
        %v6306 = vor.u32 %v6301, %v6305
        %v6307 = vshll.u32 %v6210, 16
        %v6309 = vrot.slane %v6307, 1
        %v6310 = vsel %vm458, %v6306, %v6309
        %v6311 = vshrl.u32 %v6212, 16
        %v6313 = vshll.u32 %v6212, 16
        %v6315 = vrot.slane %v6313, 1
        %v6316 = vor.u32 %v6311, %v6315
        %v6317 = vshll.u32 %v6214, 16
        %v6319 = vrot.slane %v6317, 1
        %v6320 = vsel %vm458, %v6316, %v6319
        %v6321 = vshrl.u32 %v6216, 16
        %v6323 = vshll.u32 %v6216, 16
        %v6325 = vrot.slane %v6323, 1
        %v6326 = vor.u32 %v6321, %v6325
        %v6327 = vshll.u32 %v6218, 16
        %v6329 = vrot.slane %v6327, 1
        %v6330 = vsel %vm458, %v6326, %v6329
        %v6331 = vshrl.u32 %v6220, 16
        %v6333 = vshll.u32 %v6220, 16
        %v6335 = vrot.slane %v6333, 1
        %v6336 = vor.u32 %v6331, %v6335
        %v6337 = vshll.u32 %v6222, 16
        %v6339 = vrot.slane %v6337, 1
        %v6340 = vsel %vm458, %v6336, %v6339
        %v6341 = vshrl.u32 %v6224, 16
        %v6343 = vshll.u32 %v6224, 16
        %v6345 = vrot.slane %v6343, 1
        %v6346 = vor.u32 %v6341, %v6345
        %v6347 = vshll.u32 %v6226, 16
        %v6349 = vrot.slane %v6347, 1
        %v6350 = vsel %vm458, %v6346, %v6349
        %v6351 = vshrl.u32 %v6228, 16
        %v6353 = vshll.u32 %v6228, 16
        %v6355 = vrot.slane %v6353, 1
        %v6356 = vor.u32 %v6351, %v6355
        %v6357 = vshll.u32 %v6230, 16
        %v6359 = vrot.slane %v6357, 1
        %v6360 = vsel %vm458, %v6356, %v6359
        %v6361 = vshrl.u32 %v6232, 16
        %v6363 = vshll.u32 %v6232, 16
        %v6365 = vrot.slane %v6363, 1
        %v6366 = vor.u32 %v6361, %v6365
        %v6367 = vshll.u32 %v6234, 16
        %v6369 = vrot.slane %v6367, 1
        %v6370 = vsel %vm458, %v6366, %v6369
        %v6371 = vshrl.u32 %v6236, 16
        %v6373 = vshll.u32 %v6236, 16
        %v6375 = vrot.slane %v6373, 1
        %v6376 = vor.u32 %v6371, %v6375
        %v6377 = vshll.u32 %v6238, 16
        %v6379 = vrot.slane %v6377, 1
        %v6380 = vsel %vm458, %v6376, %v6379
        %v6381 = vshrl.u32 %v6240, 16
        %v6383 = vshll.u32 %v6240, 16
        %v6385 = vrot.slane %v6383, 1
        %v6386 = vor.u32 %v6381, %v6385
        %v6387 = vshll.u32 %v6242, 16
        %v6389 = vrot.slane %v6387, 1
        %v6390 = vsel %vm458, %v6386, %v6389
        %v6391 = vshrl.u32 %v6244, 16
        %v6393 = vshll.u32 %v6244, 16
        %v6395 = vrot.slane %v6393, 1
        %v6396 = vor.u32 %v6391, %v6395
        %v6397 = vshll.u32 %v6246, 16
        %v6399 = vrot.slane %v6397, 1
        %v6400 = vsel %vm458, %v6396, %v6399
        %v6401 = vshrl.u32 %v6248, 16
        %v6403 = vshll.u32 %v6248, 16
        %v6405 = vrot.slane %v6403, 1
        %v6406 = vor.u32 %v6401, %v6405
        %v6407 = vshll.u32 %v6250, 16
        %v6409 = vrot.slane %v6407, 1
        %v6410 = vsel %vm458, %v6406, %v6409
        %s6411 = scalar_lea.vmem %s1, 24
        %v6412 = vld [vmem:[%s6411] sm:$0xf]
        %v6413 = vld [vmem:[%s6411 + $0x4] sm:$0xf]
        %v6416 = vunpack.c.l.b16 %v6412
        %v6417 = vunpack.c.l.b16 %v6413
        %v6418 = vpack.c.b16 %v6417, %v6416
        %v6421 = vsel %vm1180, %v6260, 0
        %v6424 = vsel %vm1180, %v6270, 0
        %v6427 = vsel %vm1180, %v6280, 0
        %v6430 = vsel %vm1180, %v6290, 0
        %v6433 = vsel %vm1180, %v6300, 0
        %v6436 = vsel %vm1180, %v6310, 0
        %v6439 = vsel %vm1180, %v6320, 0
        %v6442 = vsel %vm1180, %v6330, 0
        %v6445 = vsel %vm1180, %v6340, 0
        %v6448 = vsel %vm1180, %v6350, 0
        %v6451 = vsel %vm1180, %v6360, 0
        %v6454 = vsel %vm1180, %v6370, 0
        %v6457 = vsel %vm1180, %v6380, 0
        %v6460 = vsel %vm1180, %v6390, 0
        %v6463 = vsel %vm1180, %v6400, 0
        %v6466 = vsel %vm1180, %v6410, 0
        %6468 = vmatprep.subr.bf16.mxu0 0
        %6469 = vmatpush1.bf16.msra.mxu0 %v6418
        %6470 = vmatprep.subr.bf16.mxu0 0
        %6471 = vmatpush1.bf16.msra.mxu0 0
        %6472 = vmatprep.subr.bf16.mxu0 0
        %6473 = vmatpush1.bf16.msra.mxu0 0
        %6474 = vmatprep.subr.bf16.mxu0 0
        %6475 = vmatpush1.bf16.msra.mxu0 0
        %6476 = vmatprep.subr.bf16.mxu0 0
        %6477 = vmatpush1.bf16.msra.mxu0 0
        %6478 = vmatprep.subr.bf16.mxu0 0
        %6479 = vmatpush1.bf16.msra.mxu0 0
        %6480 = vmatprep.subr.bf16.mxu0 0
        %6481 = vmatpush1.bf16.msra.mxu0 0
        %6482 = vmatprep.subr.bf16.mxu0 0
        %6483 = vmatpush1.bf16.msra.mxu0 0
        %6484 = vmatprep.subr.bf16.mxu0 0
        %6485 = vmatpush1.bf16.msra.mxu0 0
        %6486 = vmatprep.subr.bf16.mxu0 0
        %6487 = vmatpush1.bf16.msra.mxu0 0
        %6488 = vmatprep.subr.bf16.mxu0 0
        %6489 = vmatpush1.bf16.msra.mxu0 0
        %6490 = vmatprep.subr.bf16.mxu0 0
        %6491 = vmatpush1.bf16.msra.mxu0 0
        %6492 = vmatprep.subr.bf16.mxu0 0
        %6493 = vmatpush1.bf16.msra.mxu0 0
        %6494 = vmatprep.subr.bf16.mxu0 0
        %6495 = vmatpush1.bf16.msra.mxu0 0
        %6496 = vmatprep.subr.bf16.mxu0 0
        %6497 = vmatpush1.bf16.msra.mxu0 0
        %6498 = vmatprep.subr.bf16.mxu0 0
        %6499 = vmatpush1.bf16.msra.mxu0 0
        %6500 = vmatprep.mubr.bf16.mxu0 0
        %6501 = vmatmul.mubr.bf16.gmra.mrb[0].mxu0 %v6421
        %v6502 = vpop.f32.mrb[0].mxu0
        %v6503 = vadd.f32 %v1172, %v6502
        %v6504 = vpop.f32.mrb[0].mxu0
        %v6505 = vpop.f32.mrb[0].mxu0
        %v6506 = vadd.f32 %v1172, %v6505
        %v6507 = vpop.f32.mrb[0].mxu0
        %6508 = vmatprep.mubr.bf16.mxu0 0
        %6509 = vmatmul.mubr.bf16.gmra.mrb[0].mxu0 %v6424
        %v6510 = vpop.f32.mrb[0].mxu0
        %v6511 = vadd.f32 %v1172, %v6510
        %v6512 = vpop.f32.mrb[0].mxu0
        %v6513 = vpop.f32.mrb[0].mxu0
        %v6514 = vadd.f32 %v1172, %v6513
        %v6515 = vpop.f32.mrb[0].mxu0
        %6516 = vmatprep.mubr.bf16.mxu0 0
        %6517 = vmatmul.mubr.bf16.gmra.mrb[0].mxu0 %v6427
        %v6518 = vpop.f32.mrb[0].mxu0
        %v6519 = vadd.f32 %v1172, %v6518
        %v6520 = vpop.f32.mrb[0].mxu0
        %v6521 = vpop.f32.mrb[0].mxu0
        %v6522 = vadd.f32 %v1172, %v6521
        %v6523 = vpop.f32.mrb[0].mxu0
        %6524 = vmatprep.mubr.bf16.mxu0 0
        %6525 = vmatmul.mubr.bf16.gmra.mrb[0].mxu0 %v6430
        %v6526 = vpop.f32.mrb[0].mxu0
        %v6527 = vadd.f32 %v1172, %v6526
        %v6528 = vpop.f32.mrb[0].mxu0
        %v6529 = vpop.f32.mrb[0].mxu0
        %v6530 = vadd.f32 %v1172, %v6529
        %v6531 = vpop.f32.mrb[0].mxu0
        %6532 = vmatprep.mubr.bf16.mxu0 0
        %6533 = vmatmul.mubr.bf16.gmra.mrb[0].mxu0 %v6433
        %v6534 = vpop.f32.mrb[0].mxu0
        %v6535 = vadd.f32 %v1172, %v6534
        %v6536 = vpop.f32.mrb[0].mxu0
        %v6537 = vpop.f32.mrb[0].mxu0
        %v6538 = vadd.f32 %v1172, %v6537
        %v6539 = vpop.f32.mrb[0].mxu0
        %6540 = vmatprep.mubr.bf16.mxu0 0
        %6541 = vmatmul.mubr.bf16.gmra.mrb[0].mxu0 %v6436
        %v6542 = vpop.f32.mrb[0].mxu0
        %v6543 = vadd.f32 %v1172, %v6542
        %v6544 = vpop.f32.mrb[0].mxu0
        %v6545 = vpop.f32.mrb[0].mxu0
        %v6546 = vadd.f32 %v1172, %v6545
        %v6547 = vpop.f32.mrb[0].mxu0
        %6548 = vmatprep.mubr.bf16.mxu0 0
        %6549 = vmatmul.mubr.bf16.gmra.mrb[0].mxu0 %v6439
        %v6550 = vpop.f32.mrb[0].mxu0
        %v6551 = vadd.f32 %v1172, %v6550
        %v6552 = vpop.f32.mrb[0].mxu0
        %v6553 = vpop.f32.mrb[0].mxu0
        %v6554 = vadd.f32 %v1172, %v6553
        %v6555 = vpop.f32.mrb[0].mxu0
        %6556 = vmatprep.mubr.bf16.mxu0 0
        %6557 = vmatmul.mubr.bf16.gmra.mrb[0].mxu0 %v6442
        %v6558 = vpop.f32.mrb[0].mxu0
        %v6559 = vadd.f32 %v1172, %v6558
        %v6560 = vpop.f32.mrb[0].mxu0
        %v6561 = vpop.f32.mrb[0].mxu0
        %v6562 = vadd.f32 %v1172, %v6561
        %v6563 = vpop.f32.mrb[0].mxu0
        %6564 = vmatprep.mubr.bf16.mxu0 0
        %6565 = vmatmul.mubr.bf16.gmra.mrb[0].mxu0 %v6445
        %v6566 = vpop.f32.mrb[0].mxu0
        %v6567 = vadd.f32 %v1172, %v6566
        %v6568 = vpop.f32.mrb[0].mxu0
        %v6569 = vpop.f32.mrb[0].mxu0
        %v6570 = vadd.f32 %v1172, %v6569
        %v6571 = vpop.f32.mrb[0].mxu0
        %6572 = vmatprep.mubr.bf16.mxu0 0
        %6573 = vmatmul.mubr.bf16.gmra.mrb[0].mxu0 %v6448
        %v6574 = vpop.f32.mrb[0].mxu0
        %v6575 = vadd.f32 %v1172, %v6574
        %v6576 = vpop.f32.mrb[0].mxu0
        %v6577 = vpop.f32.mrb[0].mxu0
        %v6578 = vadd.f32 %v1172, %v6577
        %v6579 = vpop.f32.mrb[0].mxu0
        %6580 = vmatprep.mubr.bf16.mxu0 0
        %6581 = vmatmul.mubr.bf16.gmra.mrb[0].mxu0 %v6451
        %v6582 = vpop.f32.mrb[0].mxu0
        %v6583 = vadd.f32 %v1172, %v6582
        %v6584 = vpop.f32.mrb[0].mxu0
        %v6585 = vpop.f32.mrb[0].mxu0
        %v6586 = vadd.f32 %v1172, %v6585
        %v6587 = vpop.f32.mrb[0].mxu0
        %6588 = vmatprep.mubr.bf16.mxu0 0
        %6589 = vmatmul.mubr.bf16.gmra.mrb[0].mxu0 %v6454
        %v6590 = vpop.f32.mrb[0].mxu0
        %v6591 = vadd.f32 %v1172, %v6590
        %v6592 = vpop.f32.mrb[0].mxu0
        %v6593 = vpop.f32.mrb[0].mxu0
        %v6594 = vadd.f32 %v1172, %v6593
        %v6595 = vpop.f32.mrb[0].mxu0
        %6596 = vmatprep.mubr.bf16.mxu0 0
        %6597 = vmatmul.mubr.bf16.gmra.mrb[0].mxu0 %v6457
        %v6598 = vpop.f32.mrb[0].mxu0
        %v6599 = vadd.f32 %v1172, %v6598
        %v6600 = vpop.f32.mrb[0].mxu0
        %v6601 = vpop.f32.mrb[0].mxu0
        %v6602 = vadd.f32 %v1172, %v6601
        %v6603 = vpop.f32.mrb[0].mxu0
        %6604 = vmatprep.mubr.bf16.mxu0 0
        %6605 = vmatmul.mubr.bf16.gmra.mrb[0].mxu0 %v6460
        %v6606 = vpop.f32.mrb[0].mxu0
        %v6607 = vadd.f32 %v1172, %v6606
        %v6608 = vpop.f32.mrb[0].mxu0
        %v6609 = vpop.f32.mrb[0].mxu0
        %v6610 = vadd.f32 %v1172, %v6609
        %v6611 = vpop.f32.mrb[0].mxu0
        %6612 = vmatprep.mubr.bf16.mxu0 0
        %6613 = vmatmul.mubr.bf16.gmra.mrb[0].mxu0 %v6463
        %v6614 = vpop.f32.mrb[0].mxu0
        %v6615 = vadd.f32 %v1172, %v6614
        %v6616 = vpop.f32.mrb[0].mxu0
        %v6617 = vpop.f32.mrb[0].mxu0
        %v6618 = vadd.f32 %v1172, %v6617
        %v6619 = vpop.f32.mrb[0].mxu0
        %6620 = vmatprep.mubr.bf16.mxu0 0
        %6621 = vmatmul.mubr.bf16.gmra.mrb[0].mxu0 %v6466
        %v6622 = vpop.f32.mrb[0].mxu0
        %v6623 = vadd.f32 %v1172, %v6622
        %v6624 = vpop.f32.mrb[0].mxu0
        %v6625 = vpop.f32.mrb[0].mxu0
        %v6626 = vadd.f32 %v1172, %v6625
        %v6627 = vpop.f32.mrb[0].mxu0
        %6628 = vdwg.mxu0
        %v6629 = vmin.f32 %v6503, 30.0
        %v6630 = vmin.f32 %v6506, 30.0
        %v6631 = vmin.f32 %v6511, 30.0
        %v6632 = vmin.f32 %v6514, 30.0
        %v6633 = vmin.f32 %v6519, 30.0
        %v6634 = vmin.f32 %v6522, 30.0
        %v6635 = vmin.f32 %v6527, 30.0
        %v6636 = vmin.f32 %v6530, 30.0
        %v6637 = vmin.f32 %v6535, 30.0
        %v6638 = vmin.f32 %v6538, 30.0
        %v6639 = vmin.f32 %v6543, 30.0
        %v6640 = vmin.f32 %v6546, 30.0
        %v6641 = vmin.f32 %v6551, 30.0
        %v6642 = vmin.f32 %v6554, 30.0
        %v6643 = vmin.f32 %v6559, 30.0
        %v6644 = vmin.f32 %v6562, 30.0
        %v6645 = vmin.f32 %v6567, 30.0
        %v6646 = vmin.f32 %v6570, 30.0
        %v6647 = vmin.f32 %v6575, 30.0
        %v6648 = vmin.f32 %v6578, 30.0
        %v6649 = vmin.f32 %v6583, 30.0
        %v6650 = vmin.f32 %v6586, 30.0
        %v6651 = vmin.f32 %v6591, 30.0
        %v6652 = vmin.f32 %v6594, 30.0
        %v6653 = vmin.f32 %v6599, 30.0
        %v6654 = vmin.f32 %v6602, 30.0
        %v6655 = vmin.f32 %v6607, 30.0
        %v6656 = vmin.f32 %v6610, 30.0
        %v6657 = vmin.f32 %v6615, 30.0
        %v6658 = vmin.f32 %v6618, 30.0
        %v6659 = vmin.f32 %v6623, 30.0
        %v6660 = vmin.f32 %v6626, 30.0
        %v6661 = vmul.f32 %v6629, 1.442695
        %v6662 = vpow.pop %v6661
        %v6663 = vmul.f32 %v6630, 1.442695
        %v6664 = vpow.pop %v6663
        %v6665 = vmul.f32 %v6631, 1.442695
        %v6666 = vpow.pop %v6665
        %v6667 = vmul.f32 %v6632, 1.442695
        %v6668 = vpow.pop %v6667
        %v6669 = vmul.f32 %v6633, 1.442695
        %v6670 = vpow.pop %v6669
        %v6671 = vmul.f32 %v6634, 1.442695
        %v6672 = vpow.pop %v6671
        %v6673 = vmul.f32 %v6635, 1.442695
        %v6674 = vpow.pop %v6673
        %v6675 = vmul.f32 %v6636, 1.442695
        %v6676 = vpow.pop %v6675
        %v6677 = vmul.f32 %v6637, 1.442695
        %v6678 = vpow.pop %v6677
        %v6679 = vmul.f32 %v6638, 1.442695
        %v6680 = vpow.pop %v6679
        %v6681 = vmul.f32 %v6639, 1.442695
        %v6682 = vpow.pop %v6681
        %v6683 = vmul.f32 %v6640, 1.442695
        %v6684 = vpow.pop %v6683
        %v6685 = vmul.f32 %v6641, 1.442695
        %v6686 = vpow.pop %v6685
        %v6687 = vmul.f32 %v6642, 1.442695
        %v6688 = vpow.pop %v6687
        %v6689 = vmul.f32 %v6643, 1.442695
        %v6690 = vpow.pop %v6689
        %v6691 = vmul.f32 %v6644, 1.442695
        %v6692 = vpow.pop %v6691
        %v6693 = vmul.f32 %v6645, 1.442695
        %v6694 = vpow.pop %v6693
        %v6695 = vmul.f32 %v6646, 1.442695
        %v6696 = vpow.pop %v6695
        %v6697 = vmul.f32 %v6647, 1.442695
        %v6698 = vpow.pop %v6697
        %v6699 = vmul.f32 %v6648, 1.442695
        %v6700 = vpow.pop %v6699
        %v6701 = vmul.f32 %v6649, 1.442695
        %v6702 = vpow.pop %v6701
        %v6703 = vmul.f32 %v6650, 1.442695
        %v6704 = vpow.pop %v6703
        %v6705 = vmul.f32 %v6651, 1.442695
        %v6706 = vpow.pop %v6705
        %v6707 = vmul.f32 %v6652, 1.442695
        %v6708 = vpow.pop %v6707
        %v6709 = vmul.f32 %v6653, 1.442695
        %v6710 = vpow.pop %v6709
        %v6711 = vmul.f32 %v6654, 1.442695
        %v6712 = vpow.pop %v6711
        %v6713 = vmul.f32 %v6655, 1.442695
        %v6714 = vpow.pop %v6713
        %v6715 = vmul.f32 %v6656, 1.442695
        %v6716 = vpow.pop %v6715
        %v6717 = vmul.f32 %v6657, 1.442695
        %v6718 = vpow.pop %v6717
        %v6719 = vmul.f32 %v6658, 1.442695
        %v6720 = vpow.pop %v6719
        %v6721 = vmul.f32 %v6659, 1.442695
        %v6722 = vpow.pop %v6721
        %v6723 = vmul.f32 %v6660, 1.442695
        %v6724 = vpow.pop %v6723
        %v6725 = vadd.f32 %v6662, 1.0
        %v6726 = vadd.f32 %v6664, 1.0
        %v6727 = vadd.f32 %v6666, 1.0
        %v6728 = vadd.f32 %v6668, 1.0
        %v6729 = vadd.f32 %v6670, 1.0
        %v6730 = vadd.f32 %v6672, 1.0
        %v6731 = vadd.f32 %v6674, 1.0
        %v6732 = vadd.f32 %v6676, 1.0
        %v6733 = vadd.f32 %v6678, 1.0
        %v6734 = vadd.f32 %v6680, 1.0
        %v6735 = vadd.f32 %v6682, 1.0
        %v6736 = vadd.f32 %v6684, 1.0
        %v6737 = vadd.f32 %v6686, 1.0
        %v6738 = vadd.f32 %v6688, 1.0
        %v6739 = vadd.f32 %v6690, 1.0
        %v6740 = vadd.f32 %v6692, 1.0
        %v6741 = vadd.f32 %v6694, 1.0
        %v6742 = vadd.f32 %v6696, 1.0
        %v6743 = vadd.f32 %v6698, 1.0
        %v6744 = vadd.f32 %v6700, 1.0
        %v6745 = vadd.f32 %v6702, 1.0
        %v6746 = vadd.f32 %v6704, 1.0
        %v6747 = vadd.f32 %v6706, 1.0
        %v6748 = vadd.f32 %v6708, 1.0
        %v6749 = vadd.f32 %v6710, 1.0
        %v6750 = vadd.f32 %v6712, 1.0
        %v6751 = vadd.f32 %v6714, 1.0
        %v6752 = vadd.f32 %v6716, 1.0
        %v6753 = vadd.f32 %v6718, 1.0
        %v6754 = vadd.f32 %v6720, 1.0
        %v6755 = vadd.f32 %v6722, 1.0
        %v6756 = vadd.f32 %v6724, 1.0
        %v6757 = vmul.f32 %v6725, %v6725
        %v6758 = vmul.f32 %v6726, %v6726
        %v6759 = vmul.f32 %v6727, %v6727
        %v6760 = vmul.f32 %v6728, %v6728
        %v6761 = vmul.f32 %v6729, %v6729
        %v6762 = vmul.f32 %v6730, %v6730
        %v6763 = vmul.f32 %v6731, %v6731
        %v6764 = vmul.f32 %v6732, %v6732
        %v6765 = vmul.f32 %v6733, %v6733
        %v6766 = vmul.f32 %v6734, %v6734
        %v6767 = vmul.f32 %v6735, %v6735
        %v6768 = vmul.f32 %v6736, %v6736
        %v6769 = vmul.f32 %v6737, %v6737
        %v6770 = vmul.f32 %v6738, %v6738
        %v6771 = vmul.f32 %v6739, %v6739
        %v6772 = vmul.f32 %v6740, %v6740
        %v6773 = vmul.f32 %v6741, %v6741
        %v6774 = vmul.f32 %v6742, %v6742
        %v6775 = vmul.f32 %v6743, %v6743
        %v6776 = vmul.f32 %v6744, %v6744
        %v6777 = vmul.f32 %v6745, %v6745
        %v6778 = vmul.f32 %v6746, %v6746
        %v6779 = vmul.f32 %v6747, %v6747
        %v6780 = vmul.f32 %v6748, %v6748
        %v6781 = vmul.f32 %v6749, %v6749
        %v6782 = vmul.f32 %v6750, %v6750
        %v6783 = vmul.f32 %v6751, %v6751
        %v6784 = vmul.f32 %v6752, %v6752
        %v6785 = vmul.f32 %v6753, %v6753
        %v6786 = vmul.f32 %v6754, %v6754
        %v6787 = vmul.f32 %v6755, %v6755
        %v6788 = vmul.f32 %v6756, %v6756
        %v6789 = vadd.f32 %v6757, 1.0
        %v6790 = vadd.f32 %v6758, 1.0
        %v6791 = vadd.f32 %v6759, 1.0
        %v6792 = vadd.f32 %v6760, 1.0
        %v6793 = vadd.f32 %v6761, 1.0
        %v6794 = vadd.f32 %v6762, 1.0
        %v6795 = vadd.f32 %v6763, 1.0
        %v6796 = vadd.f32 %v6764, 1.0
        %v6797 = vadd.f32 %v6765, 1.0
        %v6798 = vadd.f32 %v6766, 1.0
        %v6799 = vadd.f32 %v6767, 1.0
        %v6800 = vadd.f32 %v6768, 1.0
        %v6801 = vadd.f32 %v6769, 1.0
        %v6802 = vadd.f32 %v6770, 1.0
        %v6803 = vadd.f32 %v6771, 1.0
        %v6804 = vadd.f32 %v6772, 1.0
        %v6805 = vadd.f32 %v6773, 1.0
        %v6806 = vadd.f32 %v6774, 1.0
        %v6807 = vadd.f32 %v6775, 1.0
        %v6808 = vadd.f32 %v6776, 1.0
        %v6809 = vadd.f32 %v6777, 1.0
        %v6810 = vadd.f32 %v6778, 1.0
        %v6811 = vadd.f32 %v6779, 1.0
        %v6812 = vadd.f32 %v6780, 1.0
        %v6813 = vadd.f32 %v6781, 1.0
        %v6814 = vadd.f32 %v6782, 1.0
        %v6815 = vadd.f32 %v6783, 1.0
        %v6816 = vadd.f32 %v6784, 1.0
        %v6817 = vadd.f32 %v6785, 1.0
        %v6818 = vadd.f32 %v6786, 1.0
        %v6819 = vadd.f32 %v6787, 1.0
        %v6820 = vadd.f32 %v6788, 1.0
        %v6821 = vrcp.pop %v6789
        %v6822 = vrcp.pop %v6790
        %v6823 = vrcp.pop %v6791
        %v6824 = vrcp.pop %v6792
        %v6825 = vrcp.pop %v6793
        %v6826 = vrcp.pop %v6794
        %v6827 = vrcp.pop %v6795
        %v6828 = vrcp.pop %v6796
        %v6829 = vrcp.pop %v6797
        %v6830 = vrcp.pop %v6798
        %v6831 = vrcp.pop %v6799
        %v6832 = vrcp.pop %v6800
        %v6833 = vrcp.pop %v6801
        %v6834 = vrcp.pop %v6802
        %v6835 = vrcp.pop %v6803
        %v6836 = vrcp.pop %v6804
        %v6837 = vrcp.pop %v6805
        %v6838 = vrcp.pop %v6806
        %v6839 = vrcp.pop %v6807
        %v6840 = vrcp.pop %v6808
        %v6841 = vrcp.pop %v6809
        %v6842 = vrcp.pop %v6810
        %v6843 = vrcp.pop %v6811
        %v6844 = vrcp.pop %v6812
        %v6845 = vrcp.pop %v6813
        %v6846 = vrcp.pop %v6814
        %v6847 = vrcp.pop %v6815
        %v6848 = vrcp.pop %v6816
        %v6849 = vrcp.pop %v6817
        %v6850 = vrcp.pop %v6818
        %v6851 = vrcp.pop %v6819
        %v6852 = vrcp.pop %v6820
        %v6853 = vmul.f32 %v6821, 2.0
        %v6854 = vmul.f32 %v6822, 2.0
        %v6855 = vmul.f32 %v6823, 2.0
        %v6856 = vmul.f32 %v6824, 2.0
        %v6857 = vmul.f32 %v6825, 2.0
        %v6858 = vmul.f32 %v6826, 2.0
        %v6859 = vmul.f32 %v6827, 2.0
        %v6860 = vmul.f32 %v6828, 2.0
        %v6861 = vmul.f32 %v6829, 2.0
        %v6862 = vmul.f32 %v6830, 2.0
        %v6863 = vmul.f32 %v6831, 2.0
        %v6864 = vmul.f32 %v6832, 2.0
        %v6865 = vmul.f32 %v6833, 2.0
        %v6866 = vmul.f32 %v6834, 2.0
        %v6867 = vmul.f32 %v6835, 2.0
        %v6868 = vmul.f32 %v6836, 2.0
        %v6869 = vmul.f32 %v6837, 2.0
        %v6870 = vmul.f32 %v6838, 2.0
        %v6871 = vmul.f32 %v6839, 2.0
        %v6872 = vmul.f32 %v6840, 2.0
        %v6873 = vmul.f32 %v6841, 2.0
        %v6874 = vmul.f32 %v6842, 2.0
        %v6875 = vmul.f32 %v6843, 2.0
        %v6876 = vmul.f32 %v6844, 2.0
        %v6877 = vmul.f32 %v6845, 2.0
        %v6878 = vmul.f32 %v6846, 2.0
        %v6879 = vmul.f32 %v6847, 2.0
        %v6880 = vmul.f32 %v6848, 2.0
        %v6881 = vmul.f32 %v6849, 2.0
        %v6882 = vmul.f32 %v6850, 2.0
        %v6883 = vmul.f32 %v6851, 2.0
        %v6884 = vmul.f32 %v6852, 2.0
        %v6885 = vsub.f32 1.0, %v6853
        %v6886 = vsub.f32 1.0, %v6854
        %v6887 = vsub.f32 1.0, %v6855
        %v6888 = vsub.f32 1.0, %v6856
        %v6889 = vsub.f32 1.0, %v6857
        %v6890 = vsub.f32 1.0, %v6858
        %v6891 = vsub.f32 1.0, %v6859
        %v6892 = vsub.f32 1.0, %v6860
        %v6893 = vsub.f32 1.0, %v6861
        %v6894 = vsub.f32 1.0, %v6862
        %v6895 = vsub.f32 1.0, %v6863
        %v6896 = vsub.f32 1.0, %v6864
        %v6897 = vsub.f32 1.0, %v6865
        %v6898 = vsub.f32 1.0, %v6866
        %v6899 = vsub.f32 1.0, %v6867
        %v6900 = vsub.f32 1.0, %v6868
        %v6901 = vsub.f32 1.0, %v6869
        %v6902 = vsub.f32 1.0, %v6870
        %v6903 = vsub.f32 1.0, %v6871
        %v6904 = vsub.f32 1.0, %v6872
        %v6905 = vsub.f32 1.0, %v6873
        %v6906 = vsub.f32 1.0, %v6874
        %v6907 = vsub.f32 1.0, %v6875
        %v6908 = vsub.f32 1.0, %v6876
        %v6909 = vsub.f32 1.0, %v6877
        %v6910 = vsub.f32 1.0, %v6878
        %v6911 = vsub.f32 1.0, %v6879
        %v6912 = vsub.f32 1.0, %v6880
        %v6913 = vsub.f32 1.0, %v6881
        %v6914 = vsub.f32 1.0, %v6882
        %v6915 = vsub.f32 1.0, %v6883
        %v6916 = vsub.f32 1.0, %v6884
        %v6917 = vmul.f32 %v6503, %v6885
        %v6918 = vmul.f32 %v6506, %v6886
        %v6919 = vmul.f32 %v6511, %v6887
        %v6920 = vmul.f32 %v6514, %v6888
        %v6921 = vmul.f32 %v6519, %v6889
        %v6922 = vmul.f32 %v6522, %v6890
        %v6923 = vmul.f32 %v6527, %v6891
        %v6924 = vmul.f32 %v6530, %v6892
        %v6925 = vmul.f32 %v6535, %v6893
        %v6926 = vmul.f32 %v6538, %v6894
        %v6927 = vmul.f32 %v6543, %v6895
        %v6928 = vmul.f32 %v6546, %v6896
        %v6929 = vmul.f32 %v6551, %v6897
        %v6930 = vmul.f32 %v6554, %v6898
        %v6931 = vmul.f32 %v6559, %v6899
        %v6932 = vmul.f32 %v6562, %v6900
        %v6933 = vmul.f32 %v6567, %v6901
        %v6934 = vmul.f32 %v6570, %v6902
        %v6935 = vmul.f32 %v6575, %v6903
        %v6936 = vmul.f32 %v6578, %v6904
        %v6937 = vmul.f32 %v6583, %v6905
        %v6938 = vmul.f32 %v6586, %v6906
        %v6939 = vmul.f32 %v6591, %v6907
        %v6940 = vmul.f32 %v6594, %v6908
        %v6941 = vmul.f32 %v6599, %v6909
        %v6942 = vmul.f32 %v6602, %v6910
        %v6943 = vmul.f32 %v6607, %v6911
        %v6944 = vmul.f32 %v6610, %v6912
        %v6945 = vmul.f32 %v6615, %v6913
        %v6946 = vmul.f32 %v6618, %v6914
        %v6947 = vmul.f32 %v6623, %v6915
        %v6948 = vmul.f32 %v6626, %v6916
        %v6949 = vsel %vm1100, %v6917, 0.0
        %v6950 = vsel %vm1100, %v6918, 0.0
        %v6951 = vadd.f32 %v6949, %v6950
        %v6952 = vsel %vm1100, %v6919, 0.0
        %v6953 = vadd.f32 %v6951, %v6952
        %v6954 = vsel %vm1100, %v6920, 0.0
        %v6955 = vadd.f32 %v6953, %v6954
        %v6956 = vsel %vm1100, %v6921, 0.0
        %v6957 = vadd.f32 %v6955, %v6956
        %v6958 = vsel %vm1100, %v6922, 0.0
        %v6959 = vadd.f32 %v6957, %v6958
        %v6960 = vsel %vm1100, %v6923, 0.0
        %v6961 = vadd.f32 %v6959, %v6960
        %v6962 = vsel %vm1100, %v6924, 0.0
        %v6963 = vadd.f32 %v6961, %v6962
        %v6964 = vsel %vm1100, %v6925, 0.0
        %v6965 = vadd.f32 %v6963, %v6964
        %v6966 = vsel %vm1100, %v6926, 0.0
        %v6967 = vadd.f32 %v6965, %v6966
        %v6968 = vsel %vm1100, %v6927, 0.0
        %v6969 = vadd.f32 %v6967, %v6968
        %v6970 = vsel %vm1100, %v6928, 0.0
        %v6971 = vadd.f32 %v6969, %v6970
        %v6972 = vsel %vm1100, %v6929, 0.0
        %v6973 = vadd.f32 %v6971, %v6972
        %v6974 = vsel %vm1100, %v6930, 0.0
        %v6975 = vadd.f32 %v6973, %v6974
        %v6976 = vsel %vm1100, %v6931, 0.0
        %v6977 = vadd.f32 %v6975, %v6976
        %v6978 = vsel %vm1100, %v6932, 0.0
        %v6979 = vadd.f32 %v6977, %v6978
        %v6980 = vsel %vm1100, %v6933, 0.0
        %v6981 = vadd.f32 %v6979, %v6980
        %v6982 = vsel %vm1100, %v6934, 0.0
        %v6983 = vadd.f32 %v6981, %v6982
        %v6984 = vsel %vm1100, %v6935, 0.0
        %v6985 = vadd.f32 %v6983, %v6984
        %v6986 = vsel %vm1100, %v6936, 0.0
        %v6987 = vadd.f32 %v6985, %v6986
        %v6988 = vsel %vm1100, %v6937, 0.0
        %v6989 = vadd.f32 %v6987, %v6988
        %v6990 = vsel %vm1100, %v6938, 0.0
        %v6991 = vadd.f32 %v6989, %v6990
        %v6992 = vsel %vm1100, %v6939, 0.0
        %v6993 = vadd.f32 %v6991, %v6992
        %v6994 = vsel %vm1100, %v6940, 0.0
        %v6995 = vadd.f32 %v6993, %v6994
        %v6996 = vsel %vm1100, %v6941, 0.0
        %v6997 = vadd.f32 %v6995, %v6996
        %v6998 = vsel %vm1100, %v6942, 0.0
        %v6999 = vadd.f32 %v6997, %v6998
        %v7000 = vsel %vm1100, %v6943, 0.0
        %v7001 = vadd.f32 %v6999, %v7000
        %v7002 = vsel %vm1100, %v6944, 0.0
        %v7003 = vadd.f32 %v7001, %v7002
        %v7004 = vsel %vm1100, %v6945, 0.0
        %v7005 = vadd.f32 %v7003, %v7004
        %v7006 = vsel %vm1100, %v6946, 0.0
        %v7007 = vadd.f32 %v7005, %v7006
        %v7008 = vsel %vm1100, %v6947, 0.0
        %v7009 = vadd.f32 %v7007, %v7008
        %v7010 = vsel %vm1100, %v6948, 0.0
        %v7011 = vadd.f32 %v7009, %v7010
        %v7012 = vrot.slane %v7011, 4
        %v7013 = vadd.f32 %v7011, %v7012
        %v7014 = vrot.slane %v7013, 2
        %v7015 = vadd.f32 %v7013, %v7014
        %v7016 = vrot.slane %v7015, 1
        %v7017 = vadd.f32 %v7015, %v7016
        %v7018 = vadd.f32 %v5364, %v7017
        %v7019 = vmul.f32 %v6917, %v6917
        %v7020 = vmul.f32 %v6918, %v6918
        %v7021 = vmul.f32 %v6919, %v6919
        %v7022 = vmul.f32 %v6920, %v6920
        %v7023 = vmul.f32 %v6921, %v6921
        %v7024 = vmul.f32 %v6922, %v6922
        %v7025 = vmul.f32 %v6923, %v6923
        %v7026 = vmul.f32 %v6924, %v6924
        %v7027 = vmul.f32 %v6925, %v6925
        %v7028 = vmul.f32 %v6926, %v6926
        %v7029 = vmul.f32 %v6927, %v6927
        %v7030 = vmul.f32 %v6928, %v6928
        %v7031 = vmul.f32 %v6929, %v6929
        %v7032 = vmul.f32 %v6930, %v6930
        %v7033 = vmul.f32 %v6931, %v6931
        %v7034 = vmul.f32 %v6932, %v6932
        %v7035 = vmul.f32 %v6933, %v6933
        %v7036 = vmul.f32 %v6934, %v6934
        %v7037 = vmul.f32 %v6935, %v6935
        %v7038 = vmul.f32 %v6936, %v6936
        %v7039 = vmul.f32 %v6937, %v6937
        %v7040 = vmul.f32 %v6938, %v6938
        %v7041 = vmul.f32 %v6939, %v6939
        %v7042 = vmul.f32 %v6940, %v6940
        %v7043 = vmul.f32 %v6941, %v6941
        %v7044 = vmul.f32 %v6942, %v6942
        %v7045 = vmul.f32 %v6943, %v6943
        %v7046 = vmul.f32 %v6944, %v6944
        %v7047 = vmul.f32 %v6945, %v6945
        %v7048 = vmul.f32 %v6946, %v6946
        %v7049 = vmul.f32 %v6947, %v6947
        %v7050 = vmul.f32 %v6948, %v6948
        %v7051 = vsel %vm1100, %v7019, 0.0
        %v7052 = vsel %vm1100, %v7020, 0.0
        %v7053 = vadd.f32 %v7051, %v7052
        %v7054 = vsel %vm1100, %v7021, 0.0
        %v7055 = vadd.f32 %v7053, %v7054
        %v7056 = vsel %vm1100, %v7022, 0.0
        %v7057 = vadd.f32 %v7055, %v7056
        %v7058 = vsel %vm1100, %v7023, 0.0
        %v7059 = vadd.f32 %v7057, %v7058
        %v7060 = vsel %vm1100, %v7024, 0.0
        %v7061 = vadd.f32 %v7059, %v7060
        %v7062 = vsel %vm1100, %v7025, 0.0
        %v7063 = vadd.f32 %v7061, %v7062
        %v7064 = vsel %vm1100, %v7026, 0.0
        %v7065 = vadd.f32 %v7063, %v7064
        %v7066 = vsel %vm1100, %v7027, 0.0
        %v7067 = vadd.f32 %v7065, %v7066
        %v7068 = vsel %vm1100, %v7028, 0.0
        %v7069 = vadd.f32 %v7067, %v7068
        %v7070 = vsel %vm1100, %v7029, 0.0
        %v7071 = vadd.f32 %v7069, %v7070
        %v7072 = vsel %vm1100, %v7030, 0.0
        %v7073 = vadd.f32 %v7071, %v7072
        %v7074 = vsel %vm1100, %v7031, 0.0
        %v7075 = vadd.f32 %v7073, %v7074
        %v7076 = vsel %vm1100, %v7032, 0.0
        %v7077 = vadd.f32 %v7075, %v7076
        %v7078 = vsel %vm1100, %v7033, 0.0
        %v7079 = vadd.f32 %v7077, %v7078
        %v7080 = vsel %vm1100, %v7034, 0.0
        %v7081 = vadd.f32 %v7079, %v7080
        %v7082 = vsel %vm1100, %v7035, 0.0
        %v7083 = vadd.f32 %v7081, %v7082
        %v7084 = vsel %vm1100, %v7036, 0.0
        %v7085 = vadd.f32 %v7083, %v7084
        %v7086 = vsel %vm1100, %v7037, 0.0
        %v7087 = vadd.f32 %v7085, %v7086
        %v7088 = vsel %vm1100, %v7038, 0.0
        %v7089 = vadd.f32 %v7087, %v7088
        %v7090 = vsel %vm1100, %v7039, 0.0
        %v7091 = vadd.f32 %v7089, %v7090
        %v7092 = vsel %vm1100, %v7040, 0.0
        %v7093 = vadd.f32 %v7091, %v7092
        %v7094 = vsel %vm1100, %v7041, 0.0
        %v7095 = vadd.f32 %v7093, %v7094
        %v7096 = vsel %vm1100, %v7042, 0.0
        %v7097 = vadd.f32 %v7095, %v7096
        %v7098 = vsel %vm1100, %v7043, 0.0
        %v7099 = vadd.f32 %v7097, %v7098
        %v7100 = vsel %vm1100, %v7044, 0.0
        %v7101 = vadd.f32 %v7099, %v7100
        %v7102 = vsel %vm1100, %v7045, 0.0
        %v7103 = vadd.f32 %v7101, %v7102
        %v7104 = vsel %vm1100, %v7046, 0.0
        %v7105 = vadd.f32 %v7103, %v7104
        %v7106 = vsel %vm1100, %v7047, 0.0
        %v7107 = vadd.f32 %v7105, %v7106
        %v7108 = vsel %vm1100, %v7048, 0.0
        %v7109 = vadd.f32 %v7107, %v7108
        %v7110 = vsel %vm1100, %v7049, 0.0
        %v7111 = vadd.f32 %v7109, %v7110
        %v7112 = vsel %vm1100, %v7050, 0.0
        %v7113 = vadd.f32 %v7111, %v7112
        %v7114 = vrot.slane %v7113, 4
        %v7115 = vadd.f32 %v7113, %v7114
        %v7116 = vrot.slane %v7115, 2
        %v7117 = vadd.f32 %v7115, %v7116
        %v7118 = vrot.slane %v7117, 1
        %v7119 = vadd.f32 %v7117, %v7118
        %v7120 = vadd.f32 %v5466, %v7119
        %7153 = vrot.lane.b32.xlu0 %v6917, 8
        %v7154 = vpop.permute.xlu0 %7153
        %7155 = vrot.lane.b32.xlu0 %v6918, 8
        %v7156 = vpop.permute.xlu0 %7155
        %7157 = vrot.lane.b32.xlu0 %v6919, 8
        %v7158 = vpop.permute.xlu0 %7157
        %7159 = vrot.lane.b32.xlu0 %v6920, 8
        %v7160 = vpop.permute.xlu0 %7159
        %7161 = vrot.lane.b32.xlu0 %v6921, 8
        %v7162 = vpop.permute.xlu0 %7161
        %7163 = vrot.lane.b32.xlu0 %v6922, 8
        %v7164 = vpop.permute.xlu0 %7163
        %7165 = vrot.lane.b32.xlu0 %v6923, 8
        %v7166 = vpop.permute.xlu0 %7165
        %7167 = vrot.lane.b32.xlu0 %v6924, 8
        %v7168 = vpop.permute.xlu0 %7167
        %7169 = vrot.lane.b32.xlu0 %v6925, 8
        %v7170 = vpop.permute.xlu0 %7169
        %7171 = vrot.lane.b32.xlu0 %v6926, 8
        %v7172 = vpop.permute.xlu0 %7171
        %7173 = vrot.lane.b32.xlu0 %v6927, 8
        %v7174 = vpop.permute.xlu0 %7173
        %7175 = vrot.lane.b32.xlu0 %v6928, 8
        %v7176 = vpop.permute.xlu0 %7175
        %7177 = vrot.lane.b32.xlu0 %v6929, 8
        %v7178 = vpop.permute.xlu0 %7177
        %7179 = vrot.lane.b32.xlu0 %v6930, 8
        %v7180 = vpop.permute.xlu0 %7179
        %7181 = vrot.lane.b32.xlu0 %v6931, 8
        %v7182 = vpop.permute.xlu0 %7181
        %7183 = vrot.lane.b32.xlu0 %v6932, 8
        %v7184 = vpop.permute.xlu0 %7183
        %7185 = vrot.lane.b32.xlu0 %v6933, 8
        %v7186 = vpop.permute.xlu0 %7185
        %7187 = vrot.lane.b32.xlu0 %v6934, 8
        %v7188 = vpop.permute.xlu0 %7187
        %7189 = vrot.lane.b32.xlu0 %v6935, 8
        %v7190 = vpop.permute.xlu0 %7189
        %7191 = vrot.lane.b32.xlu0 %v6936, 8
        %v7192 = vpop.permute.xlu0 %7191
        %7193 = vrot.lane.b32.xlu0 %v6937, 8
        %v7194 = vpop.permute.xlu0 %7193
        %7195 = vrot.lane.b32.xlu0 %v6938, 8
        %v7196 = vpop.permute.xlu0 %7195
        %7197 = vrot.lane.b32.xlu0 %v6939, 8
        %v7198 = vpop.permute.xlu0 %7197
        %7199 = vrot.lane.b32.xlu0 %v6940, 8
        %v7200 = vpop.permute.xlu0 %7199
        %7201 = vrot.lane.b32.xlu0 %v6941, 8
        %v7202 = vpop.permute.xlu0 %7201
        %7203 = vrot.lane.b32.xlu0 %v6942, 8
        %v7204 = vpop.permute.xlu0 %7203
        %7205 = vrot.lane.b32.xlu0 %v6943, 8
        %v7206 = vpop.permute.xlu0 %7205
        %7207 = vrot.lane.b32.xlu0 %v6944, 8
        %v7208 = vpop.permute.xlu0 %7207
        %7209 = vrot.lane.b32.xlu0 %v6945, 8
        %v7210 = vpop.permute.xlu0 %7209
        %7211 = vrot.lane.b32.xlu0 %v6946, 8
        %v7212 = vpop.permute.xlu0 %7211
        %7213 = vrot.lane.b32.xlu0 %v6947, 8
        %v7214 = vpop.permute.xlu0 %7213
        %7215 = vrot.lane.b32.xlu0 %v6948, 8
        %v7216 = vpop.permute.xlu0 %7215
        %v7249 = vsel %vm1100, %v5263, %v7154
        %v7250 = vsel %vm1100, %v5264, %v7156
        %v7251 = vsel %vm1100, %v5265, %v7158
        %v7252 = vsel %vm1100, %v5266, %v7160
        %v7253 = vsel %vm1100, %v5267, %v7162
        %v7254 = vsel %vm1100, %v5268, %v7164
        %v7255 = vsel %vm1100, %v5269, %v7166
        %v7256 = vsel %vm1100, %v5270, %v7168
        %v7257 = vsel %vm1100, %v5271, %v7170
        %v7258 = vsel %vm1100, %v5272, %v7172
        %v7259 = vsel %vm1100, %v5273, %v7174
        %v7260 = vsel %vm1100, %v5274, %v7176
        %v7261 = vsel %vm1100, %v5275, %v7178
        %v7262 = vsel %vm1100, %v5276, %v7180
        %v7263 = vsel %vm1100, %v5277, %v7182
        %v7264 = vsel %vm1100, %v5278, %v7184
        %v7265 = vsel %vm1100, %v5279, %v7186
        %v7266 = vsel %vm1100, %v5280, %v7188
        %v7267 = vsel %vm1100, %v5281, %v7190
        %v7268 = vsel %vm1100, %v5282, %v7192
        %v7269 = vsel %vm1100, %v5283, %v7194
        %v7270 = vsel %vm1100, %v5284, %v7196
        %v7271 = vsel %vm1100, %v5285, %v7198
        %v7272 = vsel %vm1100, %v5286, %v7200
        %v7273 = vsel %vm1100, %v5287, %v7202
        %v7274 = vsel %vm1100, %v5288, %v7204
        %v7275 = vsel %vm1100, %v5289, %v7206
        %v7276 = vsel %vm1100, %v5290, %v7208
        %v7277 = vsel %vm1100, %v5291, %v7210
        %v7278 = vsel %vm1100, %v5292, %v7212
        %v7279 = vsel %vm1100, %v5293, %v7214
        %v7280 = vsel %vm1100, %v5294, %v7216
        %v7281 = vpack.c.bf16 %v7250, %v7249
        %v7282 = vpack.c.bf16 %v7252, %v7251
        %v7283 = vpack.c.bf16 %v7254, %v7253
        %v7284 = vpack.c.bf16 %v7256, %v7255
        %v7285 = vpack.c.bf16 %v7258, %v7257
        %v7286 = vpack.c.bf16 %v7260, %v7259
        %v7287 = vpack.c.bf16 %v7262, %v7261
        %v7288 = vpack.c.bf16 %v7264, %v7263
        %v7289 = vpack.c.bf16 %v7266, %v7265
        %v7290 = vpack.c.bf16 %v7268, %v7267
        %v7291 = vpack.c.bf16 %v7270, %v7269
        %v7292 = vpack.c.bf16 %v7272, %v7271
        %v7293 = vpack.c.bf16 %v7274, %v7273
        %v7294 = vpack.c.bf16 %v7276, %v7275
        %v7295 = vpack.c.bf16 %v7278, %v7277
        %v7296 = vpack.c.bf16 %v7280, %v7279
        %v7313 = vunpack.c.l.b16 %v7281
        %v7314 = vunpack.c.h.b16 %v7281
        %v7315 = vunpack.c.l.b16 %v7282
        %v7316 = vunpack.c.h.b16 %v7282
        %v7317 = vunpack.c.l.b16 %v7283
        %v7318 = vunpack.c.h.b16 %v7283
        %v7319 = vunpack.c.l.b16 %v7284
        %v7320 = vunpack.c.h.b16 %v7284
        %v7321 = vunpack.c.l.b16 %v7285
        %v7322 = vunpack.c.h.b16 %v7285
        %v7323 = vunpack.c.l.b16 %v7286
        %v7324 = vunpack.c.h.b16 %v7286
        %v7325 = vunpack.c.l.b16 %v7287
        %v7326 = vunpack.c.h.b16 %v7287
        %v7327 = vunpack.c.l.b16 %v7288
        %v7328 = vunpack.c.h.b16 %v7288
        %v7329 = vunpack.c.l.b16 %v7289
        %v7330 = vunpack.c.h.b16 %v7289
        %v7331 = vunpack.c.l.b16 %v7290
        %v7332 = vunpack.c.h.b16 %v7290
        %v7333 = vunpack.c.l.b16 %v7291
        %v7334 = vunpack.c.h.b16 %v7291
        %v7335 = vunpack.c.l.b16 %v7292
        %v7336 = vunpack.c.h.b16 %v7292
        %v7337 = vunpack.c.l.b16 %v7293
        %v7338 = vunpack.c.h.b16 %v7293
        %v7339 = vunpack.c.l.b16 %v7294
        %v7340 = vunpack.c.h.b16 %v7294
        %v7341 = vunpack.c.l.b16 %v7295
        %v7342 = vunpack.c.h.b16 %v7295
        %v7343 = vunpack.c.l.b16 %v7296
        %v7344 = vunpack.c.h.b16 %v7296
        %v7345 = vpack.c.b16 %v7313, %v7313
        %v7346 = vpack.c.b16 %v7314, %v7314
        %v7347 = vpack.c.b16 %v7315, %v7315
        %v7348 = vpack.c.b16 %v7316, %v7316
        %v7349 = vpack.c.b16 %v7317, %v7317
        %v7350 = vpack.c.b16 %v7318, %v7318
        %v7351 = vpack.c.b16 %v7319, %v7319
        %v7352 = vpack.c.b16 %v7320, %v7320
        %v7353 = vpack.c.b16 %v7321, %v7321
        %v7354 = vpack.c.b16 %v7322, %v7322
        %v7355 = vpack.c.b16 %v7323, %v7323
        %v7356 = vpack.c.b16 %v7324, %v7324
        %v7357 = vpack.c.b16 %v7325, %v7325
        %v7358 = vpack.c.b16 %v7326, %v7326
        %v7359 = vpack.c.b16 %v7327, %v7327
        %v7360 = vpack.c.b16 %v7328, %v7328
        %v7361 = vpack.c.b16 %v7329, %v7329
        %v7362 = vpack.c.b16 %v7330, %v7330
        %v7363 = vpack.c.b16 %v7331, %v7331
        %v7364 = vpack.c.b16 %v7332, %v7332
        %v7365 = vpack.c.b16 %v7333, %v7333
        %v7366 = vpack.c.b16 %v7334, %v7334
        %v7367 = vpack.c.b16 %v7335, %v7335
        %v7368 = vpack.c.b16 %v7336, %v7336
        %v7369 = vpack.c.b16 %v7337, %v7337
        %v7370 = vpack.c.b16 %v7338, %v7338
        %v7371 = vpack.c.b16 %v7339, %v7339
        %v7372 = vpack.c.b16 %v7340, %v7340
        %v7373 = vpack.c.b16 %v7341, %v7341
        %v7374 = vpack.c.b16 %v7342, %v7342
        %v7375 = vpack.c.b16 %v7343, %v7343
        %v7376 = vpack.c.b16 %v7344, %v7344
        %s7409 = scalar_lea.vmem %s210, 8 [#allocation2]
        %7410 = vst.msk [vmem:[%s7409] sm:$0xf] %vm3808, %v7345
        %7411 = vst.msk [vmem:[%s7409 + $0x4] sm:$0xf] %vm3808, %v7346
        %7412 = vst.msk [vmem:[%s7409 + $0x10] sm:$0xf] %vm3808, %v7347
        %7413 = vst.msk [vmem:[%s7409 + $0x14] sm:$0xf] %vm3808, %v7348
        %7414 = vst.msk [vmem:[%s7409 + $0x20] sm:$0xf] %vm3808, %v7349
        %7415 = vst.msk [vmem:[%s7409 + $0x24] sm:$0xf] %vm3808, %v7350
        %7416 = vst.msk [vmem:[%s7409 + $0x30] sm:$0xf] %vm3808, %v7351
        %7417 = vst.msk [vmem:[%s7409 + $0x34] sm:$0xf] %vm3808, %v7352
        %7418 = vst.msk [vmem:[%s7409 + $0x40] sm:$0xf] %vm3808, %v7353
        %7419 = vst.msk [vmem:[%s7409 + $0x44] sm:$0xf] %vm3808, %v7354
        %7420 = vst.msk [vmem:[%s7409 + $0x50] sm:$0xf] %vm3808, %v7355
        %7421 = vst.msk [vmem:[%s7409 + $0x54] sm:$0xf] %vm3808, %v7356
        %7422 = vst.msk [vmem:[%s7409 + $0x60] sm:$0xf] %vm3808, %v7357
        %7423 = vst.msk [vmem:[%s7409 + $0x64] sm:$0xf] %vm3808, %v7358
        %7424 = vst.msk [vmem:[%s7409 + $0x70] sm:$0xf] %vm3808, %v7359
        %7425 = vst.msk [vmem:[%s7409 + $0x74] sm:$0xf] %vm3808, %v7360
        %7426 = vst.msk [vmem:[%s7409 + $0x80] sm:$0xf] %vm3808, %v7361
        %7427 = vst.msk [vmem:[%s7409 + $0x84] sm:$0xf] %vm3808, %v7362
        %7428 = vst.msk [vmem:[%s7409 + $0x90] sm:$0xf] %vm3808, %v7363
        %7429 = vst.msk [vmem:[%s7409 + $0x94] sm:$0xf] %vm3808, %v7364
        %7430 = vst.msk [vmem:[%s7409 + $0xa0] sm:$0xf] %vm3808, %v7365
        %7431 = vst.msk [vmem:[%s7409 + $0xa4] sm:$0xf] %vm3808, %v7366
        %7432 = vst.msk [vmem:[%s7409 + $0xb0] sm:$0xf] %vm3808, %v7367
        %7433 = vst.msk [vmem:[%s7409 + $0xb4] sm:$0xf] %vm3808, %v7368
        %7434 = vst.msk [vmem:[%s7409 + $0xc0] sm:$0xf] %vm3808, %v7369
        %7435 = vst.msk [vmem:[%s7409 + $0xc4] sm:$0xf] %vm3808, %v7370
        %7436 = vst.msk [vmem:[%s7409 + $0xd0] sm:$0xf] %vm3808, %v7371
        %7437 = vst.msk [vmem:[%s7409 + $0xd4] sm:$0xf] %vm3808, %v7372
        %7438 = vst.msk [vmem:[%s7409 + $0xe0] sm:$0xf] %vm3808, %v7373
        %7439 = vst.msk [vmem:[%s7409 + $0xe4] sm:$0xf] %vm3808, %v7374
        %7440 = vst.msk [vmem:[%s7409 + $0xf0] sm:$0xf] %vm3808, %v7375
        %7441 = vst.msk [vmem:[%s7409 + $0xf4] sm:$0xf] %vm3808, %v7376
        %vm7442 = vcmask 1040384
        %v7443 = vsel %vm7442, %v7018, %v7120
        %vm7444 = vcmask 58368
        %7445 = vst.msk [vmem:[%s217] sm:$0x3] %vm7444, %v7443
        %s7446 = sand.u32 %s112, 1
        %s7447 = scalar_lea.sflag [#allocation3], %s7446
        %s7448 = sand.u32 %s112, 1
        %s7449 = smul.addr %s7448, 256
        %s7450 = scalar_lea.vmem [#allocation2], %s7449
        %s7451 = sand.u32 %s140, 1
        %s7452 = scalar_lea.sflag [#allocation5], %s7451
        %s7453 = sand.u32 %s140, 1
        %s7454 = smul.addr %s7453, 2
        %s7455 = scalar_lea.vmem [#allocation4], %s7454
        // Predicated region
        $region33: #{tpu_custom_call.1} parent=31 // pred_check
          %p7456 = pneg %p122
        $region34: #{tpu_custom_call.1} parent=31 // pred_check_branch
          %7458 = sbr.rel (%p7456) target = $region36
        $region35: #{tpu_custom_call.1} parent=31 // pred_region
          %s7459 = smul.u32 16, %s27
          %s7461 = ssub.s32 4096, 4096
          %7462 = vsyncadd %s7447, %s7461
          %s7463 = smul.addr %s7459, 4
          %s7464 = smul.addr %s26, 64
          %s7465 = sadd.s32 %s7463, %s7464
          %s7466 = smul.addr %s7465, 64
          %s7467 = scalar_lea.hbm %s3, %s7466
          %s7468 = sshll.u32 %s7450, 4
          %s7469 = int_to_ptr.vmem [resolvable:$true] %s7468
          %7474 = dma.vmem_to_hbm [thread:$0]  %s7469, 4096, %s7467, %s7447, 64, 64, 4
        $region36: #{tpu_custom_call.1} parent=31 // pred_fallthru
          _
        // Predicated region
        $region37: #{tpu_custom_call.1} parent=31 // pred_check
          %p7475 = pneg %p150
        $region38: #{tpu_custom_call.1} parent=31 // pred_check_branch
          %7477 = sbr.rel (%p7475) target = $region40
        $region39: #{tpu_custom_call.1} parent=31 // pred_region
          %s7479 = ssub.s32 32, 32
          %7480 = vsyncadd %s7452, %s7479
          %s7481 = sadd.s32 %s27, %s26
          %s7482 = smul.addr %s7481, 32
          %s7483 = scalar_lea.hbm %s4, %s7482
          %s7485 = sshll.u32 %s7455, 4
          %s7486 = int_to_ptr.vmem [resolvable:$true] %s7485
          %7488 = dma.vmem_to_hbm [thread:$0]  %s7486, 32, %s7483, %s7452
        $region40: #{tpu_custom_call.1} parent=31 // pred_fallthru
          _
      $region32: #{tpu_custom_call.1} parent=5 // pred_fallthru
        _
      %p7489 = scmp.le.s32.totalorder 2, %s17
      // Predicated region
      $region41: #{tpu_custom_call.1} parent=5 // pred_check
        %p7490 = pneg %p7489
      $region42: #{tpu_custom_call.1} parent=5 // pred_check_branch
        %7492 = sbr.rel (%p7490) target = $region44
      $region43: #{tpu_custom_call.1} parent=5 // pred_region
        %s7493 = ssub.s32 %s17, 2
        // Predicated region
        $region45: #{tpu_custom_call.1} parent=43 // pred_check
          %p7494 = pneg %p128
        $region46: #{tpu_custom_call.1} parent=43 // pred_check_branch
          %7496 = sbr.rel (%p7494) target = $region48
        $region47: #{tpu_custom_call.1} parent=43 // pred_region
          %s7497 = sand.u32 %s113, 1
          %s7498 = scalar_lea.sflag [#allocation3], %s7497
          %s7499 = sand.u32 %s113, 1
          %s7500 = smul.addr %s7499, 256
          %s7501 = scalar_lea.vmem [#allocation2], %s7500
          %7502 = dma.done %s7498, 4096
        $region48: #{tpu_custom_call.1} parent=43 // pred_fallthru
          _
        // Predicated region
        $region49: #{tpu_custom_call.1} parent=43 // pred_check
          %p7503 = pneg %p156
        $region50: #{tpu_custom_call.1} parent=43 // pred_check_branch
          %7505 = sbr.rel (%p7503) target = $region52
        $region51: #{tpu_custom_call.1} parent=43 // pred_region
          %s7506 = sand.u32 %s141, 1
          %s7507 = scalar_lea.sflag [#allocation5], %s7506
          %s7508 = sand.u32 %s141, 1
          %s7509 = smul.addr %s7508, 2
          %s7510 = scalar_lea.vmem [#allocation4], %s7509
          %7511 = dma.done %s7507, 32
        $region52: #{tpu_custom_call.1} parent=43 // pred_fallthru
          _
      $region44: #{tpu_custom_call.1} parent=5 // pred_fallthru
        _
    $region6: #{tpu_custom_call.1} parent=1 // loop_footer
      %s21 = sadd.s32 1, %s17
    $region7: #{tpu_custom_call.1} parent=1 // loop_footer_branch
      %16 = sbr.rel target = $region3
    $region8: #{tpu_custom_call.1} parent=1 // loop_exit
      _
    %7512 = vsyncpa [#allocation3], 1
    %s7513 = scalar_lea.sflag [#allocation3], 1
    %7514 = vsyncpa %s7513, 1
    %7515 = vsyncpa [#allocation5], 1
    %s7516 = scalar_lea.sflag [#allocation5], 1
    %7517 = vsyncpa %s7516, 1

</llo_original>
